<compile_context>
chip_gen: v7x
topology: tpu7x:2x2x1
jax: 0.10.0
libtpu: 0.0.40
codegen_flags: <defaults>
</compile_context>

<pallas_src>
import jax
import jax.numpy as jnp
from jax.experimental import pallas as pl
from jax.experimental.pallas import tpu as pltpu
import numpy as np


def final_attention_kernel(x_ref, wqkv_ref, bqkv_ref, wo_ref, bo_ref,
                           v_out_ref, a_out_ref):
    tb, hp = v_out_ref.shape                                        # hp = lane-padded H
    tsteps = a_out_ref.shape[1]

    x = x_ref[...]                                                   # (tb*T, D)

    # Fused Q/K/V projection: single MXU matmul, M = tb*T rows, N = 3*HP cols.
    qkv = jnp.dot(x, wqkv_ref[...], preferred_element_type=jnp.float32)
    qkv = qkv + bqkv_ref[...]                                        # (tb*T, 3*HP)
    qkv = qkv.reshape(tb, tsteps, 3 * hp)

    # Tile-aligned lane slices (offsets 0 / HP / 2*HP, HP a multiple of 128).
    q_cols = qkv[:, :, 0:hp]                                         # x@Wq + bq   (padded cols = 0)
    k_cols = qkv[:, :, hp:2 * hp]                                    # x@Wk + bk + b_in

    # q = Wq(mean_t x) + bq  ==  mean_t(x@Wq + bq)   (linearity of the mean)
    q = jnp.mean(q_cols, axis=1, keepdims=True)                      # (tb, 1, HP)

    h = jnp.tanh(q + k_cols)                                         # (tb, T, HP)  (EUP)

    # e = W_out(h) + b_out on VPU + XLU; padded columns of wo are zero.
    e = jnp.sum(h * wo_ref[...], axis=2) + bo_ref[0, 0]              # (tb, T)

    # --- sparsemax over T (sort-free, exact: support is a prefix of the sorted
    # order, so rank / cumsum-at-rank are recovered via >= comparisons) ---
    z = e - jnp.max(e, axis=1, keepdims=True)                        # (tb, T)
    zi = z[:, None, :]                                               # (tb, 1, T)
    zj = z[:, :, None]                                               # (tb, T, 1)
    ge = (zi >= zj).astype(jnp.float32)                              # ge[b,j,i] = z_i >= z_j
    r = jnp.sum(ge, axis=2)                                          # (tb, T) rank of z_j
    s_at = jnp.sum(ge * zi, axis=2)                                  # (tb, T) cumsum at rank of z_j
    support = (1.0 + r * z > s_at).astype(jnp.float32)               # (tb, T)
    ksup = jnp.sum(support, axis=1, keepdims=True)                   # (tb, 1), always >= 1
    ssum = jnp.sum(support * z, axis=1, keepdims=True)               # (tb, 1)
    tau = (ssum - 1.0) / ksup
    a = jnp.maximum(z - tau, 0.0)                                    # (tb, T)

    # V sliced late (shorter live range); weighted value v[b] = sum_t a[b,t]*v[b,t,:]
    v_cols = qkv[:, :, 2 * hp:]                                      # x@Wv + bv   (padded cols = 0)
    v_out_ref[...] = jnp.sum(a[:, :, None] * v_cols, axis=1)         # (tb, HP) lane-dense store
    a_out_ref[...] = a                                               # (tb, T)


def pack_params(params, lane=128):
    """One-time parameter packing (call at init, NOT per forward)."""
    D, H = params["Wq"].shape
    HP = ((H + lane - 1) // lane) * lane

    def padw(w):   # (D, H) -> (D, HP)
        return jnp.pad(w, ((0, 0), (0, HP - H)))

    def padb(b):   # (1, H) -> (1, HP)
        return jnp.pad(b, ((0, 0), (0, HP - H)))

    w_qkv = jnp.concatenate([padw(params["Wq"]), padw(params["Wk"]),
                             padw(params["Wv"])], axis=1)                       # (D, 3*HP)
    b_qkv = jnp.concatenate([padb(params["bq"]),
                             padb(params["bk"] + params["b_in"][0, 0]),          # fold b_in
                             padb(params["bv"])], axis=1)                        # (1, 3*HP)
    return {
        "w_qkv": w_qkv,
        "b_qkv": b_qkv,
        "wo": padb(params["Wout_w"]),                                            # (1, HP)
        "bo": params["Wout_b"],                                                  # (1, 1) scalar
        "H": H,
        "HP": HP,
        "D": D,
    }


def final_attention_qkv(x, packed, tb=None):
    """Forward pass.  tb=None -> whole batch in one grid step (best on v5e/v6e).
    On v7x, pass tb = B // 2 to give each TensorCore one block (grid=2)."""
    B, T, D = x.shape
    H, HP = packed["H"], packed["HP"]

    if tb is None:
        tb = B
    n_blocks = pl.cdiv(B, tb)
    Bp = n_blocks * tb
    if Bp != B:
        x = jnp.pad(x, ((0, Bp - B), (0, 0), (0, 0)))
    # Flatten (Bp, T, D) -> (Bp*T, D): each grid step sees one contiguous slab.
    x_flat = x.reshape(Bp * T, D)

    in_specs = [
        pl.BlockSpec((tb * T, D), lambda g: (g, 0)),            # x slab
        pl.BlockSpec((D, 3 * HP), lambda g: (0, 0)),            # fused W_qkv (constant block)
        pl.BlockSpec((1, 3 * HP), lambda g: (0, 0)),            # fused bias
        pl.BlockSpec((1, HP), lambda g: (0, 0)),                # W_out weight (lane-padded)
        pl.BlockSpec(memory_space=pltpu.MemorySpace.SMEM),      # W_out bias scalar
    ]
    out_specs = [
        pl.BlockSpec((tb, HP), lambda g: (g, 0)),               # lane-dense v_out slab
        pl.BlockSpec((tb, T), lambda g: (g, 0)),
    ]
    out_shape = [
        jax.ShapeDtypeStruct((Bp, HP), jnp.float32),
        jax.ShapeDtypeStruct((Bp, T), jnp.float32),
    ]

    v_out, a_out = pl.pallas_call(
        final_attention_kernel,
        grid=(n_blocks,),
        in_specs=in_specs,
        out_specs=out_specs,
        out_shape=out_shape,
        compiler_params=pltpu.CompilerParams(dimension_semantics=("parallel",)),
    )(x_flat, packed["w_qkv"], packed["b_qkv"], packed["wo"], packed["bo"])

    return v_out[:B, :H], a_out[:B]


# ----------------------- pure-JAX reference (for checking) -----------------------
def sparsemax_ref(e):
    z = e - jnp.max(e, axis=-1, keepdims=True)
    zs = jnp.sort(z, axis=-1)[..., ::-1]
    rng = jnp.arange(1, z.shape[-1] + 1, dtype=jnp.float32)
    cs = jnp.cumsum(zs, axis=-1)
    is_gt = (1.0 + rng * zs > cs).astype(jnp.float32)
    k = jnp.max(is_gt * rng, axis=-1, keepdims=True)
    tau = (jnp.sum(is_gt * zs, axis=-1, keepdims=True) - 1.0) / k
    return jnp.maximum(z - tau, 0.0)


def reference_forward(x, p):
    q = jnp.mean(x, axis=1) @ p["Wq"] + p["bq"][0]                    # (B, H)
    k = jnp.einsum("btd,dh->bth", x, p["Wk"]) + p["bk"][0]            # (B, T, H)
    v = jnp.einsum("btd,dh->bth", x, p["Wv"]) + p["bv"][0]            # (B, T, H)
    h = jnp.tanh(q[:, None, :] + k + p["b_in"][0, 0])                 # (B, T, H)
    e = jnp.einsum("bth,h->bt", h, p["Wout_w"][0]) + p["Wout_b"][0, 0]
    a = sparsemax_ref(e)
    out = jnp.einsum("bt,bth->bh", a, v)
    return out, a


# ----------------------------------- main -----------------------------------
if __name__ == "__main__":
    B, T, D, H = 32, 8, 32, 32     # batch, time, feature, attention hidden

    key = jax.random.PRNGKey(0)
    ks = jax.random.split(key, 10)

    def kaiming_uniform(k, shape, fan_in):
        bound = 1.0 / np.sqrt(fan_in)
        return jax.random.uniform(k, shape, jnp.float32, -bound, bound)

    params = {
        "Wq": kaiming_uniform(ks[0], (D, H), D),
        "bq": kaiming_uniform(ks[1], (1, H), D),
        "Wk": kaiming_uniform(ks[2], (D, H), D),
        "bk": kaiming_uniform(ks[3], (1, H), D),
        "Wv": kaiming_uniform(ks[4], (D, H), D),
        "bv": kaiming_uniform(ks[5], (1, H), D),
        "Wout_w": kaiming_uniform(ks[6], (1, H), H),
        "Wout_b": kaiming_uniform(ks[7], (1, 1), H),
        # b_in is zero-initialized in the module but learnable; use a nonzero
        # value to exercise the bias-folding path.
        "b_in": 0.1 * jax.random.normal(ks[8], (1, 1), jnp.float32),
    }

    # Hoisted out of the forward path: packed once at init time.
    packed = pack_params(params)
    packed = jax.tree_util.tree_map(
        lambda a: jax.block_until_ready(a) if isinstance(a, jax.Array) else a, packed)

    x = jax.random.normal(ks[9], (B, T, D), jnp.float32)

    # Default: grid=(1,) (whole batch per step) -- fastest on single-TC v5e/v6e.
    # On v7x, call with tb=B//2 to shard two blocks across the two TensorCores.
    v_out, a_out = final_attention_qkv(x, packed)
    jax.block_until_ready((v_out, a_out))

    v_ref, a_ref = reference_forward(x, params)
    np.testing.assert_allclose(np.asarray(a_out), np.asarray(a_ref), atol=1e-5, rtol=1e-5)
    np.testing.assert_allclose(np.asarray(v_out), np.asarray(v_ref), atol=1e-5, rtol=1e-5)

    print("KERNEL_OK")
</pallas_src>

<mosaic_0001>
module attributes {stable_mosaic.version = 11 : i64} {
  func.func @final_attention_kernel(%arg0: i32, %arg1: memref<256x32xf32, #tpu.memory_space<vmem>>, %arg2: memref<32x384xf32, #tpu.memory_space<vmem>>, %arg3: memref<1x384xf32, #tpu.memory_space<vmem>>, %arg4: memref<1x128xf32, #tpu.memory_space<vmem>>, %arg5: memref<1x1xf32, #tpu.memory_space<smem>>, %arg6: memref<32x128xf32, #tpu.memory_space<vmem>>, %arg7: memref<32x8xf32, #tpu.memory_space<vmem>>) attributes {dimension_semantics = [#tpu.dimension_semantics<parallel>], iteration_bounds = array<i64: 1>, scalar_prefetch = 0 : i64, scratch_operands = 0 : i64, tpu.core_type = #tpu.core_type<tc>, window_params = [{transform_indices = @transform_0, window_bounds = array<i64: 256, 32>}, {pipeline_mode = #tpu.pipeline_mode<synchronous>, transform_indices = @transform_1, window_bounds = array<i64: 32, 384>}, {pipeline_mode = #tpu.pipeline_mode<synchronous>, transform_indices = @transform_2, window_bounds = array<i64: 1, 384>}, {pipeline_mode = #tpu.pipeline_mode<synchronous>, transform_indices = @transform_3, window_bounds = array<i64: 1, 128>}, {transform_indices = @transform_4, window_bounds = array<i64: 1, 1>}, {transform_indices = @transform_5, window_bounds = array<i64: 32, 128>}, {transform_indices = @transform_6, window_bounds = array<i64: 32, 8>}]} {
    %c0 = arith.constant 0 : index
    %c0_0 = arith.constant 0 : index
    %0 = vector.load %arg1[%c0, %c0_0] : memref<256x32xf32, #tpu.memory_space<vmem>>, vector<256x32xf32>
    %c0_1 = arith.constant 0 : index
    %c0_2 = arith.constant 0 : index
    %1 = vector.load %arg2[%c0_1, %c0_2] : memref<32x384xf32, #tpu.memory_space<vmem>>, vector<32x384xf32>
    %cst = arith.constant dense<0.000000e+00> : vector<256x384xf32>
    %2 = tpu.matmul %0, %1, %cst {dimension_numbers = #tpu.dot_dimension_numbers<[1], [0], [0], [1], [0, 0, 1, 1], [], []>} : vector<256x32xf32>, vector<32x384xf32>, vector<256x384xf32> -> vector<256x384xf32>
    %c0_3 = arith.constant 0 : index
    %c0_4 = arith.constant 0 : index
    %3 = vector.load %arg3[%c0_3, %c0_4] : memref<1x384xf32, #tpu.memory_space<vmem>>, vector<1x384xf32>
    %4 = vector.broadcast %3 : vector<1x384xf32> to vector<256x384xf32>
    %5 = arith.addf %2, %4 : vector<256x384xf32>
    %6 = vector.shape_cast %5 : vector<256x384xf32> to vector<32x8x384xf32>
    %7 = vector.extract_strided_slice %6 {offsets = [0, 0, 0], sizes = [32, 8, 128], strides = [1, 1, 1]} : vector<32x8x384xf32> to vector<32x8x128xf32>
    %8 = vector.extract_strided_slice %6 {offsets = [0, 0, 128], sizes = [32, 8, 128], strides = [1, 1, 1]} : vector<32x8x384xf32> to vector<32x8x128xf32>
    %cst_5 = arith.constant dense<0.000000e+00> : vector<32x128xf32>
    %9 = vector.multi_reduction <add>, %7, %cst_5 [1] : vector<32x8x128xf32> to vector<32x128xf32>
    %10 = vector.shape_cast %9 : vector<32x128xf32> to vector<32x1x128xf32>
    %cst_6 = arith.constant 8.000000e+00 : f32
    %11 = vector.broadcast %cst_6 : f32 to vector<32x1x128xf32>
    %12 = arith.divf %10, %11 : vector<32x1x128xf32>
    %13 = vector.broadcast %12 : vector<32x1x128xf32> to vector<32x8x128xf32>
    %14 = arith.addf %13, %8 : vector<32x8x128xf32>
    %15 = math.tanh %14 : vector<32x8x128xf32>
    %c0_7 = arith.constant 0 : index
    %c0_8 = arith.constant 0 : index
    %16 = vector.load %arg4[%c0_7, %c0_8] : memref<1x128xf32, #tpu.memory_space<vmem>>, vector<1x128xf32>
    %17 = vector.shape_cast %16 : vector<1x128xf32> to vector<1x1x128xf32>
    %18 = vector.broadcast %17 : vector<1x1x128xf32> to vector<32x8x128xf32>
    %19 = arith.mulf %15, %18 : vector<32x8x128xf32>
    %cst_9 = arith.constant dense<0.000000e+00> : vector<32x8xf32>
    %20 = vector.multi_reduction <add>, %19, %cst_9 [2] : vector<32x8x128xf32> to vector<32x8xf32>
    %c0_10 = arith.constant 0 : index
    %c0_11 = arith.constant 0 : index
    %21 = memref.load %arg5[%c0_10, %c0_11] : memref<1x1xf32, #tpu.memory_space<smem>>
    %22 = vector.broadcast %21 : f32 to vector<32x8xf32>
    %23 = arith.addf %20, %22 : vector<32x8xf32>
    %cst_12 = arith.constant dense<0xFF800000> : vector<32xf32>
    %24 = vector.multi_reduction <maximumf>, %23, %cst_12 [1] : vector<32x8xf32> to vector<32xf32>
    %25 = vector.shape_cast %24 : vector<32xf32> to vector<32x1xf32>
    %26 = vector.broadcast %25 : vector<32x1xf32> to vector<32x8xf32>
    %27 = arith.subf %23, %26 : vector<32x8xf32>
    %28 = vector.shape_cast %27 : vector<32x8xf32> to vector<32x1x8xf32>
    %29 = vector.shape_cast %27 : vector<32x8xf32> to vector<32x8x1xf32>
    %30 = vector.broadcast %28 : vector<32x1x8xf32> to vector<32x8x8xf32>
    %31 = vector.broadcast %29 : vector<32x8x1xf32> to vector<32x8x8xf32>
    %32 = arith.cmpf oge, %30, %31 : vector<32x8x8xf32>
    %33 = arith.extui %32 : vector<32x8x8xi1> to vector<32x8x8xi32>
    %34 = arith.sitofp %33 : vector<32x8x8xi32> to vector<32x8x8xf32>
    %cst_13 = arith.constant dense<0.000000e+00> : vector<32x8xf32>
    %35 = vector.multi_reduction <add>, %34, %cst_13 [2] : vector<32x8x8xf32> to vector<32x8xf32>
    %36 = vector.broadcast %28 : vector<32x1x8xf32> to vector<32x8x8xf32>
    %37 = arith.mulf %34, %36 : vector<32x8x8xf32>
    %cst_14 = arith.constant dense<0.000000e+00> : vector<32x8xf32>
    %38 = vector.multi_reduction <add>, %37, %cst_14 [2] : vector<32x8x8xf32> to vector<32x8xf32>
    %39 = arith.mulf %35, %27 : vector<32x8xf32>
    %cst_15 = arith.constant 1.000000e+00 : f32
    %40 = vector.broadcast %cst_15 : f32 to vector<32x8xf32>
    %41 = arith.addf %40, %39 : vector<32x8xf32>
    %42 = arith.cmpf ogt, %41, %38 : vector<32x8xf32>
    %43 = arith.extui %42 : vector<32x8xi1> to vector<32x8xi32>
    %44 = arith.sitofp %43 : vector<32x8xi32> to vector<32x8xf32>
    %cst_16 = arith.constant dense<0.000000e+00> : vector<32xf32>
    %45 = vector.multi_reduction <add>, %44, %cst_16 [1] : vector<32x8xf32> to vector<32xf32>
    %46 = vector.shape_cast %45 : vector<32xf32> to vector<32x1xf32>
    %47 = arith.mulf %44, %27 : vector<32x8xf32>
    %cst_17 = arith.constant dense<0.000000e+00> : vector<32xf32>
    %48 = vector.multi_reduction <add>, %47, %cst_17 [1] : vector<32x8xf32> to vector<32xf32>
    %49 = vector.shape_cast %48 : vector<32xf32> to vector<32x1xf32>
    %cst_18 = arith.constant 1.000000e+00 : f32
    %50 = vector.broadcast %cst_18 : f32 to vector<32x1xf32>
    %51 = arith.subf %49, %50 : vector<32x1xf32>
    %52 = arith.divf %51, %46 : vector<32x1xf32>
    %53 = vector.broadcast %52 : vector<32x1xf32> to vector<32x8xf32>
    %54 = arith.subf %27, %53 : vector<32x8xf32>
    %cst_19 = arith.constant 0.000000e+00 : f32
    %55 = vector.broadcast %cst_19 : f32 to vector<32x8xf32>
    %56 = arith.maximumf %54, %55 : vector<32x8xf32>
    %57 = vector.extract_strided_slice %6 {offsets = [0, 0, 256], sizes = [32, 8, 128], strides = [1, 1, 1]} : vector<32x8x384xf32> to vector<32x8x128xf32>
    %58 = vector.shape_cast %56 : vector<32x8xf32> to vector<32x8x1xf32>
    %59 = vector.broadcast %58 : vector<32x8x1xf32> to vector<32x8x128xf32>
    %60 = arith.mulf %59, %57 : vector<32x8x128xf32>
    %cst_20 = arith.constant dense<0.000000e+00> : vector<32x128xf32>
    %61 = vector.multi_reduction <add>, %60, %cst_20 [1] : vector<32x8x128xf32> to vector<32x128xf32>
    %c0_21 = arith.constant 0 : index
    %c0_22 = arith.constant 0 : index
    %62 = vector.load %arg6[%c0_21, %c0_22] : memref<32x128xf32, #tpu.memory_space<vmem>>, vector<32x128xf32>
    tpu.vector_store %arg6[%c0_21, %c0_22], %61 {strides = array<i32>} : memref<32x128xf32, #tpu.memory_space<vmem>>, vector<32x128xf32>,
    %c0_23 = arith.constant 0 : index
    %c0_24 = arith.constant 0 : index
    %63 = vector.load %arg7[%c0_23, %c0_24] : memref<32x8xf32, #tpu.memory_space<vmem>>, vector<32x8xf32>
    tpu.vector_store %arg7[%c0_23, %c0_24], %56 {strides = array<i32>} : memref<32x8xf32, #tpu.memory_space<vmem>>, vector<32x8xf32>,
    return
  }
  func.func @transform_0(%arg0: i32) -> (i32, i32) {
    %c0_i32 = arith.constant 0 : i32
    %c0_i32_0 = arith.constant 0 : i32
    return %arg0, %c0_i32 : i32, i32
  }
  func.func @transform_1(%arg0: i32) -> (i32, i32) {
    %c0_i32 = arith.constant 0 : i32
    %c0_i32_0 = arith.constant 0 : i32
    %c0_i32_1 = arith.constant 0 : i32
    return %c0_i32, %c0_i32_0 : i32, i32
  }
  func.func @transform_2(%arg0: i32) -> (i32, i32) {
    %c0_i32 = arith.constant 0 : i32
    %c0_i32_0 = arith.constant 0 : i32
    %c0_i32_1 = arith.constant 0 : i32
    return %c0_i32, %c0_i32_0 : i32, i32
  }
  func.func @transform_3(%arg0: i32) -> (i32, i32) {
    %c0_i32 = arith.constant 0 : i32
    %c0_i32_0 = arith.constant 0 : i32
    %c0_i32_1 = arith.constant 0 : i32
    return %c0_i32, %c0_i32_0 : i32, i32
  }
  func.func @transform_4(%arg0: i32) -> (i32, i32) {
    %c0_i32 = arith.constant 0 : i32
    %c0_i32_0 = arith.constant 0 : i32
    %c0_i32_1 = arith.constant 0 : i32
    return %c0_i32, %c0_i32_0 : i32, i32
  }
  func.func @transform_5(%arg0: i32) -> (i32, i32) {
    %c0_i32 = arith.constant 0 : i32
    %c0_i32_0 = arith.constant 0 : i32
    return %arg0, %c0_i32 : i32, i32
  }
  func.func @transform_6(%arg0: i32) -> (i32, i32) {
    %c0_i32 = arith.constant 0 : i32
    %c0_i32_0 = arith.constant 0 : i32
    return %arg0, %c0_i32 : i32, i32
  }
}

</mosaic_0001>

<llo_original>
// kernel: tpu_custom_call.1
$region0: #{tpu_custom_call.1}
  #allocation0 [shape = 'u32[]', space=smem, size = 0x4, offset = 0x4, fixed_abs, tag = 'smem constant byte address 0x4 - core index']
  #allocation1 [shape = 'u32[144,128]{1,0:T(1,128)}', space=vmem, size = 0x12000, scoped, tag = 'internal scratch']
  #allocation2 [shape = 'f32[1,1]{1,0:T(1,128)S(6)}', space=smem, size = 0x200, scoped, tag = 'scoped memory for tpu_custom_call.1']
  %s0 = inlined_call_operand.vmem [shape: f32[256,32], index: 0, kind: input, shape index: {}]
  %s1 = inlined_call_operand.vmem [shape: f32[32,384], index: 1, kind: input, shape index: {}]
  %s2 = inlined_call_operand.vmem [shape: f32[1,384], index: 2, kind: input, shape index: {}]
  %s3 = inlined_call_operand.vmem [shape: f32[1,128], index: 3, kind: input, shape index: {}]
  %s4 = inlined_call_operand.<no memory space> [shape: f32[1,1], index: 4, kind: input, shape index: {}]
  %s5 = inlined_call_operand.hbm [shape: f32[32,128], index: 5, kind: output, shape index: {0}]
  %s6 = inlined_call_operand.vmem [shape: f32[32,8], index: 6, kind: output, shape index: {1}]
  %7 = xla_tuple %s5, %s6
  %s8 = sld [smem:[#allocation0]]
  $region38: #{tpu_custom_call.1} parent=0
    _
  %s10 = ssub.s32 1, %s8
  %s11 = scalar_select 0, %s10, %s8
  %12 = sst [smem:[#allocation2]] %s4
  $region1: #{tpu_custom_call.1} parent=0
    #allocation3 [shape = 'u8[16384]{0}', space=vmem, size = 0x4000, scoped, tag = 'output window, operand 0, single buffered']
    #allocation4 [shape = 's32[1]{0}', space=sflag, size = 0x4, scoped, tag = 'scoped memory for tpu_custom_call.1']
    %13 = vsyncpa [#allocation4], 0
    // Predicated region
    $region2: #{tpu_custom_call.1} parent=1 // pred_check
      _
    $region3: #{tpu_custom_call.1} parent=1 // pred_check_branch
      %15 = sbr.rel (0) target = $region5
    $region4: #{tpu_custom_call.1} parent=1 // pred_region
      _
    $region5: #{tpu_custom_call.1} parent=1 // pred_fallthru
      _
    // Predicated region
    $region6: #{tpu_custom_call.1} parent=1 // pred_check
      _
    $region7: #{tpu_custom_call.1} parent=1 // pred_check_branch
      %17 = sbr.rel (0) target = $region9
    $region8: #{tpu_custom_call.1} parent=1 // pred_region
      _
    $region9: #{tpu_custom_call.1} parent=1 // pred_fallthru
      _
    // Predicated region
    $region10: #{tpu_custom_call.1} parent=1 // pred_check
      _
    $region11: #{tpu_custom_call.1} parent=1 // pred_check_branch
      %19 = sbr.rel (0) target = $region13
    $region12: #{tpu_custom_call.1} parent=1 // pred_region
      _
    $region13: #{tpu_custom_call.1} parent=1 // pred_fallthru
      _
    // Predicated region
    $region14: #{tpu_custom_call.1} parent=1 // pred_check
      _
    $region15: #{tpu_custom_call.1} parent=1 // pred_check_branch
      %21 = sbr.rel (0) target = $region17
    $region16: #{tpu_custom_call.1} parent=1 // pred_region
      _
    $region17: #{tpu_custom_call.1} parent=1 // pred_fallthru
      _
    // Predicated region
    $region18: #{tpu_custom_call.1} parent=1 // pred_check
      _
    $region19: #{tpu_custom_call.1} parent=1 // pred_check_branch
      %23 = sbr.rel (0) target = $region21
    $region20: #{tpu_custom_call.1} parent=1 // pred_region
      _
    $region21: #{tpu_custom_call.1} parent=1 // pred_fallthru
      _
    %v24 = vld [vmem:[%s0] sm:$0xff]
    %v25 = vld [vmem:[%s0 + $0x8] sm:$0xff]
    %v26 = vld [vmem:[%s0 + $0x10] sm:$0xff]
    %v27 = vld [vmem:[%s0 + $0x18] sm:$0xff]
    %v28 = vld [vmem:[%s0 + $0x20] sm:$0xff]
    %v29 = vld [vmem:[%s0 + $0x28] sm:$0xff]
    %v30 = vld [vmem:[%s0 + $0x30] sm:$0xff]
    %v31 = vld [vmem:[%s0 + $0x38] sm:$0xff]
    %v32 = vld [vmem:[%s0 + $0x40] sm:$0xff]
    %v33 = vld [vmem:[%s0 + $0x48] sm:$0xff]
    %v34 = vld [vmem:[%s0 + $0x50] sm:$0xff]
    %v35 = vld [vmem:[%s0 + $0x58] sm:$0xff]
    %v36 = vld [vmem:[%s0 + $0x60] sm:$0xff]
    %v37 = vld [vmem:[%s0 + $0x68] sm:$0xff]
    %v38 = vld [vmem:[%s0 + $0x70] sm:$0xff]
    %v39 = vld [vmem:[%s0 + $0x78] sm:$0xff]
    %v40 = vld [vmem:[%s0 + $0x80] sm:$0xff]
    %v41 = vld [vmem:[%s0 + $0x88] sm:$0xff]
    %v42 = vld [vmem:[%s0 + $0x90] sm:$0xff]
    %v43 = vld [vmem:[%s0 + $0x98] sm:$0xff]
    %v44 = vld [vmem:[%s0 + $0xa0] sm:$0xff]
    %v45 = vld [vmem:[%s0 + $0xa8] sm:$0xff]
    %v46 = vld [vmem:[%s0 + $0xb0] sm:$0xff]
    %v47 = vld [vmem:[%s0 + $0xb8] sm:$0xff]
    %v48 = vld [vmem:[%s0 + $0xc0] sm:$0xff]
    %v49 = vld [vmem:[%s0 + $0xc8] sm:$0xff]
    %v50 = vld [vmem:[%s0 + $0xd0] sm:$0xff]
    %v51 = vld [vmem:[%s0 + $0xd8] sm:$0xff]
    %v52 = vld [vmem:[%s0 + $0xe0] sm:$0xff]
    %v53 = vld [vmem:[%s0 + $0xe8] sm:$0xff]
    %v54 = vld [vmem:[%s0 + $0xf0] sm:$0xff]
    %v55 = vld [vmem:[%s0 + $0xf8] sm:$0xff]
    %v56 = vld [vmem:[%s1] sm:$0xff]
    %v57 = vld [vmem:[%s1 + $0x8] sm:$0xff]
    %v58 = vld [vmem:[%s1 + $0x10] sm:$0xff]
    %v59 = vld [vmem:[%s1 + $0x18] sm:$0xff]
    %v60 = vld [vmem:[%s1 + $0x20] sm:$0xff]
    %v61 = vld [vmem:[%s1 + $0x28] sm:$0xff]
    %v62 = vld [vmem:[%s1 + $0x30] sm:$0xff]
    %v63 = vld [vmem:[%s1 + $0x38] sm:$0xff]
    %v64 = vld [vmem:[%s1 + $0x40] sm:$0xff]
    %v65 = vld [vmem:[%s1 + $0x48] sm:$0xff]
    %v66 = vld [vmem:[%s1 + $0x50] sm:$0xff]
    %v67 = vld [vmem:[%s1 + $0x58] sm:$0xff]
    %v68 = vld [vmem:[%s2] sm:$0x7]
    %v70 = vlaneseq
    %v71 = vshrl.u32 %v70, 7
    %v72 = vsub.s32 0, %v71
    %v73 = vrot.slane %v68, %v72
    %v74 = vlaneseq
    %v75 = vshrl.u32 %v74, 7
    %v76 = vsub.s32 1, %v75
    %v77 = vrot.slane %v68, %v76
    %v78 = vlaneseq
    %v79 = vshrl.u32 %v78, 7
    %v80 = vsub.s32 2, %v79
    %v81 = vrot.slane %v68, %v80
    %vm85 = vcmask 261120
    %v87 = vsel %vm85, %v24, 0
    %v90 = vsel %vm85, %v25, 0
    %v93 = vsel %vm85, %v26, 0
    %v96 = vsel %vm85, %v27, 0
    %v99 = vsel %vm85, %v28, 0
    %v102 = vsel %vm85, %v29, 0
    %v105 = vsel %vm85, %v30, 0
    %v108 = vsel %vm85, %v31, 0
    %v111 = vsel %vm85, %v32, 0
    %v114 = vsel %vm85, %v33, 0
    %v117 = vsel %vm85, %v34, 0
    %v120 = vsel %vm85, %v35, 0
    %v123 = vsel %vm85, %v36, 0
    %v126 = vsel %vm85, %v37, 0
    %v129 = vsel %vm85, %v38, 0
    %v132 = vsel %vm85, %v39, 0
    %v135 = vsel %vm85, %v40, 0
    %v138 = vsel %vm85, %v41, 0
    %v141 = vsel %vm85, %v42, 0
    %v144 = vsel %vm85, %v43, 0
    %v147 = vsel %vm85, %v44, 0
    %v150 = vsel %vm85, %v45, 0
    %v153 = vsel %vm85, %v46, 0
    %v156 = vsel %vm85, %v47, 0
    %v159 = vsel %vm85, %v48, 0
    %v162 = vsel %vm85, %v49, 0
    %v165 = vsel %vm85, %v50, 0
    %v168 = vsel %vm85, %v51, 0
    %v171 = vsel %vm85, %v52, 0
    %v174 = vsel %vm85, %v53, 0
    %v177 = vsel %vm85, %v54, 0
    %v180 = vsel %vm85, %v55, 0
    %182 = vmatprep.subr.mxu0 %v57
    %183 = vmatpush1.msra.mxu0 %v56
    %184 = vmatprep.subr.mxu0 %v60
    %185 = vmatpush1.msra.mxu0 %v59
    %186 = vmatprep.subr.mxu0 %v63
    %187 = vmatpush1.msra.mxu0 %v62
    %188 = vmatprep.subr.mxu0 %v66
    %189 = vmatpush1.msra.mxu0 %v65
    %190 = vmatprep.subr.mxu0 0.0
    %191 = vmatpush1.msra.mxu0 0.0
    %192 = vmatprep.subr.mxu0 0.0
    %193 = vmatpush1.msra.mxu0 0.0
    %194 = vmatprep.subr.mxu0 0.0
    %195 = vmatpush1.msra.mxu0 0.0
    %196 = vmatprep.subr.mxu0 0.0
    %197 = vmatpush1.msra.mxu0 0.0
    %198 = vmatprep.subr.mxu0 0.0
    %199 = vmatpush1.msra.mxu0 0.0
    %200 = vmatprep.subr.mxu0 0.0
    %201 = vmatpush1.msra.mxu0 0.0
    %202 = vmatprep.subr.mxu0 0.0
    %203 = vmatpush1.msra.mxu0 0.0
    %204 = vmatprep.subr.mxu0 0.0
    %205 = vmatpush1.msra.mxu0 0.0
    %206 = vmatprep.subr.mxu0 0.0
    %207 = vmatpush1.msra.mxu0 0.0
    %208 = vmatprep.subr.mxu0 0.0
    %209 = vmatpush1.msra.mxu0 0.0
    %210 = vmatprep.subr.mxu0 0.0
    %211 = vmatpush1.msra.mxu0 0.0
    %212 = vmatprep.subr.mxu0 0.0
    %213 = vmatpush1.msra.mxu0 0.0
    %214 = vmatprep.subr.mxu0 0.0
    %215 = vmatpush1.msra.mxu0 0.0
    %216 = vmatprep.subr.mxu0 0.0
    %217 = vmatpush1.msra.mxu0 0.0
    %218 = vmatprep.subr.mxu0 0.0
    %219 = vmatpush1.msra.mxu0 0.0
    %220 = vmatprep.subr.mxu0 0.0
    %221 = vmatpush1.msra.mxu0 0.0
    %222 = vmatprep.subr.mxu0 0.0
    %223 = vmatpush1.msra.mxu0 0.0
    %224 = vmatprep.subr.mxu0 0.0
    %225 = vmatpush1.msra.mxu0 0.0
    %226 = vmatprep.subr.mxu0 0.0
    %227 = vmatpush1.msra.mxu0 0.0
    %228 = vmatprep.subr.mxu0 0.0
    %229 = vmatpush1.msra.mxu0 0.0
    %230 = vmatprep.subr.mxu0 0.0
    %231 = vmatpush1.msra.mxu0 0.0
    %232 = vmatprep.subr.mxu0 0.0
    %233 = vmatpush1.msra.mxu0 0.0
    %234 = vmatprep.subr.mxu0 0.0
    %235 = vmatpush1.msra.mxu0 0.0
    %236 = vmatprep.subr.mxu0 0.0
    %237 = vmatpush1.msra.mxu0 0.0
    %238 = vmatprep.subr.mxu0 0.0
    %239 = vmatpush1.msra.mxu0 0.0
    %240 = vmatprep.subr.mxu0 0.0
    %241 = vmatpush1.msra.mxu0 0.0
    %242 = vmatprep.subr.mxu0 0.0
    %243 = vmatpush1.msra.mxu0 0.0
    %244 = vmatprep.subr.mxu0 0.0
    %245 = vmatpush1.msra.mxu0 0.0
    %246 = vmatprep.mubr.f32.mxu0 0.0
    %247 = vmatmul.mubr.f32.gmra.mrb[0].mxu0 %v87
    %v248 = vpop.f32.mrb[0].mxu0
    %v249 = vadd.f32 %v73, %v248
    %v250 = vpop.f32.mrb[0].mxu0
    %v251 = vadd.f32 %v77, %v250
    %252 = vmatprep.mubr.f32.mxu0 0.0
    %253 = vmatmul.mubr.f32.gmra.mrb[0].mxu0 %v90
    %v254 = vpop.f32.mrb[0].mxu0
    %v255 = vadd.f32 %v73, %v254
    %v256 = vpop.f32.mrb[0].mxu0
    %v257 = vadd.f32 %v77, %v256
    %258 = vmatprep.mubr.f32.mxu0 0.0
    %259 = vmatmul.mubr.f32.gmra.mrb[0].mxu0 %v93
    %v260 = vpop.f32.mrb[0].mxu0
    %v261 = vadd.f32 %v73, %v260
    %v262 = vpop.f32.mrb[0].mxu0
    %v263 = vadd.f32 %v77, %v262
    %264 = vmatprep.mubr.f32.mxu0 0.0
    %265 = vmatmul.mubr.f32.gmra.mrb[0].mxu0 %v96
    %v266 = vpop.f32.mrb[0].mxu0
    %v267 = vadd.f32 %v73, %v266
    %v268 = vpop.f32.mrb[0].mxu0
    %v269 = vadd.f32 %v77, %v268
    %270 = vmatprep.mubr.f32.mxu0 0.0
    %271 = vmatmul.mubr.f32.gmra.mrb[0].mxu0 %v99
    %v272 = vpop.f32.mrb[0].mxu0
    %v273 = vadd.f32 %v73, %v272
    %v274 = vpop.f32.mrb[0].mxu0
    %v275 = vadd.f32 %v77, %v274
    %276 = vmatprep.mubr.f32.mxu0 0.0
    %277 = vmatmul.mubr.f32.gmra.mrb[0].mxu0 %v102
    %v278 = vpop.f32.mrb[0].mxu0
    %v279 = vadd.f32 %v73, %v278
    %v280 = vpop.f32.mrb[0].mxu0
    %v281 = vadd.f32 %v77, %v280
    %282 = vmatprep.mubr.f32.mxu0 0.0
    %283 = vmatmul.mubr.f32.gmra.mrb[0].mxu0 %v105
    %v284 = vpop.f32.mrb[0].mxu0
    %v285 = vadd.f32 %v73, %v284
    %v286 = vpop.f32.mrb[0].mxu0
    %v287 = vadd.f32 %v77, %v286
    %288 = vmatprep.mubr.f32.mxu0 0.0
    %289 = vmatmul.mubr.f32.gmra.mrb[0].mxu0 %v108
    %v290 = vpop.f32.mrb[0].mxu0
    %v291 = vadd.f32 %v73, %v290
    %v292 = vpop.f32.mrb[0].mxu0
    %v293 = vadd.f32 %v77, %v292
    %294 = vmatprep.mubr.f32.mxu0 0.0
    %295 = vmatmul.mubr.f32.gmra.mrb[0].mxu0 %v111
    %v296 = vpop.f32.mrb[0].mxu0
    %v297 = vadd.f32 %v73, %v296
    %v298 = vpop.f32.mrb[0].mxu0
    %v299 = vadd.f32 %v77, %v298
    %300 = vmatprep.mubr.f32.mxu0 0.0
    %301 = vmatmul.mubr.f32.gmra.mrb[0].mxu0 %v114
    %v302 = vpop.f32.mrb[0].mxu0
    %v303 = vadd.f32 %v73, %v302
    %v304 = vpop.f32.mrb[0].mxu0
    %v305 = vadd.f32 %v77, %v304
    %306 = vmatprep.mubr.f32.mxu0 0.0
    %307 = vmatmul.mubr.f32.gmra.mrb[0].mxu0 %v117
    %v308 = vpop.f32.mrb[0].mxu0
    %v309 = vadd.f32 %v73, %v308
    %v310 = vpop.f32.mrb[0].mxu0
    %v311 = vadd.f32 %v77, %v310
    %312 = vmatprep.mubr.f32.mxu0 0.0
    %313 = vmatmul.mubr.f32.gmra.mrb[0].mxu0 %v120
    %v314 = vpop.f32.mrb[0].mxu0
    %v315 = vadd.f32 %v73, %v314
    %v316 = vpop.f32.mrb[0].mxu0
    %v317 = vadd.f32 %v77, %v316
    %318 = vmatprep.mubr.f32.mxu0 0.0
    %319 = vmatmul.mubr.f32.gmra.mrb[0].mxu0 %v123
    %v320 = vpop.f32.mrb[0].mxu0
    %v321 = vadd.f32 %v73, %v320
    %v322 = vpop.f32.mrb[0].mxu0
    %v323 = vadd.f32 %v77, %v322
    %324 = vmatprep.mubr.f32.mxu0 0.0
    %325 = vmatmul.mubr.f32.gmra.mrb[0].mxu0 %v126
    %v326 = vpop.f32.mrb[0].mxu0
    %v327 = vadd.f32 %v73, %v326
    %v328 = vpop.f32.mrb[0].mxu0
    %v329 = vadd.f32 %v77, %v328
    %330 = vmatprep.mubr.f32.mxu0 0.0
    %331 = vmatmul.mubr.f32.gmra.mrb[0].mxu0 %v129
    %v332 = vpop.f32.mrb[0].mxu0
    %v333 = vadd.f32 %v73, %v332
    %v334 = vpop.f32.mrb[0].mxu0
    %v335 = vadd.f32 %v77, %v334
    %336 = vmatprep.mubr.f32.mxu0 0.0
    %337 = vmatmul.mubr.f32.gmra.mrb[0].mxu0 %v132
    %v338 = vpop.f32.mrb[0].mxu0
    %v339 = vadd.f32 %v73, %v338
    %v340 = vpop.f32.mrb[0].mxu0
    %v341 = vadd.f32 %v77, %v340
    %342 = vmatprep.mubr.f32.mxu0 0.0
    %343 = vmatmul.mubr.f32.gmra.mrb[0].mxu0 %v135
    %v344 = vpop.f32.mrb[0].mxu0
    %v345 = vadd.f32 %v73, %v344
    %v346 = vpop.f32.mrb[0].mxu0
    %v347 = vadd.f32 %v77, %v346
    %348 = vmatprep.mubr.f32.mxu0 0.0
    %349 = vmatmul.mubr.f32.gmra.mrb[0].mxu0 %v138
    %v350 = vpop.f32.mrb[0].mxu0
    %v351 = vadd.f32 %v73, %v350
    %v352 = vpop.f32.mrb[0].mxu0
    %v353 = vadd.f32 %v77, %v352
    %354 = vmatprep.mubr.f32.mxu0 0.0
    %355 = vmatmul.mubr.f32.gmra.mrb[0].mxu0 %v141
    %v356 = vpop.f32.mrb[0].mxu0
    %v357 = vadd.f32 %v73, %v356
    %v358 = vpop.f32.mrb[0].mxu0
    %v359 = vadd.f32 %v77, %v358
    %360 = vmatprep.mubr.f32.mxu0 0.0
    %361 = vmatmul.mubr.f32.gmra.mrb[0].mxu0 %v144
    %v362 = vpop.f32.mrb[0].mxu0
    %v363 = vadd.f32 %v73, %v362
    %v364 = vpop.f32.mrb[0].mxu0
    %v365 = vadd.f32 %v77, %v364
    %366 = vmatprep.mubr.f32.mxu0 0.0
    %367 = vmatmul.mubr.f32.gmra.mrb[0].mxu0 %v147
    %v368 = vpop.f32.mrb[0].mxu0
    %v369 = vadd.f32 %v73, %v368
    %v370 = vpop.f32.mrb[0].mxu0
    %v371 = vadd.f32 %v77, %v370
    %372 = vmatprep.mubr.f32.mxu0 0.0
    %373 = vmatmul.mubr.f32.gmra.mrb[0].mxu0 %v150
    %v374 = vpop.f32.mrb[0].mxu0
    %v375 = vadd.f32 %v73, %v374
    %v376 = vpop.f32.mrb[0].mxu0
    %v377 = vadd.f32 %v77, %v376
    %378 = vmatprep.mubr.f32.mxu0 0.0
    %379 = vmatmul.mubr.f32.gmra.mrb[0].mxu0 %v153
    %v380 = vpop.f32.mrb[0].mxu0
    %v381 = vadd.f32 %v73, %v380
    %v382 = vpop.f32.mrb[0].mxu0
    %v383 = vadd.f32 %v77, %v382
    %384 = vmatprep.mubr.f32.mxu0 0.0
    %385 = vmatmul.mubr.f32.gmra.mrb[0].mxu0 %v156
    %v386 = vpop.f32.mrb[0].mxu0
    %v387 = vadd.f32 %v73, %v386
    %v388 = vpop.f32.mrb[0].mxu0
    %v389 = vadd.f32 %v77, %v388
    %390 = vmatprep.mubr.f32.mxu0 0.0
    %391 = vmatmul.mubr.f32.gmra.mrb[0].mxu0 %v159
    %v392 = vpop.f32.mrb[0].mxu0
    %v393 = vadd.f32 %v73, %v392
    %v394 = vpop.f32.mrb[0].mxu0
    %v395 = vadd.f32 %v77, %v394
    %396 = vmatprep.mubr.f32.mxu0 0.0
    %397 = vmatmul.mubr.f32.gmra.mrb[0].mxu0 %v162
    %v398 = vpop.f32.mrb[0].mxu0
    %v399 = vadd.f32 %v73, %v398
    %v400 = vpop.f32.mrb[0].mxu0
    %v401 = vadd.f32 %v77, %v400
    %402 = vmatprep.mubr.f32.mxu0 0.0
    %403 = vmatmul.mubr.f32.gmra.mrb[0].mxu0 %v165
    %v404 = vpop.f32.mrb[0].mxu0
    %v405 = vadd.f32 %v73, %v404
    %v406 = vpop.f32.mrb[0].mxu0
    %v407 = vadd.f32 %v77, %v406
    %408 = vmatprep.mubr.f32.mxu0 0.0
    %409 = vmatmul.mubr.f32.gmra.mrb[0].mxu0 %v168
    %v410 = vpop.f32.mrb[0].mxu0
    %v411 = vadd.f32 %v73, %v410
    %v412 = vpop.f32.mrb[0].mxu0
    %v413 = vadd.f32 %v77, %v412
    %414 = vmatprep.mubr.f32.mxu0 0.0
    %415 = vmatmul.mubr.f32.gmra.mrb[0].mxu0 %v171
    %v416 = vpop.f32.mrb[0].mxu0
    %v417 = vadd.f32 %v73, %v416
    %v418 = vpop.f32.mrb[0].mxu0
    %v419 = vadd.f32 %v77, %v418
    %420 = vmatprep.mubr.f32.mxu0 0.0
    %421 = vmatmul.mubr.f32.gmra.mrb[0].mxu0 %v174
    %v422 = vpop.f32.mrb[0].mxu0
    %v423 = vadd.f32 %v73, %v422
    %v424 = vpop.f32.mrb[0].mxu0
    %v425 = vadd.f32 %v77, %v424
    %426 = vmatprep.mubr.f32.mxu0 0.0
    %427 = vmatmul.mubr.f32.gmra.mrb[0].mxu0 %v177
    %v428 = vpop.f32.mrb[0].mxu0
    %v429 = vadd.f32 %v73, %v428
    %v430 = vpop.f32.mrb[0].mxu0
    %v431 = vadd.f32 %v77, %v430
    %432 = vmatprep.mubr.f32.mxu0 0.0
    %433 = vmatmul.mubr.f32.gmra.mrb[0].mxu0 %v180
    %v434 = vpop.f32.mrb[0].mxu0
    %v435 = vadd.f32 %v73, %v434
    %v436 = vpop.f32.mrb[0].mxu0
    %v437 = vadd.f32 %v77, %v436
    %438 = vdwg.mxu0
    %439 = vmatprep.subr.mxu0 0.0
    %440 = vmatpush1.msra.mxu0 %v58
    %441 = vmatprep.subr.mxu0 0.0
    %442 = vmatpush1.msra.mxu0 %v61
    %443 = vmatprep.subr.mxu0 0.0
    %444 = vmatpush1.msra.mxu0 %v64
    %445 = vmatprep.subr.mxu0 0.0
    %446 = vmatpush1.msra.mxu0 %v67
    %447 = vmatprep.subr.mxu0 0.0
    %448 = vmatpush1.msra.mxu0 0.0
    %449 = vmatprep.subr.mxu0 0.0
    %450 = vmatpush1.msra.mxu0 0.0
    %451 = vmatprep.subr.mxu0 0.0
    %452 = vmatpush1.msra.mxu0 0.0
    %453 = vmatprep.subr.mxu0 0.0
    %454 = vmatpush1.msra.mxu0 0.0
    %455 = vmatprep.subr.mxu0 0.0
    %456 = vmatpush1.msra.mxu0 0.0
    %457 = vmatprep.subr.mxu0 0.0
    %458 = vmatpush1.msra.mxu0 0.0
    %459 = vmatprep.subr.mxu0 0.0
    %460 = vmatpush1.msra.mxu0 0.0
    %461 = vmatprep.subr.mxu0 0.0
    %462 = vmatpush1.msra.mxu0 0.0
    %463 = vmatprep.subr.mxu0 0.0
    %464 = vmatpush1.msra.mxu0 0.0
    %465 = vmatprep.subr.mxu0 0.0
    %466 = vmatpush1.msra.mxu0 0.0
    %467 = vmatprep.subr.mxu0 0.0
    %468 = vmatpush1.msra.mxu0 0.0
    %469 = vmatprep.subr.mxu0 0.0
    %470 = vmatpush1.msra.mxu0 0.0
    %471 = vmatprep.subr.mxu0 0.0
    %472 = vmatpush1.msra.mxu0 0.0
    %473 = vmatprep.subr.mxu0 0.0
    %474 = vmatpush1.msra.mxu0 0.0
    %475 = vmatprep.subr.mxu0 0.0
    %476 = vmatpush1.msra.mxu0 0.0
    %477 = vmatprep.subr.mxu0 0.0
    %478 = vmatpush1.msra.mxu0 0.0
    %479 = vmatprep.subr.mxu0 0.0
    %480 = vmatpush1.msra.mxu0 0.0
    %481 = vmatprep.subr.mxu0 0.0
    %482 = vmatpush1.msra.mxu0 0.0
    %483 = vmatprep.subr.mxu0 0.0
    %484 = vmatpush1.msra.mxu0 0.0
    %485 = vmatprep.subr.mxu0 0.0
    %486 = vmatpush1.msra.mxu0 0.0
    %487 = vmatprep.subr.mxu0 0.0
    %488 = vmatpush1.msra.mxu0 0.0
    %489 = vmatprep.subr.mxu0 0.0
    %490 = vmatpush1.msra.mxu0 0.0
    %491 = vmatprep.subr.mxu0 0.0
    %492 = vmatpush1.msra.mxu0 0.0
    %493 = vmatprep.subr.mxu0 0.0
    %494 = vmatpush1.msra.mxu0 0.0
    %495 = vmatprep.subr.mxu0 0.0
    %496 = vmatpush1.msra.mxu0 0.0
    %497 = vmatprep.subr.mxu0 0.0
    %498 = vmatpush1.msra.mxu0 0.0
    %499 = vmatprep.subr.mxu0 0.0
    %500 = vmatpush1.msra.mxu0 0.0
    %501 = vmatprep.subr.mxu0 0.0
    %502 = vmatpush1.msra.mxu0 0.0
    %503 = vmatprep.mubr.f32.mxu0 0.0
    %504 = vmatmul.mubr.f32.gmra.mrb[0].mxu0 %v87
    %v505 = vpop.f32.mrb[0].mxu0
    %v506 = vadd.f32 %v81, %v505
    %v507 = vpop.f32.mrb[0].mxu0
    %508 = vmatprep.mubr.f32.mxu0 0.0
    %509 = vmatmul.mubr.f32.gmra.mrb[0].mxu0 %v90
    %v510 = vpop.f32.mrb[0].mxu0
    %v511 = vadd.f32 %v81, %v510
    %v512 = vpop.f32.mrb[0].mxu0
    %513 = vmatprep.mubr.f32.mxu0 0.0
    %514 = vmatmul.mubr.f32.gmra.mrb[0].mxu0 %v93
    %v515 = vpop.f32.mrb[0].mxu0
    %v516 = vadd.f32 %v81, %v515
    %v517 = vpop.f32.mrb[0].mxu0
    %518 = vmatprep.mubr.f32.mxu0 0.0
    %519 = vmatmul.mubr.f32.gmra.mrb[0].mxu0 %v96
    %v520 = vpop.f32.mrb[0].mxu0
    %v521 = vadd.f32 %v81, %v520
    %v522 = vpop.f32.mrb[0].mxu0
    %523 = vmatprep.mubr.f32.mxu0 0.0
    %524 = vmatmul.mubr.f32.gmra.mrb[0].mxu0 %v99
    %v525 = vpop.f32.mrb[0].mxu0
    %v526 = vadd.f32 %v81, %v525
    %v527 = vpop.f32.mrb[0].mxu0
    %528 = vmatprep.mubr.f32.mxu0 0.0
    %529 = vmatmul.mubr.f32.gmra.mrb[0].mxu0 %v102
    %v530 = vpop.f32.mrb[0].mxu0
    %v531 = vadd.f32 %v81, %v530
    %v532 = vpop.f32.mrb[0].mxu0
    %533 = vmatprep.mubr.f32.mxu0 0.0
    %534 = vmatmul.mubr.f32.gmra.mrb[0].mxu0 %v105
    %v535 = vpop.f32.mrb[0].mxu0
    %v536 = vadd.f32 %v81, %v535
    %v537 = vpop.f32.mrb[0].mxu0
    %538 = vmatprep.mubr.f32.mxu0 0.0
    %539 = vmatmul.mubr.f32.gmra.mrb[0].mxu0 %v108
    %v540 = vpop.f32.mrb[0].mxu0
    %v541 = vadd.f32 %v81, %v540
    %v542 = vpop.f32.mrb[0].mxu0
    %543 = vmatprep.mubr.f32.mxu0 0.0
    %544 = vmatmul.mubr.f32.gmra.mrb[0].mxu0 %v111
    %v545 = vpop.f32.mrb[0].mxu0
    %v546 = vadd.f32 %v81, %v545
    %v547 = vpop.f32.mrb[0].mxu0
    %548 = vmatprep.mubr.f32.mxu0 0.0
    %549 = vmatmul.mubr.f32.gmra.mrb[0].mxu0 %v114
    %v550 = vpop.f32.mrb[0].mxu0
    %v551 = vadd.f32 %v81, %v550
    %v552 = vpop.f32.mrb[0].mxu0
    %553 = vmatprep.mubr.f32.mxu0 0.0
    %554 = vmatmul.mubr.f32.gmra.mrb[0].mxu0 %v117
    %v555 = vpop.f32.mrb[0].mxu0
    %v556 = vadd.f32 %v81, %v555
    %v557 = vpop.f32.mrb[0].mxu0
    %558 = vmatprep.mubr.f32.mxu0 0.0
    %559 = vmatmul.mubr.f32.gmra.mrb[0].mxu0 %v120
    %v560 = vpop.f32.mrb[0].mxu0
    %v561 = vadd.f32 %v81, %v560
    %v562 = vpop.f32.mrb[0].mxu0
    %563 = vmatprep.mubr.f32.mxu0 0.0
    %564 = vmatmul.mubr.f32.gmra.mrb[0].mxu0 %v123
    %v565 = vpop.f32.mrb[0].mxu0
    %v566 = vadd.f32 %v81, %v565
    %v567 = vpop.f32.mrb[0].mxu0
    %568 = vmatprep.mubr.f32.mxu0 0.0
    %569 = vmatmul.mubr.f32.gmra.mrb[0].mxu0 %v126
    %v570 = vpop.f32.mrb[0].mxu0
    %v571 = vadd.f32 %v81, %v570
    %v572 = vpop.f32.mrb[0].mxu0
    %573 = vmatprep.mubr.f32.mxu0 0.0
    %574 = vmatmul.mubr.f32.gmra.mrb[0].mxu0 %v129
    %v575 = vpop.f32.mrb[0].mxu0
    %v576 = vadd.f32 %v81, %v575
    %v577 = vpop.f32.mrb[0].mxu0
    %578 = vmatprep.mubr.f32.mxu0 0.0
    %579 = vmatmul.mubr.f32.gmra.mrb[0].mxu0 %v132
    %v580 = vpop.f32.mrb[0].mxu0
    %v581 = vadd.f32 %v81, %v580
    %v582 = vpop.f32.mrb[0].mxu0
    %583 = vmatprep.mubr.f32.mxu0 0.0
    %584 = vmatmul.mubr.f32.gmra.mrb[0].mxu0 %v135
    %v585 = vpop.f32.mrb[0].mxu0
    %v586 = vadd.f32 %v81, %v585
    %v587 = vpop.f32.mrb[0].mxu0
    %588 = vmatprep.mubr.f32.mxu0 0.0
    %589 = vmatmul.mubr.f32.gmra.mrb[0].mxu0 %v138
    %v590 = vpop.f32.mrb[0].mxu0
    %v591 = vadd.f32 %v81, %v590
    %v592 = vpop.f32.mrb[0].mxu0
    %593 = vmatprep.mubr.f32.mxu0 0.0
    %594 = vmatmul.mubr.f32.gmra.mrb[0].mxu0 %v141
    %v595 = vpop.f32.mrb[0].mxu0
    %v596 = vadd.f32 %v81, %v595
    %v597 = vpop.f32.mrb[0].mxu0
    %598 = vmatprep.mubr.f32.mxu0 0.0
    %599 = vmatmul.mubr.f32.gmra.mrb[0].mxu0 %v144
    %v600 = vpop.f32.mrb[0].mxu0
    %v601 = vadd.f32 %v81, %v600
    %v602 = vpop.f32.mrb[0].mxu0
    %603 = vmatprep.mubr.f32.mxu0 0.0
    %604 = vmatmul.mubr.f32.gmra.mrb[0].mxu0 %v147
    %v605 = vpop.f32.mrb[0].mxu0
    %v606 = vadd.f32 %v81, %v605
    %v607 = vpop.f32.mrb[0].mxu0
    %608 = vmatprep.mubr.f32.mxu0 0.0
    %609 = vmatmul.mubr.f32.gmra.mrb[0].mxu0 %v150
    %v610 = vpop.f32.mrb[0].mxu0
    %v611 = vadd.f32 %v81, %v610
    %v612 = vpop.f32.mrb[0].mxu0
    %613 = vmatprep.mubr.f32.mxu0 0.0
    %614 = vmatmul.mubr.f32.gmra.mrb[0].mxu0 %v153
    %v615 = vpop.f32.mrb[0].mxu0
    %v616 = vadd.f32 %v81, %v615
    %v617 = vpop.f32.mrb[0].mxu0
    %618 = vmatprep.mubr.f32.mxu0 0.0
    %619 = vmatmul.mubr.f32.gmra.mrb[0].mxu0 %v156
    %v620 = vpop.f32.mrb[0].mxu0
    %v621 = vadd.f32 %v81, %v620
    %v622 = vpop.f32.mrb[0].mxu0
    %623 = vmatprep.mubr.f32.mxu0 0.0
    %624 = vmatmul.mubr.f32.gmra.mrb[0].mxu0 %v159
    %v625 = vpop.f32.mrb[0].mxu0
    %v626 = vadd.f32 %v81, %v625
    %v627 = vpop.f32.mrb[0].mxu0
    %628 = vmatprep.mubr.f32.mxu0 0.0
    %629 = vmatmul.mubr.f32.gmra.mrb[0].mxu0 %v162
    %v630 = vpop.f32.mrb[0].mxu0
    %v631 = vadd.f32 %v81, %v630
    %v632 = vpop.f32.mrb[0].mxu0
    %633 = vmatprep.mubr.f32.mxu0 0.0
    %634 = vmatmul.mubr.f32.gmra.mrb[0].mxu0 %v165
    %v635 = vpop.f32.mrb[0].mxu0
    %v636 = vadd.f32 %v81, %v635
    %v637 = vpop.f32.mrb[0].mxu0
    %638 = vmatprep.mubr.f32.mxu0 0.0
    %639 = vmatmul.mubr.f32.gmra.mrb[0].mxu0 %v168
    %v640 = vpop.f32.mrb[0].mxu0
    %v641 = vadd.f32 %v81, %v640
    %v642 = vpop.f32.mrb[0].mxu0
    %643 = vmatprep.mubr.f32.mxu0 0.0
    %644 = vmatmul.mubr.f32.gmra.mrb[0].mxu0 %v171
    %v645 = vpop.f32.mrb[0].mxu0
    %v646 = vadd.f32 %v81, %v645
    %v647 = vpop.f32.mrb[0].mxu0
    %648 = vmatprep.mubr.f32.mxu0 0.0
    %649 = vmatmul.mubr.f32.gmra.mrb[0].mxu0 %v174
    %v650 = vpop.f32.mrb[0].mxu0
    %v651 = vadd.f32 %v81, %v650
    %v652 = vpop.f32.mrb[0].mxu0
    %653 = vmatprep.mubr.f32.mxu0 0.0
    %654 = vmatmul.mubr.f32.gmra.mrb[0].mxu0 %v177
    %v655 = vpop.f32.mrb[0].mxu0
    %v656 = vadd.f32 %v81, %v655
    %v657 = vpop.f32.mrb[0].mxu0
    %658 = vmatprep.mubr.f32.mxu0 0.0
    %659 = vmatmul.mubr.f32.gmra.mrb[0].mxu0 %v180
    %v660 = vpop.f32.mrb[0].mxu0
    %v661 = vadd.f32 %v81, %v660
    %v662 = vpop.f32.mrb[0].mxu0
    %663 = vdwg.mxu0
    %v664 = vrot.slane %v249, 4
    %v665 = vadd.f32 %v249, %v664
    %v666 = vrot.slane %v665, 2
    %v667 = vadd.f32 %v665, %v666
    %v668 = vrot.slane %v667, 1
    %v669 = vadd.f32 %v667, %v668
    %v670 = vrot.slane %v255, 4
    %v671 = vadd.f32 %v255, %v670
    %v672 = vrot.slane %v671, 2
    %v673 = vadd.f32 %v671, %v672
    %v674 = vrot.slane %v673, 1
    %v675 = vadd.f32 %v673, %v674
    %v676 = vrot.slane %v261, 4
    %v677 = vadd.f32 %v261, %v676
    %v678 = vrot.slane %v677, 2
    %v679 = vadd.f32 %v677, %v678
    %v680 = vrot.slane %v679, 1
    %v681 = vadd.f32 %v679, %v680
    %v682 = vrot.slane %v267, 4
    %v683 = vadd.f32 %v267, %v682
    %v684 = vrot.slane %v683, 2
    %v685 = vadd.f32 %v683, %v684
    %v686 = vrot.slane %v685, 1
    %v687 = vadd.f32 %v685, %v686
    %v688 = vrot.slane %v273, 4
    %v689 = vadd.f32 %v273, %v688
    %v690 = vrot.slane %v689, 2
    %v691 = vadd.f32 %v689, %v690
    %v692 = vrot.slane %v691, 1
    %v693 = vadd.f32 %v691, %v692
    %v694 = vrot.slane %v279, 4
    %v695 = vadd.f32 %v279, %v694
    %v696 = vrot.slane %v695, 2
    %v697 = vadd.f32 %v695, %v696
    %v698 = vrot.slane %v697, 1
    %v699 = vadd.f32 %v697, %v698
    %v700 = vrot.slane %v285, 4
    %v701 = vadd.f32 %v285, %v700
    %v702 = vrot.slane %v701, 2
    %v703 = vadd.f32 %v701, %v702
    %v704 = vrot.slane %v703, 1
    %v705 = vadd.f32 %v703, %v704
    %v706 = vrot.slane %v291, 4
    %v707 = vadd.f32 %v291, %v706
    %v708 = vrot.slane %v707, 2
    %v709 = vadd.f32 %v707, %v708
    %v710 = vrot.slane %v709, 1
    %v711 = vadd.f32 %v709, %v710
    %v712 = vrot.slane %v297, 4
    %v713 = vadd.f32 %v297, %v712
    %v714 = vrot.slane %v713, 2
    %v715 = vadd.f32 %v713, %v714
    %v716 = vrot.slane %v715, 1
    %v717 = vadd.f32 %v715, %v716
    %v718 = vrot.slane %v303, 4
    %v719 = vadd.f32 %v303, %v718
    %v720 = vrot.slane %v719, 2
    %v721 = vadd.f32 %v719, %v720
    %v722 = vrot.slane %v721, 1
    %v723 = vadd.f32 %v721, %v722
    %v724 = vrot.slane %v309, 4
    %v725 = vadd.f32 %v309, %v724
    %v726 = vrot.slane %v725, 2
    %v727 = vadd.f32 %v725, %v726
    %v728 = vrot.slane %v727, 1
    %v729 = vadd.f32 %v727, %v728
    %v730 = vrot.slane %v315, 4
    %v731 = vadd.f32 %v315, %v730
    %v732 = vrot.slane %v731, 2
    %v733 = vadd.f32 %v731, %v732
    %v734 = vrot.slane %v733, 1
    %v735 = vadd.f32 %v733, %v734
    %v736 = vrot.slane %v321, 4
    %v737 = vadd.f32 %v321, %v736
    %v738 = vrot.slane %v737, 2
    %v739 = vadd.f32 %v737, %v738
    %v740 = vrot.slane %v739, 1
    %v741 = vadd.f32 %v739, %v740
    %v742 = vrot.slane %v327, 4
    %v743 = vadd.f32 %v327, %v742
    %v744 = vrot.slane %v743, 2
    %v745 = vadd.f32 %v743, %v744
    %v746 = vrot.slane %v745, 1
    %v747 = vadd.f32 %v745, %v746
    %v748 = vrot.slane %v333, 4
    %v749 = vadd.f32 %v333, %v748
    %v750 = vrot.slane %v749, 2
    %v751 = vadd.f32 %v749, %v750
    %v752 = vrot.slane %v751, 1
    %v753 = vadd.f32 %v751, %v752
    %v754 = vrot.slane %v339, 4
    %v755 = vadd.f32 %v339, %v754
    %v756 = vrot.slane %v755, 2
    %v757 = vadd.f32 %v755, %v756
    %v758 = vrot.slane %v757, 1
    %v759 = vadd.f32 %v757, %v758
    %v760 = vrot.slane %v345, 4
    %v761 = vadd.f32 %v345, %v760
    %v762 = vrot.slane %v761, 2
    %v763 = vadd.f32 %v761, %v762
    %v764 = vrot.slane %v763, 1
    %v765 = vadd.f32 %v763, %v764
    %v766 = vrot.slane %v351, 4
    %v767 = vadd.f32 %v351, %v766
    %v768 = vrot.slane %v767, 2
    %v769 = vadd.f32 %v767, %v768
    %v770 = vrot.slane %v769, 1
    %v771 = vadd.f32 %v769, %v770
    %v772 = vrot.slane %v357, 4
    %v773 = vadd.f32 %v357, %v772
    %v774 = vrot.slane %v773, 2
    %v775 = vadd.f32 %v773, %v774
    %v776 = vrot.slane %v775, 1
    %v777 = vadd.f32 %v775, %v776
    %v778 = vrot.slane %v363, 4
    %v779 = vadd.f32 %v363, %v778
    %v780 = vrot.slane %v779, 2
    %v781 = vadd.f32 %v779, %v780
    %v782 = vrot.slane %v781, 1
    %v783 = vadd.f32 %v781, %v782
    %v784 = vrot.slane %v369, 4
    %v785 = vadd.f32 %v369, %v784
    %v786 = vrot.slane %v785, 2
    %v787 = vadd.f32 %v785, %v786
    %v788 = vrot.slane %v787, 1
    %v789 = vadd.f32 %v787, %v788
    %v790 = vrot.slane %v375, 4
    %v791 = vadd.f32 %v375, %v790
    %v792 = vrot.slane %v791, 2
    %v793 = vadd.f32 %v791, %v792
    %v794 = vrot.slane %v793, 1
    %v795 = vadd.f32 %v793, %v794
    %v796 = vrot.slane %v381, 4
    %v797 = vadd.f32 %v381, %v796
    %v798 = vrot.slane %v797, 2
    %v799 = vadd.f32 %v797, %v798
    %v800 = vrot.slane %v799, 1
    %v801 = vadd.f32 %v799, %v800
    %v802 = vrot.slane %v387, 4
    %v803 = vadd.f32 %v387, %v802
    %v804 = vrot.slane %v803, 2
    %v805 = vadd.f32 %v803, %v804
    %v806 = vrot.slane %v805, 1
    %v807 = vadd.f32 %v805, %v806
    %v808 = vrot.slane %v393, 4
    %v809 = vadd.f32 %v393, %v808
    %v810 = vrot.slane %v809, 2
    %v811 = vadd.f32 %v809, %v810
    %v812 = vrot.slane %v811, 1
    %v813 = vadd.f32 %v811, %v812
    %v814 = vrot.slane %v399, 4
    %v815 = vadd.f32 %v399, %v814
    %v816 = vrot.slane %v815, 2
    %v817 = vadd.f32 %v815, %v816
    %v818 = vrot.slane %v817, 1
    %v819 = vadd.f32 %v817, %v818
    %v820 = vrot.slane %v405, 4
    %v821 = vadd.f32 %v405, %v820
    %v822 = vrot.slane %v821, 2
    %v823 = vadd.f32 %v821, %v822
    %v824 = vrot.slane %v823, 1
    %v825 = vadd.f32 %v823, %v824
    %v826 = vrot.slane %v411, 4
    %v827 = vadd.f32 %v411, %v826
    %v828 = vrot.slane %v827, 2
    %v829 = vadd.f32 %v827, %v828
    %v830 = vrot.slane %v829, 1
    %v831 = vadd.f32 %v829, %v830
    %v832 = vrot.slane %v417, 4
    %v833 = vadd.f32 %v417, %v832
    %v834 = vrot.slane %v833, 2
    %v835 = vadd.f32 %v833, %v834
    %v836 = vrot.slane %v835, 1
    %v837 = vadd.f32 %v835, %v836
    %v838 = vrot.slane %v423, 4
    %v839 = vadd.f32 %v423, %v838
    %v840 = vrot.slane %v839, 2
    %v841 = vadd.f32 %v839, %v840
    %v842 = vrot.slane %v841, 1
    %v843 = vadd.f32 %v841, %v842
    %v844 = vrot.slane %v429, 4
    %v845 = vadd.f32 %v429, %v844
    %v846 = vrot.slane %v845, 2
    %v847 = vadd.f32 %v845, %v846
    %v848 = vrot.slane %v847, 1
    %v849 = vadd.f32 %v847, %v848
    %v850 = vrot.slane %v435, 4
    %v851 = vadd.f32 %v435, %v850
    %v852 = vrot.slane %v851, 2
    %v853 = vadd.f32 %v851, %v852
    %v854 = vrot.slane %v853, 1
    %v855 = vadd.f32 %v853, %v854
    %v856 = vrcp.pop 8.0
    %v857 = vmul.f32 %v669, %v856
    %v858 = vmul.f32 %v675, %v856
    %v859 = vmul.f32 %v681, %v856
    %v860 = vmul.f32 %v687, %v856
    %v861 = vmul.f32 %v693, %v856
    %v862 = vmul.f32 %v699, %v856
    %v863 = vmul.f32 %v705, %v856
    %v864 = vmul.f32 %v711, %v856
    %v865 = vmul.f32 %v717, %v856
    %v866 = vmul.f32 %v723, %v856
    %v867 = vmul.f32 %v729, %v856
    %v868 = vmul.f32 %v735, %v856
    %v869 = vmul.f32 %v741, %v856
    %v870 = vmul.f32 %v747, %v856
    %v871 = vmul.f32 %v753, %v856
    %v872 = vmul.f32 %v759, %v856
    %v873 = vmul.f32 %v765, %v856
    %v874 = vmul.f32 %v771, %v856
    %v875 = vmul.f32 %v777, %v856
    %v876 = vmul.f32 %v783, %v856
    %v877 = vmul.f32 %v789, %v856
    %v878 = vmul.f32 %v795, %v856
    %v879 = vmul.f32 %v801, %v856
    %v880 = vmul.f32 %v807, %v856
    %v881 = vmul.f32 %v813, %v856
    %v882 = vmul.f32 %v819, %v856
    %v883 = vmul.f32 %v825, %v856
    %v884 = vmul.f32 %v831, %v856
    %v885 = vmul.f32 %v837, %v856
    %v886 = vmul.f32 %v843, %v856
    %v887 = vmul.f32 %v849, %v856
    %v888 = vmul.f32 %v855, %v856
    %v889 = vadd.f32 %v857, %v251
    %v890 = vadd.f32 %v858, %v257
    %v891 = vadd.f32 %v859, %v263
    %v892 = vadd.f32 %v860, %v269
    %v893 = vadd.f32 %v861, %v275
    %v894 = vadd.f32 %v862, %v281
    %v895 = vadd.f32 %v863, %v287
    %v896 = vadd.f32 %v864, %v293
    %v897 = vadd.f32 %v865, %v299
    %v898 = vadd.f32 %v866, %v305
    %v899 = vadd.f32 %v867, %v311
    %v900 = vadd.f32 %v868, %v317
    %v901 = vadd.f32 %v869, %v323
    %v902 = vadd.f32 %v870, %v329
    %v903 = vadd.f32 %v871, %v335
    %v904 = vadd.f32 %v872, %v341
    %v905 = vadd.f32 %v873, %v347
    %v906 = vadd.f32 %v874, %v353
    %v907 = vadd.f32 %v875, %v359
    %v908 = vadd.f32 %v876, %v365
    %v909 = vadd.f32 %v877, %v371
    %v910 = vadd.f32 %v878, %v377
    %v911 = vadd.f32 %v879, %v383
    %v912 = vadd.f32 %v880, %v389
    %v913 = vadd.f32 %v881, %v395
    %v914 = vadd.f32 %v882, %v401
    %v915 = vadd.f32 %v883, %v407
    %v916 = vadd.f32 %v884, %v413
    %v917 = vadd.f32 %v885, %v419
    %v918 = vadd.f32 %v886, %v425
    %v919 = vadd.f32 %v887, %v431
    %v920 = vadd.f32 %v888, %v437
    %v921 = vtanh.pop %v889
    %v922 = vtanh.pop %v890
    %v923 = vtanh.pop %v891
    %v924 = vtanh.pop %v892
    %v925 = vtanh.pop %v893
    %v926 = vtanh.pop %v894
    %v927 = vtanh.pop %v895
    %v928 = vtanh.pop %v896
    %v929 = vtanh.pop %v897
    %v930 = vtanh.pop %v898
    %v931 = vtanh.pop %v899
    %v932 = vtanh.pop %v900
    %v933 = vtanh.pop %v901
    %v934 = vtanh.pop %v902
    %v935 = vtanh.pop %v903
    %v936 = vtanh.pop %v904
    %v937 = vtanh.pop %v905
    %v938 = vtanh.pop %v906
    %v939 = vtanh.pop %v907
    %v940 = vtanh.pop %v908
    %v941 = vtanh.pop %v909
    %v942 = vtanh.pop %v910
    %v943 = vtanh.pop %v911
    %v944 = vtanh.pop %v912
    %v945 = vtanh.pop %v913
    %v946 = vtanh.pop %v914
    %v947 = vtanh.pop %v915
    %v948 = vtanh.pop %v916
    %v949 = vtanh.pop %v917
    %v950 = vtanh.pop %v918
    %v951 = vtanh.pop %v919
    %v952 = vtanh.pop %v920
    %v953 = vld [vmem:[%s3] sm:$0x1]
    %v955 = vlaneseq
    %v956 = vshrl.u32 %v955, 7
    %v957 = vsub.s32 0, %v956
    %v958 = vrot.slane %v953, %v957
    %v960 = vmul.f32 %v921, %v958
    %v961 = vmul.f32 %v922, %v958
    %v962 = vmul.f32 %v923, %v958
    %v963 = vmul.f32 %v924, %v958
    %v964 = vmul.f32 %v925, %v958
    %v965 = vmul.f32 %v926, %v958
    %v966 = vmul.f32 %v927, %v958
    %v967 = vmul.f32 %v928, %v958
    %v968 = vmul.f32 %v929, %v958
    %v969 = vmul.f32 %v930, %v958
    %v970 = vmul.f32 %v931, %v958
    %v971 = vmul.f32 %v932, %v958
    %v972 = vmul.f32 %v933, %v958
    %v973 = vmul.f32 %v934, %v958
    %v974 = vmul.f32 %v935, %v958
    %v975 = vmul.f32 %v936, %v958
    %v976 = vmul.f32 %v937, %v958
    %v977 = vmul.f32 %v938, %v958
    %v978 = vmul.f32 %v939, %v958
    %v979 = vmul.f32 %v940, %v958
    %v980 = vmul.f32 %v941, %v958
    %v981 = vmul.f32 %v942, %v958
    %v982 = vmul.f32 %v943, %v958
    %v983 = vmul.f32 %v944, %v958
    %v984 = vmul.f32 %v945, %v958
    %v985 = vmul.f32 %v946, %v958
    %v986 = vmul.f32 %v947, %v958
    %v987 = vmul.f32 %v948, %v958
    %v988 = vmul.f32 %v949, %v958
    %v989 = vmul.f32 %v950, %v958
    %v990 = vmul.f32 %v951, %v958
    %v991 = vmul.f32 %v952, %v958
    %992 = vadd.xlane.f32.xlu0 %v960
    %v993 = vpop.xlane.xlu0 %992
    %994 = vadd.xlane.f32.xlu0 %v961
    %v995 = vpop.xlane.xlu0 %994
    %996 = vadd.xlane.f32.xlu0 %v962
    %v997 = vpop.xlane.xlu0 %996
    %998 = vadd.xlane.f32.xlu0 %v963
    %v999 = vpop.xlane.xlu0 %998
    %1000 = vadd.xlane.f32.xlu0 %v964
    %v1001 = vpop.xlane.xlu0 %1000
    %1002 = vadd.xlane.f32.xlu0 %v965
    %v1003 = vpop.xlane.xlu0 %1002
    %1004 = vadd.xlane.f32.xlu0 %v966
    %v1005 = vpop.xlane.xlu0 %1004
    %1006 = vadd.xlane.f32.xlu0 %v967
    %v1007 = vpop.xlane.xlu0 %1006
    %1008 = vadd.xlane.f32.xlu0 %v968
    %v1009 = vpop.xlane.xlu0 %1008
    %1010 = vadd.xlane.f32.xlu0 %v969
    %v1011 = vpop.xlane.xlu0 %1010
    %1012 = vadd.xlane.f32.xlu0 %v970
    %v1013 = vpop.xlane.xlu0 %1012
    %1014 = vadd.xlane.f32.xlu0 %v971
    %v1015 = vpop.xlane.xlu0 %1014
    %1016 = vadd.xlane.f32.xlu0 %v972
    %v1017 = vpop.xlane.xlu0 %1016
    %1018 = vadd.xlane.f32.xlu0 %v973
    %v1019 = vpop.xlane.xlu0 %1018
    %1020 = vadd.xlane.f32.xlu0 %v974
    %v1021 = vpop.xlane.xlu0 %1020
    %1022 = vadd.xlane.f32.xlu0 %v975
    %v1023 = vpop.xlane.xlu0 %1022
    %1024 = vadd.xlane.f32.xlu0 %v976
    %v1025 = vpop.xlane.xlu0 %1024
    %1026 = vadd.xlane.f32.xlu0 %v977
    %v1027 = vpop.xlane.xlu0 %1026
    %1028 = vadd.xlane.f32.xlu0 %v978
    %v1029 = vpop.xlane.xlu0 %1028
    %1030 = vadd.xlane.f32.xlu0 %v979
    %v1031 = vpop.xlane.xlu0 %1030
    %1032 = vadd.xlane.f32.xlu0 %v980
    %v1033 = vpop.xlane.xlu0 %1032
    %1034 = vadd.xlane.f32.xlu0 %v981
    %v1035 = vpop.xlane.xlu0 %1034
    %1036 = vadd.xlane.f32.xlu0 %v982
    %v1037 = vpop.xlane.xlu0 %1036
    %1038 = vadd.xlane.f32.xlu0 %v983
    %v1039 = vpop.xlane.xlu0 %1038
    %1040 = vadd.xlane.f32.xlu0 %v984
    %v1041 = vpop.xlane.xlu0 %1040
    %1042 = vadd.xlane.f32.xlu0 %v985
    %v1043 = vpop.xlane.xlu0 %1042
    %1044 = vadd.xlane.f32.xlu0 %v986
    %v1045 = vpop.xlane.xlu0 %1044
    %1046 = vadd.xlane.f32.xlu0 %v987
    %v1047 = vpop.xlane.xlu0 %1046
    %1048 = vadd.xlane.f32.xlu0 %v988
    %v1049 = vpop.xlane.xlu0 %1048
    %1050 = vadd.xlane.f32.xlu0 %v989
    %v1051 = vpop.xlane.xlu0 %1050
    %1052 = vadd.xlane.f32.xlu0 %v990
    %v1053 = vpop.xlane.xlu0 %1052
    %1054 = vadd.xlane.f32.xlu0 %v991
    %v1055 = vpop.xlane.xlu0 %1054
    %s1056 = sld [smem:[#allocation2]]
    %v1057 = vstv %s1056
    %v1058 = vadd.f32 %v993, %v1057
    %v1059 = vadd.f32 %v995, %v1057
    %v1060 = vadd.f32 %v997, %v1057
    %v1061 = vadd.f32 %v999, %v1057
    %v1062 = vadd.f32 %v1001, %v1057
    %v1063 = vadd.f32 %v1003, %v1057
    %v1064 = vadd.f32 %v1005, %v1057
    %v1065 = vadd.f32 %v1007, %v1057
    %v1066 = vadd.f32 %v1009, %v1057
    %v1067 = vadd.f32 %v1011, %v1057
    %v1068 = vadd.f32 %v1013, %v1057
    %v1069 = vadd.f32 %v1015, %v1057
    %v1070 = vadd.f32 %v1017, %v1057
    %v1071 = vadd.f32 %v1019, %v1057
    %v1072 = vadd.f32 %v1021, %v1057
    %v1073 = vadd.f32 %v1023, %v1057
    %v1074 = vadd.f32 %v1025, %v1057
    %v1075 = vadd.f32 %v1027, %v1057
    %v1076 = vadd.f32 %v1029, %v1057
    %v1077 = vadd.f32 %v1031, %v1057
    %v1078 = vadd.f32 %v1033, %v1057
    %v1079 = vadd.f32 %v1035, %v1057
    %v1080 = vadd.f32 %v1037, %v1057
    %v1081 = vadd.f32 %v1039, %v1057
    %v1082 = vadd.f32 %v1041, %v1057
    %v1083 = vadd.f32 %v1043, %v1057
    %v1084 = vadd.f32 %v1045, %v1057
    %v1085 = vadd.f32 %v1047, %v1057
    %v1086 = vadd.f32 %v1049, %v1057
    %v1087 = vadd.f32 %v1051, %v1057
    %v1088 = vadd.f32 %v1053, %v1057
    %v1089 = vadd.f32 %v1055, %v1057
    %v1122 = vlaneseq
    %v1123 = vand.u32 %v1122, 127
    %v1124 = vlaneseq
    %v1125 = vshrl.u32 %v1124, 7
    %v1126 = vsub.s32 %v1123, %v1125
    %v1127 = vrot.slane %v1058, %v1126
    %v1128 = vlaneseq
    %v1129 = vshrl.u32 %v1128, 7
    %v1130 = vsub.s32 %v1123, %v1129
    %v1131 = vrot.slane %v1059, %v1130
    %v1132 = vlaneseq
    %v1133 = vshrl.u32 %v1132, 7
    %v1134 = vsub.s32 %v1123, %v1133
    %v1135 = vrot.slane %v1060, %v1134
    %v1136 = vlaneseq
    %v1137 = vshrl.u32 %v1136, 7
    %v1138 = vsub.s32 %v1123, %v1137
    %v1139 = vrot.slane %v1061, %v1138
    %v1140 = vlaneseq
    %v1141 = vshrl.u32 %v1140, 7
    %v1142 = vsub.s32 %v1123, %v1141
    %v1143 = vrot.slane %v1062, %v1142
    %v1144 = vlaneseq
    %v1145 = vshrl.u32 %v1144, 7
    %v1146 = vsub.s32 %v1123, %v1145
    %v1147 = vrot.slane %v1063, %v1146
    %v1148 = vlaneseq
    %v1149 = vshrl.u32 %v1148, 7
    %v1150 = vsub.s32 %v1123, %v1149
    %v1151 = vrot.slane %v1064, %v1150
    %v1152 = vlaneseq
    %v1153 = vshrl.u32 %v1152, 7
    %v1154 = vsub.s32 %v1123, %v1153
    %v1155 = vrot.slane %v1065, %v1154
    %v1156 = vlaneseq
    %v1157 = vshrl.u32 %v1156, 7
    %v1158 = vsub.s32 %v1123, %v1157
    %v1159 = vrot.slane %v1066, %v1158
    %v1160 = vlaneseq
    %v1161 = vshrl.u32 %v1160, 7
    %v1162 = vsub.s32 %v1123, %v1161
    %v1163 = vrot.slane %v1067, %v1162
    %v1164 = vlaneseq
    %v1165 = vshrl.u32 %v1164, 7
    %v1166 = vsub.s32 %v1123, %v1165
    %v1167 = vrot.slane %v1068, %v1166
    %v1168 = vlaneseq
    %v1169 = vshrl.u32 %v1168, 7
    %v1170 = vsub.s32 %v1123, %v1169
    %v1171 = vrot.slane %v1069, %v1170
    %v1172 = vlaneseq
    %v1173 = vshrl.u32 %v1172, 7
    %v1174 = vsub.s32 %v1123, %v1173
    %v1175 = vrot.slane %v1070, %v1174
    %v1176 = vlaneseq
    %v1177 = vshrl.u32 %v1176, 7
    %v1178 = vsub.s32 %v1123, %v1177
    %v1179 = vrot.slane %v1071, %v1178
    %v1180 = vlaneseq
    %v1181 = vshrl.u32 %v1180, 7
    %v1182 = vsub.s32 %v1123, %v1181
    %v1183 = vrot.slane %v1072, %v1182
    %v1184 = vlaneseq
    %v1185 = vshrl.u32 %v1184, 7
    %v1186 = vsub.s32 %v1123, %v1185
    %v1187 = vrot.slane %v1073, %v1186
    %v1188 = vlaneseq
    %v1189 = vshrl.u32 %v1188, 7
    %v1190 = vsub.s32 %v1123, %v1189
    %v1191 = vrot.slane %v1074, %v1190
    %v1192 = vlaneseq
    %v1193 = vshrl.u32 %v1192, 7
    %v1194 = vsub.s32 %v1123, %v1193
    %v1195 = vrot.slane %v1075, %v1194
    %v1196 = vlaneseq
    %v1197 = vshrl.u32 %v1196, 7
    %v1198 = vsub.s32 %v1123, %v1197
    %v1199 = vrot.slane %v1076, %v1198
    %v1200 = vlaneseq
    %v1201 = vshrl.u32 %v1200, 7
    %v1202 = vsub.s32 %v1123, %v1201
    %v1203 = vrot.slane %v1077, %v1202
    %v1204 = vlaneseq
    %v1205 = vshrl.u32 %v1204, 7
    %v1206 = vsub.s32 %v1123, %v1205
    %v1207 = vrot.slane %v1078, %v1206
    %v1208 = vlaneseq
    %v1209 = vshrl.u32 %v1208, 7
    %v1210 = vsub.s32 %v1123, %v1209
    %v1211 = vrot.slane %v1079, %v1210
    %v1212 = vlaneseq
    %v1213 = vshrl.u32 %v1212, 7
    %v1214 = vsub.s32 %v1123, %v1213
    %v1215 = vrot.slane %v1080, %v1214
    %v1216 = vlaneseq
    %v1217 = vshrl.u32 %v1216, 7
    %v1218 = vsub.s32 %v1123, %v1217
    %v1219 = vrot.slane %v1081, %v1218
    %v1220 = vlaneseq
    %v1221 = vshrl.u32 %v1220, 7
    %v1222 = vsub.s32 %v1123, %v1221
    %v1223 = vrot.slane %v1082, %v1222
    %v1224 = vlaneseq
    %v1225 = vshrl.u32 %v1224, 7
    %v1226 = vsub.s32 %v1123, %v1225
    %v1227 = vrot.slane %v1083, %v1226
    %v1228 = vlaneseq
    %v1229 = vshrl.u32 %v1228, 7
    %v1230 = vsub.s32 %v1123, %v1229
    %v1231 = vrot.slane %v1084, %v1230
    %v1232 = vlaneseq
    %v1233 = vshrl.u32 %v1232, 7
    %v1234 = vsub.s32 %v1123, %v1233
    %v1235 = vrot.slane %v1085, %v1234
    %v1236 = vlaneseq
    %v1237 = vshrl.u32 %v1236, 7
    %v1238 = vsub.s32 %v1123, %v1237
    %v1239 = vrot.slane %v1086, %v1238
    %v1240 = vlaneseq
    %v1241 = vshrl.u32 %v1240, 7
    %v1242 = vsub.s32 %v1123, %v1241
    %v1243 = vrot.slane %v1087, %v1242
    %v1244 = vlaneseq
    %v1245 = vshrl.u32 %v1244, 7
    %v1246 = vsub.s32 %v1123, %v1245
    %v1247 = vrot.slane %v1088, %v1246
    %v1248 = vlaneseq
    %v1249 = vshrl.u32 %v1248, 7
    %v1250 = vsub.s32 %v1123, %v1249
    %v1251 = vrot.slane %v1089, %v1250
    %vm1252 = vcmask 1041409
    %v1253 = vsel %vm1252, %v1131, %v1127
    %vm1254 = vcmask 1042434
    %v1255 = vsel %vm1254, %v1135, %v1253
    %vm1256 = vcmask 1043459
    %v1257 = vsel %vm1256, %v1139, %v1255
    %vm1258 = vcmask 1044484
    %v1259 = vsel %vm1258, %v1143, %v1257
    %vm1260 = vcmask 1045509
    %v1261 = vsel %vm1260, %v1147, %v1259
    %vm1262 = vcmask 1046534
    %v1263 = vsel %vm1262, %v1151, %v1261
    %vm1264 = vcmask 1047559
    %v1265 = vsel %vm1264, %v1155, %v1263
    %v1266 = vsel %vm1252, %v1163, %v1159
    %v1267 = vsel %vm1254, %v1167, %v1266
    %v1268 = vsel %vm1256, %v1171, %v1267
    %v1269 = vsel %vm1258, %v1175, %v1268
    %v1270 = vsel %vm1260, %v1179, %v1269
    %v1271 = vsel %vm1262, %v1183, %v1270
    %v1272 = vsel %vm1264, %v1187, %v1271
    %v1273 = vsel %vm1252, %v1195, %v1191
    %v1274 = vsel %vm1254, %v1199, %v1273
    %v1275 = vsel %vm1256, %v1203, %v1274
    %v1276 = vsel %vm1258, %v1207, %v1275
    %v1277 = vsel %vm1260, %v1211, %v1276
    %v1278 = vsel %vm1262, %v1215, %v1277
    %v1279 = vsel %vm1264, %v1219, %v1278
    %v1280 = vsel %vm1252, %v1227, %v1223
    %v1281 = vsel %vm1254, %v1231, %v1280
    %v1282 = vsel %vm1256, %v1235, %v1281
    %v1283 = vsel %vm1258, %v1239, %v1282
    %v1284 = vsel %vm1260, %v1243, %v1283
    %v1285 = vsel %vm1262, %v1247, %v1284
    %v1286 = vsel %vm1264, %v1251, %v1285
    %vm1291 = vcmask 64512
    %v1292 = vsel %vm1291, %v1265, -inf
    %1293 = vmax.xlane.f32.xlu0 %v1292
    %v1294 = vpop.xlane.xlu0 %1293
    %v1295 = vsel %vm1291, %v1272, -inf
    %1296 = vmax.xlane.f32.xlu0 %v1295
    %v1297 = vpop.xlane.xlu0 %1296
    %v1298 = vsel %vm1291, %v1279, -inf
    %1299 = vmax.xlane.f32.xlu0 %v1298
    %v1300 = vpop.xlane.xlu0 %1299
    %v1301 = vsel %vm1291, %v1286, -inf
    %1302 = vmax.xlane.f32.xlu0 %v1301
    %v1303 = vpop.xlane.xlu0 %1302
    %v1308 = vlaneseq
    %v1309 = vshrl.u32 %v1308, 7
    %v1310 = vsub.s32 0, %v1309
    %v1311 = vrot.slane %v1294, %v1310
    %v1312 = vlaneseq
    %v1313 = vshrl.u32 %v1312, 7
    %v1314 = vsub.s32 1, %v1313
    %v1315 = vrot.slane %v1294, %v1314
    %v1316 = vlaneseq
    %v1317 = vshrl.u32 %v1316, 7
    %v1318 = vsub.s32 2, %v1317
    %v1319 = vrot.slane %v1294, %v1318
    %v1320 = vlaneseq
    %v1321 = vshrl.u32 %v1320, 7
    %v1322 = vsub.s32 3, %v1321
    %v1323 = vrot.slane %v1294, %v1322
    %v1324 = vlaneseq
    %v1325 = vshrl.u32 %v1324, 7
    %v1326 = vsub.s32 4, %v1325
    %v1327 = vrot.slane %v1294, %v1326
    %v1328 = vlaneseq
    %v1329 = vshrl.u32 %v1328, 7
    %v1330 = vsub.s32 5, %v1329
    %v1331 = vrot.slane %v1294, %v1330
    %v1332 = vlaneseq
    %v1333 = vshrl.u32 %v1332, 7
    %v1334 = vsub.s32 6, %v1333
    %v1335 = vrot.slane %v1294, %v1334
    %v1336 = vlaneseq
    %v1337 = vshrl.u32 %v1336, 7
    %v1338 = vsub.s32 7, %v1337
    %v1339 = vrot.slane %v1294, %v1338
    %v1340 = vlaneseq
    %v1341 = vshrl.u32 %v1340, 7
    %v1342 = vsub.s32 0, %v1341
    %v1343 = vrot.slane %v1297, %v1342
    %v1344 = vlaneseq
    %v1345 = vshrl.u32 %v1344, 7
    %v1346 = vsub.s32 1, %v1345
    %v1347 = vrot.slane %v1297, %v1346
    %v1348 = vlaneseq
    %v1349 = vshrl.u32 %v1348, 7
    %v1350 = vsub.s32 2, %v1349
    %v1351 = vrot.slane %v1297, %v1350
    %v1352 = vlaneseq
    %v1353 = vshrl.u32 %v1352, 7
    %v1354 = vsub.s32 3, %v1353
    %v1355 = vrot.slane %v1297, %v1354
    %v1356 = vlaneseq
    %v1357 = vshrl.u32 %v1356, 7
    %v1358 = vsub.s32 4, %v1357
    %v1359 = vrot.slane %v1297, %v1358
    %v1360 = vlaneseq
    %v1361 = vshrl.u32 %v1360, 7
    %v1362 = vsub.s32 5, %v1361
    %v1363 = vrot.slane %v1297, %v1362
    %v1364 = vlaneseq
    %v1365 = vshrl.u32 %v1364, 7
    %v1366 = vsub.s32 6, %v1365
    %v1367 = vrot.slane %v1297, %v1366
    %v1368 = vlaneseq
    %v1369 = vshrl.u32 %v1368, 7
    %v1370 = vsub.s32 7, %v1369
    %v1371 = vrot.slane %v1297, %v1370
    %v1372 = vlaneseq
    %v1373 = vshrl.u32 %v1372, 7
    %v1374 = vsub.s32 0, %v1373
    %v1375 = vrot.slane %v1300, %v1374
    %v1376 = vlaneseq
    %v1377 = vshrl.u32 %v1376, 7
    %v1378 = vsub.s32 1, %v1377
    %v1379 = vrot.slane %v1300, %v1378
    %v1380 = vlaneseq
    %v1381 = vshrl.u32 %v1380, 7
    %v1382 = vsub.s32 2, %v1381
    %v1383 = vrot.slane %v1300, %v1382
    %v1384 = vlaneseq
    %v1385 = vshrl.u32 %v1384, 7
    %v1386 = vsub.s32 3, %v1385
    %v1387 = vrot.slane %v1300, %v1386
    %v1388 = vlaneseq
    %v1389 = vshrl.u32 %v1388, 7
    %v1390 = vsub.s32 4, %v1389
    %v1391 = vrot.slane %v1300, %v1390
    %v1392 = vlaneseq
    %v1393 = vshrl.u32 %v1392, 7
    %v1394 = vsub.s32 5, %v1393
    %v1395 = vrot.slane %v1300, %v1394
    %v1396 = vlaneseq
    %v1397 = vshrl.u32 %v1396, 7
    %v1398 = vsub.s32 6, %v1397
    %v1399 = vrot.slane %v1300, %v1398
    %v1400 = vlaneseq
    %v1401 = vshrl.u32 %v1400, 7
    %v1402 = vsub.s32 7, %v1401
    %v1403 = vrot.slane %v1300, %v1402
    %v1404 = vlaneseq
    %v1405 = vshrl.u32 %v1404, 7
    %v1406 = vsub.s32 0, %v1405
    %v1407 = vrot.slane %v1303, %v1406
    %v1408 = vlaneseq
    %v1409 = vshrl.u32 %v1408, 7
    %v1410 = vsub.s32 1, %v1409
    %v1411 = vrot.slane %v1303, %v1410
    %v1412 = vlaneseq
    %v1413 = vshrl.u32 %v1412, 7
    %v1414 = vsub.s32 2, %v1413
    %v1415 = vrot.slane %v1303, %v1414
    %v1416 = vlaneseq
    %v1417 = vshrl.u32 %v1416, 7
    %v1418 = vsub.s32 3, %v1417
    %v1419 = vrot.slane %v1303, %v1418
    %v1420 = vlaneseq
    %v1421 = vshrl.u32 %v1420, 7
    %v1422 = vsub.s32 4, %v1421
    %v1423 = vrot.slane %v1303, %v1422
    %v1424 = vlaneseq
    %v1425 = vshrl.u32 %v1424, 7
    %v1426 = vsub.s32 5, %v1425
    %v1427 = vrot.slane %v1303, %v1426
    %v1428 = vlaneseq
    %v1429 = vshrl.u32 %v1428, 7
    %v1430 = vsub.s32 6, %v1429
    %v1431 = vrot.slane %v1303, %v1430
    %v1432 = vlaneseq
    %v1433 = vshrl.u32 %v1432, 7
    %v1434 = vsub.s32 7, %v1433
    %v1435 = vrot.slane %v1303, %v1434
    %v1468 = vsub.f32 %v1058, %v1311
    %v1469 = vsub.f32 %v1059, %v1315
    %v1470 = vsub.f32 %v1060, %v1319
    %v1471 = vsub.f32 %v1061, %v1323
    %v1472 = vsub.f32 %v1062, %v1327
    %v1473 = vsub.f32 %v1063, %v1331
    %v1474 = vsub.f32 %v1064, %v1335
    %v1475 = vsub.f32 %v1065, %v1339
    %v1476 = vsub.f32 %v1066, %v1343
    %v1477 = vsub.f32 %v1067, %v1347
    %v1478 = vsub.f32 %v1068, %v1351
    %v1479 = vsub.f32 %v1069, %v1355
    %v1480 = vsub.f32 %v1070, %v1359
    %v1481 = vsub.f32 %v1071, %v1363
    %v1482 = vsub.f32 %v1072, %v1367
    %v1483 = vsub.f32 %v1073, %v1371
    %v1484 = vsub.f32 %v1074, %v1375
    %v1485 = vsub.f32 %v1075, %v1379
    %v1486 = vsub.f32 %v1076, %v1383
    %v1487 = vsub.f32 %v1077, %v1387
    %v1488 = vsub.f32 %v1078, %v1391
    %v1489 = vsub.f32 %v1079, %v1395
    %v1490 = vsub.f32 %v1080, %v1399
    %v1491 = vsub.f32 %v1081, %v1403
    %v1492 = vsub.f32 %v1082, %v1407
    %v1493 = vsub.f32 %v1083, %v1411
    %v1494 = vsub.f32 %v1084, %v1415
    %v1495 = vsub.f32 %v1085, %v1419
    %v1496 = vsub.f32 %v1086, %v1423
    %v1497 = vsub.f32 %v1087, %v1427
    %v1498 = vsub.f32 %v1088, %v1431
    %v1499 = vsub.f32 %v1089, %v1435
    %1501 = vset.pattern.permute.xlu0 0
    %1502 = vperm.xlu0 %1501, %v1468
    %v1503 = vpop.permute.xlu0 %1502
    %1505 = vset.pattern.permute.xlu0 0
    %1506 = vperm.xlu0 %1505, %v1469
    %v1507 = vpop.permute.xlu0 %1506
    %1509 = vset.pattern.permute.xlu0 0
    %1510 = vperm.xlu0 %1509, %v1470
    %v1511 = vpop.permute.xlu0 %1510
    %1513 = vset.pattern.permute.xlu0 0
    %1514 = vperm.xlu0 %1513, %v1471
    %v1515 = vpop.permute.xlu0 %1514
    %1517 = vset.pattern.permute.xlu0 0
    %1518 = vperm.xlu0 %1517, %v1472
    %v1519 = vpop.permute.xlu0 %1518
    %1521 = vset.pattern.permute.xlu0 0
    %1522 = vperm.xlu0 %1521, %v1473
    %v1523 = vpop.permute.xlu0 %1522
    %1525 = vset.pattern.permute.xlu0 0
    %1526 = vperm.xlu0 %1525, %v1474
    %v1527 = vpop.permute.xlu0 %1526
    %1529 = vset.pattern.permute.xlu0 0
    %1530 = vperm.xlu0 %1529, %v1475
    %v1531 = vpop.permute.xlu0 %1530
    %1533 = vset.pattern.permute.xlu0 0
    %1534 = vperm.xlu0 %1533, %v1476
    %v1535 = vpop.permute.xlu0 %1534
    %1537 = vset.pattern.permute.xlu0 0
    %1538 = vperm.xlu0 %1537, %v1477
    %v1539 = vpop.permute.xlu0 %1538
    %1541 = vset.pattern.permute.xlu0 0
    %1542 = vperm.xlu0 %1541, %v1478
    %v1543 = vpop.permute.xlu0 %1542
    %1545 = vset.pattern.permute.xlu0 0
    %1546 = vperm.xlu0 %1545, %v1479
    %v1547 = vpop.permute.xlu0 %1546
    %1549 = vset.pattern.permute.xlu0 0
    %1550 = vperm.xlu0 %1549, %v1480
    %v1551 = vpop.permute.xlu0 %1550
    %1553 = vset.pattern.permute.xlu0 0
    %1554 = vperm.xlu0 %1553, %v1481
    %v1555 = vpop.permute.xlu0 %1554
    %1557 = vset.pattern.permute.xlu0 0
    %1558 = vperm.xlu0 %1557, %v1482
    %v1559 = vpop.permute.xlu0 %1558
    %1561 = vset.pattern.permute.xlu0 0
    %1562 = vperm.xlu0 %1561, %v1483
    %v1563 = vpop.permute.xlu0 %1562
    %1565 = vset.pattern.permute.xlu0 0
    %1566 = vperm.xlu0 %1565, %v1484
    %v1567 = vpop.permute.xlu0 %1566
    %1569 = vset.pattern.permute.xlu0 0
    %1570 = vperm.xlu0 %1569, %v1485
    %v1571 = vpop.permute.xlu0 %1570
    %1573 = vset.pattern.permute.xlu0 0
    %1574 = vperm.xlu0 %1573, %v1486
    %v1575 = vpop.permute.xlu0 %1574
    %1577 = vset.pattern.permute.xlu0 0
    %1578 = vperm.xlu0 %1577, %v1487
    %v1579 = vpop.permute.xlu0 %1578
    %1581 = vset.pattern.permute.xlu0 0
    %1582 = vperm.xlu0 %1581, %v1488
    %v1583 = vpop.permute.xlu0 %1582
    %1585 = vset.pattern.permute.xlu0 0
    %1586 = vperm.xlu0 %1585, %v1489
    %v1587 = vpop.permute.xlu0 %1586
    %1589 = vset.pattern.permute.xlu0 0
    %1590 = vperm.xlu0 %1589, %v1490
    %v1591 = vpop.permute.xlu0 %1590
    %1593 = vset.pattern.permute.xlu0 0
    %1594 = vperm.xlu0 %1593, %v1491
    %v1595 = vpop.permute.xlu0 %1594
    %1597 = vset.pattern.permute.xlu0 0
    %1598 = vperm.xlu0 %1597, %v1492
    %v1599 = vpop.permute.xlu0 %1598
    %1601 = vset.pattern.permute.xlu0 0
    %1602 = vperm.xlu0 %1601, %v1493
    %v1603 = vpop.permute.xlu0 %1602
    %1605 = vset.pattern.permute.xlu0 0
    %1606 = vperm.xlu0 %1605, %v1494
    %v1607 = vpop.permute.xlu0 %1606
    %1609 = vset.pattern.permute.xlu0 0
    %1610 = vperm.xlu0 %1609, %v1495
    %v1611 = vpop.permute.xlu0 %1610
    %1613 = vset.pattern.permute.xlu0 0
    %1614 = vperm.xlu0 %1613, %v1496
    %v1615 = vpop.permute.xlu0 %1614
    %1617 = vset.pattern.permute.xlu0 0
    %1618 = vperm.xlu0 %1617, %v1497
    %v1619 = vpop.permute.xlu0 %1618
    %1621 = vset.pattern.permute.xlu0 0
    %1622 = vperm.xlu0 %1621, %v1498
    %v1623 = vpop.permute.xlu0 %1622
    %1625 = vset.pattern.permute.xlu0 0
    %1626 = vperm.xlu0 %1625, %v1499
    %v1627 = vpop.permute.xlu0 %1626
    %v1628 = vlaneseq
    %v1629 = vshrl.u32 %v1628, 7
    %v1630 = vsub.s32 0, %v1629
    %v1631 = vrot.slane %v1503, %v1630
    %v1632 = vlaneseq
    %v1633 = vshrl.u32 %v1632, 7
    %v1634 = vsub.s32 1, %v1633
    %v1635 = vrot.slane %v1503, %v1634
    %v1636 = vlaneseq
    %v1637 = vshrl.u32 %v1636, 7
    %v1638 = vsub.s32 2, %v1637
    %v1639 = vrot.slane %v1503, %v1638
    %v1640 = vlaneseq
    %v1641 = vshrl.u32 %v1640, 7
    %v1642 = vsub.s32 3, %v1641
    %v1643 = vrot.slane %v1503, %v1642
    %v1644 = vlaneseq
    %v1645 = vshrl.u32 %v1644, 7
    %v1646 = vsub.s32 4, %v1645
    %v1647 = vrot.slane %v1503, %v1646
    %v1648 = vlaneseq
    %v1649 = vshrl.u32 %v1648, 7
    %v1650 = vsub.s32 5, %v1649
    %v1651 = vrot.slane %v1503, %v1650
    %v1652 = vlaneseq
    %v1653 = vshrl.u32 %v1652, 7
    %v1654 = vsub.s32 6, %v1653
    %v1655 = vrot.slane %v1503, %v1654
    %v1656 = vlaneseq
    %v1657 = vshrl.u32 %v1656, 7
    %v1658 = vsub.s32 7, %v1657
    %v1659 = vrot.slane %v1503, %v1658
    %v1660 = vlaneseq
    %v1661 = vshrl.u32 %v1660, 7
    %v1662 = vsub.s32 0, %v1661
    %v1663 = vrot.slane %v1507, %v1662
    %v1664 = vlaneseq
    %v1665 = vshrl.u32 %v1664, 7
    %v1666 = vsub.s32 1, %v1665
    %v1667 = vrot.slane %v1507, %v1666
    %v1668 = vlaneseq
    %v1669 = vshrl.u32 %v1668, 7
    %v1670 = vsub.s32 2, %v1669
    %v1671 = vrot.slane %v1507, %v1670
    %v1672 = vlaneseq
    %v1673 = vshrl.u32 %v1672, 7
    %v1674 = vsub.s32 3, %v1673
    %v1675 = vrot.slane %v1507, %v1674
    %v1676 = vlaneseq
    %v1677 = vshrl.u32 %v1676, 7
    %v1678 = vsub.s32 4, %v1677
    %v1679 = vrot.slane %v1507, %v1678
    %v1680 = vlaneseq
    %v1681 = vshrl.u32 %v1680, 7
    %v1682 = vsub.s32 5, %v1681
    %v1683 = vrot.slane %v1507, %v1682
    %v1684 = vlaneseq
    %v1685 = vshrl.u32 %v1684, 7
    %v1686 = vsub.s32 6, %v1685
    %v1687 = vrot.slane %v1507, %v1686
    %v1688 = vlaneseq
    %v1689 = vshrl.u32 %v1688, 7
    %v1690 = vsub.s32 7, %v1689
    %v1691 = vrot.slane %v1507, %v1690
    %v1692 = vlaneseq
    %v1693 = vshrl.u32 %v1692, 7
    %v1694 = vsub.s32 0, %v1693
    %v1695 = vrot.slane %v1511, %v1694
    %v1696 = vlaneseq
    %v1697 = vshrl.u32 %v1696, 7
    %v1698 = vsub.s32 1, %v1697
    %v1699 = vrot.slane %v1511, %v1698
    %v1700 = vlaneseq
    %v1701 = vshrl.u32 %v1700, 7
    %v1702 = vsub.s32 2, %v1701
    %v1703 = vrot.slane %v1511, %v1702
    %v1704 = vlaneseq
    %v1705 = vshrl.u32 %v1704, 7
    %v1706 = vsub.s32 3, %v1705
    %v1707 = vrot.slane %v1511, %v1706
    %v1708 = vlaneseq
    %v1709 = vshrl.u32 %v1708, 7
    %v1710 = vsub.s32 4, %v1709
    %v1711 = vrot.slane %v1511, %v1710
    %v1712 = vlaneseq
    %v1713 = vshrl.u32 %v1712, 7
    %v1714 = vsub.s32 5, %v1713
    %v1715 = vrot.slane %v1511, %v1714
    %v1716 = vlaneseq
    %v1717 = vshrl.u32 %v1716, 7
    %v1718 = vsub.s32 6, %v1717
    %v1719 = vrot.slane %v1511, %v1718
    %v1720 = vlaneseq
    %v1721 = vshrl.u32 %v1720, 7
    %v1722 = vsub.s32 7, %v1721
    %v1723 = vrot.slane %v1511, %v1722
    %v1724 = vlaneseq
    %v1725 = vshrl.u32 %v1724, 7
    %v1726 = vsub.s32 0, %v1725
    %v1727 = vrot.slane %v1515, %v1726
    %v1728 = vlaneseq
    %v1729 = vshrl.u32 %v1728, 7
    %v1730 = vsub.s32 1, %v1729
    %v1731 = vrot.slane %v1515, %v1730
    %v1732 = vlaneseq
    %v1733 = vshrl.u32 %v1732, 7
    %v1734 = vsub.s32 2, %v1733
    %v1735 = vrot.slane %v1515, %v1734
    %v1736 = vlaneseq
    %v1737 = vshrl.u32 %v1736, 7
    %v1738 = vsub.s32 3, %v1737
    %v1739 = vrot.slane %v1515, %v1738
    %v1740 = vlaneseq
    %v1741 = vshrl.u32 %v1740, 7
    %v1742 = vsub.s32 4, %v1741
    %v1743 = vrot.slane %v1515, %v1742
    %v1744 = vlaneseq
    %v1745 = vshrl.u32 %v1744, 7
    %v1746 = vsub.s32 5, %v1745
    %v1747 = vrot.slane %v1515, %v1746
    %v1748 = vlaneseq
    %v1749 = vshrl.u32 %v1748, 7
    %v1750 = vsub.s32 6, %v1749
    %v1751 = vrot.slane %v1515, %v1750
    %v1752 = vlaneseq
    %v1753 = vshrl.u32 %v1752, 7
    %v1754 = vsub.s32 7, %v1753
    %v1755 = vrot.slane %v1515, %v1754
    %v1756 = vlaneseq
    %v1757 = vshrl.u32 %v1756, 7
    %v1758 = vsub.s32 0, %v1757
    %v1759 = vrot.slane %v1519, %v1758
    %v1760 = vlaneseq
    %v1761 = vshrl.u32 %v1760, 7
    %v1762 = vsub.s32 1, %v1761
    %v1763 = vrot.slane %v1519, %v1762
    %v1764 = vlaneseq
    %v1765 = vshrl.u32 %v1764, 7
    %v1766 = vsub.s32 2, %v1765
    %v1767 = vrot.slane %v1519, %v1766
    %v1768 = vlaneseq
    %v1769 = vshrl.u32 %v1768, 7
    %v1770 = vsub.s32 3, %v1769
    %v1771 = vrot.slane %v1519, %v1770
    %v1772 = vlaneseq
    %v1773 = vshrl.u32 %v1772, 7
    %v1774 = vsub.s32 4, %v1773
    %v1775 = vrot.slane %v1519, %v1774
    %v1776 = vlaneseq
    %v1777 = vshrl.u32 %v1776, 7
    %v1778 = vsub.s32 5, %v1777
    %v1779 = vrot.slane %v1519, %v1778
    %v1780 = vlaneseq
    %v1781 = vshrl.u32 %v1780, 7
    %v1782 = vsub.s32 6, %v1781
    %v1783 = vrot.slane %v1519, %v1782
    %v1784 = vlaneseq
    %v1785 = vshrl.u32 %v1784, 7
    %v1786 = vsub.s32 7, %v1785
    %v1787 = vrot.slane %v1519, %v1786
    %v1788 = vlaneseq
    %v1789 = vshrl.u32 %v1788, 7
    %v1790 = vsub.s32 0, %v1789
    %v1791 = vrot.slane %v1523, %v1790
    %v1792 = vlaneseq
    %v1793 = vshrl.u32 %v1792, 7
    %v1794 = vsub.s32 1, %v1793
    %v1795 = vrot.slane %v1523, %v1794
    %v1796 = vlaneseq
    %v1797 = vshrl.u32 %v1796, 7
    %v1798 = vsub.s32 2, %v1797
    %v1799 = vrot.slane %v1523, %v1798
    %v1800 = vlaneseq
    %v1801 = vshrl.u32 %v1800, 7
    %v1802 = vsub.s32 3, %v1801
    %v1803 = vrot.slane %v1523, %v1802
    %v1804 = vlaneseq
    %v1805 = vshrl.u32 %v1804, 7
    %v1806 = vsub.s32 4, %v1805
    %v1807 = vrot.slane %v1523, %v1806
    %v1808 = vlaneseq
    %v1809 = vshrl.u32 %v1808, 7
    %v1810 = vsub.s32 5, %v1809
    %v1811 = vrot.slane %v1523, %v1810
    %v1812 = vlaneseq
    %v1813 = vshrl.u32 %v1812, 7
    %v1814 = vsub.s32 6, %v1813
    %v1815 = vrot.slane %v1523, %v1814
    %v1816 = vlaneseq
    %v1817 = vshrl.u32 %v1816, 7
    %v1818 = vsub.s32 7, %v1817
    %v1819 = vrot.slane %v1523, %v1818
    %v1820 = vlaneseq
    %v1821 = vshrl.u32 %v1820, 7
    %v1822 = vsub.s32 0, %v1821
    %v1823 = vrot.slane %v1527, %v1822
    %v1824 = vlaneseq
    %v1825 = vshrl.u32 %v1824, 7
    %v1826 = vsub.s32 1, %v1825
    %v1827 = vrot.slane %v1527, %v1826
    %v1828 = vlaneseq
    %v1829 = vshrl.u32 %v1828, 7
    %v1830 = vsub.s32 2, %v1829
    %v1831 = vrot.slane %v1527, %v1830
    %v1832 = vlaneseq
    %v1833 = vshrl.u32 %v1832, 7
    %v1834 = vsub.s32 3, %v1833
    %v1835 = vrot.slane %v1527, %v1834
    %v1836 = vlaneseq
    %v1837 = vshrl.u32 %v1836, 7
    %v1838 = vsub.s32 4, %v1837
    %v1839 = vrot.slane %v1527, %v1838
    %v1840 = vlaneseq
    %v1841 = vshrl.u32 %v1840, 7
    %v1842 = vsub.s32 5, %v1841
    %v1843 = vrot.slane %v1527, %v1842
    %v1844 = vlaneseq
    %v1845 = vshrl.u32 %v1844, 7
    %v1846 = vsub.s32 6, %v1845
    %v1847 = vrot.slane %v1527, %v1846
    %v1848 = vlaneseq
    %v1849 = vshrl.u32 %v1848, 7
    %v1850 = vsub.s32 7, %v1849
    %v1851 = vrot.slane %v1527, %v1850
    %v1852 = vlaneseq
    %v1853 = vshrl.u32 %v1852, 7
    %v1854 = vsub.s32 0, %v1853
    %v1855 = vrot.slane %v1531, %v1854
    %v1856 = vlaneseq
    %v1857 = vshrl.u32 %v1856, 7
    %v1858 = vsub.s32 1, %v1857
    %v1859 = vrot.slane %v1531, %v1858
    %v1860 = vlaneseq
    %v1861 = vshrl.u32 %v1860, 7
    %v1862 = vsub.s32 2, %v1861
    %v1863 = vrot.slane %v1531, %v1862
    %v1864 = vlaneseq
    %v1865 = vshrl.u32 %v1864, 7
    %v1866 = vsub.s32 3, %v1865
    %v1867 = vrot.slane %v1531, %v1866
    %v1868 = vlaneseq
    %v1869 = vshrl.u32 %v1868, 7
    %v1870 = vsub.s32 4, %v1869
    %v1871 = vrot.slane %v1531, %v1870
    %v1872 = vlaneseq
    %v1873 = vshrl.u32 %v1872, 7
    %v1874 = vsub.s32 5, %v1873
    %v1875 = vrot.slane %v1531, %v1874
    %v1876 = vlaneseq
    %v1877 = vshrl.u32 %v1876, 7
    %v1878 = vsub.s32 6, %v1877
    %v1879 = vrot.slane %v1531, %v1878
    %v1880 = vlaneseq
    %v1881 = vshrl.u32 %v1880, 7
    %v1882 = vsub.s32 7, %v1881
    %v1883 = vrot.slane %v1531, %v1882
    %v1884 = vlaneseq
    %v1885 = vshrl.u32 %v1884, 7
    %v1886 = vsub.s32 0, %v1885
    %v1887 = vrot.slane %v1535, %v1886
    %v1888 = vlaneseq
    %v1889 = vshrl.u32 %v1888, 7
    %v1890 = vsub.s32 1, %v1889
    %v1891 = vrot.slane %v1535, %v1890
    %v1892 = vlaneseq
    %v1893 = vshrl.u32 %v1892, 7
    %v1894 = vsub.s32 2, %v1893
    %v1895 = vrot.slane %v1535, %v1894
    %v1896 = vlaneseq
    %v1897 = vshrl.u32 %v1896, 7
    %v1898 = vsub.s32 3, %v1897
    %v1899 = vrot.slane %v1535, %v1898
    %v1900 = vlaneseq
    %v1901 = vshrl.u32 %v1900, 7
    %v1902 = vsub.s32 4, %v1901
    %v1903 = vrot.slane %v1535, %v1902
    %v1904 = vlaneseq
    %v1905 = vshrl.u32 %v1904, 7
    %v1906 = vsub.s32 5, %v1905
    %v1907 = vrot.slane %v1535, %v1906
    %v1908 = vlaneseq
    %v1909 = vshrl.u32 %v1908, 7
    %v1910 = vsub.s32 6, %v1909
    %v1911 = vrot.slane %v1535, %v1910
    %v1912 = vlaneseq
    %v1913 = vshrl.u32 %v1912, 7
    %v1914 = vsub.s32 7, %v1913
    %v1915 = vrot.slane %v1535, %v1914
    %v1916 = vlaneseq
    %v1917 = vshrl.u32 %v1916, 7
    %v1918 = vsub.s32 0, %v1917
    %v1919 = vrot.slane %v1539, %v1918
    %v1920 = vlaneseq
    %v1921 = vshrl.u32 %v1920, 7
    %v1922 = vsub.s32 1, %v1921
    %v1923 = vrot.slane %v1539, %v1922
    %v1924 = vlaneseq
    %v1925 = vshrl.u32 %v1924, 7
    %v1926 = vsub.s32 2, %v1925
    %v1927 = vrot.slane %v1539, %v1926
    %v1928 = vlaneseq
    %v1929 = vshrl.u32 %v1928, 7
    %v1930 = vsub.s32 3, %v1929
    %v1931 = vrot.slane %v1539, %v1930
    %v1932 = vlaneseq
    %v1933 = vshrl.u32 %v1932, 7
    %v1934 = vsub.s32 4, %v1933
    %v1935 = vrot.slane %v1539, %v1934
    %v1936 = vlaneseq
    %v1937 = vshrl.u32 %v1936, 7
    %v1938 = vsub.s32 5, %v1937
    %v1939 = vrot.slane %v1539, %v1938
    %v1940 = vlaneseq
    %v1941 = vshrl.u32 %v1940, 7
    %v1942 = vsub.s32 6, %v1941
    %v1943 = vrot.slane %v1539, %v1942
    %v1944 = vlaneseq
    %v1945 = vshrl.u32 %v1944, 7
    %v1946 = vsub.s32 7, %v1945
    %v1947 = vrot.slane %v1539, %v1946
    %v1948 = vlaneseq
    %v1949 = vshrl.u32 %v1948, 7
    %v1950 = vsub.s32 0, %v1949
    %v1951 = vrot.slane %v1543, %v1950
    %v1952 = vlaneseq
    %v1953 = vshrl.u32 %v1952, 7
    %v1954 = vsub.s32 1, %v1953
    %v1955 = vrot.slane %v1543, %v1954
    %v1956 = vlaneseq
    %v1957 = vshrl.u32 %v1956, 7
    %v1958 = vsub.s32 2, %v1957
    %v1959 = vrot.slane %v1543, %v1958
    %v1960 = vlaneseq
    %v1961 = vshrl.u32 %v1960, 7
    %v1962 = vsub.s32 3, %v1961
    %v1963 = vrot.slane %v1543, %v1962
    %v1964 = vlaneseq
    %v1965 = vshrl.u32 %v1964, 7
    %v1966 = vsub.s32 4, %v1965
    %v1967 = vrot.slane %v1543, %v1966
    %v1968 = vlaneseq
    %v1969 = vshrl.u32 %v1968, 7
    %v1970 = vsub.s32 5, %v1969
    %v1971 = vrot.slane %v1543, %v1970
    %v1972 = vlaneseq
    %v1973 = vshrl.u32 %v1972, 7
    %v1974 = vsub.s32 6, %v1973
    %v1975 = vrot.slane %v1543, %v1974
    %v1976 = vlaneseq
    %v1977 = vshrl.u32 %v1976, 7
    %v1978 = vsub.s32 7, %v1977
    %v1979 = vrot.slane %v1543, %v1978
    %v1980 = vlaneseq
    %v1981 = vshrl.u32 %v1980, 7
    %v1982 = vsub.s32 0, %v1981
    %v1983 = vrot.slane %v1547, %v1982
    %v1984 = vlaneseq
    %v1985 = vshrl.u32 %v1984, 7
    %v1986 = vsub.s32 1, %v1985
    %v1987 = vrot.slane %v1547, %v1986
    %v1988 = vlaneseq
    %v1989 = vshrl.u32 %v1988, 7
    %v1990 = vsub.s32 2, %v1989
    %v1991 = vrot.slane %v1547, %v1990
    %v1992 = vlaneseq
    %v1993 = vshrl.u32 %v1992, 7
    %v1994 = vsub.s32 3, %v1993
    %v1995 = vrot.slane %v1547, %v1994
    %v1996 = vlaneseq
    %v1997 = vshrl.u32 %v1996, 7
    %v1998 = vsub.s32 4, %v1997
    %v1999 = vrot.slane %v1547, %v1998
    %v2000 = vlaneseq
    %v2001 = vshrl.u32 %v2000, 7
    %v2002 = vsub.s32 5, %v2001
    %v2003 = vrot.slane %v1547, %v2002
    %v2004 = vlaneseq
    %v2005 = vshrl.u32 %v2004, 7
    %v2006 = vsub.s32 6, %v2005
    %v2007 = vrot.slane %v1547, %v2006
    %v2008 = vlaneseq
    %v2009 = vshrl.u32 %v2008, 7
    %v2010 = vsub.s32 7, %v2009
    %v2011 = vrot.slane %v1547, %v2010
    %v2012 = vlaneseq
    %v2013 = vshrl.u32 %v2012, 7
    %v2014 = vsub.s32 0, %v2013
    %v2015 = vrot.slane %v1551, %v2014
    %v2016 = vlaneseq
    %v2017 = vshrl.u32 %v2016, 7
    %v2018 = vsub.s32 1, %v2017
    %v2019 = vrot.slane %v1551, %v2018
    %v2020 = vlaneseq
    %v2021 = vshrl.u32 %v2020, 7
    %v2022 = vsub.s32 2, %v2021
    %v2023 = vrot.slane %v1551, %v2022
    %v2024 = vlaneseq
    %v2025 = vshrl.u32 %v2024, 7
    %v2026 = vsub.s32 3, %v2025
    %v2027 = vrot.slane %v1551, %v2026
    %v2028 = vlaneseq
    %v2029 = vshrl.u32 %v2028, 7
    %v2030 = vsub.s32 4, %v2029
    %v2031 = vrot.slane %v1551, %v2030
    %v2032 = vlaneseq
    %v2033 = vshrl.u32 %v2032, 7
    %v2034 = vsub.s32 5, %v2033
    %v2035 = vrot.slane %v1551, %v2034
    %v2036 = vlaneseq
    %v2037 = vshrl.u32 %v2036, 7
    %v2038 = vsub.s32 6, %v2037
    %v2039 = vrot.slane %v1551, %v2038
    %v2040 = vlaneseq
    %v2041 = vshrl.u32 %v2040, 7
    %v2042 = vsub.s32 7, %v2041
    %v2043 = vrot.slane %v1551, %v2042
    %v2044 = vlaneseq
    %v2045 = vshrl.u32 %v2044, 7
    %v2046 = vsub.s32 0, %v2045
    %v2047 = vrot.slane %v1555, %v2046
    %v2048 = vlaneseq
    %v2049 = vshrl.u32 %v2048, 7
    %v2050 = vsub.s32 1, %v2049
    %v2051 = vrot.slane %v1555, %v2050
    %v2052 = vlaneseq
    %v2053 = vshrl.u32 %v2052, 7
    %v2054 = vsub.s32 2, %v2053
    %v2055 = vrot.slane %v1555, %v2054
    %v2056 = vlaneseq
    %v2057 = vshrl.u32 %v2056, 7
    %v2058 = vsub.s32 3, %v2057
    %v2059 = vrot.slane %v1555, %v2058
    %v2060 = vlaneseq
    %v2061 = vshrl.u32 %v2060, 7
    %v2062 = vsub.s32 4, %v2061
    %v2063 = vrot.slane %v1555, %v2062
    %v2064 = vlaneseq
    %v2065 = vshrl.u32 %v2064, 7
    %v2066 = vsub.s32 5, %v2065
    %v2067 = vrot.slane %v1555, %v2066
    %v2068 = vlaneseq
    %v2069 = vshrl.u32 %v2068, 7
    %v2070 = vsub.s32 6, %v2069
    %v2071 = vrot.slane %v1555, %v2070
    %v2072 = vlaneseq
    %v2073 = vshrl.u32 %v2072, 7
    %v2074 = vsub.s32 7, %v2073
    %v2075 = vrot.slane %v1555, %v2074
    %v2076 = vlaneseq
    %v2077 = vshrl.u32 %v2076, 7
    %v2078 = vsub.s32 0, %v2077
    %v2079 = vrot.slane %v1559, %v2078
    %v2080 = vlaneseq
    %v2081 = vshrl.u32 %v2080, 7
    %v2082 = vsub.s32 1, %v2081
    %v2083 = vrot.slane %v1559, %v2082
    %v2084 = vlaneseq
    %v2085 = vshrl.u32 %v2084, 7
    %v2086 = vsub.s32 2, %v2085
    %v2087 = vrot.slane %v1559, %v2086
    %v2088 = vlaneseq
    %v2089 = vshrl.u32 %v2088, 7
    %v2090 = vsub.s32 3, %v2089
    %v2091 = vrot.slane %v1559, %v2090
    %v2092 = vlaneseq
    %v2093 = vshrl.u32 %v2092, 7
    %v2094 = vsub.s32 4, %v2093
    %v2095 = vrot.slane %v1559, %v2094
    %v2096 = vlaneseq
    %v2097 = vshrl.u32 %v2096, 7
    %v2098 = vsub.s32 5, %v2097
    %v2099 = vrot.slane %v1559, %v2098
    %v2100 = vlaneseq
    %v2101 = vshrl.u32 %v2100, 7
    %v2102 = vsub.s32 6, %v2101
    %v2103 = vrot.slane %v1559, %v2102
    %v2104 = vlaneseq
    %v2105 = vshrl.u32 %v2104, 7
    %v2106 = vsub.s32 7, %v2105
    %v2107 = vrot.slane %v1559, %v2106
    %v2108 = vlaneseq
    %v2109 = vshrl.u32 %v2108, 7
    %v2110 = vsub.s32 0, %v2109
    %v2111 = vrot.slane %v1563, %v2110
    %v2112 = vlaneseq
    %v2113 = vshrl.u32 %v2112, 7
    %v2114 = vsub.s32 1, %v2113
    %v2115 = vrot.slane %v1563, %v2114
    %v2116 = vlaneseq
    %v2117 = vshrl.u32 %v2116, 7
    %v2118 = vsub.s32 2, %v2117
    %v2119 = vrot.slane %v1563, %v2118
    %v2120 = vlaneseq
    %v2121 = vshrl.u32 %v2120, 7
    %v2122 = vsub.s32 3, %v2121
    %v2123 = vrot.slane %v1563, %v2122
    %v2124 = vlaneseq
    %v2125 = vshrl.u32 %v2124, 7
    %v2126 = vsub.s32 4, %v2125
    %v2127 = vrot.slane %v1563, %v2126
    %v2128 = vlaneseq
    %v2129 = vshrl.u32 %v2128, 7
    %v2130 = vsub.s32 5, %v2129
    %v2131 = vrot.slane %v1563, %v2130
    %v2132 = vlaneseq
    %v2133 = vshrl.u32 %v2132, 7
    %v2134 = vsub.s32 6, %v2133
    %v2135 = vrot.slane %v1563, %v2134
    %v2136 = vlaneseq
    %v2137 = vshrl.u32 %v2136, 7
    %v2138 = vsub.s32 7, %v2137
    %v2139 = vrot.slane %v1563, %v2138
    %v2140 = vlaneseq
    %v2141 = vshrl.u32 %v2140, 7
    %v2142 = vsub.s32 0, %v2141
    %v2143 = vrot.slane %v1567, %v2142
    %v2144 = vlaneseq
    %v2145 = vshrl.u32 %v2144, 7
    %v2146 = vsub.s32 1, %v2145
    %v2147 = vrot.slane %v1567, %v2146
    %v2148 = vlaneseq
    %v2149 = vshrl.u32 %v2148, 7
    %v2150 = vsub.s32 2, %v2149
    %v2151 = vrot.slane %v1567, %v2150
    %v2152 = vlaneseq
    %v2153 = vshrl.u32 %v2152, 7
    %v2154 = vsub.s32 3, %v2153
    %v2155 = vrot.slane %v1567, %v2154
    %v2156 = vlaneseq
    %v2157 = vshrl.u32 %v2156, 7
    %v2158 = vsub.s32 4, %v2157
    %v2159 = vrot.slane %v1567, %v2158
    %v2160 = vlaneseq
    %v2161 = vshrl.u32 %v2160, 7
    %v2162 = vsub.s32 5, %v2161
    %v2163 = vrot.slane %v1567, %v2162
    %v2164 = vlaneseq
    %v2165 = vshrl.u32 %v2164, 7
    %v2166 = vsub.s32 6, %v2165
    %v2167 = vrot.slane %v1567, %v2166
    %v2168 = vlaneseq
    %v2169 = vshrl.u32 %v2168, 7
    %v2170 = vsub.s32 7, %v2169
    %v2171 = vrot.slane %v1567, %v2170
    %v2172 = vlaneseq
    %v2173 = vshrl.u32 %v2172, 7
    %v2174 = vsub.s32 0, %v2173
    %v2175 = vrot.slane %v1571, %v2174
    %v2176 = vlaneseq
    %v2177 = vshrl.u32 %v2176, 7
    %v2178 = vsub.s32 1, %v2177
    %v2179 = vrot.slane %v1571, %v2178
    %v2180 = vlaneseq
    %v2181 = vshrl.u32 %v2180, 7
    %v2182 = vsub.s32 2, %v2181
    %v2183 = vrot.slane %v1571, %v2182
    %v2184 = vlaneseq
    %v2185 = vshrl.u32 %v2184, 7
    %v2186 = vsub.s32 3, %v2185
    %v2187 = vrot.slane %v1571, %v2186
    %v2188 = vlaneseq
    %v2189 = vshrl.u32 %v2188, 7
    %v2190 = vsub.s32 4, %v2189
    %v2191 = vrot.slane %v1571, %v2190
    %v2192 = vlaneseq
    %v2193 = vshrl.u32 %v2192, 7
    %v2194 = vsub.s32 5, %v2193
    %v2195 = vrot.slane %v1571, %v2194
    %v2196 = vlaneseq
    %v2197 = vshrl.u32 %v2196, 7
    %v2198 = vsub.s32 6, %v2197
    %v2199 = vrot.slane %v1571, %v2198
    %v2200 = vlaneseq
    %v2201 = vshrl.u32 %v2200, 7
    %v2202 = vsub.s32 7, %v2201
    %v2203 = vrot.slane %v1571, %v2202
    %v2204 = vlaneseq
    %v2205 = vshrl.u32 %v2204, 7
    %v2206 = vsub.s32 0, %v2205
    %v2207 = vrot.slane %v1575, %v2206
    %v2208 = vlaneseq
    %v2209 = vshrl.u32 %v2208, 7
    %v2210 = vsub.s32 1, %v2209
    %v2211 = vrot.slane %v1575, %v2210
    %v2212 = vlaneseq
    %v2213 = vshrl.u32 %v2212, 7
    %v2214 = vsub.s32 2, %v2213
    %v2215 = vrot.slane %v1575, %v2214
    %v2216 = vlaneseq
    %v2217 = vshrl.u32 %v2216, 7
    %v2218 = vsub.s32 3, %v2217
    %v2219 = vrot.slane %v1575, %v2218
    %v2220 = vlaneseq
    %v2221 = vshrl.u32 %v2220, 7
    %v2222 = vsub.s32 4, %v2221
    %v2223 = vrot.slane %v1575, %v2222
    %v2224 = vlaneseq
    %v2225 = vshrl.u32 %v2224, 7
    %v2226 = vsub.s32 5, %v2225
    %v2227 = vrot.slane %v1575, %v2226
    %v2228 = vlaneseq
    %v2229 = vshrl.u32 %v2228, 7
    %v2230 = vsub.s32 6, %v2229
    %v2231 = vrot.slane %v1575, %v2230
    %v2232 = vlaneseq
    %v2233 = vshrl.u32 %v2232, 7
    %v2234 = vsub.s32 7, %v2233
    %v2235 = vrot.slane %v1575, %v2234
    %v2236 = vlaneseq
    %v2237 = vshrl.u32 %v2236, 7
    %v2238 = vsub.s32 0, %v2237
    %v2239 = vrot.slane %v1579, %v2238
    %v2240 = vlaneseq
    %v2241 = vshrl.u32 %v2240, 7
    %v2242 = vsub.s32 1, %v2241
    %v2243 = vrot.slane %v1579, %v2242
    %v2244 = vlaneseq
    %v2245 = vshrl.u32 %v2244, 7
    %v2246 = vsub.s32 2, %v2245
    %v2247 = vrot.slane %v1579, %v2246
    %v2248 = vlaneseq
    %v2249 = vshrl.u32 %v2248, 7
    %v2250 = vsub.s32 3, %v2249
    %v2251 = vrot.slane %v1579, %v2250
    %v2252 = vlaneseq
    %v2253 = vshrl.u32 %v2252, 7
    %v2254 = vsub.s32 4, %v2253
    %v2255 = vrot.slane %v1579, %v2254
    %v2256 = vlaneseq
    %v2257 = vshrl.u32 %v2256, 7
    %v2258 = vsub.s32 5, %v2257
    %v2259 = vrot.slane %v1579, %v2258
    %v2260 = vlaneseq
    %v2261 = vshrl.u32 %v2260, 7
    %v2262 = vsub.s32 6, %v2261
    %v2263 = vrot.slane %v1579, %v2262
    %v2264 = vlaneseq
    %v2265 = vshrl.u32 %v2264, 7
    %v2266 = vsub.s32 7, %v2265
    %v2267 = vrot.slane %v1579, %v2266
    %v2268 = vlaneseq
    %v2269 = vshrl.u32 %v2268, 7
    %v2270 = vsub.s32 0, %v2269
    %v2271 = vrot.slane %v1583, %v2270
    %v2272 = vlaneseq
    %v2273 = vshrl.u32 %v2272, 7
    %v2274 = vsub.s32 1, %v2273
    %v2275 = vrot.slane %v1583, %v2274
    %v2276 = vlaneseq
    %v2277 = vshrl.u32 %v2276, 7
    %v2278 = vsub.s32 2, %v2277
    %v2279 = vrot.slane %v1583, %v2278
    %v2280 = vlaneseq
    %v2281 = vshrl.u32 %v2280, 7
    %v2282 = vsub.s32 3, %v2281
    %v2283 = vrot.slane %v1583, %v2282
    %v2284 = vlaneseq
    %v2285 = vshrl.u32 %v2284, 7
    %v2286 = vsub.s32 4, %v2285
    %v2287 = vrot.slane %v1583, %v2286
    %v2288 = vlaneseq
    %v2289 = vshrl.u32 %v2288, 7
    %v2290 = vsub.s32 5, %v2289
    %v2291 = vrot.slane %v1583, %v2290
    %v2292 = vlaneseq
    %v2293 = vshrl.u32 %v2292, 7
    %v2294 = vsub.s32 6, %v2293
    %v2295 = vrot.slane %v1583, %v2294
    %v2296 = vlaneseq
    %v2297 = vshrl.u32 %v2296, 7
    %v2298 = vsub.s32 7, %v2297
    %v2299 = vrot.slane %v1583, %v2298
    %v2300 = vlaneseq
    %v2301 = vshrl.u32 %v2300, 7
    %v2302 = vsub.s32 0, %v2301
    %v2303 = vrot.slane %v1587, %v2302
    %v2304 = vlaneseq
    %v2305 = vshrl.u32 %v2304, 7
    %v2306 = vsub.s32 1, %v2305
    %v2307 = vrot.slane %v1587, %v2306
    %v2308 = vlaneseq
    %v2309 = vshrl.u32 %v2308, 7
    %v2310 = vsub.s32 2, %v2309
    %v2311 = vrot.slane %v1587, %v2310
    %v2312 = vlaneseq
    %v2313 = vshrl.u32 %v2312, 7
    %v2314 = vsub.s32 3, %v2313
    %v2315 = vrot.slane %v1587, %v2314
    %v2316 = vlaneseq
    %v2317 = vshrl.u32 %v2316, 7
    %v2318 = vsub.s32 4, %v2317
    %v2319 = vrot.slane %v1587, %v2318
    %v2320 = vlaneseq
    %v2321 = vshrl.u32 %v2320, 7
    %v2322 = vsub.s32 5, %v2321
    %v2323 = vrot.slane %v1587, %v2322
    %v2324 = vlaneseq
    %v2325 = vshrl.u32 %v2324, 7
    %v2326 = vsub.s32 6, %v2325
    %v2327 = vrot.slane %v1587, %v2326
    %v2328 = vlaneseq
    %v2329 = vshrl.u32 %v2328, 7
    %v2330 = vsub.s32 7, %v2329
    %v2331 = vrot.slane %v1587, %v2330
    %v2332 = vlaneseq
    %v2333 = vshrl.u32 %v2332, 7
    %v2334 = vsub.s32 0, %v2333
    %v2335 = vrot.slane %v1591, %v2334
    %v2336 = vlaneseq
    %v2337 = vshrl.u32 %v2336, 7
    %v2338 = vsub.s32 1, %v2337
    %v2339 = vrot.slane %v1591, %v2338
    %v2340 = vlaneseq
    %v2341 = vshrl.u32 %v2340, 7
    %v2342 = vsub.s32 2, %v2341
    %v2343 = vrot.slane %v1591, %v2342
    %v2344 = vlaneseq
    %v2345 = vshrl.u32 %v2344, 7
    %v2346 = vsub.s32 3, %v2345
    %v2347 = vrot.slane %v1591, %v2346
    %v2348 = vlaneseq
    %v2349 = vshrl.u32 %v2348, 7
    %v2350 = vsub.s32 4, %v2349
    %v2351 = vrot.slane %v1591, %v2350
    %v2352 = vlaneseq
    %v2353 = vshrl.u32 %v2352, 7
    %v2354 = vsub.s32 5, %v2353
    %v2355 = vrot.slane %v1591, %v2354
    %v2356 = vlaneseq
    %v2357 = vshrl.u32 %v2356, 7
    %v2358 = vsub.s32 6, %v2357
    %v2359 = vrot.slane %v1591, %v2358
    %v2360 = vlaneseq
    %v2361 = vshrl.u32 %v2360, 7
    %v2362 = vsub.s32 7, %v2361
    %v2363 = vrot.slane %v1591, %v2362
    %v2364 = vlaneseq
    %v2365 = vshrl.u32 %v2364, 7
    %v2366 = vsub.s32 0, %v2365
    %v2367 = vrot.slane %v1595, %v2366
    %v2368 = vlaneseq
    %v2369 = vshrl.u32 %v2368, 7
    %v2370 = vsub.s32 1, %v2369
    %v2371 = vrot.slane %v1595, %v2370
    %v2372 = vlaneseq
    %v2373 = vshrl.u32 %v2372, 7
    %v2374 = vsub.s32 2, %v2373
    %v2375 = vrot.slane %v1595, %v2374
    %v2376 = vlaneseq
    %v2377 = vshrl.u32 %v2376, 7
    %v2378 = vsub.s32 3, %v2377
    %v2379 = vrot.slane %v1595, %v2378
    %v2380 = vlaneseq
    %v2381 = vshrl.u32 %v2380, 7
    %v2382 = vsub.s32 4, %v2381
    %v2383 = vrot.slane %v1595, %v2382
    %v2384 = vlaneseq
    %v2385 = vshrl.u32 %v2384, 7
    %v2386 = vsub.s32 5, %v2385
    %v2387 = vrot.slane %v1595, %v2386
    %v2388 = vlaneseq
    %v2389 = vshrl.u32 %v2388, 7
    %v2390 = vsub.s32 6, %v2389
    %v2391 = vrot.slane %v1595, %v2390
    %v2392 = vlaneseq
    %v2393 = vshrl.u32 %v2392, 7
    %v2394 = vsub.s32 7, %v2393
    %v2395 = vrot.slane %v1595, %v2394
    %v2396 = vlaneseq
    %v2397 = vshrl.u32 %v2396, 7
    %v2398 = vsub.s32 0, %v2397
    %v2399 = vrot.slane %v1599, %v2398
    %v2400 = vlaneseq
    %v2401 = vshrl.u32 %v2400, 7
    %v2402 = vsub.s32 1, %v2401
    %v2403 = vrot.slane %v1599, %v2402
    %v2404 = vlaneseq
    %v2405 = vshrl.u32 %v2404, 7
    %v2406 = vsub.s32 2, %v2405
    %v2407 = vrot.slane %v1599, %v2406
    %v2408 = vlaneseq
    %v2409 = vshrl.u32 %v2408, 7
    %v2410 = vsub.s32 3, %v2409
    %v2411 = vrot.slane %v1599, %v2410
    %v2412 = vlaneseq
    %v2413 = vshrl.u32 %v2412, 7
    %v2414 = vsub.s32 4, %v2413
    %v2415 = vrot.slane %v1599, %v2414
    %v2416 = vlaneseq
    %v2417 = vshrl.u32 %v2416, 7
    %v2418 = vsub.s32 5, %v2417
    %v2419 = vrot.slane %v1599, %v2418
    %v2420 = vlaneseq
    %v2421 = vshrl.u32 %v2420, 7
    %v2422 = vsub.s32 6, %v2421
    %v2423 = vrot.slane %v1599, %v2422
    %v2424 = vlaneseq
    %v2425 = vshrl.u32 %v2424, 7
    %v2426 = vsub.s32 7, %v2425
    %v2427 = vrot.slane %v1599, %v2426
    %v2428 = vlaneseq
    %v2429 = vshrl.u32 %v2428, 7
    %v2430 = vsub.s32 0, %v2429
    %v2431 = vrot.slane %v1603, %v2430
    %v2432 = vlaneseq
    %v2433 = vshrl.u32 %v2432, 7
    %v2434 = vsub.s32 1, %v2433
    %v2435 = vrot.slane %v1603, %v2434
    %v2436 = vlaneseq
    %v2437 = vshrl.u32 %v2436, 7
    %v2438 = vsub.s32 2, %v2437
    %v2439 = vrot.slane %v1603, %v2438
    %v2440 = vlaneseq
    %v2441 = vshrl.u32 %v2440, 7
    %v2442 = vsub.s32 3, %v2441
    %v2443 = vrot.slane %v1603, %v2442
    %v2444 = vlaneseq
    %v2445 = vshrl.u32 %v2444, 7
    %v2446 = vsub.s32 4, %v2445
    %v2447 = vrot.slane %v1603, %v2446
    %v2448 = vlaneseq
    %v2449 = vshrl.u32 %v2448, 7
    %v2450 = vsub.s32 5, %v2449
    %v2451 = vrot.slane %v1603, %v2450
    %v2452 = vlaneseq
    %v2453 = vshrl.u32 %v2452, 7
    %v2454 = vsub.s32 6, %v2453
    %v2455 = vrot.slane %v1603, %v2454
    %v2456 = vlaneseq
    %v2457 = vshrl.u32 %v2456, 7
    %v2458 = vsub.s32 7, %v2457
    %v2459 = vrot.slane %v1603, %v2458
    %v2460 = vlaneseq
    %v2461 = vshrl.u32 %v2460, 7
    %v2462 = vsub.s32 0, %v2461
    %v2463 = vrot.slane %v1607, %v2462
    %v2464 = vlaneseq
    %v2465 = vshrl.u32 %v2464, 7
    %v2466 = vsub.s32 1, %v2465
    %v2467 = vrot.slane %v1607, %v2466
    %v2468 = vlaneseq
    %v2469 = vshrl.u32 %v2468, 7
    %v2470 = vsub.s32 2, %v2469
    %v2471 = vrot.slane %v1607, %v2470
    %v2472 = vlaneseq
    %v2473 = vshrl.u32 %v2472, 7
    %v2474 = vsub.s32 3, %v2473
    %v2475 = vrot.slane %v1607, %v2474
    %v2476 = vlaneseq
    %v2477 = vshrl.u32 %v2476, 7
    %v2478 = vsub.s32 4, %v2477
    %v2479 = vrot.slane %v1607, %v2478
    %v2480 = vlaneseq
    %v2481 = vshrl.u32 %v2480, 7
    %v2482 = vsub.s32 5, %v2481
    %v2483 = vrot.slane %v1607, %v2482
    %v2484 = vlaneseq
    %v2485 = vshrl.u32 %v2484, 7
    %v2486 = vsub.s32 6, %v2485
    %v2487 = vrot.slane %v1607, %v2486
    %v2488 = vlaneseq
    %v2489 = vshrl.u32 %v2488, 7
    %v2490 = vsub.s32 7, %v2489
    %v2491 = vrot.slane %v1607, %v2490
    %v2492 = vlaneseq
    %v2493 = vshrl.u32 %v2492, 7
    %v2494 = vsub.s32 0, %v2493
    %v2495 = vrot.slane %v1611, %v2494
    %v2496 = vlaneseq
    %v2497 = vshrl.u32 %v2496, 7
    %v2498 = vsub.s32 1, %v2497
    %v2499 = vrot.slane %v1611, %v2498
    %v2500 = vlaneseq
    %v2501 = vshrl.u32 %v2500, 7
    %v2502 = vsub.s32 2, %v2501
    %v2503 = vrot.slane %v1611, %v2502
    %v2504 = vlaneseq
    %v2505 = vshrl.u32 %v2504, 7
    %v2506 = vsub.s32 3, %v2505
    %v2507 = vrot.slane %v1611, %v2506
    %v2508 = vlaneseq
    %v2509 = vshrl.u32 %v2508, 7
    %v2510 = vsub.s32 4, %v2509
    %v2511 = vrot.slane %v1611, %v2510
    %v2512 = vlaneseq
    %v2513 = vshrl.u32 %v2512, 7
    %v2514 = vsub.s32 5, %v2513
    %v2515 = vrot.slane %v1611, %v2514
    %v2516 = vlaneseq
    %v2517 = vshrl.u32 %v2516, 7
    %v2518 = vsub.s32 6, %v2517
    %v2519 = vrot.slane %v1611, %v2518
    %v2520 = vlaneseq
    %v2521 = vshrl.u32 %v2520, 7
    %v2522 = vsub.s32 7, %v2521
    %v2523 = vrot.slane %v1611, %v2522
    %v2524 = vlaneseq
    %v2525 = vshrl.u32 %v2524, 7
    %v2526 = vsub.s32 0, %v2525
    %v2527 = vrot.slane %v1615, %v2526
    %v2528 = vlaneseq
    %v2529 = vshrl.u32 %v2528, 7
    %v2530 = vsub.s32 1, %v2529
    %v2531 = vrot.slane %v1615, %v2530
    %v2532 = vlaneseq
    %v2533 = vshrl.u32 %v2532, 7
    %v2534 = vsub.s32 2, %v2533
    %v2535 = vrot.slane %v1615, %v2534
    %v2536 = vlaneseq
    %v2537 = vshrl.u32 %v2536, 7
    %v2538 = vsub.s32 3, %v2537
    %v2539 = vrot.slane %v1615, %v2538
    %v2540 = vlaneseq
    %v2541 = vshrl.u32 %v2540, 7
    %v2542 = vsub.s32 4, %v2541
    %v2543 = vrot.slane %v1615, %v2542
    %v2544 = vlaneseq
    %v2545 = vshrl.u32 %v2544, 7
    %v2546 = vsub.s32 5, %v2545
    %v2547 = vrot.slane %v1615, %v2546
    %v2548 = vlaneseq
    %v2549 = vshrl.u32 %v2548, 7
    %v2550 = vsub.s32 6, %v2549
    %v2551 = vrot.slane %v1615, %v2550
    %v2552 = vlaneseq
    %v2553 = vshrl.u32 %v2552, 7
    %v2554 = vsub.s32 7, %v2553
    %v2555 = vrot.slane %v1615, %v2554
    %v2556 = vlaneseq
    %v2557 = vshrl.u32 %v2556, 7
    %v2558 = vsub.s32 0, %v2557
    %v2559 = vrot.slane %v1619, %v2558
    %v2560 = vlaneseq
    %v2561 = vshrl.u32 %v2560, 7
    %v2562 = vsub.s32 1, %v2561
    %v2563 = vrot.slane %v1619, %v2562
    %v2564 = vlaneseq
    %v2565 = vshrl.u32 %v2564, 7
    %v2566 = vsub.s32 2, %v2565
    %v2567 = vrot.slane %v1619, %v2566
    %v2568 = vlaneseq
    %v2569 = vshrl.u32 %v2568, 7
    %v2570 = vsub.s32 3, %v2569
    %v2571 = vrot.slane %v1619, %v2570
    %v2572 = vlaneseq
    %v2573 = vshrl.u32 %v2572, 7
    %v2574 = vsub.s32 4, %v2573
    %v2575 = vrot.slane %v1619, %v2574
    %v2576 = vlaneseq
    %v2577 = vshrl.u32 %v2576, 7
    %v2578 = vsub.s32 5, %v2577
    %v2579 = vrot.slane %v1619, %v2578
    %v2580 = vlaneseq
    %v2581 = vshrl.u32 %v2580, 7
    %v2582 = vsub.s32 6, %v2581
    %v2583 = vrot.slane %v1619, %v2582
    %v2584 = vlaneseq
    %v2585 = vshrl.u32 %v2584, 7
    %v2586 = vsub.s32 7, %v2585
    %v2587 = vrot.slane %v1619, %v2586
    %v2588 = vlaneseq
    %v2589 = vshrl.u32 %v2588, 7
    %v2590 = vsub.s32 0, %v2589
    %v2591 = vrot.slane %v1623, %v2590
    %v2592 = vlaneseq
    %v2593 = vshrl.u32 %v2592, 7
    %v2594 = vsub.s32 1, %v2593
    %v2595 = vrot.slane %v1623, %v2594
    %v2596 = vlaneseq
    %v2597 = vshrl.u32 %v2596, 7
    %v2598 = vsub.s32 2, %v2597
    %v2599 = vrot.slane %v1623, %v2598
    %v2600 = vlaneseq
    %v2601 = vshrl.u32 %v2600, 7
    %v2602 = vsub.s32 3, %v2601
    %v2603 = vrot.slane %v1623, %v2602
    %v2604 = vlaneseq
    %v2605 = vshrl.u32 %v2604, 7
    %v2606 = vsub.s32 4, %v2605
    %v2607 = vrot.slane %v1623, %v2606
    %v2608 = vlaneseq
    %v2609 = vshrl.u32 %v2608, 7
    %v2610 = vsub.s32 5, %v2609
    %v2611 = vrot.slane %v1623, %v2610
    %v2612 = vlaneseq
    %v2613 = vshrl.u32 %v2612, 7
    %v2614 = vsub.s32 6, %v2613
    %v2615 = vrot.slane %v1623, %v2614
    %v2616 = vlaneseq
    %v2617 = vshrl.u32 %v2616, 7
    %v2618 = vsub.s32 7, %v2617
    %v2619 = vrot.slane %v1623, %v2618
    %v2620 = vlaneseq
    %v2621 = vshrl.u32 %v2620, 7
    %v2622 = vsub.s32 0, %v2621
    %v2623 = vrot.slane %v1627, %v2622
    %v2624 = vlaneseq
    %v2625 = vshrl.u32 %v2624, 7
    %v2626 = vsub.s32 1, %v2625
    %v2627 = vrot.slane %v1627, %v2626
    %v2628 = vlaneseq
    %v2629 = vshrl.u32 %v2628, 7
    %v2630 = vsub.s32 2, %v2629
    %v2631 = vrot.slane %v1627, %v2630
    %v2632 = vlaneseq
    %v2633 = vshrl.u32 %v2632, 7
    %v2634 = vsub.s32 3, %v2633
    %v2635 = vrot.slane %v1627, %v2634
    %v2636 = vlaneseq
    %v2637 = vshrl.u32 %v2636, 7
    %v2638 = vsub.s32 4, %v2637
    %v2639 = vrot.slane %v1627, %v2638
    %v2640 = vlaneseq
    %v2641 = vshrl.u32 %v2640, 7
    %v2642 = vsub.s32 5, %v2641
    %v2643 = vrot.slane %v1627, %v2642
    %v2644 = vlaneseq
    %v2645 = vshrl.u32 %v2644, 7
    %v2646 = vsub.s32 6, %v2645
    %v2647 = vrot.slane %v1627, %v2646
    %v2648 = vlaneseq
    %v2649 = vshrl.u32 %v2648, 7
    %v2650 = vsub.s32 7, %v2649
    %v2651 = vrot.slane %v1627, %v2650
    %vm2908 = vcmp.ge.f32.partialorder %v1468, %v1631
    %vm2909 = vcmp.ge.f32.partialorder %v1468, %v1635
    %vm2910 = vcmp.ge.f32.partialorder %v1468, %v1639
    %vm2911 = vcmp.ge.f32.partialorder %v1468, %v1643
    %vm2912 = vcmp.ge.f32.partialorder %v1468, %v1647
    %vm2913 = vcmp.ge.f32.partialorder %v1468, %v1651
    %vm2914 = vcmp.ge.f32.partialorder %v1468, %v1655
    %vm2915 = vcmp.ge.f32.partialorder %v1468, %v1659
    %vm2916 = vcmp.ge.f32.partialorder %v1469, %v1663
    %vm2917 = vcmp.ge.f32.partialorder %v1469, %v1667
    %vm2918 = vcmp.ge.f32.partialorder %v1469, %v1671
    %vm2919 = vcmp.ge.f32.partialorder %v1469, %v1675
    %vm2920 = vcmp.ge.f32.partialorder %v1469, %v1679
    %vm2921 = vcmp.ge.f32.partialorder %v1469, %v1683
    %vm2922 = vcmp.ge.f32.partialorder %v1469, %v1687
    %vm2923 = vcmp.ge.f32.partialorder %v1469, %v1691
    %vm2924 = vcmp.ge.f32.partialorder %v1470, %v1695
    %vm2925 = vcmp.ge.f32.partialorder %v1470, %v1699
    %vm2926 = vcmp.ge.f32.partialorder %v1470, %v1703
    %vm2927 = vcmp.ge.f32.partialorder %v1470, %v1707
    %vm2928 = vcmp.ge.f32.partialorder %v1470, %v1711
    %vm2929 = vcmp.ge.f32.partialorder %v1470, %v1715
    %vm2930 = vcmp.ge.f32.partialorder %v1470, %v1719
    %vm2931 = vcmp.ge.f32.partialorder %v1470, %v1723
    %vm2932 = vcmp.ge.f32.partialorder %v1471, %v1727
    %vm2933 = vcmp.ge.f32.partialorder %v1471, %v1731
    %vm2934 = vcmp.ge.f32.partialorder %v1471, %v1735
    %vm2935 = vcmp.ge.f32.partialorder %v1471, %v1739
    %vm2936 = vcmp.ge.f32.partialorder %v1471, %v1743
    %vm2937 = vcmp.ge.f32.partialorder %v1471, %v1747
    %vm2938 = vcmp.ge.f32.partialorder %v1471, %v1751
    %vm2939 = vcmp.ge.f32.partialorder %v1471, %v1755
    %vm2940 = vcmp.ge.f32.partialorder %v1472, %v1759
    %vm2941 = vcmp.ge.f32.partialorder %v1472, %v1763
    %vm2942 = vcmp.ge.f32.partialorder %v1472, %v1767
    %vm2943 = vcmp.ge.f32.partialorder %v1472, %v1771
    %vm2944 = vcmp.ge.f32.partialorder %v1472, %v1775
    %vm2945 = vcmp.ge.f32.partialorder %v1472, %v1779
    %vm2946 = vcmp.ge.f32.partialorder %v1472, %v1783
    %vm2947 = vcmp.ge.f32.partialorder %v1472, %v1787
    %vm2948 = vcmp.ge.f32.partialorder %v1473, %v1791
    %vm2949 = vcmp.ge.f32.partialorder %v1473, %v1795
    %vm2950 = vcmp.ge.f32.partialorder %v1473, %v1799
    %vm2951 = vcmp.ge.f32.partialorder %v1473, %v1803
    %vm2952 = vcmp.ge.f32.partialorder %v1473, %v1807
    %vm2953 = vcmp.ge.f32.partialorder %v1473, %v1811
    %vm2954 = vcmp.ge.f32.partialorder %v1473, %v1815
    %vm2955 = vcmp.ge.f32.partialorder %v1473, %v1819
    %vm2956 = vcmp.ge.f32.partialorder %v1474, %v1823
    %vm2957 = vcmp.ge.f32.partialorder %v1474, %v1827
    %vm2958 = vcmp.ge.f32.partialorder %v1474, %v1831
    %vm2959 = vcmp.ge.f32.partialorder %v1474, %v1835
    %vm2960 = vcmp.ge.f32.partialorder %v1474, %v1839
    %vm2961 = vcmp.ge.f32.partialorder %v1474, %v1843
    %vm2962 = vcmp.ge.f32.partialorder %v1474, %v1847
    %vm2963 = vcmp.ge.f32.partialorder %v1474, %v1851
    %vm2964 = vcmp.ge.f32.partialorder %v1475, %v1855
    %vm2965 = vcmp.ge.f32.partialorder %v1475, %v1859
    %vm2966 = vcmp.ge.f32.partialorder %v1475, %v1863
    %vm2967 = vcmp.ge.f32.partialorder %v1475, %v1867
    %vm2968 = vcmp.ge.f32.partialorder %v1475, %v1871
    %vm2969 = vcmp.ge.f32.partialorder %v1475, %v1875
    %vm2970 = vcmp.ge.f32.partialorder %v1475, %v1879
    %vm2971 = vcmp.ge.f32.partialorder %v1475, %v1883
    %vm2972 = vcmp.ge.f32.partialorder %v1476, %v1887
    %vm2973 = vcmp.ge.f32.partialorder %v1476, %v1891
    %vm2974 = vcmp.ge.f32.partialorder %v1476, %v1895
    %vm2975 = vcmp.ge.f32.partialorder %v1476, %v1899
    %vm2976 = vcmp.ge.f32.partialorder %v1476, %v1903
    %vm2977 = vcmp.ge.f32.partialorder %v1476, %v1907
    %vm2978 = vcmp.ge.f32.partialorder %v1476, %v1911
    %vm2979 = vcmp.ge.f32.partialorder %v1476, %v1915
    %vm2980 = vcmp.ge.f32.partialorder %v1477, %v1919
    %vm2981 = vcmp.ge.f32.partialorder %v1477, %v1923
    %vm2982 = vcmp.ge.f32.partialorder %v1477, %v1927
    %vm2983 = vcmp.ge.f32.partialorder %v1477, %v1931
    %vm2984 = vcmp.ge.f32.partialorder %v1477, %v1935
    %vm2985 = vcmp.ge.f32.partialorder %v1477, %v1939
    %vm2986 = vcmp.ge.f32.partialorder %v1477, %v1943
    %vm2987 = vcmp.ge.f32.partialorder %v1477, %v1947
    %vm2988 = vcmp.ge.f32.partialorder %v1478, %v1951
    %vm2989 = vcmp.ge.f32.partialorder %v1478, %v1955
    %vm2990 = vcmp.ge.f32.partialorder %v1478, %v1959
    %vm2991 = vcmp.ge.f32.partialorder %v1478, %v1963
    %vm2992 = vcmp.ge.f32.partialorder %v1478, %v1967
    %vm2993 = vcmp.ge.f32.partialorder %v1478, %v1971
    %vm2994 = vcmp.ge.f32.partialorder %v1478, %v1975
    %vm2995 = vcmp.ge.f32.partialorder %v1478, %v1979
    %vm2996 = vcmp.ge.f32.partialorder %v1479, %v1983
    %vm2997 = vcmp.ge.f32.partialorder %v1479, %v1987
    %vm2998 = vcmp.ge.f32.partialorder %v1479, %v1991
    %vm2999 = vcmp.ge.f32.partialorder %v1479, %v1995
    %vm3000 = vcmp.ge.f32.partialorder %v1479, %v1999
    %vm3001 = vcmp.ge.f32.partialorder %v1479, %v2003
    %vm3002 = vcmp.ge.f32.partialorder %v1479, %v2007
    %vm3003 = vcmp.ge.f32.partialorder %v1479, %v2011
    %vm3004 = vcmp.ge.f32.partialorder %v1480, %v2015
    %vm3005 = vcmp.ge.f32.partialorder %v1480, %v2019
    %vm3006 = vcmp.ge.f32.partialorder %v1480, %v2023
    %vm3007 = vcmp.ge.f32.partialorder %v1480, %v2027
    %vm3008 = vcmp.ge.f32.partialorder %v1480, %v2031
    %vm3009 = vcmp.ge.f32.partialorder %v1480, %v2035
    %vm3010 = vcmp.ge.f32.partialorder %v1480, %v2039
    %vm3011 = vcmp.ge.f32.partialorder %v1480, %v2043
    %vm3012 = vcmp.ge.f32.partialorder %v1481, %v2047
    %vm3013 = vcmp.ge.f32.partialorder %v1481, %v2051
    %vm3014 = vcmp.ge.f32.partialorder %v1481, %v2055
    %vm3015 = vcmp.ge.f32.partialorder %v1481, %v2059
    %vm3016 = vcmp.ge.f32.partialorder %v1481, %v2063
    %vm3017 = vcmp.ge.f32.partialorder %v1481, %v2067
    %vm3018 = vcmp.ge.f32.partialorder %v1481, %v2071
    %vm3019 = vcmp.ge.f32.partialorder %v1481, %v2075
    %vm3020 = vcmp.ge.f32.partialorder %v1482, %v2079
    %vm3021 = vcmp.ge.f32.partialorder %v1482, %v2083
    %vm3022 = vcmp.ge.f32.partialorder %v1482, %v2087
    %vm3023 = vcmp.ge.f32.partialorder %v1482, %v2091
    %vm3024 = vcmp.ge.f32.partialorder %v1482, %v2095
    %vm3025 = vcmp.ge.f32.partialorder %v1482, %v2099
    %vm3026 = vcmp.ge.f32.partialorder %v1482, %v2103
    %vm3027 = vcmp.ge.f32.partialorder %v1482, %v2107
    %vm3028 = vcmp.ge.f32.partialorder %v1483, %v2111
    %vm3029 = vcmp.ge.f32.partialorder %v1483, %v2115
    %vm3030 = vcmp.ge.f32.partialorder %v1483, %v2119
    %vm3031 = vcmp.ge.f32.partialorder %v1483, %v2123
    %vm3032 = vcmp.ge.f32.partialorder %v1483, %v2127
    %vm3033 = vcmp.ge.f32.partialorder %v1483, %v2131
    %vm3034 = vcmp.ge.f32.partialorder %v1483, %v2135
    %vm3035 = vcmp.ge.f32.partialorder %v1483, %v2139
    %vm3036 = vcmp.ge.f32.partialorder %v1484, %v2143
    %vm3037 = vcmp.ge.f32.partialorder %v1484, %v2147
    %vm3038 = vcmp.ge.f32.partialorder %v1484, %v2151
    %vm3039 = vcmp.ge.f32.partialorder %v1484, %v2155
    %vm3040 = vcmp.ge.f32.partialorder %v1484, %v2159
    %vm3041 = vcmp.ge.f32.partialorder %v1484, %v2163
    %vm3042 = vcmp.ge.f32.partialorder %v1484, %v2167
    %vm3043 = vcmp.ge.f32.partialorder %v1484, %v2171
    %vm3044 = vcmp.ge.f32.partialorder %v1485, %v2175
    %vm3045 = vcmp.ge.f32.partialorder %v1485, %v2179
    %vm3046 = vcmp.ge.f32.partialorder %v1485, %v2183
    %vm3047 = vcmp.ge.f32.partialorder %v1485, %v2187
    %vm3048 = vcmp.ge.f32.partialorder %v1485, %v2191
    %vm3049 = vcmp.ge.f32.partialorder %v1485, %v2195
    %vm3050 = vcmp.ge.f32.partialorder %v1485, %v2199
    %vm3051 = vcmp.ge.f32.partialorder %v1485, %v2203
    %vm3052 = vcmp.ge.f32.partialorder %v1486, %v2207
    %vm3053 = vcmp.ge.f32.partialorder %v1486, %v2211
    %vm3054 = vcmp.ge.f32.partialorder %v1486, %v2215
    %vm3055 = vcmp.ge.f32.partialorder %v1486, %v2219
    %vm3056 = vcmp.ge.f32.partialorder %v1486, %v2223
    %vm3057 = vcmp.ge.f32.partialorder %v1486, %v2227
    %vm3058 = vcmp.ge.f32.partialorder %v1486, %v2231
    %vm3059 = vcmp.ge.f32.partialorder %v1486, %v2235
    %vm3060 = vcmp.ge.f32.partialorder %v1487, %v2239
    %vm3061 = vcmp.ge.f32.partialorder %v1487, %v2243
    %vm3062 = vcmp.ge.f32.partialorder %v1487, %v2247
    %vm3063 = vcmp.ge.f32.partialorder %v1487, %v2251
    %vm3064 = vcmp.ge.f32.partialorder %v1487, %v2255
    %vm3065 = vcmp.ge.f32.partialorder %v1487, %v2259
    %vm3066 = vcmp.ge.f32.partialorder %v1487, %v2263
    %vm3067 = vcmp.ge.f32.partialorder %v1487, %v2267
    %vm3068 = vcmp.ge.f32.partialorder %v1488, %v2271
    %vm3069 = vcmp.ge.f32.partialorder %v1488, %v2275
    %vm3070 = vcmp.ge.f32.partialorder %v1488, %v2279
    %vm3071 = vcmp.ge.f32.partialorder %v1488, %v2283
    %vm3072 = vcmp.ge.f32.partialorder %v1488, %v2287
    %vm3073 = vcmp.ge.f32.partialorder %v1488, %v2291
    %vm3074 = vcmp.ge.f32.partialorder %v1488, %v2295
    %vm3075 = vcmp.ge.f32.partialorder %v1488, %v2299
    %vm3076 = vcmp.ge.f32.partialorder %v1489, %v2303
    %vm3077 = vcmp.ge.f32.partialorder %v1489, %v2307
    %vm3078 = vcmp.ge.f32.partialorder %v1489, %v2311
    %vm3079 = vcmp.ge.f32.partialorder %v1489, %v2315
    %vm3080 = vcmp.ge.f32.partialorder %v1489, %v2319
    %vm3081 = vcmp.ge.f32.partialorder %v1489, %v2323
    %vm3082 = vcmp.ge.f32.partialorder %v1489, %v2327
    %vm3083 = vcmp.ge.f32.partialorder %v1489, %v2331
    %vm3084 = vcmp.ge.f32.partialorder %v1490, %v2335
    %vm3085 = vcmp.ge.f32.partialorder %v1490, %v2339
    %vm3086 = vcmp.ge.f32.partialorder %v1490, %v2343
    %vm3087 = vcmp.ge.f32.partialorder %v1490, %v2347
    %vm3088 = vcmp.ge.f32.partialorder %v1490, %v2351
    %vm3089 = vcmp.ge.f32.partialorder %v1490, %v2355
    %vm3090 = vcmp.ge.f32.partialorder %v1490, %v2359
    %vm3091 = vcmp.ge.f32.partialorder %v1490, %v2363
    %vm3092 = vcmp.ge.f32.partialorder %v1491, %v2367
    %vm3093 = vcmp.ge.f32.partialorder %v1491, %v2371
    %vm3094 = vcmp.ge.f32.partialorder %v1491, %v2375
    %vm3095 = vcmp.ge.f32.partialorder %v1491, %v2379
    %vm3096 = vcmp.ge.f32.partialorder %v1491, %v2383
    %vm3097 = vcmp.ge.f32.partialorder %v1491, %v2387
    %vm3098 = vcmp.ge.f32.partialorder %v1491, %v2391
    %vm3099 = vcmp.ge.f32.partialorder %v1491, %v2395
    %vm3100 = vcmp.ge.f32.partialorder %v1492, %v2399
    %vm3101 = vcmp.ge.f32.partialorder %v1492, %v2403
    %vm3102 = vcmp.ge.f32.partialorder %v1492, %v2407
    %vm3103 = vcmp.ge.f32.partialorder %v1492, %v2411
    %vm3104 = vcmp.ge.f32.partialorder %v1492, %v2415
    %vm3105 = vcmp.ge.f32.partialorder %v1492, %v2419
    %vm3106 = vcmp.ge.f32.partialorder %v1492, %v2423
    %vm3107 = vcmp.ge.f32.partialorder %v1492, %v2427
    %vm3108 = vcmp.ge.f32.partialorder %v1493, %v2431
    %vm3109 = vcmp.ge.f32.partialorder %v1493, %v2435
    %vm3110 = vcmp.ge.f32.partialorder %v1493, %v2439
    %vm3111 = vcmp.ge.f32.partialorder %v1493, %v2443
    %vm3112 = vcmp.ge.f32.partialorder %v1493, %v2447
    %vm3113 = vcmp.ge.f32.partialorder %v1493, %v2451
    %vm3114 = vcmp.ge.f32.partialorder %v1493, %v2455
    %vm3115 = vcmp.ge.f32.partialorder %v1493, %v2459
    %vm3116 = vcmp.ge.f32.partialorder %v1494, %v2463
    %vm3117 = vcmp.ge.f32.partialorder %v1494, %v2467
    %vm3118 = vcmp.ge.f32.partialorder %v1494, %v2471
    %vm3119 = vcmp.ge.f32.partialorder %v1494, %v2475
    %vm3120 = vcmp.ge.f32.partialorder %v1494, %v2479
    %vm3121 = vcmp.ge.f32.partialorder %v1494, %v2483
    %vm3122 = vcmp.ge.f32.partialorder %v1494, %v2487
    %vm3123 = vcmp.ge.f32.partialorder %v1494, %v2491
    %vm3124 = vcmp.ge.f32.partialorder %v1495, %v2495
    %vm3125 = vcmp.ge.f32.partialorder %v1495, %v2499
    %vm3126 = vcmp.ge.f32.partialorder %v1495, %v2503
    %vm3127 = vcmp.ge.f32.partialorder %v1495, %v2507
    %vm3128 = vcmp.ge.f32.partialorder %v1495, %v2511
    %vm3129 = vcmp.ge.f32.partialorder %v1495, %v2515
    %vm3130 = vcmp.ge.f32.partialorder %v1495, %v2519
    %vm3131 = vcmp.ge.f32.partialorder %v1495, %v2523
    %vm3132 = vcmp.ge.f32.partialorder %v1496, %v2527
    %vm3133 = vcmp.ge.f32.partialorder %v1496, %v2531
    %vm3134 = vcmp.ge.f32.partialorder %v1496, %v2535
    %vm3135 = vcmp.ge.f32.partialorder %v1496, %v2539
    %vm3136 = vcmp.ge.f32.partialorder %v1496, %v2543
    %vm3137 = vcmp.ge.f32.partialorder %v1496, %v2547
    %vm3138 = vcmp.ge.f32.partialorder %v1496, %v2551
    %vm3139 = vcmp.ge.f32.partialorder %v1496, %v2555
    %vm3140 = vcmp.ge.f32.partialorder %v1497, %v2559
    %vm3141 = vcmp.ge.f32.partialorder %v1497, %v2563
    %vm3142 = vcmp.ge.f32.partialorder %v1497, %v2567
    %vm3143 = vcmp.ge.f32.partialorder %v1497, %v2571
    %vm3144 = vcmp.ge.f32.partialorder %v1497, %v2575
    %vm3145 = vcmp.ge.f32.partialorder %v1497, %v2579
    %vm3146 = vcmp.ge.f32.partialorder %v1497, %v2583
    %vm3147 = vcmp.ge.f32.partialorder %v1497, %v2587
    %vm3148 = vcmp.ge.f32.partialorder %v1498, %v2591
    %vm3149 = vcmp.ge.f32.partialorder %v1498, %v2595
    %vm3150 = vcmp.ge.f32.partialorder %v1498, %v2599
    %vm3151 = vcmp.ge.f32.partialorder %v1498, %v2603
    %vm3152 = vcmp.ge.f32.partialorder %v1498, %v2607
    %vm3153 = vcmp.ge.f32.partialorder %v1498, %v2611
    %vm3154 = vcmp.ge.f32.partialorder %v1498, %v2615
    %vm3155 = vcmp.ge.f32.partialorder %v1498, %v2619
    %vm3156 = vcmp.ge.f32.partialorder %v1499, %v2623
    %vm3157 = vcmp.ge.f32.partialorder %v1499, %v2627
    %vm3158 = vcmp.ge.f32.partialorder %v1499, %v2631
    %vm3159 = vcmp.ge.f32.partialorder %v1499, %v2635
    %vm3160 = vcmp.ge.f32.partialorder %v1499, %v2639
    %vm3161 = vcmp.ge.f32.partialorder %v1499, %v2643
    %vm3162 = vcmp.ge.f32.partialorder %v1499, %v2647
    %vm3163 = vcmp.ge.f32.partialorder %v1499, %v2651
    %v3164 = vsel %vm2908, 1, 0
    %v3165 = vsel %vm2909, 1, 0
    %v3166 = vsel %vm2910, 1, 0
    %v3167 = vsel %vm2911, 1, 0
    %v3168 = vsel %vm2912, 1, 0
    %v3169 = vsel %vm2913, 1, 0
    %v3170 = vsel %vm2914, 1, 0
    %v3171 = vsel %vm2915, 1, 0
    %v3172 = vsel %vm2916, 1, 0
    %v3173 = vsel %vm2917, 1, 0
    %v3174 = vsel %vm2918, 1, 0
    %v3175 = vsel %vm2919, 1, 0
    %v3176 = vsel %vm2920, 1, 0
    %v3177 = vsel %vm2921, 1, 0
    %v3178 = vsel %vm2922, 1, 0
    %v3179 = vsel %vm2923, 1, 0
    %v3180 = vsel %vm2924, 1, 0
    %v3181 = vsel %vm2925, 1, 0
    %v3182 = vsel %vm2926, 1, 0
    %v3183 = vsel %vm2927, 1, 0
    %v3184 = vsel %vm2928, 1, 0
    %v3185 = vsel %vm2929, 1, 0
    %v3186 = vsel %vm2930, 1, 0
    %v3187 = vsel %vm2931, 1, 0
    %v3188 = vsel %vm2932, 1, 0
    %v3189 = vsel %vm2933, 1, 0
    %v3190 = vsel %vm2934, 1, 0
    %v3191 = vsel %vm2935, 1, 0
    %v3192 = vsel %vm2936, 1, 0
    %v3193 = vsel %vm2937, 1, 0
    %v3194 = vsel %vm2938, 1, 0
    %v3195 = vsel %vm2939, 1, 0
    %v3196 = vsel %vm2940, 1, 0
    %v3197 = vsel %vm2941, 1, 0
    %v3198 = vsel %vm2942, 1, 0
    %v3199 = vsel %vm2943, 1, 0
    %v3200 = vsel %vm2944, 1, 0
    %v3201 = vsel %vm2945, 1, 0
    %v3202 = vsel %vm2946, 1, 0
    %v3203 = vsel %vm2947, 1, 0
    %v3204 = vsel %vm2948, 1, 0
    %v3205 = vsel %vm2949, 1, 0
    %v3206 = vsel %vm2950, 1, 0
    %v3207 = vsel %vm2951, 1, 0
    %v3208 = vsel %vm2952, 1, 0
    %v3209 = vsel %vm2953, 1, 0
    %v3210 = vsel %vm2954, 1, 0
    %v3211 = vsel %vm2955, 1, 0
    %v3212 = vsel %vm2956, 1, 0
    %v3213 = vsel %vm2957, 1, 0
    %v3214 = vsel %vm2958, 1, 0
    %v3215 = vsel %vm2959, 1, 0
    %v3216 = vsel %vm2960, 1, 0
    %v3217 = vsel %vm2961, 1, 0
    %v3218 = vsel %vm2962, 1, 0
    %v3219 = vsel %vm2963, 1, 0
    %v3220 = vsel %vm2964, 1, 0
    %v3221 = vsel %vm2965, 1, 0
    %v3222 = vsel %vm2966, 1, 0
    %v3223 = vsel %vm2967, 1, 0
    %v3224 = vsel %vm2968, 1, 0
    %v3225 = vsel %vm2969, 1, 0
    %v3226 = vsel %vm2970, 1, 0
    %v3227 = vsel %vm2971, 1, 0
    %v3228 = vsel %vm2972, 1, 0
    %v3229 = vsel %vm2973, 1, 0
    %v3230 = vsel %vm2974, 1, 0
    %v3231 = vsel %vm2975, 1, 0
    %v3232 = vsel %vm2976, 1, 0
    %v3233 = vsel %vm2977, 1, 0
    %v3234 = vsel %vm2978, 1, 0
    %v3235 = vsel %vm2979, 1, 0
    %v3236 = vsel %vm2980, 1, 0
    %v3237 = vsel %vm2981, 1, 0
    %v3238 = vsel %vm2982, 1, 0
    %v3239 = vsel %vm2983, 1, 0
    %v3240 = vsel %vm2984, 1, 0
    %v3241 = vsel %vm2985, 1, 0
    %v3242 = vsel %vm2986, 1, 0
    %v3243 = vsel %vm2987, 1, 0
    %v3244 = vsel %vm2988, 1, 0
    %v3245 = vsel %vm2989, 1, 0
    %v3246 = vsel %vm2990, 1, 0
    %v3247 = vsel %vm2991, 1, 0
    %v3248 = vsel %vm2992, 1, 0
    %v3249 = vsel %vm2993, 1, 0
    %v3250 = vsel %vm2994, 1, 0
    %v3251 = vsel %vm2995, 1, 0
    %v3252 = vsel %vm2996, 1, 0
    %v3253 = vsel %vm2997, 1, 0
    %v3254 = vsel %vm2998, 1, 0
    %v3255 = vsel %vm2999, 1, 0
    %v3256 = vsel %vm3000, 1, 0
    %v3257 = vsel %vm3001, 1, 0
    %v3258 = vsel %vm3002, 1, 0
    %v3259 = vsel %vm3003, 1, 0
    %v3260 = vsel %vm3004, 1, 0
    %v3261 = vsel %vm3005, 1, 0
    %v3262 = vsel %vm3006, 1, 0
    %v3263 = vsel %vm3007, 1, 0
    %v3264 = vsel %vm3008, 1, 0
    %v3265 = vsel %vm3009, 1, 0
    %v3266 = vsel %vm3010, 1, 0
    %v3267 = vsel %vm3011, 1, 0
    %v3268 = vsel %vm3012, 1, 0
    %v3269 = vsel %vm3013, 1, 0
    %v3270 = vsel %vm3014, 1, 0
    %v3271 = vsel %vm3015, 1, 0
    %v3272 = vsel %vm3016, 1, 0
    %v3273 = vsel %vm3017, 1, 0
    %v3274 = vsel %vm3018, 1, 0
    %v3275 = vsel %vm3019, 1, 0
    %v3276 = vsel %vm3020, 1, 0
    %v3277 = vsel %vm3021, 1, 0
    %v3278 = vsel %vm3022, 1, 0
    %v3279 = vsel %vm3023, 1, 0
    %v3280 = vsel %vm3024, 1, 0
    %v3281 = vsel %vm3025, 1, 0
    %v3282 = vsel %vm3026, 1, 0
    %v3283 = vsel %vm3027, 1, 0
    %v3284 = vsel %vm3028, 1, 0
    %v3285 = vsel %vm3029, 1, 0
    %v3286 = vsel %vm3030, 1, 0
    %v3287 = vsel %vm3031, 1, 0
    %v3288 = vsel %vm3032, 1, 0
    %v3289 = vsel %vm3033, 1, 0
    %v3290 = vsel %vm3034, 1, 0
    %v3291 = vsel %vm3035, 1, 0
    %v3292 = vsel %vm3036, 1, 0
    %v3293 = vsel %vm3037, 1, 0
    %v3294 = vsel %vm3038, 1, 0
    %v3295 = vsel %vm3039, 1, 0
    %v3296 = vsel %vm3040, 1, 0
    %v3297 = vsel %vm3041, 1, 0
    %v3298 = vsel %vm3042, 1, 0
    %v3299 = vsel %vm3043, 1, 0
    %v3300 = vsel %vm3044, 1, 0
    %v3301 = vsel %vm3045, 1, 0
    %v3302 = vsel %vm3046, 1, 0
    %v3303 = vsel %vm3047, 1, 0
    %v3304 = vsel %vm3048, 1, 0
    %v3305 = vsel %vm3049, 1, 0
    %v3306 = vsel %vm3050, 1, 0
    %v3307 = vsel %vm3051, 1, 0
    %v3308 = vsel %vm3052, 1, 0
    %v3309 = vsel %vm3053, 1, 0
    %v3310 = vsel %vm3054, 1, 0
    %v3311 = vsel %vm3055, 1, 0
    %v3312 = vsel %vm3056, 1, 0
    %v3313 = vsel %vm3057, 1, 0
    %v3314 = vsel %vm3058, 1, 0
    %v3315 = vsel %vm3059, 1, 0
    %v3316 = vsel %vm3060, 1, 0
    %v3317 = vsel %vm3061, 1, 0
    %v3318 = vsel %vm3062, 1, 0
    %v3319 = vsel %vm3063, 1, 0
    %v3320 = vsel %vm3064, 1, 0
    %v3321 = vsel %vm3065, 1, 0
    %v3322 = vsel %vm3066, 1, 0
    %v3323 = vsel %vm3067, 1, 0
    %v3324 = vsel %vm3068, 1, 0
    %v3325 = vsel %vm3069, 1, 0
    %v3326 = vsel %vm3070, 1, 0
    %v3327 = vsel %vm3071, 1, 0
    %v3328 = vsel %vm3072, 1, 0
    %v3329 = vsel %vm3073, 1, 0
    %v3330 = vsel %vm3074, 1, 0
    %v3331 = vsel %vm3075, 1, 0
    %v3332 = vsel %vm3076, 1, 0
    %v3333 = vsel %vm3077, 1, 0
    %v3334 = vsel %vm3078, 1, 0
    %v3335 = vsel %vm3079, 1, 0
    %v3336 = vsel %vm3080, 1, 0
    %v3337 = vsel %vm3081, 1, 0
    %v3338 = vsel %vm3082, 1, 0
    %v3339 = vsel %vm3083, 1, 0
    %v3340 = vsel %vm3084, 1, 0
    %v3341 = vsel %vm3085, 1, 0
    %v3342 = vsel %vm3086, 1, 0
    %v3343 = vsel %vm3087, 1, 0
    %v3344 = vsel %vm3088, 1, 0
    %v3345 = vsel %vm3089, 1, 0
    %v3346 = vsel %vm3090, 1, 0
    %v3347 = vsel %vm3091, 1, 0
    %v3348 = vsel %vm3092, 1, 0
    %v3349 = vsel %vm3093, 1, 0
    %v3350 = vsel %vm3094, 1, 0
    %v3351 = vsel %vm3095, 1, 0
    %v3352 = vsel %vm3096, 1, 0
    %v3353 = vsel %vm3097, 1, 0
    %v3354 = vsel %vm3098, 1, 0
    %v3355 = vsel %vm3099, 1, 0
    %v3356 = vsel %vm3100, 1, 0
    %v3357 = vsel %vm3101, 1, 0
    %v3358 = vsel %vm3102, 1, 0
    %v3359 = vsel %vm3103, 1, 0
    %v3360 = vsel %vm3104, 1, 0
    %v3361 = vsel %vm3105, 1, 0
    %v3362 = vsel %vm3106, 1, 0
    %v3363 = vsel %vm3107, 1, 0
    %v3364 = vsel %vm3108, 1, 0
    %v3365 = vsel %vm3109, 1, 0
    %v3366 = vsel %vm3110, 1, 0
    %v3367 = vsel %vm3111, 1, 0
    %v3368 = vsel %vm3112, 1, 0
    %v3369 = vsel %vm3113, 1, 0
    %v3370 = vsel %vm3114, 1, 0
    %v3371 = vsel %vm3115, 1, 0
    %v3372 = vsel %vm3116, 1, 0
    %v3373 = vsel %vm3117, 1, 0
    %v3374 = vsel %vm3118, 1, 0
    %v3375 = vsel %vm3119, 1, 0
    %v3376 = vsel %vm3120, 1, 0
    %v3377 = vsel %vm3121, 1, 0
    %v3378 = vsel %vm3122, 1, 0
    %v3379 = vsel %vm3123, 1, 0
    %v3380 = vsel %vm3124, 1, 0
    %v3381 = vsel %vm3125, 1, 0
    %v3382 = vsel %vm3126, 1, 0
    %v3383 = vsel %vm3127, 1, 0
    %v3384 = vsel %vm3128, 1, 0
    %v3385 = vsel %vm3129, 1, 0
    %v3386 = vsel %vm3130, 1, 0
    %v3387 = vsel %vm3131, 1, 0
    %v3388 = vsel %vm3132, 1, 0
    %v3389 = vsel %vm3133, 1, 0
    %v3390 = vsel %vm3134, 1, 0
    %v3391 = vsel %vm3135, 1, 0
    %v3392 = vsel %vm3136, 1, 0
    %v3393 = vsel %vm3137, 1, 0
    %v3394 = vsel %vm3138, 1, 0
    %v3395 = vsel %vm3139, 1, 0
    %v3396 = vsel %vm3140, 1, 0
    %v3397 = vsel %vm3141, 1, 0
    %v3398 = vsel %vm3142, 1, 0
    %v3399 = vsel %vm3143, 1, 0
    %v3400 = vsel %vm3144, 1, 0
    %v3401 = vsel %vm3145, 1, 0
    %v3402 = vsel %vm3146, 1, 0
    %v3403 = vsel %vm3147, 1, 0
    %v3404 = vsel %vm3148, 1, 0
    %v3405 = vsel %vm3149, 1, 0
    %v3406 = vsel %vm3150, 1, 0
    %v3407 = vsel %vm3151, 1, 0
    %v3408 = vsel %vm3152, 1, 0
    %v3409 = vsel %vm3153, 1, 0
    %v3410 = vsel %vm3154, 1, 0
    %v3411 = vsel %vm3155, 1, 0
    %v3412 = vsel %vm3156, 1, 0
    %v3413 = vsel %vm3157, 1, 0
    %v3414 = vsel %vm3158, 1, 0
    %v3415 = vsel %vm3159, 1, 0
    %v3416 = vsel %vm3160, 1, 0
    %v3417 = vsel %vm3161, 1, 0
    %v3418 = vsel %vm3162, 1, 0
    %v3419 = vsel %vm3163, 1, 0
    %v3420 = vcvt.s32.f32 %v3164
    %v3421 = vcvt.s32.f32 %v3165
    %v3422 = vcvt.s32.f32 %v3166
    %v3423 = vcvt.s32.f32 %v3167
    %v3424 = vcvt.s32.f32 %v3168
    %v3425 = vcvt.s32.f32 %v3169
    %v3426 = vcvt.s32.f32 %v3170
    %v3427 = vcvt.s32.f32 %v3171
    %v3428 = vcvt.s32.f32 %v3172
    %v3429 = vcvt.s32.f32 %v3173
    %v3430 = vcvt.s32.f32 %v3174
    %v3431 = vcvt.s32.f32 %v3175
    %v3432 = vcvt.s32.f32 %v3176
    %v3433 = vcvt.s32.f32 %v3177
    %v3434 = vcvt.s32.f32 %v3178
    %v3435 = vcvt.s32.f32 %v3179
    %v3436 = vcvt.s32.f32 %v3180
    %v3437 = vcvt.s32.f32 %v3181
    %v3438 = vcvt.s32.f32 %v3182
    %v3439 = vcvt.s32.f32 %v3183
    %v3440 = vcvt.s32.f32 %v3184
    %v3441 = vcvt.s32.f32 %v3185
    %v3442 = vcvt.s32.f32 %v3186
    %v3443 = vcvt.s32.f32 %v3187
    %v3444 = vcvt.s32.f32 %v3188
    %v3445 = vcvt.s32.f32 %v3189
    %v3446 = vcvt.s32.f32 %v3190
    %v3447 = vcvt.s32.f32 %v3191
    %v3448 = vcvt.s32.f32 %v3192
    %v3449 = vcvt.s32.f32 %v3193
    %v3450 = vcvt.s32.f32 %v3194
    %v3451 = vcvt.s32.f32 %v3195
    %v3452 = vcvt.s32.f32 %v3196
    %v3453 = vcvt.s32.f32 %v3197
    %v3454 = vcvt.s32.f32 %v3198
    %v3455 = vcvt.s32.f32 %v3199
    %v3456 = vcvt.s32.f32 %v3200
    %v3457 = vcvt.s32.f32 %v3201
    %v3458 = vcvt.s32.f32 %v3202
    %v3459 = vcvt.s32.f32 %v3203
    %v3460 = vcvt.s32.f32 %v3204
    %v3461 = vcvt.s32.f32 %v3205
    %v3462 = vcvt.s32.f32 %v3206
    %v3463 = vcvt.s32.f32 %v3207
    %v3464 = vcvt.s32.f32 %v3208
    %v3465 = vcvt.s32.f32 %v3209
    %v3466 = vcvt.s32.f32 %v3210
    %v3467 = vcvt.s32.f32 %v3211
    %v3468 = vcvt.s32.f32 %v3212
    %v3469 = vcvt.s32.f32 %v3213
    %v3470 = vcvt.s32.f32 %v3214
    %v3471 = vcvt.s32.f32 %v3215
    %v3472 = vcvt.s32.f32 %v3216
    %v3473 = vcvt.s32.f32 %v3217
    %v3474 = vcvt.s32.f32 %v3218
    %v3475 = vcvt.s32.f32 %v3219
    %v3476 = vcvt.s32.f32 %v3220
    %v3477 = vcvt.s32.f32 %v3221
    %v3478 = vcvt.s32.f32 %v3222
    %v3479 = vcvt.s32.f32 %v3223
    %v3480 = vcvt.s32.f32 %v3224
    %v3481 = vcvt.s32.f32 %v3225
    %v3482 = vcvt.s32.f32 %v3226
    %v3483 = vcvt.s32.f32 %v3227
    %v3484 = vcvt.s32.f32 %v3228
    %v3485 = vcvt.s32.f32 %v3229
    %v3486 = vcvt.s32.f32 %v3230
    %v3487 = vcvt.s32.f32 %v3231
    %v3488 = vcvt.s32.f32 %v3232
    %v3489 = vcvt.s32.f32 %v3233
    %v3490 = vcvt.s32.f32 %v3234
    %v3491 = vcvt.s32.f32 %v3235
    %v3492 = vcvt.s32.f32 %v3236
    %v3493 = vcvt.s32.f32 %v3237
    %v3494 = vcvt.s32.f32 %v3238
    %v3495 = vcvt.s32.f32 %v3239
    %v3496 = vcvt.s32.f32 %v3240
    %v3497 = vcvt.s32.f32 %v3241
    %v3498 = vcvt.s32.f32 %v3242
    %v3499 = vcvt.s32.f32 %v3243
    %v3500 = vcvt.s32.f32 %v3244
    %v3501 = vcvt.s32.f32 %v3245
    %v3502 = vcvt.s32.f32 %v3246
    %v3503 = vcvt.s32.f32 %v3247
    %v3504 = vcvt.s32.f32 %v3248
    %v3505 = vcvt.s32.f32 %v3249
    %v3506 = vcvt.s32.f32 %v3250
    %v3507 = vcvt.s32.f32 %v3251
    %v3508 = vcvt.s32.f32 %v3252
    %v3509 = vcvt.s32.f32 %v3253
    %v3510 = vcvt.s32.f32 %v3254
    %v3511 = vcvt.s32.f32 %v3255
    %v3512 = vcvt.s32.f32 %v3256
    %v3513 = vcvt.s32.f32 %v3257
    %v3514 = vcvt.s32.f32 %v3258
    %v3515 = vcvt.s32.f32 %v3259
    %v3516 = vcvt.s32.f32 %v3260
    %v3517 = vcvt.s32.f32 %v3261
    %v3518 = vcvt.s32.f32 %v3262
    %v3519 = vcvt.s32.f32 %v3263
    %v3520 = vcvt.s32.f32 %v3264
    %v3521 = vcvt.s32.f32 %v3265
    %v3522 = vcvt.s32.f32 %v3266
    %v3523 = vcvt.s32.f32 %v3267
    %v3524 = vcvt.s32.f32 %v3268
    %v3525 = vcvt.s32.f32 %v3269
    %v3526 = vcvt.s32.f32 %v3270
    %v3527 = vcvt.s32.f32 %v3271
    %v3528 = vcvt.s32.f32 %v3272
    %v3529 = vcvt.s32.f32 %v3273
    %v3530 = vcvt.s32.f32 %v3274
    %v3531 = vcvt.s32.f32 %v3275
    %v3532 = vcvt.s32.f32 %v3276
    %v3533 = vcvt.s32.f32 %v3277
    %v3534 = vcvt.s32.f32 %v3278
    %v3535 = vcvt.s32.f32 %v3279
    %v3536 = vcvt.s32.f32 %v3280
    %v3537 = vcvt.s32.f32 %v3281
    %v3538 = vcvt.s32.f32 %v3282
    %v3539 = vcvt.s32.f32 %v3283
    %v3540 = vcvt.s32.f32 %v3284
    %v3541 = vcvt.s32.f32 %v3285
    %v3542 = vcvt.s32.f32 %v3286
    %v3543 = vcvt.s32.f32 %v3287
    %v3544 = vcvt.s32.f32 %v3288
    %v3545 = vcvt.s32.f32 %v3289
    %v3546 = vcvt.s32.f32 %v3290
    %v3547 = vcvt.s32.f32 %v3291
    %v3548 = vcvt.s32.f32 %v3292
    %v3549 = vcvt.s32.f32 %v3293
    %v3550 = vcvt.s32.f32 %v3294
    %v3551 = vcvt.s32.f32 %v3295
    %v3552 = vcvt.s32.f32 %v3296
    %v3553 = vcvt.s32.f32 %v3297
    %v3554 = vcvt.s32.f32 %v3298
    %v3555 = vcvt.s32.f32 %v3299
    %v3556 = vcvt.s32.f32 %v3300
    %v3557 = vcvt.s32.f32 %v3301
    %v3558 = vcvt.s32.f32 %v3302
    %v3559 = vcvt.s32.f32 %v3303
    %v3560 = vcvt.s32.f32 %v3304
    %v3561 = vcvt.s32.f32 %v3305
    %v3562 = vcvt.s32.f32 %v3306
    %v3563 = vcvt.s32.f32 %v3307
    %v3564 = vcvt.s32.f32 %v3308
    %v3565 = vcvt.s32.f32 %v3309
    %v3566 = vcvt.s32.f32 %v3310
    %v3567 = vcvt.s32.f32 %v3311
    %v3568 = vcvt.s32.f32 %v3312
    %v3569 = vcvt.s32.f32 %v3313
    %v3570 = vcvt.s32.f32 %v3314
    %v3571 = vcvt.s32.f32 %v3315
    %v3572 = vcvt.s32.f32 %v3316
    %v3573 = vcvt.s32.f32 %v3317
    %v3574 = vcvt.s32.f32 %v3318
    %v3575 = vcvt.s32.f32 %v3319
    %v3576 = vcvt.s32.f32 %v3320
    %v3577 = vcvt.s32.f32 %v3321
    %v3578 = vcvt.s32.f32 %v3322
    %v3579 = vcvt.s32.f32 %v3323
    %v3580 = vcvt.s32.f32 %v3324
    %v3581 = vcvt.s32.f32 %v3325
    %v3582 = vcvt.s32.f32 %v3326
    %v3583 = vcvt.s32.f32 %v3327
    %v3584 = vcvt.s32.f32 %v3328
    %v3585 = vcvt.s32.f32 %v3329
    %v3586 = vcvt.s32.f32 %v3330
    %v3587 = vcvt.s32.f32 %v3331
    %v3588 = vcvt.s32.f32 %v3332
    %v3589 = vcvt.s32.f32 %v3333
    %v3590 = vcvt.s32.f32 %v3334
    %v3591 = vcvt.s32.f32 %v3335
    %v3592 = vcvt.s32.f32 %v3336
    %v3593 = vcvt.s32.f32 %v3337
    %v3594 = vcvt.s32.f32 %v3338
    %v3595 = vcvt.s32.f32 %v3339
    %v3596 = vcvt.s32.f32 %v3340
    %v3597 = vcvt.s32.f32 %v3341
    %v3598 = vcvt.s32.f32 %v3342
    %v3599 = vcvt.s32.f32 %v3343
    %v3600 = vcvt.s32.f32 %v3344
    %v3601 = vcvt.s32.f32 %v3345
    %v3602 = vcvt.s32.f32 %v3346
    %v3603 = vcvt.s32.f32 %v3347
    %v3604 = vcvt.s32.f32 %v3348
    %v3605 = vcvt.s32.f32 %v3349
    %v3606 = vcvt.s32.f32 %v3350
    %v3607 = vcvt.s32.f32 %v3351
    %v3608 = vcvt.s32.f32 %v3352
    %v3609 = vcvt.s32.f32 %v3353
    %v3610 = vcvt.s32.f32 %v3354
    %v3611 = vcvt.s32.f32 %v3355
    %v3612 = vcvt.s32.f32 %v3356
    %v3613 = vcvt.s32.f32 %v3357
    %v3614 = vcvt.s32.f32 %v3358
    %v3615 = vcvt.s32.f32 %v3359
    %v3616 = vcvt.s32.f32 %v3360
    %v3617 = vcvt.s32.f32 %v3361
    %v3618 = vcvt.s32.f32 %v3362
    %v3619 = vcvt.s32.f32 %v3363
    %v3620 = vcvt.s32.f32 %v3364
    %v3621 = vcvt.s32.f32 %v3365
    %v3622 = vcvt.s32.f32 %v3366
    %v3623 = vcvt.s32.f32 %v3367
    %v3624 = vcvt.s32.f32 %v3368
    %v3625 = vcvt.s32.f32 %v3369
    %v3626 = vcvt.s32.f32 %v3370
    %v3627 = vcvt.s32.f32 %v3371
    %v3628 = vcvt.s32.f32 %v3372
    %v3629 = vcvt.s32.f32 %v3373
    %v3630 = vcvt.s32.f32 %v3374
    %v3631 = vcvt.s32.f32 %v3375
    %v3632 = vcvt.s32.f32 %v3376
    %v3633 = vcvt.s32.f32 %v3377
    %v3634 = vcvt.s32.f32 %v3378
    %v3635 = vcvt.s32.f32 %v3379
    %v3636 = vcvt.s32.f32 %v3380
    %v3637 = vcvt.s32.f32 %v3381
    %v3638 = vcvt.s32.f32 %v3382
    %v3639 = vcvt.s32.f32 %v3383
    %v3640 = vcvt.s32.f32 %v3384
    %v3641 = vcvt.s32.f32 %v3385
    %v3642 = vcvt.s32.f32 %v3386
    %v3643 = vcvt.s32.f32 %v3387
    %v3644 = vcvt.s32.f32 %v3388
    %v3645 = vcvt.s32.f32 %v3389
    %v3646 = vcvt.s32.f32 %v3390
    %v3647 = vcvt.s32.f32 %v3391
    %v3648 = vcvt.s32.f32 %v3392
    %v3649 = vcvt.s32.f32 %v3393
    %v3650 = vcvt.s32.f32 %v3394
    %v3651 = vcvt.s32.f32 %v3395
    %v3652 = vcvt.s32.f32 %v3396
    %v3653 = vcvt.s32.f32 %v3397
    %v3654 = vcvt.s32.f32 %v3398
    %v3655 = vcvt.s32.f32 %v3399
    %v3656 = vcvt.s32.f32 %v3400
    %v3657 = vcvt.s32.f32 %v3401
    %v3658 = vcvt.s32.f32 %v3402
    %v3659 = vcvt.s32.f32 %v3403
    %v3660 = vcvt.s32.f32 %v3404
    %v3661 = vcvt.s32.f32 %v3405
    %v3662 = vcvt.s32.f32 %v3406
    %v3663 = vcvt.s32.f32 %v3407
    %v3664 = vcvt.s32.f32 %v3408
    %v3665 = vcvt.s32.f32 %v3409
    %v3666 = vcvt.s32.f32 %v3410
    %v3667 = vcvt.s32.f32 %v3411
    %v3668 = vcvt.s32.f32 %v3412
    %v3669 = vcvt.s32.f32 %v3413
    %v3670 = vcvt.s32.f32 %v3414
    %v3671 = vcvt.s32.f32 %v3415
    %v3672 = vcvt.s32.f32 %v3416
    %v3673 = vcvt.s32.f32 %v3417
    %v3674 = vcvt.s32.f32 %v3418
    %v3675 = vcvt.s32.f32 %v3419
    %3932 = vset.pattern.permute.xlu0 0
    %3933 = vperm.xlu0 %3932, %v3420
    %v3934 = vpop.permute.xlu0 %3933
    %3935 = vset.pattern.permute.xlu0 0
    %3936 = vperm.xlu0 %3935, %v3421
    %v3937 = vpop.permute.xlu0 %3936
    %3938 = vset.pattern.permute.xlu0 0
    %3939 = vperm.xlu0 %3938, %v3422
    %v3940 = vpop.permute.xlu0 %3939
    %3941 = vset.pattern.permute.xlu0 0
    %3942 = vperm.xlu0 %3941, %v3423
    %v3943 = vpop.permute.xlu0 %3942
    %3944 = vset.pattern.permute.xlu0 0
    %3945 = vperm.xlu0 %3944, %v3424
    %v3946 = vpop.permute.xlu0 %3945
    %3947 = vset.pattern.permute.xlu0 0
    %3948 = vperm.xlu0 %3947, %v3425
    %v3949 = vpop.permute.xlu0 %3948
    %3950 = vset.pattern.permute.xlu0 0
    %3951 = vperm.xlu0 %3950, %v3426
    %v3952 = vpop.permute.xlu0 %3951
    %3953 = vset.pattern.permute.xlu0 0
    %3954 = vperm.xlu0 %3953, %v3427
    %v3955 = vpop.permute.xlu0 %3954
    %3956 = vset.pattern.permute.xlu0 0
    %3957 = vperm.xlu0 %3956, %v3428
    %v3958 = vpop.permute.xlu0 %3957
    %3959 = vset.pattern.permute.xlu0 0
    %3960 = vperm.xlu0 %3959, %v3429
    %v3961 = vpop.permute.xlu0 %3960
    %3962 = vset.pattern.permute.xlu0 0
    %3963 = vperm.xlu0 %3962, %v3430
    %v3964 = vpop.permute.xlu0 %3963
    %3965 = vset.pattern.permute.xlu0 0
    %3966 = vperm.xlu0 %3965, %v3431
    %v3967 = vpop.permute.xlu0 %3966
    %3968 = vset.pattern.permute.xlu0 0
    %3969 = vperm.xlu0 %3968, %v3432
    %v3970 = vpop.permute.xlu0 %3969
    %3971 = vset.pattern.permute.xlu0 0
    %3972 = vperm.xlu0 %3971, %v3433
    %v3973 = vpop.permute.xlu0 %3972
    %3974 = vset.pattern.permute.xlu0 0
    %3975 = vperm.xlu0 %3974, %v3434
    %v3976 = vpop.permute.xlu0 %3975
    %3977 = vset.pattern.permute.xlu0 0
    %3978 = vperm.xlu0 %3977, %v3435
    %v3979 = vpop.permute.xlu0 %3978
    %3980 = vset.pattern.permute.xlu0 0
    %3981 = vperm.xlu0 %3980, %v3436
    %v3982 = vpop.permute.xlu0 %3981
    %3983 = vset.pattern.permute.xlu0 0
    %3984 = vperm.xlu0 %3983, %v3437
    %v3985 = vpop.permute.xlu0 %3984
    %3986 = vset.pattern.permute.xlu0 0
    %3987 = vperm.xlu0 %3986, %v3438
    %v3988 = vpop.permute.xlu0 %3987
    %3989 = vset.pattern.permute.xlu0 0
    %3990 = vperm.xlu0 %3989, %v3439
    %v3991 = vpop.permute.xlu0 %3990
    %3992 = vset.pattern.permute.xlu0 0
    %3993 = vperm.xlu0 %3992, %v3440
    %v3994 = vpop.permute.xlu0 %3993
    %3995 = vset.pattern.permute.xlu0 0
    %3996 = vperm.xlu0 %3995, %v3441
    %v3997 = vpop.permute.xlu0 %3996
    %3998 = vset.pattern.permute.xlu0 0
    %3999 = vperm.xlu0 %3998, %v3442
    %v4000 = vpop.permute.xlu0 %3999
    %4001 = vset.pattern.permute.xlu0 0
    %4002 = vperm.xlu0 %4001, %v3443
    %v4003 = vpop.permute.xlu0 %4002
    %4004 = vset.pattern.permute.xlu0 0
    %4005 = vperm.xlu0 %4004, %v3444
    %v4006 = vpop.permute.xlu0 %4005
    %4007 = vset.pattern.permute.xlu0 0
    %4008 = vperm.xlu0 %4007, %v3445
    %v4009 = vpop.permute.xlu0 %4008
    %4010 = vset.pattern.permute.xlu0 0
    %4011 = vperm.xlu0 %4010, %v3446
    %v4012 = vpop.permute.xlu0 %4011
    %4013 = vset.pattern.permute.xlu0 0
    %4014 = vperm.xlu0 %4013, %v3447
    %v4015 = vpop.permute.xlu0 %4014
    %4016 = vset.pattern.permute.xlu0 0
    %4017 = vperm.xlu0 %4016, %v3448
    %v4018 = vpop.permute.xlu0 %4017
    %4019 = vset.pattern.permute.xlu0 0
    %4020 = vperm.xlu0 %4019, %v3449
    %v4021 = vpop.permute.xlu0 %4020
    %4022 = vset.pattern.permute.xlu0 0
    %4023 = vperm.xlu0 %4022, %v3450
    %v4024 = vpop.permute.xlu0 %4023
    %4025 = vset.pattern.permute.xlu0 0
    %4026 = vperm.xlu0 %4025, %v3451
    %v4027 = vpop.permute.xlu0 %4026
    %4028 = vset.pattern.permute.xlu0 0
    %4029 = vperm.xlu0 %4028, %v3452
    %v4030 = vpop.permute.xlu0 %4029
    %4031 = vset.pattern.permute.xlu0 0
    %4032 = vperm.xlu0 %4031, %v3453
    %v4033 = vpop.permute.xlu0 %4032
    %4034 = vset.pattern.permute.xlu0 0
    %4035 = vperm.xlu0 %4034, %v3454
    %v4036 = vpop.permute.xlu0 %4035
    %4037 = vset.pattern.permute.xlu0 0
    %4038 = vperm.xlu0 %4037, %v3455
    %v4039 = vpop.permute.xlu0 %4038
    %4040 = vset.pattern.permute.xlu0 0
    %4041 = vperm.xlu0 %4040, %v3456
    %v4042 = vpop.permute.xlu0 %4041
    %4043 = vset.pattern.permute.xlu0 0
    %4044 = vperm.xlu0 %4043, %v3457
    %v4045 = vpop.permute.xlu0 %4044
    %4046 = vset.pattern.permute.xlu0 0
    %4047 = vperm.xlu0 %4046, %v3458
    %v4048 = vpop.permute.xlu0 %4047
    %4049 = vset.pattern.permute.xlu0 0
    %4050 = vperm.xlu0 %4049, %v3459
    %v4051 = vpop.permute.xlu0 %4050
    %4052 = vset.pattern.permute.xlu0 0
    %4053 = vperm.xlu0 %4052, %v3460
    %v4054 = vpop.permute.xlu0 %4053
    %4055 = vset.pattern.permute.xlu0 0
    %4056 = vperm.xlu0 %4055, %v3461
    %v4057 = vpop.permute.xlu0 %4056
    %4058 = vset.pattern.permute.xlu0 0
    %4059 = vperm.xlu0 %4058, %v3462
    %v4060 = vpop.permute.xlu0 %4059
    %4061 = vset.pattern.permute.xlu0 0
    %4062 = vperm.xlu0 %4061, %v3463
    %v4063 = vpop.permute.xlu0 %4062
    %4064 = vset.pattern.permute.xlu0 0
    %4065 = vperm.xlu0 %4064, %v3464
    %v4066 = vpop.permute.xlu0 %4065
    %4067 = vset.pattern.permute.xlu0 0
    %4068 = vperm.xlu0 %4067, %v3465
    %v4069 = vpop.permute.xlu0 %4068
    %4070 = vset.pattern.permute.xlu0 0
    %4071 = vperm.xlu0 %4070, %v3466
    %v4072 = vpop.permute.xlu0 %4071
    %4073 = vset.pattern.permute.xlu0 0
    %4074 = vperm.xlu0 %4073, %v3467
    %v4075 = vpop.permute.xlu0 %4074
    %4076 = vset.pattern.permute.xlu0 0
    %4077 = vperm.xlu0 %4076, %v3468
    %v4078 = vpop.permute.xlu0 %4077
    %4079 = vset.pattern.permute.xlu0 0
    %4080 = vperm.xlu0 %4079, %v3469
    %v4081 = vpop.permute.xlu0 %4080
    %4082 = vset.pattern.permute.xlu0 0
    %4083 = vperm.xlu0 %4082, %v3470
    %v4084 = vpop.permute.xlu0 %4083
    %4085 = vset.pattern.permute.xlu0 0
    %4086 = vperm.xlu0 %4085, %v3471
    %v4087 = vpop.permute.xlu0 %4086
    %4088 = vset.pattern.permute.xlu0 0
    %4089 = vperm.xlu0 %4088, %v3472
    %v4090 = vpop.permute.xlu0 %4089
    %4091 = vset.pattern.permute.xlu0 0
    %4092 = vperm.xlu0 %4091, %v3473
    %v4093 = vpop.permute.xlu0 %4092
    %4094 = vset.pattern.permute.xlu0 0
    %4095 = vperm.xlu0 %4094, %v3474
    %v4096 = vpop.permute.xlu0 %4095
    %4097 = vset.pattern.permute.xlu0 0
    %4098 = vperm.xlu0 %4097, %v3475
    %v4099 = vpop.permute.xlu0 %4098
    %4100 = vset.pattern.permute.xlu0 0
    %4101 = vperm.xlu0 %4100, %v3476
    %v4102 = vpop.permute.xlu0 %4101
    %4103 = vset.pattern.permute.xlu0 0
    %4104 = vperm.xlu0 %4103, %v3477
    %v4105 = vpop.permute.xlu0 %4104
    %4106 = vset.pattern.permute.xlu0 0
    %4107 = vperm.xlu0 %4106, %v3478
    %v4108 = vpop.permute.xlu0 %4107
    %4109 = vset.pattern.permute.xlu0 0
    %4110 = vperm.xlu0 %4109, %v3479
    %v4111 = vpop.permute.xlu0 %4110
    %4112 = vset.pattern.permute.xlu0 0
    %4113 = vperm.xlu0 %4112, %v3480
    %v4114 = vpop.permute.xlu0 %4113
    %4115 = vset.pattern.permute.xlu0 0
    %4116 = vperm.xlu0 %4115, %v3481
    %v4117 = vpop.permute.xlu0 %4116
    %4118 = vset.pattern.permute.xlu0 0
    %4119 = vperm.xlu0 %4118, %v3482
    %v4120 = vpop.permute.xlu0 %4119
    %4121 = vset.pattern.permute.xlu0 0
    %4122 = vperm.xlu0 %4121, %v3483
    %v4123 = vpop.permute.xlu0 %4122
    %4124 = vset.pattern.permute.xlu0 0
    %4125 = vperm.xlu0 %4124, %v3484
    %v4126 = vpop.permute.xlu0 %4125
    %4127 = vset.pattern.permute.xlu0 0
    %4128 = vperm.xlu0 %4127, %v3485
    %v4129 = vpop.permute.xlu0 %4128
    %4130 = vset.pattern.permute.xlu0 0
    %4131 = vperm.xlu0 %4130, %v3486
    %v4132 = vpop.permute.xlu0 %4131
    %4133 = vset.pattern.permute.xlu0 0
    %4134 = vperm.xlu0 %4133, %v3487
    %v4135 = vpop.permute.xlu0 %4134
    %4136 = vset.pattern.permute.xlu0 0
    %4137 = vperm.xlu0 %4136, %v3488
    %v4138 = vpop.permute.xlu0 %4137
    %4139 = vset.pattern.permute.xlu0 0
    %4140 = vperm.xlu0 %4139, %v3489
    %v4141 = vpop.permute.xlu0 %4140
    %4142 = vset.pattern.permute.xlu0 0
    %4143 = vperm.xlu0 %4142, %v3490
    %v4144 = vpop.permute.xlu0 %4143
    %4145 = vset.pattern.permute.xlu0 0
    %4146 = vperm.xlu0 %4145, %v3491
    %v4147 = vpop.permute.xlu0 %4146
    %4148 = vset.pattern.permute.xlu0 0
    %4149 = vperm.xlu0 %4148, %v3492
    %v4150 = vpop.permute.xlu0 %4149
    %4151 = vset.pattern.permute.xlu0 0
    %4152 = vperm.xlu0 %4151, %v3493
    %v4153 = vpop.permute.xlu0 %4152
    %4154 = vset.pattern.permute.xlu0 0
    %4155 = vperm.xlu0 %4154, %v3494
    %v4156 = vpop.permute.xlu0 %4155
    %4157 = vset.pattern.permute.xlu0 0
    %4158 = vperm.xlu0 %4157, %v3495
    %v4159 = vpop.permute.xlu0 %4158
    %4160 = vset.pattern.permute.xlu0 0
    %4161 = vperm.xlu0 %4160, %v3496
    %v4162 = vpop.permute.xlu0 %4161
    %4163 = vset.pattern.permute.xlu0 0
    %4164 = vperm.xlu0 %4163, %v3497
    %v4165 = vpop.permute.xlu0 %4164
    %4166 = vset.pattern.permute.xlu0 0
    %4167 = vperm.xlu0 %4166, %v3498
    %v4168 = vpop.permute.xlu0 %4167
    %4169 = vset.pattern.permute.xlu0 0
    %4170 = vperm.xlu0 %4169, %v3499
    %v4171 = vpop.permute.xlu0 %4170
    %4172 = vset.pattern.permute.xlu0 0
    %4173 = vperm.xlu0 %4172, %v3500
    %v4174 = vpop.permute.xlu0 %4173
    %4175 = vset.pattern.permute.xlu0 0
    %4176 = vperm.xlu0 %4175, %v3501
    %v4177 = vpop.permute.xlu0 %4176
    %4178 = vset.pattern.permute.xlu0 0
    %4179 = vperm.xlu0 %4178, %v3502
    %v4180 = vpop.permute.xlu0 %4179
    %4181 = vset.pattern.permute.xlu0 0
    %4182 = vperm.xlu0 %4181, %v3503
    %v4183 = vpop.permute.xlu0 %4182
    %4184 = vset.pattern.permute.xlu0 0
    %4185 = vperm.xlu0 %4184, %v3504
    %v4186 = vpop.permute.xlu0 %4185
    %4187 = vset.pattern.permute.xlu0 0
    %4188 = vperm.xlu0 %4187, %v3505
    %v4189 = vpop.permute.xlu0 %4188
    %4190 = vset.pattern.permute.xlu0 0
    %4191 = vperm.xlu0 %4190, %v3506
    %v4192 = vpop.permute.xlu0 %4191
    %4193 = vset.pattern.permute.xlu0 0
    %4194 = vperm.xlu0 %4193, %v3507
    %v4195 = vpop.permute.xlu0 %4194
    %4196 = vset.pattern.permute.xlu0 0
    %4197 = vperm.xlu0 %4196, %v3508
    %v4198 = vpop.permute.xlu0 %4197
    %4199 = vset.pattern.permute.xlu0 0
    %4200 = vperm.xlu0 %4199, %v3509
    %v4201 = vpop.permute.xlu0 %4200
    %4202 = vset.pattern.permute.xlu0 0
    %4203 = vperm.xlu0 %4202, %v3510
    %v4204 = vpop.permute.xlu0 %4203
    %4205 = vset.pattern.permute.xlu0 0
    %4206 = vperm.xlu0 %4205, %v3511
    %v4207 = vpop.permute.xlu0 %4206
    %4208 = vset.pattern.permute.xlu0 0
    %4209 = vperm.xlu0 %4208, %v3512
    %v4210 = vpop.permute.xlu0 %4209
    %4211 = vset.pattern.permute.xlu0 0
    %4212 = vperm.xlu0 %4211, %v3513
    %v4213 = vpop.permute.xlu0 %4212
    %4214 = vset.pattern.permute.xlu0 0
    %4215 = vperm.xlu0 %4214, %v3514
    %v4216 = vpop.permute.xlu0 %4215
    %4217 = vset.pattern.permute.xlu0 0
    %4218 = vperm.xlu0 %4217, %v3515
    %v4219 = vpop.permute.xlu0 %4218
    %4220 = vset.pattern.permute.xlu0 0
    %4221 = vperm.xlu0 %4220, %v3516
    %v4222 = vpop.permute.xlu0 %4221
    %4223 = vset.pattern.permute.xlu0 0
    %4224 = vperm.xlu0 %4223, %v3517
    %v4225 = vpop.permute.xlu0 %4224
    %4226 = vset.pattern.permute.xlu0 0
    %4227 = vperm.xlu0 %4226, %v3518
    %v4228 = vpop.permute.xlu0 %4227
    %4229 = vset.pattern.permute.xlu0 0
    %4230 = vperm.xlu0 %4229, %v3519
    %v4231 = vpop.permute.xlu0 %4230
    %4232 = vset.pattern.permute.xlu0 0
    %4233 = vperm.xlu0 %4232, %v3520
    %v4234 = vpop.permute.xlu0 %4233
    %4235 = vset.pattern.permute.xlu0 0
    %4236 = vperm.xlu0 %4235, %v3521
    %v4237 = vpop.permute.xlu0 %4236
    %4238 = vset.pattern.permute.xlu0 0
    %4239 = vperm.xlu0 %4238, %v3522
    %v4240 = vpop.permute.xlu0 %4239
    %4241 = vset.pattern.permute.xlu0 0
    %4242 = vperm.xlu0 %4241, %v3523
    %v4243 = vpop.permute.xlu0 %4242
    %4244 = vset.pattern.permute.xlu0 0
    %4245 = vperm.xlu0 %4244, %v3524
    %v4246 = vpop.permute.xlu0 %4245
    %4247 = vset.pattern.permute.xlu0 0
    %4248 = vperm.xlu0 %4247, %v3525
    %v4249 = vpop.permute.xlu0 %4248
    %4250 = vset.pattern.permute.xlu0 0
    %4251 = vperm.xlu0 %4250, %v3526
    %v4252 = vpop.permute.xlu0 %4251
    %4253 = vset.pattern.permute.xlu0 0
    %4254 = vperm.xlu0 %4253, %v3527
    %v4255 = vpop.permute.xlu0 %4254
    %4256 = vset.pattern.permute.xlu0 0
    %4257 = vperm.xlu0 %4256, %v3528
    %v4258 = vpop.permute.xlu0 %4257
    %4259 = vset.pattern.permute.xlu0 0
    %4260 = vperm.xlu0 %4259, %v3529
    %v4261 = vpop.permute.xlu0 %4260
    %4262 = vset.pattern.permute.xlu0 0
    %4263 = vperm.xlu0 %4262, %v3530
    %v4264 = vpop.permute.xlu0 %4263
    %4265 = vset.pattern.permute.xlu0 0
    %4266 = vperm.xlu0 %4265, %v3531
    %v4267 = vpop.permute.xlu0 %4266
    %4268 = vset.pattern.permute.xlu0 0
    %4269 = vperm.xlu0 %4268, %v3532
    %v4270 = vpop.permute.xlu0 %4269
    %4271 = vset.pattern.permute.xlu0 0
    %4272 = vperm.xlu0 %4271, %v3533
    %v4273 = vpop.permute.xlu0 %4272
    %4274 = vset.pattern.permute.xlu0 0
    %4275 = vperm.xlu0 %4274, %v3534
    %v4276 = vpop.permute.xlu0 %4275
    %4277 = vset.pattern.permute.xlu0 0
    %4278 = vperm.xlu0 %4277, %v3535
    %v4279 = vpop.permute.xlu0 %4278
    %4280 = vset.pattern.permute.xlu0 0
    %4281 = vperm.xlu0 %4280, %v3536
    %v4282 = vpop.permute.xlu0 %4281
    %4283 = vset.pattern.permute.xlu0 0
    %4284 = vperm.xlu0 %4283, %v3537
    %v4285 = vpop.permute.xlu0 %4284
    %4286 = vset.pattern.permute.xlu0 0
    %4287 = vperm.xlu0 %4286, %v3538
    %v4288 = vpop.permute.xlu0 %4287
    %4289 = vset.pattern.permute.xlu0 0
    %4290 = vperm.xlu0 %4289, %v3539
    %v4291 = vpop.permute.xlu0 %4290
    %4292 = vset.pattern.permute.xlu0 0
    %4293 = vperm.xlu0 %4292, %v3540
    %v4294 = vpop.permute.xlu0 %4293
    %4295 = vset.pattern.permute.xlu0 0
    %4296 = vperm.xlu0 %4295, %v3541
    %v4297 = vpop.permute.xlu0 %4296
    %4298 = vset.pattern.permute.xlu0 0
    %4299 = vperm.xlu0 %4298, %v3542
    %v4300 = vpop.permute.xlu0 %4299
    %4301 = vset.pattern.permute.xlu0 0
    %4302 = vperm.xlu0 %4301, %v3543
    %v4303 = vpop.permute.xlu0 %4302
    %4304 = vset.pattern.permute.xlu0 0
    %4305 = vperm.xlu0 %4304, %v3544
    %v4306 = vpop.permute.xlu0 %4305
    %4307 = vset.pattern.permute.xlu0 0
    %4308 = vperm.xlu0 %4307, %v3545
    %v4309 = vpop.permute.xlu0 %4308
    %4310 = vset.pattern.permute.xlu0 0
    %4311 = vperm.xlu0 %4310, %v3546
    %v4312 = vpop.permute.xlu0 %4311
    %4313 = vset.pattern.permute.xlu0 0
    %4314 = vperm.xlu0 %4313, %v3547
    %v4315 = vpop.permute.xlu0 %4314
    %4316 = vset.pattern.permute.xlu0 0
    %4317 = vperm.xlu0 %4316, %v3548
    %v4318 = vpop.permute.xlu0 %4317
    %4319 = vset.pattern.permute.xlu0 0
    %4320 = vperm.xlu0 %4319, %v3549
    %v4321 = vpop.permute.xlu0 %4320
    %4322 = vset.pattern.permute.xlu0 0
    %4323 = vperm.xlu0 %4322, %v3550
    %v4324 = vpop.permute.xlu0 %4323
    %4325 = vset.pattern.permute.xlu0 0
    %4326 = vperm.xlu0 %4325, %v3551
    %v4327 = vpop.permute.xlu0 %4326
    %4328 = vset.pattern.permute.xlu0 0
    %4329 = vperm.xlu0 %4328, %v3552
    %v4330 = vpop.permute.xlu0 %4329
    %4331 = vset.pattern.permute.xlu0 0
    %4332 = vperm.xlu0 %4331, %v3553
    %v4333 = vpop.permute.xlu0 %4332
    %4334 = vset.pattern.permute.xlu0 0
    %4335 = vperm.xlu0 %4334, %v3554
    %v4336 = vpop.permute.xlu0 %4335
    %4337 = vset.pattern.permute.xlu0 0
    %4338 = vperm.xlu0 %4337, %v3555
    %v4339 = vpop.permute.xlu0 %4338
    %4340 = vset.pattern.permute.xlu0 0
    %4341 = vperm.xlu0 %4340, %v3556
    %v4342 = vpop.permute.xlu0 %4341
    %4343 = vset.pattern.permute.xlu0 0
    %4344 = vperm.xlu0 %4343, %v3557
    %v4345 = vpop.permute.xlu0 %4344
    %4346 = vset.pattern.permute.xlu0 0
    %4347 = vperm.xlu0 %4346, %v3558
    %v4348 = vpop.permute.xlu0 %4347
    %4349 = vset.pattern.permute.xlu0 0
    %4350 = vperm.xlu0 %4349, %v3559
    %v4351 = vpop.permute.xlu0 %4350
    %4352 = vset.pattern.permute.xlu0 0
    %4353 = vperm.xlu0 %4352, %v3560
    %v4354 = vpop.permute.xlu0 %4353
    %4355 = vset.pattern.permute.xlu0 0
    %4356 = vperm.xlu0 %4355, %v3561
    %v4357 = vpop.permute.xlu0 %4356
    %4358 = vset.pattern.permute.xlu0 0
    %4359 = vperm.xlu0 %4358, %v3562
    %v4360 = vpop.permute.xlu0 %4359
    %4361 = vset.pattern.permute.xlu0 0
    %4362 = vperm.xlu0 %4361, %v3563
    %v4363 = vpop.permute.xlu0 %4362
    %4364 = vset.pattern.permute.xlu0 0
    %4365 = vperm.xlu0 %4364, %v3564
    %v4366 = vpop.permute.xlu0 %4365
    %4367 = vset.pattern.permute.xlu0 0
    %4368 = vperm.xlu0 %4367, %v3565
    %v4369 = vpop.permute.xlu0 %4368
    %4370 = vset.pattern.permute.xlu0 0
    %4371 = vperm.xlu0 %4370, %v3566
    %v4372 = vpop.permute.xlu0 %4371
    %4373 = vset.pattern.permute.xlu0 0
    %4374 = vperm.xlu0 %4373, %v3567
    %v4375 = vpop.permute.xlu0 %4374
    %4376 = vset.pattern.permute.xlu0 0
    %4377 = vperm.xlu0 %4376, %v3568
    %v4378 = vpop.permute.xlu0 %4377
    %4379 = vset.pattern.permute.xlu0 0
    %4380 = vperm.xlu0 %4379, %v3569
    %v4381 = vpop.permute.xlu0 %4380
    %4382 = vset.pattern.permute.xlu0 0
    %4383 = vperm.xlu0 %4382, %v3570
    %v4384 = vpop.permute.xlu0 %4383
    %4385 = vset.pattern.permute.xlu0 0
    %4386 = vperm.xlu0 %4385, %v3571
    %v4387 = vpop.permute.xlu0 %4386
    %4388 = vset.pattern.permute.xlu0 0
    %4389 = vperm.xlu0 %4388, %v3572
    %v4390 = vpop.permute.xlu0 %4389
    %4391 = vset.pattern.permute.xlu0 0
    %4392 = vperm.xlu0 %4391, %v3573
    %v4393 = vpop.permute.xlu0 %4392
    %4394 = vset.pattern.permute.xlu0 0
    %4395 = vperm.xlu0 %4394, %v3574
    %v4396 = vpop.permute.xlu0 %4395
    %4397 = vset.pattern.permute.xlu0 0
    %4398 = vperm.xlu0 %4397, %v3575
    %v4399 = vpop.permute.xlu0 %4398
    %4400 = vset.pattern.permute.xlu0 0
    %4401 = vperm.xlu0 %4400, %v3576
    %v4402 = vpop.permute.xlu0 %4401
    %4403 = vset.pattern.permute.xlu0 0
    %4404 = vperm.xlu0 %4403, %v3577
    %v4405 = vpop.permute.xlu0 %4404
    %4406 = vset.pattern.permute.xlu0 0
    %4407 = vperm.xlu0 %4406, %v3578
    %v4408 = vpop.permute.xlu0 %4407
    %4409 = vset.pattern.permute.xlu0 0
    %4410 = vperm.xlu0 %4409, %v3579
    %v4411 = vpop.permute.xlu0 %4410
    %4412 = vset.pattern.permute.xlu0 0
    %4413 = vperm.xlu0 %4412, %v3580
    %v4414 = vpop.permute.xlu0 %4413
    %4415 = vset.pattern.permute.xlu0 0
    %4416 = vperm.xlu0 %4415, %v3581
    %v4417 = vpop.permute.xlu0 %4416
    %4418 = vset.pattern.permute.xlu0 0
    %4419 = vperm.xlu0 %4418, %v3582
    %v4420 = vpop.permute.xlu0 %4419
    %4421 = vset.pattern.permute.xlu0 0
    %4422 = vperm.xlu0 %4421, %v3583
    %v4423 = vpop.permute.xlu0 %4422
    %4424 = vset.pattern.permute.xlu0 0
    %4425 = vperm.xlu0 %4424, %v3584
    %v4426 = vpop.permute.xlu0 %4425
    %4427 = vset.pattern.permute.xlu0 0
    %4428 = vperm.xlu0 %4427, %v3585
    %v4429 = vpop.permute.xlu0 %4428
    %4430 = vset.pattern.permute.xlu0 0
    %4431 = vperm.xlu0 %4430, %v3586
    %v4432 = vpop.permute.xlu0 %4431
    %4433 = vset.pattern.permute.xlu0 0
    %4434 = vperm.xlu0 %4433, %v3587
    %v4435 = vpop.permute.xlu0 %4434
    %4436 = vset.pattern.permute.xlu0 0
    %4437 = vperm.xlu0 %4436, %v3588
    %v4438 = vpop.permute.xlu0 %4437
    %4439 = vset.pattern.permute.xlu0 0
    %4440 = vperm.xlu0 %4439, %v3589
    %v4441 = vpop.permute.xlu0 %4440
    %4442 = vset.pattern.permute.xlu0 0
    %4443 = vperm.xlu0 %4442, %v3590
    %v4444 = vpop.permute.xlu0 %4443
    %4445 = vset.pattern.permute.xlu0 0
    %4446 = vperm.xlu0 %4445, %v3591
    %v4447 = vpop.permute.xlu0 %4446
    %4448 = vset.pattern.permute.xlu0 0
    %4449 = vperm.xlu0 %4448, %v3592
    %v4450 = vpop.permute.xlu0 %4449
    %4451 = vset.pattern.permute.xlu0 0
    %4452 = vperm.xlu0 %4451, %v3593
    %v4453 = vpop.permute.xlu0 %4452
    %4454 = vset.pattern.permute.xlu0 0
    %4455 = vperm.xlu0 %4454, %v3594
    %v4456 = vpop.permute.xlu0 %4455
    %4457 = vset.pattern.permute.xlu0 0
    %4458 = vperm.xlu0 %4457, %v3595
    %v4459 = vpop.permute.xlu0 %4458
    %4460 = vset.pattern.permute.xlu0 0
    %4461 = vperm.xlu0 %4460, %v3596
    %v4462 = vpop.permute.xlu0 %4461
    %4463 = vset.pattern.permute.xlu0 0
    %4464 = vperm.xlu0 %4463, %v3597
    %v4465 = vpop.permute.xlu0 %4464
    %4466 = vset.pattern.permute.xlu0 0
    %4467 = vperm.xlu0 %4466, %v3598
    %v4468 = vpop.permute.xlu0 %4467
    %4469 = vset.pattern.permute.xlu0 0
    %4470 = vperm.xlu0 %4469, %v3599
    %v4471 = vpop.permute.xlu0 %4470
    %4472 = vset.pattern.permute.xlu0 0
    %4473 = vperm.xlu0 %4472, %v3600
    %v4474 = vpop.permute.xlu0 %4473
    %4475 = vset.pattern.permute.xlu0 0
    %4476 = vperm.xlu0 %4475, %v3601
    %v4477 = vpop.permute.xlu0 %4476
    %4478 = vset.pattern.permute.xlu0 0
    %4479 = vperm.xlu0 %4478, %v3602
    %v4480 = vpop.permute.xlu0 %4479
    %4481 = vset.pattern.permute.xlu0 0
    %4482 = vperm.xlu0 %4481, %v3603
    %v4483 = vpop.permute.xlu0 %4482
    %4484 = vset.pattern.permute.xlu0 0
    %4485 = vperm.xlu0 %4484, %v3604
    %v4486 = vpop.permute.xlu0 %4485
    %4487 = vset.pattern.permute.xlu0 0
    %4488 = vperm.xlu0 %4487, %v3605
    %v4489 = vpop.permute.xlu0 %4488
    %4490 = vset.pattern.permute.xlu0 0
    %4491 = vperm.xlu0 %4490, %v3606
    %v4492 = vpop.permute.xlu0 %4491
    %4493 = vset.pattern.permute.xlu0 0
    %4494 = vperm.xlu0 %4493, %v3607
    %v4495 = vpop.permute.xlu0 %4494
    %4496 = vset.pattern.permute.xlu0 0
    %4497 = vperm.xlu0 %4496, %v3608
    %v4498 = vpop.permute.xlu0 %4497
    %4499 = vset.pattern.permute.xlu0 0
    %4500 = vperm.xlu0 %4499, %v3609
    %v4501 = vpop.permute.xlu0 %4500
    %4502 = vset.pattern.permute.xlu0 0
    %4503 = vperm.xlu0 %4502, %v3610
    %v4504 = vpop.permute.xlu0 %4503
    %4505 = vset.pattern.permute.xlu0 0
    %4506 = vperm.xlu0 %4505, %v3611
    %v4507 = vpop.permute.xlu0 %4506
    %4508 = vset.pattern.permute.xlu0 0
    %4509 = vperm.xlu0 %4508, %v3612
    %v4510 = vpop.permute.xlu0 %4509
    %4511 = vset.pattern.permute.xlu0 0
    %4512 = vperm.xlu0 %4511, %v3613
    %v4513 = vpop.permute.xlu0 %4512
    %4514 = vset.pattern.permute.xlu0 0
    %4515 = vperm.xlu0 %4514, %v3614
    %v4516 = vpop.permute.xlu0 %4515
    %4517 = vset.pattern.permute.xlu0 0
    %4518 = vperm.xlu0 %4517, %v3615
    %v4519 = vpop.permute.xlu0 %4518
    %4520 = vset.pattern.permute.xlu0 0
    %4521 = vperm.xlu0 %4520, %v3616
    %v4522 = vpop.permute.xlu0 %4521
    %4523 = vset.pattern.permute.xlu0 0
    %4524 = vperm.xlu0 %4523, %v3617
    %v4525 = vpop.permute.xlu0 %4524
    %4526 = vset.pattern.permute.xlu0 0
    %4527 = vperm.xlu0 %4526, %v3618
    %v4528 = vpop.permute.xlu0 %4527
    %4529 = vset.pattern.permute.xlu0 0
    %4530 = vperm.xlu0 %4529, %v3619
    %v4531 = vpop.permute.xlu0 %4530
    %4532 = vset.pattern.permute.xlu0 0
    %4533 = vperm.xlu0 %4532, %v3620
    %v4534 = vpop.permute.xlu0 %4533
    %4535 = vset.pattern.permute.xlu0 0
    %4536 = vperm.xlu0 %4535, %v3621
    %v4537 = vpop.permute.xlu0 %4536
    %4538 = vset.pattern.permute.xlu0 0
    %4539 = vperm.xlu0 %4538, %v3622
    %v4540 = vpop.permute.xlu0 %4539
    %4541 = vset.pattern.permute.xlu0 0
    %4542 = vperm.xlu0 %4541, %v3623
    %v4543 = vpop.permute.xlu0 %4542
    %4544 = vset.pattern.permute.xlu0 0
    %4545 = vperm.xlu0 %4544, %v3624
    %v4546 = vpop.permute.xlu0 %4545
    %4547 = vset.pattern.permute.xlu0 0
    %4548 = vperm.xlu0 %4547, %v3625
    %v4549 = vpop.permute.xlu0 %4548
    %4550 = vset.pattern.permute.xlu0 0
    %4551 = vperm.xlu0 %4550, %v3626
    %v4552 = vpop.permute.xlu0 %4551
    %4553 = vset.pattern.permute.xlu0 0
    %4554 = vperm.xlu0 %4553, %v3627
    %v4555 = vpop.permute.xlu0 %4554
    %4556 = vset.pattern.permute.xlu0 0
    %4557 = vperm.xlu0 %4556, %v3628
    %v4558 = vpop.permute.xlu0 %4557
    %4559 = vset.pattern.permute.xlu0 0
    %4560 = vperm.xlu0 %4559, %v3629
    %v4561 = vpop.permute.xlu0 %4560
    %4562 = vset.pattern.permute.xlu0 0
    %4563 = vperm.xlu0 %4562, %v3630
    %v4564 = vpop.permute.xlu0 %4563
    %4565 = vset.pattern.permute.xlu0 0
    %4566 = vperm.xlu0 %4565, %v3631
    %v4567 = vpop.permute.xlu0 %4566
    %4568 = vset.pattern.permute.xlu0 0
    %4569 = vperm.xlu0 %4568, %v3632
    %v4570 = vpop.permute.xlu0 %4569
    %4571 = vset.pattern.permute.xlu0 0
    %4572 = vperm.xlu0 %4571, %v3633
    %v4573 = vpop.permute.xlu0 %4572
    %4574 = vset.pattern.permute.xlu0 0
    %4575 = vperm.xlu0 %4574, %v3634
    %v4576 = vpop.permute.xlu0 %4575
    %4577 = vset.pattern.permute.xlu0 0
    %4578 = vperm.xlu0 %4577, %v3635
    %v4579 = vpop.permute.xlu0 %4578
    %4580 = vset.pattern.permute.xlu0 0
    %4581 = vperm.xlu0 %4580, %v3636
    %v4582 = vpop.permute.xlu0 %4581
    %4583 = vset.pattern.permute.xlu0 0
    %4584 = vperm.xlu0 %4583, %v3637
    %v4585 = vpop.permute.xlu0 %4584
    %4586 = vset.pattern.permute.xlu0 0
    %4587 = vperm.xlu0 %4586, %v3638
    %v4588 = vpop.permute.xlu0 %4587
    %4589 = vset.pattern.permute.xlu0 0
    %4590 = vperm.xlu0 %4589, %v3639
    %v4591 = vpop.permute.xlu0 %4590
    %4592 = vset.pattern.permute.xlu0 0
    %4593 = vperm.xlu0 %4592, %v3640
    %v4594 = vpop.permute.xlu0 %4593
    %4595 = vset.pattern.permute.xlu0 0
    %4596 = vperm.xlu0 %4595, %v3641
    %v4597 = vpop.permute.xlu0 %4596
    %4598 = vset.pattern.permute.xlu0 0
    %4599 = vperm.xlu0 %4598, %v3642
    %v4600 = vpop.permute.xlu0 %4599
    %4601 = vset.pattern.permute.xlu0 0
    %4602 = vperm.xlu0 %4601, %v3643
    %v4603 = vpop.permute.xlu0 %4602
    %4604 = vset.pattern.permute.xlu0 0
    %4605 = vperm.xlu0 %4604, %v3644
    %v4606 = vpop.permute.xlu0 %4605
    %4607 = vset.pattern.permute.xlu0 0
    %4608 = vperm.xlu0 %4607, %v3645
    %v4609 = vpop.permute.xlu0 %4608
    %4610 = vset.pattern.permute.xlu0 0
    %4611 = vperm.xlu0 %4610, %v3646
    %v4612 = vpop.permute.xlu0 %4611
    %4613 = vset.pattern.permute.xlu0 0
    %4614 = vperm.xlu0 %4613, %v3647
    %v4615 = vpop.permute.xlu0 %4614
    %4616 = vset.pattern.permute.xlu0 0
    %4617 = vperm.xlu0 %4616, %v3648
    %v4618 = vpop.permute.xlu0 %4617
    %4619 = vset.pattern.permute.xlu0 0
    %4620 = vperm.xlu0 %4619, %v3649
    %v4621 = vpop.permute.xlu0 %4620
    %4622 = vset.pattern.permute.xlu0 0
    %4623 = vperm.xlu0 %4622, %v3650
    %v4624 = vpop.permute.xlu0 %4623
    %4625 = vset.pattern.permute.xlu0 0
    %4626 = vperm.xlu0 %4625, %v3651
    %v4627 = vpop.permute.xlu0 %4626
    %4628 = vset.pattern.permute.xlu0 0
    %4629 = vperm.xlu0 %4628, %v3652
    %v4630 = vpop.permute.xlu0 %4629
    %4631 = vset.pattern.permute.xlu0 0
    %4632 = vperm.xlu0 %4631, %v3653
    %v4633 = vpop.permute.xlu0 %4632
    %4634 = vset.pattern.permute.xlu0 0
    %4635 = vperm.xlu0 %4634, %v3654
    %v4636 = vpop.permute.xlu0 %4635
    %4637 = vset.pattern.permute.xlu0 0
    %4638 = vperm.xlu0 %4637, %v3655
    %v4639 = vpop.permute.xlu0 %4638
    %4640 = vset.pattern.permute.xlu0 0
    %4641 = vperm.xlu0 %4640, %v3656
    %v4642 = vpop.permute.xlu0 %4641
    %4643 = vset.pattern.permute.xlu0 0
    %4644 = vperm.xlu0 %4643, %v3657
    %v4645 = vpop.permute.xlu0 %4644
    %4646 = vset.pattern.permute.xlu0 0
    %4647 = vperm.xlu0 %4646, %v3658
    %v4648 = vpop.permute.xlu0 %4647
    %4649 = vset.pattern.permute.xlu0 0
    %4650 = vperm.xlu0 %4649, %v3659
    %v4651 = vpop.permute.xlu0 %4650
    %4652 = vset.pattern.permute.xlu0 0
    %4653 = vperm.xlu0 %4652, %v3660
    %v4654 = vpop.permute.xlu0 %4653
    %4655 = vset.pattern.permute.xlu0 0
    %4656 = vperm.xlu0 %4655, %v3661
    %v4657 = vpop.permute.xlu0 %4656
    %4658 = vset.pattern.permute.xlu0 0
    %4659 = vperm.xlu0 %4658, %v3662
    %v4660 = vpop.permute.xlu0 %4659
    %4661 = vset.pattern.permute.xlu0 0
    %4662 = vperm.xlu0 %4661, %v3663
    %v4663 = vpop.permute.xlu0 %4662
    %4664 = vset.pattern.permute.xlu0 0
    %4665 = vperm.xlu0 %4664, %v3664
    %v4666 = vpop.permute.xlu0 %4665
    %4667 = vset.pattern.permute.xlu0 0
    %4668 = vperm.xlu0 %4667, %v3665
    %v4669 = vpop.permute.xlu0 %4668
    %4670 = vset.pattern.permute.xlu0 0
    %4671 = vperm.xlu0 %4670, %v3666
    %v4672 = vpop.permute.xlu0 %4671
    %4673 = vset.pattern.permute.xlu0 0
    %4674 = vperm.xlu0 %4673, %v3667
    %v4675 = vpop.permute.xlu0 %4674
    %4676 = vset.pattern.permute.xlu0 0
    %4677 = vperm.xlu0 %4676, %v3668
    %v4678 = vpop.permute.xlu0 %4677
    %4679 = vset.pattern.permute.xlu0 0
    %4680 = vperm.xlu0 %4679, %v3669
    %v4681 = vpop.permute.xlu0 %4680
    %4682 = vset.pattern.permute.xlu0 0
    %4683 = vperm.xlu0 %4682, %v3670
    %v4684 = vpop.permute.xlu0 %4683
    %4685 = vset.pattern.permute.xlu0 0
    %4686 = vperm.xlu0 %4685, %v3671
    %v4687 = vpop.permute.xlu0 %4686
    %4688 = vset.pattern.permute.xlu0 0
    %4689 = vperm.xlu0 %4688, %v3672
    %v4690 = vpop.permute.xlu0 %4689
    %4691 = vset.pattern.permute.xlu0 0
    %4692 = vperm.xlu0 %4691, %v3673
    %v4693 = vpop.permute.xlu0 %4692
    %4694 = vset.pattern.permute.xlu0 0
    %4695 = vperm.xlu0 %4694, %v3674
    %v4696 = vpop.permute.xlu0 %4695
    %4697 = vset.pattern.permute.xlu0 0
    %4698 = vperm.xlu0 %4697, %v3675
    %v4699 = vpop.permute.xlu0 %4698
    %v4700 = vlaneseq
    %v4701 = vshrl.u32 %v4700, 7
    %v4702 = vsub.s32 %v1123, %v4701
    %v4703 = vrot.slane %v3934, %v4702
    %v4704 = vlaneseq
    %v4705 = vshrl.u32 %v4704, 7
    %v4706 = vsub.s32 %v1123, %v4705
    %v4707 = vrot.slane %v3937, %v4706
    %v4708 = vlaneseq
    %v4709 = vshrl.u32 %v4708, 7
    %v4710 = vsub.s32 %v1123, %v4709
    %v4711 = vrot.slane %v3940, %v4710
    %v4712 = vlaneseq
    %v4713 = vshrl.u32 %v4712, 7
    %v4714 = vsub.s32 %v1123, %v4713
    %v4715 = vrot.slane %v3943, %v4714
    %v4716 = vlaneseq
    %v4717 = vshrl.u32 %v4716, 7
    %v4718 = vsub.s32 %v1123, %v4717
    %v4719 = vrot.slane %v3946, %v4718
    %v4720 = vlaneseq
    %v4721 = vshrl.u32 %v4720, 7
    %v4722 = vsub.s32 %v1123, %v4721
    %v4723 = vrot.slane %v3949, %v4722
    %v4724 = vlaneseq
    %v4725 = vshrl.u32 %v4724, 7
    %v4726 = vsub.s32 %v1123, %v4725
    %v4727 = vrot.slane %v3952, %v4726
    %v4728 = vlaneseq
    %v4729 = vshrl.u32 %v4728, 7
    %v4730 = vsub.s32 %v1123, %v4729
    %v4731 = vrot.slane %v3955, %v4730
    %v4732 = vlaneseq
    %v4733 = vshrl.u32 %v4732, 7
    %v4734 = vsub.s32 %v1123, %v4733
    %v4735 = vrot.slane %v3958, %v4734
    %v4736 = vlaneseq
    %v4737 = vshrl.u32 %v4736, 7
    %v4738 = vsub.s32 %v1123, %v4737
    %v4739 = vrot.slane %v3961, %v4738
    %v4740 = vlaneseq
    %v4741 = vshrl.u32 %v4740, 7
    %v4742 = vsub.s32 %v1123, %v4741
    %v4743 = vrot.slane %v3964, %v4742
    %v4744 = vlaneseq
    %v4745 = vshrl.u32 %v4744, 7
    %v4746 = vsub.s32 %v1123, %v4745
    %v4747 = vrot.slane %v3967, %v4746
    %v4748 = vlaneseq
    %v4749 = vshrl.u32 %v4748, 7
    %v4750 = vsub.s32 %v1123, %v4749
    %v4751 = vrot.slane %v3970, %v4750
    %v4752 = vlaneseq
    %v4753 = vshrl.u32 %v4752, 7
    %v4754 = vsub.s32 %v1123, %v4753
    %v4755 = vrot.slane %v3973, %v4754
    %v4756 = vlaneseq
    %v4757 = vshrl.u32 %v4756, 7
    %v4758 = vsub.s32 %v1123, %v4757
    %v4759 = vrot.slane %v3976, %v4758
    %v4760 = vlaneseq
    %v4761 = vshrl.u32 %v4760, 7
    %v4762 = vsub.s32 %v1123, %v4761
    %v4763 = vrot.slane %v3979, %v4762
    %v4764 = vlaneseq
    %v4765 = vshrl.u32 %v4764, 7
    %v4766 = vsub.s32 %v1123, %v4765
    %v4767 = vrot.slane %v3982, %v4766
    %v4768 = vlaneseq
    %v4769 = vshrl.u32 %v4768, 7
    %v4770 = vsub.s32 %v1123, %v4769
    %v4771 = vrot.slane %v3985, %v4770
    %v4772 = vlaneseq
    %v4773 = vshrl.u32 %v4772, 7
    %v4774 = vsub.s32 %v1123, %v4773
    %v4775 = vrot.slane %v3988, %v4774
    %v4776 = vlaneseq
    %v4777 = vshrl.u32 %v4776, 7
    %v4778 = vsub.s32 %v1123, %v4777
    %v4779 = vrot.slane %v3991, %v4778
    %v4780 = vlaneseq
    %v4781 = vshrl.u32 %v4780, 7
    %v4782 = vsub.s32 %v1123, %v4781
    %v4783 = vrot.slane %v3994, %v4782
    %v4784 = vlaneseq
    %v4785 = vshrl.u32 %v4784, 7
    %v4786 = vsub.s32 %v1123, %v4785
    %v4787 = vrot.slane %v3997, %v4786
    %v4788 = vlaneseq
    %v4789 = vshrl.u32 %v4788, 7
    %v4790 = vsub.s32 %v1123, %v4789
    %v4791 = vrot.slane %v4000, %v4790
    %v4792 = vlaneseq
    %v4793 = vshrl.u32 %v4792, 7
    %v4794 = vsub.s32 %v1123, %v4793
    %v4795 = vrot.slane %v4003, %v4794
    %v4796 = vlaneseq
    %v4797 = vshrl.u32 %v4796, 7
    %v4798 = vsub.s32 %v1123, %v4797
    %v4799 = vrot.slane %v4006, %v4798
    %v4800 = vlaneseq
    %v4801 = vshrl.u32 %v4800, 7
    %v4802 = vsub.s32 %v1123, %v4801
    %v4803 = vrot.slane %v4009, %v4802
    %v4804 = vlaneseq
    %v4805 = vshrl.u32 %v4804, 7
    %v4806 = vsub.s32 %v1123, %v4805
    %v4807 = vrot.slane %v4012, %v4806
    %v4808 = vlaneseq
    %v4809 = vshrl.u32 %v4808, 7
    %v4810 = vsub.s32 %v1123, %v4809
    %v4811 = vrot.slane %v4015, %v4810
    %v4812 = vlaneseq
    %v4813 = vshrl.u32 %v4812, 7
    %v4814 = vsub.s32 %v1123, %v4813
    %v4815 = vrot.slane %v4018, %v4814
    %v4816 = vlaneseq
    %v4817 = vshrl.u32 %v4816, 7
    %v4818 = vsub.s32 %v1123, %v4817
    %v4819 = vrot.slane %v4021, %v4818
    %v4820 = vlaneseq
    %v4821 = vshrl.u32 %v4820, 7
    %v4822 = vsub.s32 %v1123, %v4821
    %v4823 = vrot.slane %v4024, %v4822
    %v4824 = vlaneseq
    %v4825 = vshrl.u32 %v4824, 7
    %v4826 = vsub.s32 %v1123, %v4825
    %v4827 = vrot.slane %v4027, %v4826
    %v4828 = vlaneseq
    %v4829 = vshrl.u32 %v4828, 7
    %v4830 = vsub.s32 %v1123, %v4829
    %v4831 = vrot.slane %v4030, %v4830
    %v4832 = vlaneseq
    %v4833 = vshrl.u32 %v4832, 7
    %v4834 = vsub.s32 %v1123, %v4833
    %v4835 = vrot.slane %v4033, %v4834
    %v4836 = vlaneseq
    %v4837 = vshrl.u32 %v4836, 7
    %v4838 = vsub.s32 %v1123, %v4837
    %v4839 = vrot.slane %v4036, %v4838
    %v4840 = vlaneseq
    %v4841 = vshrl.u32 %v4840, 7
    %v4842 = vsub.s32 %v1123, %v4841
    %v4843 = vrot.slane %v4039, %v4842
    %v4844 = vlaneseq
    %v4845 = vshrl.u32 %v4844, 7
    %v4846 = vsub.s32 %v1123, %v4845
    %v4847 = vrot.slane %v4042, %v4846
    %v4848 = vlaneseq
    %v4849 = vshrl.u32 %v4848, 7
    %v4850 = vsub.s32 %v1123, %v4849
    %v4851 = vrot.slane %v4045, %v4850
    %v4852 = vlaneseq
    %v4853 = vshrl.u32 %v4852, 7
    %v4854 = vsub.s32 %v1123, %v4853
    %v4855 = vrot.slane %v4048, %v4854
    %v4856 = vlaneseq
    %v4857 = vshrl.u32 %v4856, 7
    %v4858 = vsub.s32 %v1123, %v4857
    %v4859 = vrot.slane %v4051, %v4858
    %v4860 = vlaneseq
    %v4861 = vshrl.u32 %v4860, 7
    %v4862 = vsub.s32 %v1123, %v4861
    %v4863 = vrot.slane %v4054, %v4862
    %v4864 = vlaneseq
    %v4865 = vshrl.u32 %v4864, 7
    %v4866 = vsub.s32 %v1123, %v4865
    %v4867 = vrot.slane %v4057, %v4866
    %v4868 = vlaneseq
    %v4869 = vshrl.u32 %v4868, 7
    %v4870 = vsub.s32 %v1123, %v4869
    %v4871 = vrot.slane %v4060, %v4870
    %v4872 = vlaneseq
    %v4873 = vshrl.u32 %v4872, 7
    %v4874 = vsub.s32 %v1123, %v4873
    %v4875 = vrot.slane %v4063, %v4874
    %v4876 = vlaneseq
    %v4877 = vshrl.u32 %v4876, 7
    %v4878 = vsub.s32 %v1123, %v4877
    %v4879 = vrot.slane %v4066, %v4878
    %v4880 = vlaneseq
    %v4881 = vshrl.u32 %v4880, 7
    %v4882 = vsub.s32 %v1123, %v4881
    %v4883 = vrot.slane %v4069, %v4882
    %v4884 = vlaneseq
    %v4885 = vshrl.u32 %v4884, 7
    %v4886 = vsub.s32 %v1123, %v4885
    %v4887 = vrot.slane %v4072, %v4886
    %v4888 = vlaneseq
    %v4889 = vshrl.u32 %v4888, 7
    %v4890 = vsub.s32 %v1123, %v4889
    %v4891 = vrot.slane %v4075, %v4890
    %v4892 = vlaneseq
    %v4893 = vshrl.u32 %v4892, 7
    %v4894 = vsub.s32 %v1123, %v4893
    %v4895 = vrot.slane %v4078, %v4894
    %v4896 = vlaneseq
    %v4897 = vshrl.u32 %v4896, 7
    %v4898 = vsub.s32 %v1123, %v4897
    %v4899 = vrot.slane %v4081, %v4898
    %v4900 = vlaneseq
    %v4901 = vshrl.u32 %v4900, 7
    %v4902 = vsub.s32 %v1123, %v4901
    %v4903 = vrot.slane %v4084, %v4902
    %v4904 = vlaneseq
    %v4905 = vshrl.u32 %v4904, 7
    %v4906 = vsub.s32 %v1123, %v4905
    %v4907 = vrot.slane %v4087, %v4906
    %v4908 = vlaneseq
    %v4909 = vshrl.u32 %v4908, 7
    %v4910 = vsub.s32 %v1123, %v4909
    %v4911 = vrot.slane %v4090, %v4910
    %v4912 = vlaneseq
    %v4913 = vshrl.u32 %v4912, 7
    %v4914 = vsub.s32 %v1123, %v4913
    %v4915 = vrot.slane %v4093, %v4914
    %v4916 = vlaneseq
    %v4917 = vshrl.u32 %v4916, 7
    %v4918 = vsub.s32 %v1123, %v4917
    %v4919 = vrot.slane %v4096, %v4918
    %v4920 = vlaneseq
    %v4921 = vshrl.u32 %v4920, 7
    %v4922 = vsub.s32 %v1123, %v4921
    %v4923 = vrot.slane %v4099, %v4922
    %v4924 = vlaneseq
    %v4925 = vshrl.u32 %v4924, 7
    %v4926 = vsub.s32 %v1123, %v4925
    %v4927 = vrot.slane %v4102, %v4926
    %v4928 = vlaneseq
    %v4929 = vshrl.u32 %v4928, 7
    %v4930 = vsub.s32 %v1123, %v4929
    %v4931 = vrot.slane %v4105, %v4930
    %v4932 = vlaneseq
    %v4933 = vshrl.u32 %v4932, 7
    %v4934 = vsub.s32 %v1123, %v4933
    %v4935 = vrot.slane %v4108, %v4934
    %v4936 = vlaneseq
    %v4937 = vshrl.u32 %v4936, 7
    %v4938 = vsub.s32 %v1123, %v4937
    %v4939 = vrot.slane %v4111, %v4938
    %v4940 = vlaneseq
    %v4941 = vshrl.u32 %v4940, 7
    %v4942 = vsub.s32 %v1123, %v4941
    %v4943 = vrot.slane %v4114, %v4942
    %v4944 = vlaneseq
    %v4945 = vshrl.u32 %v4944, 7
    %v4946 = vsub.s32 %v1123, %v4945
    %v4947 = vrot.slane %v4117, %v4946
    %v4948 = vlaneseq
    %v4949 = vshrl.u32 %v4948, 7
    %v4950 = vsub.s32 %v1123, %v4949
    %v4951 = vrot.slane %v4120, %v4950
    %v4952 = vlaneseq
    %v4953 = vshrl.u32 %v4952, 7
    %v4954 = vsub.s32 %v1123, %v4953
    %v4955 = vrot.slane %v4123, %v4954
    %v4956 = vlaneseq
    %v4957 = vshrl.u32 %v4956, 7
    %v4958 = vsub.s32 %v1123, %v4957
    %v4959 = vrot.slane %v4126, %v4958
    %v4960 = vlaneseq
    %v4961 = vshrl.u32 %v4960, 7
    %v4962 = vsub.s32 %v1123, %v4961
    %v4963 = vrot.slane %v4129, %v4962
    %v4964 = vlaneseq
    %v4965 = vshrl.u32 %v4964, 7
    %v4966 = vsub.s32 %v1123, %v4965
    %v4967 = vrot.slane %v4132, %v4966
    %v4968 = vlaneseq
    %v4969 = vshrl.u32 %v4968, 7
    %v4970 = vsub.s32 %v1123, %v4969
    %v4971 = vrot.slane %v4135, %v4970
    %v4972 = vlaneseq
    %v4973 = vshrl.u32 %v4972, 7
    %v4974 = vsub.s32 %v1123, %v4973
    %v4975 = vrot.slane %v4138, %v4974
    %v4976 = vlaneseq
    %v4977 = vshrl.u32 %v4976, 7
    %v4978 = vsub.s32 %v1123, %v4977
    %v4979 = vrot.slane %v4141, %v4978
    %v4980 = vlaneseq
    %v4981 = vshrl.u32 %v4980, 7
    %v4982 = vsub.s32 %v1123, %v4981
    %v4983 = vrot.slane %v4144, %v4982
    %v4984 = vlaneseq
    %v4985 = vshrl.u32 %v4984, 7
    %v4986 = vsub.s32 %v1123, %v4985
    %v4987 = vrot.slane %v4147, %v4986
    %v4988 = vlaneseq
    %v4989 = vshrl.u32 %v4988, 7
    %v4990 = vsub.s32 %v1123, %v4989
    %v4991 = vrot.slane %v4150, %v4990
    %v4992 = vlaneseq
    %v4993 = vshrl.u32 %v4992, 7
    %v4994 = vsub.s32 %v1123, %v4993
    %v4995 = vrot.slane %v4153, %v4994
    %v4996 = vlaneseq
    %v4997 = vshrl.u32 %v4996, 7
    %v4998 = vsub.s32 %v1123, %v4997
    %v4999 = vrot.slane %v4156, %v4998
    %v5000 = vlaneseq
    %v5001 = vshrl.u32 %v5000, 7
    %v5002 = vsub.s32 %v1123, %v5001
    %v5003 = vrot.slane %v4159, %v5002
    %v5004 = vlaneseq
    %v5005 = vshrl.u32 %v5004, 7
    %v5006 = vsub.s32 %v1123, %v5005
    %v5007 = vrot.slane %v4162, %v5006
    %v5008 = vlaneseq
    %v5009 = vshrl.u32 %v5008, 7
    %v5010 = vsub.s32 %v1123, %v5009
    %v5011 = vrot.slane %v4165, %v5010
    %v5012 = vlaneseq
    %v5013 = vshrl.u32 %v5012, 7
    %v5014 = vsub.s32 %v1123, %v5013
    %v5015 = vrot.slane %v4168, %v5014
    %v5016 = vlaneseq
    %v5017 = vshrl.u32 %v5016, 7
    %v5018 = vsub.s32 %v1123, %v5017
    %v5019 = vrot.slane %v4171, %v5018
    %v5020 = vlaneseq
    %v5021 = vshrl.u32 %v5020, 7
    %v5022 = vsub.s32 %v1123, %v5021
    %v5023 = vrot.slane %v4174, %v5022
    %v5024 = vlaneseq
    %v5025 = vshrl.u32 %v5024, 7
    %v5026 = vsub.s32 %v1123, %v5025
    %v5027 = vrot.slane %v4177, %v5026
    %v5028 = vlaneseq
    %v5029 = vshrl.u32 %v5028, 7
    %v5030 = vsub.s32 %v1123, %v5029
    %v5031 = vrot.slane %v4180, %v5030
    %v5032 = vlaneseq
    %v5033 = vshrl.u32 %v5032, 7
    %v5034 = vsub.s32 %v1123, %v5033
    %v5035 = vrot.slane %v4183, %v5034
    %v5036 = vlaneseq
    %v5037 = vshrl.u32 %v5036, 7
    %v5038 = vsub.s32 %v1123, %v5037
    %v5039 = vrot.slane %v4186, %v5038
    %v5040 = vlaneseq
    %v5041 = vshrl.u32 %v5040, 7
    %v5042 = vsub.s32 %v1123, %v5041
    %v5043 = vrot.slane %v4189, %v5042
    %v5044 = vlaneseq
    %v5045 = vshrl.u32 %v5044, 7
    %v5046 = vsub.s32 %v1123, %v5045
    %v5047 = vrot.slane %v4192, %v5046
    %v5048 = vlaneseq
    %v5049 = vshrl.u32 %v5048, 7
    %v5050 = vsub.s32 %v1123, %v5049
    %v5051 = vrot.slane %v4195, %v5050
    %v5052 = vlaneseq
    %v5053 = vshrl.u32 %v5052, 7
    %v5054 = vsub.s32 %v1123, %v5053
    %v5055 = vrot.slane %v4198, %v5054
    %v5056 = vlaneseq
    %v5057 = vshrl.u32 %v5056, 7
    %v5058 = vsub.s32 %v1123, %v5057
    %v5059 = vrot.slane %v4201, %v5058
    %v5060 = vlaneseq
    %v5061 = vshrl.u32 %v5060, 7
    %v5062 = vsub.s32 %v1123, %v5061
    %v5063 = vrot.slane %v4204, %v5062
    %v5064 = vlaneseq
    %v5065 = vshrl.u32 %v5064, 7
    %v5066 = vsub.s32 %v1123, %v5065
    %v5067 = vrot.slane %v4207, %v5066
    %v5068 = vlaneseq
    %v5069 = vshrl.u32 %v5068, 7
    %v5070 = vsub.s32 %v1123, %v5069
    %v5071 = vrot.slane %v4210, %v5070
    %v5072 = vlaneseq
    %v5073 = vshrl.u32 %v5072, 7
    %v5074 = vsub.s32 %v1123, %v5073
    %v5075 = vrot.slane %v4213, %v5074
    %v5076 = vlaneseq
    %v5077 = vshrl.u32 %v5076, 7
    %v5078 = vsub.s32 %v1123, %v5077
    %v5079 = vrot.slane %v4216, %v5078
    %v5080 = vlaneseq
    %v5081 = vshrl.u32 %v5080, 7
    %v5082 = vsub.s32 %v1123, %v5081
    %v5083 = vrot.slane %v4219, %v5082
    %v5084 = vlaneseq
    %v5085 = vshrl.u32 %v5084, 7
    %v5086 = vsub.s32 %v1123, %v5085
    %v5087 = vrot.slane %v4222, %v5086
    %v5088 = vlaneseq
    %v5089 = vshrl.u32 %v5088, 7
    %v5090 = vsub.s32 %v1123, %v5089
    %v5091 = vrot.slane %v4225, %v5090
    %v5092 = vlaneseq
    %v5093 = vshrl.u32 %v5092, 7
    %v5094 = vsub.s32 %v1123, %v5093
    %v5095 = vrot.slane %v4228, %v5094
    %v5096 = vlaneseq
    %v5097 = vshrl.u32 %v5096, 7
    %v5098 = vsub.s32 %v1123, %v5097
    %v5099 = vrot.slane %v4231, %v5098
    %v5100 = vlaneseq
    %v5101 = vshrl.u32 %v5100, 7
    %v5102 = vsub.s32 %v1123, %v5101
    %v5103 = vrot.slane %v4234, %v5102
    %v5104 = vlaneseq
    %v5105 = vshrl.u32 %v5104, 7
    %v5106 = vsub.s32 %v1123, %v5105
    %v5107 = vrot.slane %v4237, %v5106
    %v5108 = vlaneseq
    %v5109 = vshrl.u32 %v5108, 7
    %v5110 = vsub.s32 %v1123, %v5109
    %v5111 = vrot.slane %v4240, %v5110
    %v5112 = vlaneseq
    %v5113 = vshrl.u32 %v5112, 7
    %v5114 = vsub.s32 %v1123, %v5113
    %v5115 = vrot.slane %v4243, %v5114
    %v5116 = vlaneseq
    %v5117 = vshrl.u32 %v5116, 7
    %v5118 = vsub.s32 %v1123, %v5117
    %v5119 = vrot.slane %v4246, %v5118
    %v5120 = vlaneseq
    %v5121 = vshrl.u32 %v5120, 7
    %v5122 = vsub.s32 %v1123, %v5121
    %v5123 = vrot.slane %v4249, %v5122
    %v5124 = vlaneseq
    %v5125 = vshrl.u32 %v5124, 7
    %v5126 = vsub.s32 %v1123, %v5125
    %v5127 = vrot.slane %v4252, %v5126
    %v5128 = vlaneseq
    %v5129 = vshrl.u32 %v5128, 7
    %v5130 = vsub.s32 %v1123, %v5129
    %v5131 = vrot.slane %v4255, %v5130
    %v5132 = vlaneseq
    %v5133 = vshrl.u32 %v5132, 7
    %v5134 = vsub.s32 %v1123, %v5133
    %v5135 = vrot.slane %v4258, %v5134
    %v5136 = vlaneseq
    %v5137 = vshrl.u32 %v5136, 7
    %v5138 = vsub.s32 %v1123, %v5137
    %v5139 = vrot.slane %v4261, %v5138
    %v5140 = vlaneseq
    %v5141 = vshrl.u32 %v5140, 7
    %v5142 = vsub.s32 %v1123, %v5141
    %v5143 = vrot.slane %v4264, %v5142
    %v5144 = vlaneseq
    %v5145 = vshrl.u32 %v5144, 7
    %v5146 = vsub.s32 %v1123, %v5145
    %v5147 = vrot.slane %v4267, %v5146
    %v5148 = vlaneseq
    %v5149 = vshrl.u32 %v5148, 7
    %v5150 = vsub.s32 %v1123, %v5149
    %v5151 = vrot.slane %v4270, %v5150
    %v5152 = vlaneseq
    %v5153 = vshrl.u32 %v5152, 7
    %v5154 = vsub.s32 %v1123, %v5153
    %v5155 = vrot.slane %v4273, %v5154
    %v5156 = vlaneseq
    %v5157 = vshrl.u32 %v5156, 7
    %v5158 = vsub.s32 %v1123, %v5157
    %v5159 = vrot.slane %v4276, %v5158
    %v5160 = vlaneseq
    %v5161 = vshrl.u32 %v5160, 7
    %v5162 = vsub.s32 %v1123, %v5161
    %v5163 = vrot.slane %v4279, %v5162
    %v5164 = vlaneseq
    %v5165 = vshrl.u32 %v5164, 7
    %v5166 = vsub.s32 %v1123, %v5165
    %v5167 = vrot.slane %v4282, %v5166
    %v5168 = vlaneseq
    %v5169 = vshrl.u32 %v5168, 7
    %v5170 = vsub.s32 %v1123, %v5169
    %v5171 = vrot.slane %v4285, %v5170
    %v5172 = vlaneseq
    %v5173 = vshrl.u32 %v5172, 7
    %v5174 = vsub.s32 %v1123, %v5173
    %v5175 = vrot.slane %v4288, %v5174
    %v5176 = vlaneseq
    %v5177 = vshrl.u32 %v5176, 7
    %v5178 = vsub.s32 %v1123, %v5177
    %v5179 = vrot.slane %v4291, %v5178
    %v5180 = vlaneseq
    %v5181 = vshrl.u32 %v5180, 7
    %v5182 = vsub.s32 %v1123, %v5181
    %v5183 = vrot.slane %v4294, %v5182
    %v5184 = vlaneseq
    %v5185 = vshrl.u32 %v5184, 7
    %v5186 = vsub.s32 %v1123, %v5185
    %v5187 = vrot.slane %v4297, %v5186
    %v5188 = vlaneseq
    %v5189 = vshrl.u32 %v5188, 7
    %v5190 = vsub.s32 %v1123, %v5189
    %v5191 = vrot.slane %v4300, %v5190
    %v5192 = vlaneseq
    %v5193 = vshrl.u32 %v5192, 7
    %v5194 = vsub.s32 %v1123, %v5193
    %v5195 = vrot.slane %v4303, %v5194
    %v5196 = vlaneseq
    %v5197 = vshrl.u32 %v5196, 7
    %v5198 = vsub.s32 %v1123, %v5197
    %v5199 = vrot.slane %v4306, %v5198
    %v5200 = vlaneseq
    %v5201 = vshrl.u32 %v5200, 7
    %v5202 = vsub.s32 %v1123, %v5201
    %v5203 = vrot.slane %v4309, %v5202
    %v5204 = vlaneseq
    %v5205 = vshrl.u32 %v5204, 7
    %v5206 = vsub.s32 %v1123, %v5205
    %v5207 = vrot.slane %v4312, %v5206
    %v5208 = vlaneseq
    %v5209 = vshrl.u32 %v5208, 7
    %v5210 = vsub.s32 %v1123, %v5209
    %v5211 = vrot.slane %v4315, %v5210
    %v5212 = vlaneseq
    %v5213 = vshrl.u32 %v5212, 7
    %v5214 = vsub.s32 %v1123, %v5213
    %v5215 = vrot.slane %v4318, %v5214
    %v5216 = vlaneseq
    %v5217 = vshrl.u32 %v5216, 7
    %v5218 = vsub.s32 %v1123, %v5217
    %v5219 = vrot.slane %v4321, %v5218
    %v5220 = vlaneseq
    %v5221 = vshrl.u32 %v5220, 7
    %v5222 = vsub.s32 %v1123, %v5221
    %v5223 = vrot.slane %v4324, %v5222
    %v5224 = vlaneseq
    %v5225 = vshrl.u32 %v5224, 7
    %v5226 = vsub.s32 %v1123, %v5225
    %v5227 = vrot.slane %v4327, %v5226
    %v5228 = vlaneseq
    %v5229 = vshrl.u32 %v5228, 7
    %v5230 = vsub.s32 %v1123, %v5229
    %v5231 = vrot.slane %v4330, %v5230
    %v5232 = vlaneseq
    %v5233 = vshrl.u32 %v5232, 7
    %v5234 = vsub.s32 %v1123, %v5233
    %v5235 = vrot.slane %v4333, %v5234
    %v5236 = vlaneseq
    %v5237 = vshrl.u32 %v5236, 7
    %v5238 = vsub.s32 %v1123, %v5237
    %v5239 = vrot.slane %v4336, %v5238
    %v5240 = vlaneseq
    %v5241 = vshrl.u32 %v5240, 7
    %v5242 = vsub.s32 %v1123, %v5241
    %v5243 = vrot.slane %v4339, %v5242
    %v5244 = vlaneseq
    %v5245 = vshrl.u32 %v5244, 7
    %v5246 = vsub.s32 %v1123, %v5245
    %v5247 = vrot.slane %v4342, %v5246
    %v5248 = vlaneseq
    %v5249 = vshrl.u32 %v5248, 7
    %v5250 = vsub.s32 %v1123, %v5249
    %v5251 = vrot.slane %v4345, %v5250
    %v5252 = vlaneseq
    %v5253 = vshrl.u32 %v5252, 7
    %v5254 = vsub.s32 %v1123, %v5253
    %v5255 = vrot.slane %v4348, %v5254
    %v5256 = vlaneseq
    %v5257 = vshrl.u32 %v5256, 7
    %v5258 = vsub.s32 %v1123, %v5257
    %v5259 = vrot.slane %v4351, %v5258
    %v5260 = vlaneseq
    %v5261 = vshrl.u32 %v5260, 7
    %v5262 = vsub.s32 %v1123, %v5261
    %v5263 = vrot.slane %v4354, %v5262
    %v5264 = vlaneseq
    %v5265 = vshrl.u32 %v5264, 7
    %v5266 = vsub.s32 %v1123, %v5265
    %v5267 = vrot.slane %v4357, %v5266
    %v5268 = vlaneseq
    %v5269 = vshrl.u32 %v5268, 7
    %v5270 = vsub.s32 %v1123, %v5269
    %v5271 = vrot.slane %v4360, %v5270
    %v5272 = vlaneseq
    %v5273 = vshrl.u32 %v5272, 7
    %v5274 = vsub.s32 %v1123, %v5273
    %v5275 = vrot.slane %v4363, %v5274
    %v5276 = vlaneseq
    %v5277 = vshrl.u32 %v5276, 7
    %v5278 = vsub.s32 %v1123, %v5277
    %v5279 = vrot.slane %v4366, %v5278
    %v5280 = vlaneseq
    %v5281 = vshrl.u32 %v5280, 7
    %v5282 = vsub.s32 %v1123, %v5281
    %v5283 = vrot.slane %v4369, %v5282
    %v5284 = vlaneseq
    %v5285 = vshrl.u32 %v5284, 7
    %v5286 = vsub.s32 %v1123, %v5285
    %v5287 = vrot.slane %v4372, %v5286
    %v5288 = vlaneseq
    %v5289 = vshrl.u32 %v5288, 7
    %v5290 = vsub.s32 %v1123, %v5289
    %v5291 = vrot.slane %v4375, %v5290
    %v5292 = vlaneseq
    %v5293 = vshrl.u32 %v5292, 7
    %v5294 = vsub.s32 %v1123, %v5293
    %v5295 = vrot.slane %v4378, %v5294
    %v5296 = vlaneseq
    %v5297 = vshrl.u32 %v5296, 7
    %v5298 = vsub.s32 %v1123, %v5297
    %v5299 = vrot.slane %v4381, %v5298
    %v5300 = vlaneseq
    %v5301 = vshrl.u32 %v5300, 7
    %v5302 = vsub.s32 %v1123, %v5301
    %v5303 = vrot.slane %v4384, %v5302
    %v5304 = vlaneseq
    %v5305 = vshrl.u32 %v5304, 7
    %v5306 = vsub.s32 %v1123, %v5305
    %v5307 = vrot.slane %v4387, %v5306
    %v5308 = vlaneseq
    %v5309 = vshrl.u32 %v5308, 7
    %v5310 = vsub.s32 %v1123, %v5309
    %v5311 = vrot.slane %v4390, %v5310
    %v5312 = vlaneseq
    %v5313 = vshrl.u32 %v5312, 7
    %v5314 = vsub.s32 %v1123, %v5313
    %v5315 = vrot.slane %v4393, %v5314
    %v5316 = vlaneseq
    %v5317 = vshrl.u32 %v5316, 7
    %v5318 = vsub.s32 %v1123, %v5317
    %v5319 = vrot.slane %v4396, %v5318
    %v5320 = vlaneseq
    %v5321 = vshrl.u32 %v5320, 7
    %v5322 = vsub.s32 %v1123, %v5321
    %v5323 = vrot.slane %v4399, %v5322
    %v5324 = vlaneseq
    %v5325 = vshrl.u32 %v5324, 7
    %v5326 = vsub.s32 %v1123, %v5325
    %v5327 = vrot.slane %v4402, %v5326
    %v5328 = vlaneseq
    %v5329 = vshrl.u32 %v5328, 7
    %v5330 = vsub.s32 %v1123, %v5329
    %v5331 = vrot.slane %v4405, %v5330
    %v5332 = vlaneseq
    %v5333 = vshrl.u32 %v5332, 7
    %v5334 = vsub.s32 %v1123, %v5333
    %v5335 = vrot.slane %v4408, %v5334
    %v5336 = vlaneseq
    %v5337 = vshrl.u32 %v5336, 7
    %v5338 = vsub.s32 %v1123, %v5337
    %v5339 = vrot.slane %v4411, %v5338
    %v5340 = vlaneseq
    %v5341 = vshrl.u32 %v5340, 7
    %v5342 = vsub.s32 %v1123, %v5341
    %v5343 = vrot.slane %v4414, %v5342
    %v5344 = vlaneseq
    %v5345 = vshrl.u32 %v5344, 7
    %v5346 = vsub.s32 %v1123, %v5345
    %v5347 = vrot.slane %v4417, %v5346
    %v5348 = vlaneseq
    %v5349 = vshrl.u32 %v5348, 7
    %v5350 = vsub.s32 %v1123, %v5349
    %v5351 = vrot.slane %v4420, %v5350
    %v5352 = vlaneseq
    %v5353 = vshrl.u32 %v5352, 7
    %v5354 = vsub.s32 %v1123, %v5353
    %v5355 = vrot.slane %v4423, %v5354
    %v5356 = vlaneseq
    %v5357 = vshrl.u32 %v5356, 7
    %v5358 = vsub.s32 %v1123, %v5357
    %v5359 = vrot.slane %v4426, %v5358
    %v5360 = vlaneseq
    %v5361 = vshrl.u32 %v5360, 7
    %v5362 = vsub.s32 %v1123, %v5361
    %v5363 = vrot.slane %v4429, %v5362
    %v5364 = vlaneseq
    %v5365 = vshrl.u32 %v5364, 7
    %v5366 = vsub.s32 %v1123, %v5365
    %v5367 = vrot.slane %v4432, %v5366
    %v5368 = vlaneseq
    %v5369 = vshrl.u32 %v5368, 7
    %v5370 = vsub.s32 %v1123, %v5369
    %v5371 = vrot.slane %v4435, %v5370
    %v5372 = vlaneseq
    %v5373 = vshrl.u32 %v5372, 7
    %v5374 = vsub.s32 %v1123, %v5373
    %v5375 = vrot.slane %v4438, %v5374
    %v5376 = vlaneseq
    %v5377 = vshrl.u32 %v5376, 7
    %v5378 = vsub.s32 %v1123, %v5377
    %v5379 = vrot.slane %v4441, %v5378
    %v5380 = vlaneseq
    %v5381 = vshrl.u32 %v5380, 7
    %v5382 = vsub.s32 %v1123, %v5381
    %v5383 = vrot.slane %v4444, %v5382
    %v5384 = vlaneseq
    %v5385 = vshrl.u32 %v5384, 7
    %v5386 = vsub.s32 %v1123, %v5385
    %v5387 = vrot.slane %v4447, %v5386
    %v5388 = vlaneseq
    %v5389 = vshrl.u32 %v5388, 7
    %v5390 = vsub.s32 %v1123, %v5389
    %v5391 = vrot.slane %v4450, %v5390
    %v5392 = vlaneseq
    %v5393 = vshrl.u32 %v5392, 7
    %v5394 = vsub.s32 %v1123, %v5393
    %v5395 = vrot.slane %v4453, %v5394
    %v5396 = vlaneseq
    %v5397 = vshrl.u32 %v5396, 7
    %v5398 = vsub.s32 %v1123, %v5397
    %v5399 = vrot.slane %v4456, %v5398
    %v5400 = vlaneseq
    %v5401 = vshrl.u32 %v5400, 7
    %v5402 = vsub.s32 %v1123, %v5401
    %v5403 = vrot.slane %v4459, %v5402
    %v5404 = vlaneseq
    %v5405 = vshrl.u32 %v5404, 7
    %v5406 = vsub.s32 %v1123, %v5405
    %v5407 = vrot.slane %v4462, %v5406
    %v5408 = vlaneseq
    %v5409 = vshrl.u32 %v5408, 7
    %v5410 = vsub.s32 %v1123, %v5409
    %v5411 = vrot.slane %v4465, %v5410
    %v5412 = vlaneseq
    %v5413 = vshrl.u32 %v5412, 7
    %v5414 = vsub.s32 %v1123, %v5413
    %v5415 = vrot.slane %v4468, %v5414
    %v5416 = vlaneseq
    %v5417 = vshrl.u32 %v5416, 7
    %v5418 = vsub.s32 %v1123, %v5417
    %v5419 = vrot.slane %v4471, %v5418
    %v5420 = vlaneseq
    %v5421 = vshrl.u32 %v5420, 7
    %v5422 = vsub.s32 %v1123, %v5421
    %v5423 = vrot.slane %v4474, %v5422
    %v5424 = vlaneseq
    %v5425 = vshrl.u32 %v5424, 7
    %v5426 = vsub.s32 %v1123, %v5425
    %v5427 = vrot.slane %v4477, %v5426
    %v5428 = vlaneseq
    %v5429 = vshrl.u32 %v5428, 7
    %v5430 = vsub.s32 %v1123, %v5429
    %v5431 = vrot.slane %v4480, %v5430
    %v5432 = vlaneseq
    %v5433 = vshrl.u32 %v5432, 7
    %v5434 = vsub.s32 %v1123, %v5433
    %v5435 = vrot.slane %v4483, %v5434
    %v5436 = vlaneseq
    %v5437 = vshrl.u32 %v5436, 7
    %v5438 = vsub.s32 %v1123, %v5437
    %v5439 = vrot.slane %v4486, %v5438
    %v5440 = vlaneseq
    %v5441 = vshrl.u32 %v5440, 7
    %v5442 = vsub.s32 %v1123, %v5441
    %v5443 = vrot.slane %v4489, %v5442
    %v5444 = vlaneseq
    %v5445 = vshrl.u32 %v5444, 7
    %v5446 = vsub.s32 %v1123, %v5445
    %v5447 = vrot.slane %v4492, %v5446
    %v5448 = vlaneseq
    %v5449 = vshrl.u32 %v5448, 7
    %v5450 = vsub.s32 %v1123, %v5449
    %v5451 = vrot.slane %v4495, %v5450
    %v5452 = vlaneseq
    %v5453 = vshrl.u32 %v5452, 7
    %v5454 = vsub.s32 %v1123, %v5453
    %v5455 = vrot.slane %v4498, %v5454
    %v5456 = vlaneseq
    %v5457 = vshrl.u32 %v5456, 7
    %v5458 = vsub.s32 %v1123, %v5457
    %v5459 = vrot.slane %v4501, %v5458
    %v5460 = vlaneseq
    %v5461 = vshrl.u32 %v5460, 7
    %v5462 = vsub.s32 %v1123, %v5461
    %v5463 = vrot.slane %v4504, %v5462
    %v5464 = vlaneseq
    %v5465 = vshrl.u32 %v5464, 7
    %v5466 = vsub.s32 %v1123, %v5465
    %v5467 = vrot.slane %v4507, %v5466
    %v5468 = vlaneseq
    %v5469 = vshrl.u32 %v5468, 7
    %v5470 = vsub.s32 %v1123, %v5469
    %v5471 = vrot.slane %v4510, %v5470
    %v5472 = vlaneseq
    %v5473 = vshrl.u32 %v5472, 7
    %v5474 = vsub.s32 %v1123, %v5473
    %v5475 = vrot.slane %v4513, %v5474
    %v5476 = vlaneseq
    %v5477 = vshrl.u32 %v5476, 7
    %v5478 = vsub.s32 %v1123, %v5477
    %v5479 = vrot.slane %v4516, %v5478
    %v5480 = vlaneseq
    %v5481 = vshrl.u32 %v5480, 7
    %v5482 = vsub.s32 %v1123, %v5481
    %v5483 = vrot.slane %v4519, %v5482
    %v5484 = vlaneseq
    %v5485 = vshrl.u32 %v5484, 7
    %v5486 = vsub.s32 %v1123, %v5485
    %v5487 = vrot.slane %v4522, %v5486
    %v5488 = vlaneseq
    %v5489 = vshrl.u32 %v5488, 7
    %v5490 = vsub.s32 %v1123, %v5489
    %v5491 = vrot.slane %v4525, %v5490
    %v5492 = vlaneseq
    %v5493 = vshrl.u32 %v5492, 7
    %v5494 = vsub.s32 %v1123, %v5493
    %v5495 = vrot.slane %v4528, %v5494
    %v5496 = vlaneseq
    %v5497 = vshrl.u32 %v5496, 7
    %v5498 = vsub.s32 %v1123, %v5497
    %v5499 = vrot.slane %v4531, %v5498
    %v5500 = vlaneseq
    %v5501 = vshrl.u32 %v5500, 7
    %v5502 = vsub.s32 %v1123, %v5501
    %v5503 = vrot.slane %v4534, %v5502
    %v5504 = vlaneseq
    %v5505 = vshrl.u32 %v5504, 7
    %v5506 = vsub.s32 %v1123, %v5505
    %v5507 = vrot.slane %v4537, %v5506
    %v5508 = vlaneseq
    %v5509 = vshrl.u32 %v5508, 7
    %v5510 = vsub.s32 %v1123, %v5509
    %v5511 = vrot.slane %v4540, %v5510
    %v5512 = vlaneseq
    %v5513 = vshrl.u32 %v5512, 7
    %v5514 = vsub.s32 %v1123, %v5513
    %v5515 = vrot.slane %v4543, %v5514
    %v5516 = vlaneseq
    %v5517 = vshrl.u32 %v5516, 7
    %v5518 = vsub.s32 %v1123, %v5517
    %v5519 = vrot.slane %v4546, %v5518
    %v5520 = vlaneseq
    %v5521 = vshrl.u32 %v5520, 7
    %v5522 = vsub.s32 %v1123, %v5521
    %v5523 = vrot.slane %v4549, %v5522
    %v5524 = vlaneseq
    %v5525 = vshrl.u32 %v5524, 7
    %v5526 = vsub.s32 %v1123, %v5525
    %v5527 = vrot.slane %v4552, %v5526
    %v5528 = vlaneseq
    %v5529 = vshrl.u32 %v5528, 7
    %v5530 = vsub.s32 %v1123, %v5529
    %v5531 = vrot.slane %v4555, %v5530
    %v5532 = vlaneseq
    %v5533 = vshrl.u32 %v5532, 7
    %v5534 = vsub.s32 %v1123, %v5533
    %v5535 = vrot.slane %v4558, %v5534
    %v5536 = vlaneseq
    %v5537 = vshrl.u32 %v5536, 7
    %v5538 = vsub.s32 %v1123, %v5537
    %v5539 = vrot.slane %v4561, %v5538
    %v5540 = vlaneseq
    %v5541 = vshrl.u32 %v5540, 7
    %v5542 = vsub.s32 %v1123, %v5541
    %v5543 = vrot.slane %v4564, %v5542
    %v5544 = vlaneseq
    %v5545 = vshrl.u32 %v5544, 7
    %v5546 = vsub.s32 %v1123, %v5545
    %v5547 = vrot.slane %v4567, %v5546
    %v5548 = vlaneseq
    %v5549 = vshrl.u32 %v5548, 7
    %v5550 = vsub.s32 %v1123, %v5549
    %v5551 = vrot.slane %v4570, %v5550
    %v5552 = vlaneseq
    %v5553 = vshrl.u32 %v5552, 7
    %v5554 = vsub.s32 %v1123, %v5553
    %v5555 = vrot.slane %v4573, %v5554
    %v5556 = vlaneseq
    %v5557 = vshrl.u32 %v5556, 7
    %v5558 = vsub.s32 %v1123, %v5557
    %v5559 = vrot.slane %v4576, %v5558
    %v5560 = vlaneseq
    %v5561 = vshrl.u32 %v5560, 7
    %v5562 = vsub.s32 %v1123, %v5561
    %v5563 = vrot.slane %v4579, %v5562
    %v5564 = vlaneseq
    %v5565 = vshrl.u32 %v5564, 7
    %v5566 = vsub.s32 %v1123, %v5565
    %v5567 = vrot.slane %v4582, %v5566
    %v5568 = vlaneseq
    %v5569 = vshrl.u32 %v5568, 7
    %v5570 = vsub.s32 %v1123, %v5569
    %v5571 = vrot.slane %v4585, %v5570
    %v5572 = vlaneseq
    %v5573 = vshrl.u32 %v5572, 7
    %v5574 = vsub.s32 %v1123, %v5573
    %v5575 = vrot.slane %v4588, %v5574
    %v5576 = vlaneseq
    %v5577 = vshrl.u32 %v5576, 7
    %v5578 = vsub.s32 %v1123, %v5577
    %v5579 = vrot.slane %v4591, %v5578
    %v5580 = vlaneseq
    %v5581 = vshrl.u32 %v5580, 7
    %v5582 = vsub.s32 %v1123, %v5581
    %v5583 = vrot.slane %v4594, %v5582
    %v5584 = vlaneseq
    %v5585 = vshrl.u32 %v5584, 7
    %v5586 = vsub.s32 %v1123, %v5585
    %v5587 = vrot.slane %v4597, %v5586
    %v5588 = vlaneseq
    %v5589 = vshrl.u32 %v5588, 7
    %v5590 = vsub.s32 %v1123, %v5589
    %v5591 = vrot.slane %v4600, %v5590
    %v5592 = vlaneseq
    %v5593 = vshrl.u32 %v5592, 7
    %v5594 = vsub.s32 %v1123, %v5593
    %v5595 = vrot.slane %v4603, %v5594
    %v5596 = vlaneseq
    %v5597 = vshrl.u32 %v5596, 7
    %v5598 = vsub.s32 %v1123, %v5597
    %v5599 = vrot.slane %v4606, %v5598
    %v5600 = vlaneseq
    %v5601 = vshrl.u32 %v5600, 7
    %v5602 = vsub.s32 %v1123, %v5601
    %v5603 = vrot.slane %v4609, %v5602
    %v5604 = vlaneseq
    %v5605 = vshrl.u32 %v5604, 7
    %v5606 = vsub.s32 %v1123, %v5605
    %v5607 = vrot.slane %v4612, %v5606
    %v5608 = vlaneseq
    %v5609 = vshrl.u32 %v5608, 7
    %v5610 = vsub.s32 %v1123, %v5609
    %v5611 = vrot.slane %v4615, %v5610
    %v5612 = vlaneseq
    %v5613 = vshrl.u32 %v5612, 7
    %v5614 = vsub.s32 %v1123, %v5613
    %v5615 = vrot.slane %v4618, %v5614
    %v5616 = vlaneseq
    %v5617 = vshrl.u32 %v5616, 7
    %v5618 = vsub.s32 %v1123, %v5617
    %v5619 = vrot.slane %v4621, %v5618
    %v5620 = vlaneseq
    %v5621 = vshrl.u32 %v5620, 7
    %v5622 = vsub.s32 %v1123, %v5621
    %v5623 = vrot.slane %v4624, %v5622
    %v5624 = vlaneseq
    %v5625 = vshrl.u32 %v5624, 7
    %v5626 = vsub.s32 %v1123, %v5625
    %v5627 = vrot.slane %v4627, %v5626
    %v5628 = vlaneseq
    %v5629 = vshrl.u32 %v5628, 7
    %v5630 = vsub.s32 %v1123, %v5629
    %v5631 = vrot.slane %v4630, %v5630
    %v5632 = vlaneseq
    %v5633 = vshrl.u32 %v5632, 7
    %v5634 = vsub.s32 %v1123, %v5633
    %v5635 = vrot.slane %v4633, %v5634
    %v5636 = vlaneseq
    %v5637 = vshrl.u32 %v5636, 7
    %v5638 = vsub.s32 %v1123, %v5637
    %v5639 = vrot.slane %v4636, %v5638
    %v5640 = vlaneseq
    %v5641 = vshrl.u32 %v5640, 7
    %v5642 = vsub.s32 %v1123, %v5641
    %v5643 = vrot.slane %v4639, %v5642
    %v5644 = vlaneseq
    %v5645 = vshrl.u32 %v5644, 7
    %v5646 = vsub.s32 %v1123, %v5645
    %v5647 = vrot.slane %v4642, %v5646
    %v5648 = vlaneseq
    %v5649 = vshrl.u32 %v5648, 7
    %v5650 = vsub.s32 %v1123, %v5649
    %v5651 = vrot.slane %v4645, %v5650
    %v5652 = vlaneseq
    %v5653 = vshrl.u32 %v5652, 7
    %v5654 = vsub.s32 %v1123, %v5653
    %v5655 = vrot.slane %v4648, %v5654
    %v5656 = vlaneseq
    %v5657 = vshrl.u32 %v5656, 7
    %v5658 = vsub.s32 %v1123, %v5657
    %v5659 = vrot.slane %v4651, %v5658
    %v5660 = vlaneseq
    %v5661 = vshrl.u32 %v5660, 7
    %v5662 = vsub.s32 %v1123, %v5661
    %v5663 = vrot.slane %v4654, %v5662
    %v5664 = vlaneseq
    %v5665 = vshrl.u32 %v5664, 7
    %v5666 = vsub.s32 %v1123, %v5665
    %v5667 = vrot.slane %v4657, %v5666
    %v5668 = vlaneseq
    %v5669 = vshrl.u32 %v5668, 7
    %v5670 = vsub.s32 %v1123, %v5669
    %v5671 = vrot.slane %v4660, %v5670
    %v5672 = vlaneseq
    %v5673 = vshrl.u32 %v5672, 7
    %v5674 = vsub.s32 %v1123, %v5673
    %v5675 = vrot.slane %v4663, %v5674
    %v5676 = vlaneseq
    %v5677 = vshrl.u32 %v5676, 7
    %v5678 = vsub.s32 %v1123, %v5677
    %v5679 = vrot.slane %v4666, %v5678
    %v5680 = vlaneseq
    %v5681 = vshrl.u32 %v5680, 7
    %v5682 = vsub.s32 %v1123, %v5681
    %v5683 = vrot.slane %v4669, %v5682
    %v5684 = vlaneseq
    %v5685 = vshrl.u32 %v5684, 7
    %v5686 = vsub.s32 %v1123, %v5685
    %v5687 = vrot.slane %v4672, %v5686
    %v5688 = vlaneseq
    %v5689 = vshrl.u32 %v5688, 7
    %v5690 = vsub.s32 %v1123, %v5689
    %v5691 = vrot.slane %v4675, %v5690
    %v5692 = vlaneseq
    %v5693 = vshrl.u32 %v5692, 7
    %v5694 = vsub.s32 %v1123, %v5693
    %v5695 = vrot.slane %v4678, %v5694
    %v5696 = vlaneseq
    %v5697 = vshrl.u32 %v5696, 7
    %v5698 = vsub.s32 %v1123, %v5697
    %v5699 = vrot.slane %v4681, %v5698
    %v5700 = vlaneseq
    %v5701 = vshrl.u32 %v5700, 7
    %v5702 = vsub.s32 %v1123, %v5701
    %v5703 = vrot.slane %v4684, %v5702
    %v5704 = vlaneseq
    %v5705 = vshrl.u32 %v5704, 7
    %v5706 = vsub.s32 %v1123, %v5705
    %v5707 = vrot.slane %v4687, %v5706
    %v5708 = vlaneseq
    %v5709 = vshrl.u32 %v5708, 7
    %v5710 = vsub.s32 %v1123, %v5709
    %v5711 = vrot.slane %v4690, %v5710
    %v5712 = vlaneseq
    %v5713 = vshrl.u32 %v5712, 7
    %v5714 = vsub.s32 %v1123, %v5713
    %v5715 = vrot.slane %v4693, %v5714
    %v5716 = vlaneseq
    %v5717 = vshrl.u32 %v5716, 7
    %v5718 = vsub.s32 %v1123, %v5717
    %v5719 = vrot.slane %v4696, %v5718
    %v5720 = vlaneseq
    %v5721 = vshrl.u32 %v5720, 7
    %v5722 = vsub.s32 %v1123, %v5721
    %v5723 = vrot.slane %v4699, %v5722
    %v5724 = vsel %vm1252, %v4707, %v4703
    %v5725 = vsel %vm1254, %v4711, %v5724
    %v5726 = vsel %vm1256, %v4715, %v5725
    %v5727 = vsel %vm1258, %v4719, %v5726
    %v5728 = vsel %vm1260, %v4723, %v5727
    %v5729 = vsel %vm1262, %v4727, %v5728
    %v5730 = vsel %vm1264, %v4731, %v5729
    %v5731 = vsel %vm1252, %v4739, %v4735
    %v5732 = vsel %vm1254, %v4743, %v5731
    %v5733 = vsel %vm1256, %v4747, %v5732
    %v5734 = vsel %vm1258, %v4751, %v5733
    %v5735 = vsel %vm1260, %v4755, %v5734
    %v5736 = vsel %vm1262, %v4759, %v5735
    %v5737 = vsel %vm1264, %v4763, %v5736
    %v5738 = vsel %vm1252, %v4771, %v4767
    %v5739 = vsel %vm1254, %v4775, %v5738
    %v5740 = vsel %vm1256, %v4779, %v5739
    %v5741 = vsel %vm1258, %v4783, %v5740
    %v5742 = vsel %vm1260, %v4787, %v5741
    %v5743 = vsel %vm1262, %v4791, %v5742
    %v5744 = vsel %vm1264, %v4795, %v5743
    %v5745 = vsel %vm1252, %v4803, %v4799
    %v5746 = vsel %vm1254, %v4807, %v5745
    %v5747 = vsel %vm1256, %v4811, %v5746
    %v5748 = vsel %vm1258, %v4815, %v5747
    %v5749 = vsel %vm1260, %v4819, %v5748
    %v5750 = vsel %vm1262, %v4823, %v5749
    %v5751 = vsel %vm1264, %v4827, %v5750
    %v5752 = vsel %vm1252, %v4835, %v4831
    %v5753 = vsel %vm1254, %v4839, %v5752
    %v5754 = vsel %vm1256, %v4843, %v5753
    %v5755 = vsel %vm1258, %v4847, %v5754
    %v5756 = vsel %vm1260, %v4851, %v5755
    %v5757 = vsel %vm1262, %v4855, %v5756
    %v5758 = vsel %vm1264, %v4859, %v5757
    %v5759 = vsel %vm1252, %v4867, %v4863
    %v5760 = vsel %vm1254, %v4871, %v5759
    %v5761 = vsel %vm1256, %v4875, %v5760
    %v5762 = vsel %vm1258, %v4879, %v5761
    %v5763 = vsel %vm1260, %v4883, %v5762
    %v5764 = vsel %vm1262, %v4887, %v5763
    %v5765 = vsel %vm1264, %v4891, %v5764
    %v5766 = vsel %vm1252, %v4899, %v4895
    %v5767 = vsel %vm1254, %v4903, %v5766
    %v5768 = vsel %vm1256, %v4907, %v5767
    %v5769 = vsel %vm1258, %v4911, %v5768
    %v5770 = vsel %vm1260, %v4915, %v5769
    %v5771 = vsel %vm1262, %v4919, %v5770
    %v5772 = vsel %vm1264, %v4923, %v5771
    %v5773 = vsel %vm1252, %v4931, %v4927
    %v5774 = vsel %vm1254, %v4935, %v5773
    %v5775 = vsel %vm1256, %v4939, %v5774
    %v5776 = vsel %vm1258, %v4943, %v5775
    %v5777 = vsel %vm1260, %v4947, %v5776
    %v5778 = vsel %vm1262, %v4951, %v5777
    %v5779 = vsel %vm1264, %v4955, %v5778
    %v5780 = vsel %vm1252, %v4963, %v4959
    %v5781 = vsel %vm1254, %v4967, %v5780
    %v5782 = vsel %vm1256, %v4971, %v5781
    %v5783 = vsel %vm1258, %v4975, %v5782
    %v5784 = vsel %vm1260, %v4979, %v5783
    %v5785 = vsel %vm1262, %v4983, %v5784
    %v5786 = vsel %vm1264, %v4987, %v5785
    %v5787 = vsel %vm1252, %v4995, %v4991
    %v5788 = vsel %vm1254, %v4999, %v5787
    %v5789 = vsel %vm1256, %v5003, %v5788
    %v5790 = vsel %vm1258, %v5007, %v5789
    %v5791 = vsel %vm1260, %v5011, %v5790
    %v5792 = vsel %vm1262, %v5015, %v5791
    %v5793 = vsel %vm1264, %v5019, %v5792
    %v5794 = vsel %vm1252, %v5027, %v5023
    %v5795 = vsel %vm1254, %v5031, %v5794
    %v5796 = vsel %vm1256, %v5035, %v5795
    %v5797 = vsel %vm1258, %v5039, %v5796
    %v5798 = vsel %vm1260, %v5043, %v5797
    %v5799 = vsel %vm1262, %v5047, %v5798
    %v5800 = vsel %vm1264, %v5051, %v5799
    %v5801 = vsel %vm1252, %v5059, %v5055
    %v5802 = vsel %vm1254, %v5063, %v5801
    %v5803 = vsel %vm1256, %v5067, %v5802
    %v5804 = vsel %vm1258, %v5071, %v5803
    %v5805 = vsel %vm1260, %v5075, %v5804
    %v5806 = vsel %vm1262, %v5079, %v5805
    %v5807 = vsel %vm1264, %v5083, %v5806
    %v5808 = vsel %vm1252, %v5091, %v5087
    %v5809 = vsel %vm1254, %v5095, %v5808
    %v5810 = vsel %vm1256, %v5099, %v5809
    %v5811 = vsel %vm1258, %v5103, %v5810
    %v5812 = vsel %vm1260, %v5107, %v5811
    %v5813 = vsel %vm1262, %v5111, %v5812
    %v5814 = vsel %vm1264, %v5115, %v5813
    %v5815 = vsel %vm1252, %v5123, %v5119
    %v5816 = vsel %vm1254, %v5127, %v5815
    %v5817 = vsel %vm1256, %v5131, %v5816
    %v5818 = vsel %vm1258, %v5135, %v5817
    %v5819 = vsel %vm1260, %v5139, %v5818
    %v5820 = vsel %vm1262, %v5143, %v5819
    %v5821 = vsel %vm1264, %v5147, %v5820
    %v5822 = vsel %vm1252, %v5155, %v5151
    %v5823 = vsel %vm1254, %v5159, %v5822
    %v5824 = vsel %vm1256, %v5163, %v5823
    %v5825 = vsel %vm1258, %v5167, %v5824
    %v5826 = vsel %vm1260, %v5171, %v5825
    %v5827 = vsel %vm1262, %v5175, %v5826
    %v5828 = vsel %vm1264, %v5179, %v5827
    %v5829 = vsel %vm1252, %v5187, %v5183
    %v5830 = vsel %vm1254, %v5191, %v5829
    %v5831 = vsel %vm1256, %v5195, %v5830
    %v5832 = vsel %vm1258, %v5199, %v5831
    %v5833 = vsel %vm1260, %v5203, %v5832
    %v5834 = vsel %vm1262, %v5207, %v5833
    %v5835 = vsel %vm1264, %v5211, %v5834
    %v5836 = vsel %vm1252, %v5219, %v5215
    %v5837 = vsel %vm1254, %v5223, %v5836
    %v5838 = vsel %vm1256, %v5227, %v5837
    %v5839 = vsel %vm1258, %v5231, %v5838
    %v5840 = vsel %vm1260, %v5235, %v5839
    %v5841 = vsel %vm1262, %v5239, %v5840
    %v5842 = vsel %vm1264, %v5243, %v5841
    %v5843 = vsel %vm1252, %v5251, %v5247
    %v5844 = vsel %vm1254, %v5255, %v5843
    %v5845 = vsel %vm1256, %v5259, %v5844
    %v5846 = vsel %vm1258, %v5263, %v5845
    %v5847 = vsel %vm1260, %v5267, %v5846
    %v5848 = vsel %vm1262, %v5271, %v5847
    %v5849 = vsel %vm1264, %v5275, %v5848
    %v5850 = vsel %vm1252, %v5283, %v5279
    %v5851 = vsel %vm1254, %v5287, %v5850
    %v5852 = vsel %vm1256, %v5291, %v5851
    %v5853 = vsel %vm1258, %v5295, %v5852
    %v5854 = vsel %vm1260, %v5299, %v5853
    %v5855 = vsel %vm1262, %v5303, %v5854
    %v5856 = vsel %vm1264, %v5307, %v5855
    %v5857 = vsel %vm1252, %v5315, %v5311
    %v5858 = vsel %vm1254, %v5319, %v5857
    %v5859 = vsel %vm1256, %v5323, %v5858
    %v5860 = vsel %vm1258, %v5327, %v5859
    %v5861 = vsel %vm1260, %v5331, %v5860
    %v5862 = vsel %vm1262, %v5335, %v5861
    %v5863 = vsel %vm1264, %v5339, %v5862
    %v5864 = vsel %vm1252, %v5347, %v5343
    %v5865 = vsel %vm1254, %v5351, %v5864
    %v5866 = vsel %vm1256, %v5355, %v5865
    %v5867 = vsel %vm1258, %v5359, %v5866
    %v5868 = vsel %vm1260, %v5363, %v5867
    %v5869 = vsel %vm1262, %v5367, %v5868
    %v5870 = vsel %vm1264, %v5371, %v5869
    %v5871 = vsel %vm1252, %v5379, %v5375
    %v5872 = vsel %vm1254, %v5383, %v5871
    %v5873 = vsel %vm1256, %v5387, %v5872
    %v5874 = vsel %vm1258, %v5391, %v5873
    %v5875 = vsel %vm1260, %v5395, %v5874
    %v5876 = vsel %vm1262, %v5399, %v5875
    %v5877 = vsel %vm1264, %v5403, %v5876
    %v5878 = vsel %vm1252, %v5411, %v5407
    %v5879 = vsel %vm1254, %v5415, %v5878
    %v5880 = vsel %vm1256, %v5419, %v5879
    %v5881 = vsel %vm1258, %v5423, %v5880
    %v5882 = vsel %vm1260, %v5427, %v5881
    %v5883 = vsel %vm1262, %v5431, %v5882
    %v5884 = vsel %vm1264, %v5435, %v5883
    %v5885 = vsel %vm1252, %v5443, %v5439
    %v5886 = vsel %vm1254, %v5447, %v5885
    %v5887 = vsel %vm1256, %v5451, %v5886
    %v5888 = vsel %vm1258, %v5455, %v5887
    %v5889 = vsel %vm1260, %v5459, %v5888
    %v5890 = vsel %vm1262, %v5463, %v5889
    %v5891 = vsel %vm1264, %v5467, %v5890
    %v5892 = vsel %vm1252, %v5475, %v5471
    %v5893 = vsel %vm1254, %v5479, %v5892
    %v5894 = vsel %vm1256, %v5483, %v5893
    %v5895 = vsel %vm1258, %v5487, %v5894
    %v5896 = vsel %vm1260, %v5491, %v5895
    %v5897 = vsel %vm1262, %v5495, %v5896
    %v5898 = vsel %vm1264, %v5499, %v5897
    %v5899 = vsel %vm1252, %v5507, %v5503
    %v5900 = vsel %vm1254, %v5511, %v5899
    %v5901 = vsel %vm1256, %v5515, %v5900
    %v5902 = vsel %vm1258, %v5519, %v5901
    %v5903 = vsel %vm1260, %v5523, %v5902
    %v5904 = vsel %vm1262, %v5527, %v5903
    %v5905 = vsel %vm1264, %v5531, %v5904
    %v5906 = vsel %vm1252, %v5539, %v5535
    %v5907 = vsel %vm1254, %v5543, %v5906
    %v5908 = vsel %vm1256, %v5547, %v5907
    %v5909 = vsel %vm1258, %v5551, %v5908
    %v5910 = vsel %vm1260, %v5555, %v5909
    %v5911 = vsel %vm1262, %v5559, %v5910
    %v5912 = vsel %vm1264, %v5563, %v5911
    %v5913 = vsel %vm1252, %v5571, %v5567
    %v5914 = vsel %vm1254, %v5575, %v5913
    %v5915 = vsel %vm1256, %v5579, %v5914
    %v5916 = vsel %vm1258, %v5583, %v5915
    %v5917 = vsel %vm1260, %v5587, %v5916
    %v5918 = vsel %vm1262, %v5591, %v5917
    %v5919 = vsel %vm1264, %v5595, %v5918
    %v5920 = vsel %vm1252, %v5603, %v5599
    %v5921 = vsel %vm1254, %v5607, %v5920
    %v5922 = vsel %vm1256, %v5611, %v5921
    %v5923 = vsel %vm1258, %v5615, %v5922
    %v5924 = vsel %vm1260, %v5619, %v5923
    %v5925 = vsel %vm1262, %v5623, %v5924
    %v5926 = vsel %vm1264, %v5627, %v5925
    %v5927 = vsel %vm1252, %v5635, %v5631
    %v5928 = vsel %vm1254, %v5639, %v5927
    %v5929 = vsel %vm1256, %v5643, %v5928
    %v5930 = vsel %vm1258, %v5647, %v5929
    %v5931 = vsel %vm1260, %v5651, %v5930
    %v5932 = vsel %vm1262, %v5655, %v5931
    %v5933 = vsel %vm1264, %v5659, %v5932
    %v5934 = vsel %vm1252, %v5667, %v5663
    %v5935 = vsel %vm1254, %v5671, %v5934
    %v5936 = vsel %vm1256, %v5675, %v5935
    %v5937 = vsel %vm1258, %v5679, %v5936
    %v5938 = vsel %vm1260, %v5683, %v5937
    %v5939 = vsel %vm1262, %v5687, %v5938
    %v5940 = vsel %vm1264, %v5691, %v5939
    %v5941 = vsel %vm1252, %v5699, %v5695
    %v5942 = vsel %vm1254, %v5703, %v5941
    %v5943 = vsel %vm1256, %v5707, %v5942
    %v5944 = vsel %vm1258, %v5711, %v5943
    %v5945 = vsel %vm1260, %v5715, %v5944
    %v5946 = vsel %vm1262, %v5719, %v5945
    %v5947 = vsel %vm1264, %v5723, %v5946
    %v5980 = vsel %vm1291, %v5730, 0.0
    %5981 = vadd.xlane.f32.xlu0 %v5980
    %v5982 = vpop.xlane.xlu0 %5981
    %v5983 = vsel %vm1291, %v5737, 0.0
    %5984 = vadd.xlane.f32.xlu0 %v5983
    %v5985 = vpop.xlane.xlu0 %5984
    %v5986 = vsel %vm1291, %v5744, 0.0
    %5987 = vadd.xlane.f32.xlu0 %v5986
    %v5988 = vpop.xlane.xlu0 %5987
    %v5989 = vsel %vm1291, %v5751, 0.0
    %5990 = vadd.xlane.f32.xlu0 %v5989
    %v5991 = vpop.xlane.xlu0 %5990
    %v5992 = vsel %vm1291, %v5758, 0.0
    %5993 = vadd.xlane.f32.xlu0 %v5992
    %v5994 = vpop.xlane.xlu0 %5993
    %v5995 = vsel %vm1291, %v5765, 0.0
    %5996 = vadd.xlane.f32.xlu0 %v5995
    %v5997 = vpop.xlane.xlu0 %5996
    %v5998 = vsel %vm1291, %v5772, 0.0
    %5999 = vadd.xlane.f32.xlu0 %v5998
    %v6000 = vpop.xlane.xlu0 %5999
    %v6001 = vsel %vm1291, %v5779, 0.0
    %6002 = vadd.xlane.f32.xlu0 %v6001
    %v6003 = vpop.xlane.xlu0 %6002
    %v6004 = vsel %vm1291, %v5786, 0.0
    %6005 = vadd.xlane.f32.xlu0 %v6004
    %v6006 = vpop.xlane.xlu0 %6005
    %v6007 = vsel %vm1291, %v5793, 0.0
    %6008 = vadd.xlane.f32.xlu0 %v6007
    %v6009 = vpop.xlane.xlu0 %6008
    %v6010 = vsel %vm1291, %v5800, 0.0
    %6011 = vadd.xlane.f32.xlu0 %v6010
    %v6012 = vpop.xlane.xlu0 %6011
    %v6013 = vsel %vm1291, %v5807, 0.0
    %6014 = vadd.xlane.f32.xlu0 %v6013
    %v6015 = vpop.xlane.xlu0 %6014
    %v6016 = vsel %vm1291, %v5814, 0.0
    %6017 = vadd.xlane.f32.xlu0 %v6016
    %v6018 = vpop.xlane.xlu0 %6017
    %v6019 = vsel %vm1291, %v5821, 0.0
    %6020 = vadd.xlane.f32.xlu0 %v6019
    %v6021 = vpop.xlane.xlu0 %6020
    %v6022 = vsel %vm1291, %v5828, 0.0
    %6023 = vadd.xlane.f32.xlu0 %v6022
    %v6024 = vpop.xlane.xlu0 %6023
    %v6025 = vsel %vm1291, %v5835, 0.0
    %6026 = vadd.xlane.f32.xlu0 %v6025
    %v6027 = vpop.xlane.xlu0 %6026
    %v6028 = vsel %vm1291, %v5842, 0.0
    %6029 = vadd.xlane.f32.xlu0 %v6028
    %v6030 = vpop.xlane.xlu0 %6029
    %v6031 = vsel %vm1291, %v5849, 0.0
    %6032 = vadd.xlane.f32.xlu0 %v6031
    %v6033 = vpop.xlane.xlu0 %6032
    %v6034 = vsel %vm1291, %v5856, 0.0
    %6035 = vadd.xlane.f32.xlu0 %v6034
    %v6036 = vpop.xlane.xlu0 %6035
    %v6037 = vsel %vm1291, %v5863, 0.0
    %6038 = vadd.xlane.f32.xlu0 %v6037
    %v6039 = vpop.xlane.xlu0 %6038
    %v6040 = vsel %vm1291, %v5870, 0.0
    %6041 = vadd.xlane.f32.xlu0 %v6040
    %v6042 = vpop.xlane.xlu0 %6041
    %v6043 = vsel %vm1291, %v5877, 0.0
    %6044 = vadd.xlane.f32.xlu0 %v6043
    %v6045 = vpop.xlane.xlu0 %6044
    %v6046 = vsel %vm1291, %v5884, 0.0
    %6047 = vadd.xlane.f32.xlu0 %v6046
    %v6048 = vpop.xlane.xlu0 %6047
    %v6049 = vsel %vm1291, %v5891, 0.0
    %6050 = vadd.xlane.f32.xlu0 %v6049
    %v6051 = vpop.xlane.xlu0 %6050
    %v6052 = vsel %vm1291, %v5898, 0.0
    %6053 = vadd.xlane.f32.xlu0 %v6052
    %v6054 = vpop.xlane.xlu0 %6053
    %v6055 = vsel %vm1291, %v5905, 0.0
    %6056 = vadd.xlane.f32.xlu0 %v6055
    %v6057 = vpop.xlane.xlu0 %6056
    %v6058 = vsel %vm1291, %v5912, 0.0
    %6059 = vadd.xlane.f32.xlu0 %v6058
    %v6060 = vpop.xlane.xlu0 %6059
    %v6061 = vsel %vm1291, %v5919, 0.0
    %6062 = vadd.xlane.f32.xlu0 %v6061
    %v6063 = vpop.xlane.xlu0 %6062
    %v6064 = vsel %vm1291, %v5926, 0.0
    %6065 = vadd.xlane.f32.xlu0 %v6064
    %v6066 = vpop.xlane.xlu0 %6065
    %v6067 = vsel %vm1291, %v5933, 0.0
    %6068 = vadd.xlane.f32.xlu0 %v6067
    %v6069 = vpop.xlane.xlu0 %6068
    %v6070 = vsel %vm1291, %v5940, 0.0
    %6071 = vadd.xlane.f32.xlu0 %v6070
    %v6072 = vpop.xlane.xlu0 %6071
    %v6073 = vsel %vm1291, %v5947, 0.0
    %6074 = vadd.xlane.f32.xlu0 %v6073
    %v6075 = vpop.xlane.xlu0 %6074
    %v6076 = vmul.f32 %v3420, %v1468
    %v6077 = vmul.f32 %v3421, %v1468
    %v6078 = vmul.f32 %v3422, %v1468
    %v6079 = vmul.f32 %v3423, %v1468
    %v6080 = vmul.f32 %v3424, %v1468
    %v6081 = vmul.f32 %v3425, %v1468
    %v6082 = vmul.f32 %v3426, %v1468
    %v6083 = vmul.f32 %v3427, %v1468
    %v6084 = vmul.f32 %v3428, %v1469
    %v6085 = vmul.f32 %v3429, %v1469
    %v6086 = vmul.f32 %v3430, %v1469
    %v6087 = vmul.f32 %v3431, %v1469
    %v6088 = vmul.f32 %v3432, %v1469
    %v6089 = vmul.f32 %v3433, %v1469
    %v6090 = vmul.f32 %v3434, %v1469
    %v6091 = vmul.f32 %v3435, %v1469
    %v6092 = vmul.f32 %v3436, %v1470
    %v6093 = vmul.f32 %v3437, %v1470
    %v6094 = vmul.f32 %v3438, %v1470
    %v6095 = vmul.f32 %v3439, %v1470
    %v6096 = vmul.f32 %v3440, %v1470
    %v6097 = vmul.f32 %v3441, %v1470
    %v6098 = vmul.f32 %v3442, %v1470
    %v6099 = vmul.f32 %v3443, %v1470
    %v6100 = vmul.f32 %v3444, %v1471
    %v6101 = vmul.f32 %v3445, %v1471
    %v6102 = vmul.f32 %v3446, %v1471
    %v6103 = vmul.f32 %v3447, %v1471
    %v6104 = vmul.f32 %v3448, %v1471
    %v6105 = vmul.f32 %v3449, %v1471
    %v6106 = vmul.f32 %v3450, %v1471
    %v6107 = vmul.f32 %v3451, %v1471
    %v6108 = vmul.f32 %v3452, %v1472
    %v6109 = vmul.f32 %v3453, %v1472
    %v6110 = vmul.f32 %v3454, %v1472
    %v6111 = vmul.f32 %v3455, %v1472
    %v6112 = vmul.f32 %v3456, %v1472
    %v6113 = vmul.f32 %v3457, %v1472
    %v6114 = vmul.f32 %v3458, %v1472
    %v6115 = vmul.f32 %v3459, %v1472
    %v6116 = vmul.f32 %v3460, %v1473
    %v6117 = vmul.f32 %v3461, %v1473
    %v6118 = vmul.f32 %v3462, %v1473
    %v6119 = vmul.f32 %v3463, %v1473
    %v6120 = vmul.f32 %v3464, %v1473
    %v6121 = vmul.f32 %v3465, %v1473
    %v6122 = vmul.f32 %v3466, %v1473
    %v6123 = vmul.f32 %v3467, %v1473
    %v6124 = vmul.f32 %v3468, %v1474
    %v6125 = vmul.f32 %v3469, %v1474
    %v6126 = vmul.f32 %v3470, %v1474
    %v6127 = vmul.f32 %v3471, %v1474
    %v6128 = vmul.f32 %v3472, %v1474
    %v6129 = vmul.f32 %v3473, %v1474
    %v6130 = vmul.f32 %v3474, %v1474
    %v6131 = vmul.f32 %v3475, %v1474
    %v6132 = vmul.f32 %v3476, %v1475
    %v6133 = vmul.f32 %v3477, %v1475
    %v6134 = vmul.f32 %v3478, %v1475
    %v6135 = vmul.f32 %v3479, %v1475
    %v6136 = vmul.f32 %v3480, %v1475
    %v6137 = vmul.f32 %v3481, %v1475
    %v6138 = vmul.f32 %v3482, %v1475
    %v6139 = vmul.f32 %v3483, %v1475
    %v6140 = vmul.f32 %v3484, %v1476
    %v6141 = vmul.f32 %v3485, %v1476
    %v6142 = vmul.f32 %v3486, %v1476
    %v6143 = vmul.f32 %v3487, %v1476
    %v6144 = vmul.f32 %v3488, %v1476
    %v6145 = vmul.f32 %v3489, %v1476
    %v6146 = vmul.f32 %v3490, %v1476
    %v6147 = vmul.f32 %v3491, %v1476
    %v6148 = vmul.f32 %v3492, %v1477
    %v6149 = vmul.f32 %v3493, %v1477
    %v6150 = vmul.f32 %v3494, %v1477
    %v6151 = vmul.f32 %v3495, %v1477
    %v6152 = vmul.f32 %v3496, %v1477
    %v6153 = vmul.f32 %v3497, %v1477
    %v6154 = vmul.f32 %v3498, %v1477
    %v6155 = vmul.f32 %v3499, %v1477
    %v6156 = vmul.f32 %v3500, %v1478
    %v6157 = vmul.f32 %v3501, %v1478
    %v6158 = vmul.f32 %v3502, %v1478
    %v6159 = vmul.f32 %v3503, %v1478
    %v6160 = vmul.f32 %v3504, %v1478
    %v6161 = vmul.f32 %v3505, %v1478
    %v6162 = vmul.f32 %v3506, %v1478
    %v6163 = vmul.f32 %v3507, %v1478
    %v6164 = vmul.f32 %v3508, %v1479
    %v6165 = vmul.f32 %v3509, %v1479
    %v6166 = vmul.f32 %v3510, %v1479
    %v6167 = vmul.f32 %v3511, %v1479
    %v6168 = vmul.f32 %v3512, %v1479
    %v6169 = vmul.f32 %v3513, %v1479
    %v6170 = vmul.f32 %v3514, %v1479
    %v6171 = vmul.f32 %v3515, %v1479
    %v6172 = vmul.f32 %v3516, %v1480
    %v6173 = vmul.f32 %v3517, %v1480
    %v6174 = vmul.f32 %v3518, %v1480
    %v6175 = vmul.f32 %v3519, %v1480
    %v6176 = vmul.f32 %v3520, %v1480
    %v6177 = vmul.f32 %v3521, %v1480
    %v6178 = vmul.f32 %v3522, %v1480
    %v6179 = vmul.f32 %v3523, %v1480
    %v6180 = vmul.f32 %v3524, %v1481
    %v6181 = vmul.f32 %v3525, %v1481
    %v6182 = vmul.f32 %v3526, %v1481
    %v6183 = vmul.f32 %v3527, %v1481
    %v6184 = vmul.f32 %v3528, %v1481
    %v6185 = vmul.f32 %v3529, %v1481
    %v6186 = vmul.f32 %v3530, %v1481
    %v6187 = vmul.f32 %v3531, %v1481
    %v6188 = vmul.f32 %v3532, %v1482
    %v6189 = vmul.f32 %v3533, %v1482
    %v6190 = vmul.f32 %v3534, %v1482
    %v6191 = vmul.f32 %v3535, %v1482
    %v6192 = vmul.f32 %v3536, %v1482
    %v6193 = vmul.f32 %v3537, %v1482
    %v6194 = vmul.f32 %v3538, %v1482
    %v6195 = vmul.f32 %v3539, %v1482
    %v6196 = vmul.f32 %v3540, %v1483
    %v6197 = vmul.f32 %v3541, %v1483
    %v6198 = vmul.f32 %v3542, %v1483
    %v6199 = vmul.f32 %v3543, %v1483
    %v6200 = vmul.f32 %v3544, %v1483
    %v6201 = vmul.f32 %v3545, %v1483
    %v6202 = vmul.f32 %v3546, %v1483
    %v6203 = vmul.f32 %v3547, %v1483
    %v6204 = vmul.f32 %v3548, %v1484
    %v6205 = vmul.f32 %v3549, %v1484
    %v6206 = vmul.f32 %v3550, %v1484
    %v6207 = vmul.f32 %v3551, %v1484
    %v6208 = vmul.f32 %v3552, %v1484
    %v6209 = vmul.f32 %v3553, %v1484
    %v6210 = vmul.f32 %v3554, %v1484
    %v6211 = vmul.f32 %v3555, %v1484
    %v6212 = vmul.f32 %v3556, %v1485
    %v6213 = vmul.f32 %v3557, %v1485
    %v6214 = vmul.f32 %v3558, %v1485
    %v6215 = vmul.f32 %v3559, %v1485
    %v6216 = vmul.f32 %v3560, %v1485
    %v6217 = vmul.f32 %v3561, %v1485
    %v6218 = vmul.f32 %v3562, %v1485
    %v6219 = vmul.f32 %v3563, %v1485
    %v6220 = vmul.f32 %v3564, %v1486
    %v6221 = vmul.f32 %v3565, %v1486
    %v6222 = vmul.f32 %v3566, %v1486
    %v6223 = vmul.f32 %v3567, %v1486
    %v6224 = vmul.f32 %v3568, %v1486
    %v6225 = vmul.f32 %v3569, %v1486
    %v6226 = vmul.f32 %v3570, %v1486
    %v6227 = vmul.f32 %v3571, %v1486
    %v6228 = vmul.f32 %v3572, %v1487
    %v6229 = vmul.f32 %v3573, %v1487
    %v6230 = vmul.f32 %v3574, %v1487
    %v6231 = vmul.f32 %v3575, %v1487
    %v6232 = vmul.f32 %v3576, %v1487
    %v6233 = vmul.f32 %v3577, %v1487
    %v6234 = vmul.f32 %v3578, %v1487
    %v6235 = vmul.f32 %v3579, %v1487
    %v6236 = vmul.f32 %v3580, %v1488
    %v6237 = vmul.f32 %v3581, %v1488
    %v6238 = vmul.f32 %v3582, %v1488
    %v6239 = vmul.f32 %v3583, %v1488
    %v6240 = vmul.f32 %v3584, %v1488
    %v6241 = vmul.f32 %v3585, %v1488
    %v6242 = vmul.f32 %v3586, %v1488
    %v6243 = vmul.f32 %v3587, %v1488
    %v6244 = vmul.f32 %v3588, %v1489
    %v6245 = vmul.f32 %v3589, %v1489
    %v6246 = vmul.f32 %v3590, %v1489
    %v6247 = vmul.f32 %v3591, %v1489
    %v6248 = vmul.f32 %v3592, %v1489
    %v6249 = vmul.f32 %v3593, %v1489
    %v6250 = vmul.f32 %v3594, %v1489
    %v6251 = vmul.f32 %v3595, %v1489
    %v6252 = vmul.f32 %v3596, %v1490
    %v6253 = vmul.f32 %v3597, %v1490
    %v6254 = vmul.f32 %v3598, %v1490
    %v6255 = vmul.f32 %v3599, %v1490
    %v6256 = vmul.f32 %v3600, %v1490
    %v6257 = vmul.f32 %v3601, %v1490
    %v6258 = vmul.f32 %v3602, %v1490
    %v6259 = vmul.f32 %v3603, %v1490
    %v6260 = vmul.f32 %v3604, %v1491
    %v6261 = vmul.f32 %v3605, %v1491
    %v6262 = vmul.f32 %v3606, %v1491
    %v6263 = vmul.f32 %v3607, %v1491
    %v6264 = vmul.f32 %v3608, %v1491
    %v6265 = vmul.f32 %v3609, %v1491
    %v6266 = vmul.f32 %v3610, %v1491
    %v6267 = vmul.f32 %v3611, %v1491
    %v6268 = vmul.f32 %v3612, %v1492
    %v6269 = vmul.f32 %v3613, %v1492
    %v6270 = vmul.f32 %v3614, %v1492
    %v6271 = vmul.f32 %v3615, %v1492
    %v6272 = vmul.f32 %v3616, %v1492
    %v6273 = vmul.f32 %v3617, %v1492
    %v6274 = vmul.f32 %v3618, %v1492
    %v6275 = vmul.f32 %v3619, %v1492
    %v6276 = vmul.f32 %v3620, %v1493
    %v6277 = vmul.f32 %v3621, %v1493
    %v6278 = vmul.f32 %v3622, %v1493
    %v6279 = vmul.f32 %v3623, %v1493
    %v6280 = vmul.f32 %v3624, %v1493
    %v6281 = vmul.f32 %v3625, %v1493
    %v6282 = vmul.f32 %v3626, %v1493
    %v6283 = vmul.f32 %v3627, %v1493
    %v6284 = vmul.f32 %v3628, %v1494
    %v6285 = vmul.f32 %v3629, %v1494
    %v6286 = vmul.f32 %v3630, %v1494
    %v6287 = vmul.f32 %v3631, %v1494
    %v6288 = vmul.f32 %v3632, %v1494
    %v6289 = vmul.f32 %v3633, %v1494
    %v6290 = vmul.f32 %v3634, %v1494
    %v6291 = vmul.f32 %v3635, %v1494
    %v6292 = vmul.f32 %v3636, %v1495
    %v6293 = vmul.f32 %v3637, %v1495
    %v6294 = vmul.f32 %v3638, %v1495
    %v6295 = vmul.f32 %v3639, %v1495
    %v6296 = vmul.f32 %v3640, %v1495
    %v6297 = vmul.f32 %v3641, %v1495
    %v6298 = vmul.f32 %v3642, %v1495
    %v6299 = vmul.f32 %v3643, %v1495
    %v6300 = vmul.f32 %v3644, %v1496
    %v6301 = vmul.f32 %v3645, %v1496
    %v6302 = vmul.f32 %v3646, %v1496
    %v6303 = vmul.f32 %v3647, %v1496
    %v6304 = vmul.f32 %v3648, %v1496
    %v6305 = vmul.f32 %v3649, %v1496
    %v6306 = vmul.f32 %v3650, %v1496
    %v6307 = vmul.f32 %v3651, %v1496
    %v6308 = vmul.f32 %v3652, %v1497
    %v6309 = vmul.f32 %v3653, %v1497
    %v6310 = vmul.f32 %v3654, %v1497
    %v6311 = vmul.f32 %v3655, %v1497
    %v6312 = vmul.f32 %v3656, %v1497
    %v6313 = vmul.f32 %v3657, %v1497
    %v6314 = vmul.f32 %v3658, %v1497
    %v6315 = vmul.f32 %v3659, %v1497
    %v6316 = vmul.f32 %v3660, %v1498
    %v6317 = vmul.f32 %v3661, %v1498
    %v6318 = vmul.f32 %v3662, %v1498
    %v6319 = vmul.f32 %v3663, %v1498
    %v6320 = vmul.f32 %v3664, %v1498
    %v6321 = vmul.f32 %v3665, %v1498
    %v6322 = vmul.f32 %v3666, %v1498
    %v6323 = vmul.f32 %v3667, %v1498
    %v6324 = vmul.f32 %v3668, %v1499
    %v6325 = vmul.f32 %v3669, %v1499
    %v6326 = vmul.f32 %v3670, %v1499
    %v6327 = vmul.f32 %v3671, %v1499
    %v6328 = vmul.f32 %v3672, %v1499
    %v6329 = vmul.f32 %v3673, %v1499
    %v6330 = vmul.f32 %v3674, %v1499
    %v6331 = vmul.f32 %v3675, %v1499
    %6588 = vset.pattern.permute.xlu0 0
    %6589 = vperm.xlu0 %6588, %v6076
    %v6590 = vpop.permute.xlu0 %6589
    %6591 = vset.pattern.permute.xlu0 0
    %6592 = vperm.xlu0 %6591, %v6077
    %v6593 = vpop.permute.xlu0 %6592
    %6594 = vset.pattern.permute.xlu0 0
    %6595 = vperm.xlu0 %6594, %v6078
    %v6596 = vpop.permute.xlu0 %6595
    %6597 = vset.pattern.permute.xlu0 0
    %6598 = vperm.xlu0 %6597, %v6079
    %v6599 = vpop.permute.xlu0 %6598
    %6600 = vset.pattern.permute.xlu0 0
    %6601 = vperm.xlu0 %6600, %v6080
    %v6602 = vpop.permute.xlu0 %6601
    %6603 = vset.pattern.permute.xlu0 0
    %6604 = vperm.xlu0 %6603, %v6081
    %v6605 = vpop.permute.xlu0 %6604
    %6606 = vset.pattern.permute.xlu0 0
    %6607 = vperm.xlu0 %6606, %v6082
    %v6608 = vpop.permute.xlu0 %6607
    %6609 = vset.pattern.permute.xlu0 0
    %6610 = vperm.xlu0 %6609, %v6083
    %v6611 = vpop.permute.xlu0 %6610
    %6612 = vset.pattern.permute.xlu0 0
    %6613 = vperm.xlu0 %6612, %v6084
    %v6614 = vpop.permute.xlu0 %6613
    %6615 = vset.pattern.permute.xlu0 0
    %6616 = vperm.xlu0 %6615, %v6085
    %v6617 = vpop.permute.xlu0 %6616
    %6618 = vset.pattern.permute.xlu0 0
    %6619 = vperm.xlu0 %6618, %v6086
    %v6620 = vpop.permute.xlu0 %6619
    %6621 = vset.pattern.permute.xlu0 0
    %6622 = vperm.xlu0 %6621, %v6087
    %v6623 = vpop.permute.xlu0 %6622
    %6624 = vset.pattern.permute.xlu0 0
    %6625 = vperm.xlu0 %6624, %v6088
    %v6626 = vpop.permute.xlu0 %6625
    %6627 = vset.pattern.permute.xlu0 0
    %6628 = vperm.xlu0 %6627, %v6089
    %v6629 = vpop.permute.xlu0 %6628
    %6630 = vset.pattern.permute.xlu0 0
    %6631 = vperm.xlu0 %6630, %v6090
    %v6632 = vpop.permute.xlu0 %6631
    %6633 = vset.pattern.permute.xlu0 0
    %6634 = vperm.xlu0 %6633, %v6091
    %v6635 = vpop.permute.xlu0 %6634
    %6636 = vset.pattern.permute.xlu0 0
    %6637 = vperm.xlu0 %6636, %v6092
    %v6638 = vpop.permute.xlu0 %6637
    %6639 = vset.pattern.permute.xlu0 0
    %6640 = vperm.xlu0 %6639, %v6093
    %v6641 = vpop.permute.xlu0 %6640
    %6642 = vset.pattern.permute.xlu0 0
    %6643 = vperm.xlu0 %6642, %v6094
    %v6644 = vpop.permute.xlu0 %6643
    %6645 = vset.pattern.permute.xlu0 0
    %6646 = vperm.xlu0 %6645, %v6095
    %v6647 = vpop.permute.xlu0 %6646
    %6648 = vset.pattern.permute.xlu0 0
    %6649 = vperm.xlu0 %6648, %v6096
    %v6650 = vpop.permute.xlu0 %6649
    %6651 = vset.pattern.permute.xlu0 0
    %6652 = vperm.xlu0 %6651, %v6097
    %v6653 = vpop.permute.xlu0 %6652
    %6654 = vset.pattern.permute.xlu0 0
    %6655 = vperm.xlu0 %6654, %v6098
    %v6656 = vpop.permute.xlu0 %6655
    %6657 = vset.pattern.permute.xlu0 0
    %6658 = vperm.xlu0 %6657, %v6099
    %v6659 = vpop.permute.xlu0 %6658
    %6660 = vset.pattern.permute.xlu0 0
    %6661 = vperm.xlu0 %6660, %v6100
    %v6662 = vpop.permute.xlu0 %6661
    %6663 = vset.pattern.permute.xlu0 0
    %6664 = vperm.xlu0 %6663, %v6101
    %v6665 = vpop.permute.xlu0 %6664
    %6666 = vset.pattern.permute.xlu0 0
    %6667 = vperm.xlu0 %6666, %v6102
    %v6668 = vpop.permute.xlu0 %6667
    %6669 = vset.pattern.permute.xlu0 0
    %6670 = vperm.xlu0 %6669, %v6103
    %v6671 = vpop.permute.xlu0 %6670
    %6672 = vset.pattern.permute.xlu0 0
    %6673 = vperm.xlu0 %6672, %v6104
    %v6674 = vpop.permute.xlu0 %6673
    %6675 = vset.pattern.permute.xlu0 0
    %6676 = vperm.xlu0 %6675, %v6105
    %v6677 = vpop.permute.xlu0 %6676
    %6678 = vset.pattern.permute.xlu0 0
    %6679 = vperm.xlu0 %6678, %v6106
    %v6680 = vpop.permute.xlu0 %6679
    %6681 = vset.pattern.permute.xlu0 0
    %6682 = vperm.xlu0 %6681, %v6107
    %v6683 = vpop.permute.xlu0 %6682
    %6684 = vset.pattern.permute.xlu0 0
    %6685 = vperm.xlu0 %6684, %v6108
    %v6686 = vpop.permute.xlu0 %6685
    %6687 = vset.pattern.permute.xlu0 0
    %6688 = vperm.xlu0 %6687, %v6109
    %v6689 = vpop.permute.xlu0 %6688
    %6690 = vset.pattern.permute.xlu0 0
    %6691 = vperm.xlu0 %6690, %v6110
    %v6692 = vpop.permute.xlu0 %6691
    %6693 = vset.pattern.permute.xlu0 0
    %6694 = vperm.xlu0 %6693, %v6111
    %v6695 = vpop.permute.xlu0 %6694
    %6696 = vset.pattern.permute.xlu0 0
    %6697 = vperm.xlu0 %6696, %v6112
    %v6698 = vpop.permute.xlu0 %6697
    %6699 = vset.pattern.permute.xlu0 0
    %6700 = vperm.xlu0 %6699, %v6113
    %v6701 = vpop.permute.xlu0 %6700
    %6702 = vset.pattern.permute.xlu0 0
    %6703 = vperm.xlu0 %6702, %v6114
    %v6704 = vpop.permute.xlu0 %6703
    %6705 = vset.pattern.permute.xlu0 0
    %6706 = vperm.xlu0 %6705, %v6115
    %v6707 = vpop.permute.xlu0 %6706
    %6708 = vset.pattern.permute.xlu0 0
    %6709 = vperm.xlu0 %6708, %v6116
    %v6710 = vpop.permute.xlu0 %6709
    %6711 = vset.pattern.permute.xlu0 0
    %6712 = vperm.xlu0 %6711, %v6117
    %v6713 = vpop.permute.xlu0 %6712
    %6714 = vset.pattern.permute.xlu0 0
    %6715 = vperm.xlu0 %6714, %v6118
    %v6716 = vpop.permute.xlu0 %6715
    %6717 = vset.pattern.permute.xlu0 0
    %6718 = vperm.xlu0 %6717, %v6119
    %v6719 = vpop.permute.xlu0 %6718
    %6720 = vset.pattern.permute.xlu0 0
    %6721 = vperm.xlu0 %6720, %v6120
    %v6722 = vpop.permute.xlu0 %6721
    %6723 = vset.pattern.permute.xlu0 0
    %6724 = vperm.xlu0 %6723, %v6121
    %v6725 = vpop.permute.xlu0 %6724
    %6726 = vset.pattern.permute.xlu0 0
    %6727 = vperm.xlu0 %6726, %v6122
    %v6728 = vpop.permute.xlu0 %6727
    %6729 = vset.pattern.permute.xlu0 0
    %6730 = vperm.xlu0 %6729, %v6123
    %v6731 = vpop.permute.xlu0 %6730
    %6732 = vset.pattern.permute.xlu0 0
    %6733 = vperm.xlu0 %6732, %v6124
    %v6734 = vpop.permute.xlu0 %6733
    %6735 = vset.pattern.permute.xlu0 0
    %6736 = vperm.xlu0 %6735, %v6125
    %v6737 = vpop.permute.xlu0 %6736
    %6738 = vset.pattern.permute.xlu0 0
    %6739 = vperm.xlu0 %6738, %v6126
    %v6740 = vpop.permute.xlu0 %6739
    %6741 = vset.pattern.permute.xlu0 0
    %6742 = vperm.xlu0 %6741, %v6127
    %v6743 = vpop.permute.xlu0 %6742
    %6744 = vset.pattern.permute.xlu0 0
    %6745 = vperm.xlu0 %6744, %v6128
    %v6746 = vpop.permute.xlu0 %6745
    %6747 = vset.pattern.permute.xlu0 0
    %6748 = vperm.xlu0 %6747, %v6129
    %v6749 = vpop.permute.xlu0 %6748
    %6750 = vset.pattern.permute.xlu0 0
    %6751 = vperm.xlu0 %6750, %v6130
    %v6752 = vpop.permute.xlu0 %6751
    %6753 = vset.pattern.permute.xlu0 0
    %6754 = vperm.xlu0 %6753, %v6131
    %v6755 = vpop.permute.xlu0 %6754
    %6756 = vset.pattern.permute.xlu0 0
    %6757 = vperm.xlu0 %6756, %v6132
    %v6758 = vpop.permute.xlu0 %6757
    %6759 = vset.pattern.permute.xlu0 0
    %6760 = vperm.xlu0 %6759, %v6133
    %v6761 = vpop.permute.xlu0 %6760
    %6762 = vset.pattern.permute.xlu0 0
    %6763 = vperm.xlu0 %6762, %v6134
    %v6764 = vpop.permute.xlu0 %6763
    %6765 = vset.pattern.permute.xlu0 0
    %6766 = vperm.xlu0 %6765, %v6135
    %v6767 = vpop.permute.xlu0 %6766
    %6768 = vset.pattern.permute.xlu0 0
    %6769 = vperm.xlu0 %6768, %v6136
    %v6770 = vpop.permute.xlu0 %6769
    %6771 = vset.pattern.permute.xlu0 0
    %6772 = vperm.xlu0 %6771, %v6137
    %v6773 = vpop.permute.xlu0 %6772
    %6774 = vset.pattern.permute.xlu0 0
    %6775 = vperm.xlu0 %6774, %v6138
    %v6776 = vpop.permute.xlu0 %6775
    %6777 = vset.pattern.permute.xlu0 0
    %6778 = vperm.xlu0 %6777, %v6139
    %v6779 = vpop.permute.xlu0 %6778
    %6780 = vset.pattern.permute.xlu0 0
    %6781 = vperm.xlu0 %6780, %v6140
    %v6782 = vpop.permute.xlu0 %6781
    %6783 = vset.pattern.permute.xlu0 0
    %6784 = vperm.xlu0 %6783, %v6141
    %v6785 = vpop.permute.xlu0 %6784
    %6786 = vset.pattern.permute.xlu0 0
    %6787 = vperm.xlu0 %6786, %v6142
    %v6788 = vpop.permute.xlu0 %6787
    %6789 = vset.pattern.permute.xlu0 0
    %6790 = vperm.xlu0 %6789, %v6143
    %v6791 = vpop.permute.xlu0 %6790
    %6792 = vset.pattern.permute.xlu0 0
    %6793 = vperm.xlu0 %6792, %v6144
    %v6794 = vpop.permute.xlu0 %6793
    %6795 = vset.pattern.permute.xlu0 0
    %6796 = vperm.xlu0 %6795, %v6145
    %v6797 = vpop.permute.xlu0 %6796
    %6798 = vset.pattern.permute.xlu0 0
    %6799 = vperm.xlu0 %6798, %v6146
    %v6800 = vpop.permute.xlu0 %6799
    %6801 = vset.pattern.permute.xlu0 0
    %6802 = vperm.xlu0 %6801, %v6147
    %v6803 = vpop.permute.xlu0 %6802
    %6804 = vset.pattern.permute.xlu0 0
    %6805 = vperm.xlu0 %6804, %v6148
    %v6806 = vpop.permute.xlu0 %6805
    %6807 = vset.pattern.permute.xlu0 0
    %6808 = vperm.xlu0 %6807, %v6149
    %v6809 = vpop.permute.xlu0 %6808
    %6810 = vset.pattern.permute.xlu0 0
    %6811 = vperm.xlu0 %6810, %v6150
    %v6812 = vpop.permute.xlu0 %6811
    %6813 = vset.pattern.permute.xlu0 0
    %6814 = vperm.xlu0 %6813, %v6151
    %v6815 = vpop.permute.xlu0 %6814
    %6816 = vset.pattern.permute.xlu0 0
    %6817 = vperm.xlu0 %6816, %v6152
    %v6818 = vpop.permute.xlu0 %6817
    %6819 = vset.pattern.permute.xlu0 0
    %6820 = vperm.xlu0 %6819, %v6153
    %v6821 = vpop.permute.xlu0 %6820
    %6822 = vset.pattern.permute.xlu0 0
    %6823 = vperm.xlu0 %6822, %v6154
    %v6824 = vpop.permute.xlu0 %6823
    %6825 = vset.pattern.permute.xlu0 0
    %6826 = vperm.xlu0 %6825, %v6155
    %v6827 = vpop.permute.xlu0 %6826
    %6828 = vset.pattern.permute.xlu0 0
    %6829 = vperm.xlu0 %6828, %v6156
    %v6830 = vpop.permute.xlu0 %6829
    %6831 = vset.pattern.permute.xlu0 0
    %6832 = vperm.xlu0 %6831, %v6157
    %v6833 = vpop.permute.xlu0 %6832
    %6834 = vset.pattern.permute.xlu0 0
    %6835 = vperm.xlu0 %6834, %v6158
    %v6836 = vpop.permute.xlu0 %6835
    %6837 = vset.pattern.permute.xlu0 0
    %6838 = vperm.xlu0 %6837, %v6159
    %v6839 = vpop.permute.xlu0 %6838
    %6840 = vset.pattern.permute.xlu0 0
    %6841 = vperm.xlu0 %6840, %v6160
    %v6842 = vpop.permute.xlu0 %6841
    %6843 = vset.pattern.permute.xlu0 0
    %6844 = vperm.xlu0 %6843, %v6161
    %v6845 = vpop.permute.xlu0 %6844
    %6846 = vset.pattern.permute.xlu0 0
    %6847 = vperm.xlu0 %6846, %v6162
    %v6848 = vpop.permute.xlu0 %6847
    %6849 = vset.pattern.permute.xlu0 0
    %6850 = vperm.xlu0 %6849, %v6163
    %v6851 = vpop.permute.xlu0 %6850
    %6852 = vset.pattern.permute.xlu0 0
    %6853 = vperm.xlu0 %6852, %v6164
    %v6854 = vpop.permute.xlu0 %6853
    %6855 = vset.pattern.permute.xlu0 0
    %6856 = vperm.xlu0 %6855, %v6165
    %v6857 = vpop.permute.xlu0 %6856
    %6858 = vset.pattern.permute.xlu0 0
    %6859 = vperm.xlu0 %6858, %v6166
    %v6860 = vpop.permute.xlu0 %6859
    %6861 = vset.pattern.permute.xlu0 0
    %6862 = vperm.xlu0 %6861, %v6167
    %v6863 = vpop.permute.xlu0 %6862
    %6864 = vset.pattern.permute.xlu0 0
    %6865 = vperm.xlu0 %6864, %v6168
    %v6866 = vpop.permute.xlu0 %6865
    %6867 = vset.pattern.permute.xlu0 0
    %6868 = vperm.xlu0 %6867, %v6169
    %v6869 = vpop.permute.xlu0 %6868
    %6870 = vset.pattern.permute.xlu0 0
    %6871 = vperm.xlu0 %6870, %v6170
    %v6872 = vpop.permute.xlu0 %6871
    %6873 = vset.pattern.permute.xlu0 0
    %6874 = vperm.xlu0 %6873, %v6171
    %v6875 = vpop.permute.xlu0 %6874
    %6876 = vset.pattern.permute.xlu0 0
    %6877 = vperm.xlu0 %6876, %v6172
    %v6878 = vpop.permute.xlu0 %6877
    %6879 = vset.pattern.permute.xlu0 0
    %6880 = vperm.xlu0 %6879, %v6173
    %v6881 = vpop.permute.xlu0 %6880
    %6882 = vset.pattern.permute.xlu0 0
    %6883 = vperm.xlu0 %6882, %v6174
    %v6884 = vpop.permute.xlu0 %6883
    %6885 = vset.pattern.permute.xlu0 0
    %6886 = vperm.xlu0 %6885, %v6175
    %v6887 = vpop.permute.xlu0 %6886
    %6888 = vset.pattern.permute.xlu0 0
    %6889 = vperm.xlu0 %6888, %v6176
    %v6890 = vpop.permute.xlu0 %6889
    %6891 = vset.pattern.permute.xlu0 0
    %6892 = vperm.xlu0 %6891, %v6177
    %v6893 = vpop.permute.xlu0 %6892
    %6894 = vset.pattern.permute.xlu0 0
    %6895 = vperm.xlu0 %6894, %v6178
    %v6896 = vpop.permute.xlu0 %6895
    %6897 = vset.pattern.permute.xlu0 0
    %6898 = vperm.xlu0 %6897, %v6179
    %v6899 = vpop.permute.xlu0 %6898
    %6900 = vset.pattern.permute.xlu0 0
    %6901 = vperm.xlu0 %6900, %v6180
    %v6902 = vpop.permute.xlu0 %6901
    %6903 = vset.pattern.permute.xlu0 0
    %6904 = vperm.xlu0 %6903, %v6181
    %v6905 = vpop.permute.xlu0 %6904
    %6906 = vset.pattern.permute.xlu0 0
    %6907 = vperm.xlu0 %6906, %v6182
    %v6908 = vpop.permute.xlu0 %6907
    %6909 = vset.pattern.permute.xlu0 0
    %6910 = vperm.xlu0 %6909, %v6183
    %v6911 = vpop.permute.xlu0 %6910
    %6912 = vset.pattern.permute.xlu0 0
    %6913 = vperm.xlu0 %6912, %v6184
    %v6914 = vpop.permute.xlu0 %6913
    %6915 = vset.pattern.permute.xlu0 0
    %6916 = vperm.xlu0 %6915, %v6185
    %v6917 = vpop.permute.xlu0 %6916
    %6918 = vset.pattern.permute.xlu0 0
    %6919 = vperm.xlu0 %6918, %v6186
    %v6920 = vpop.permute.xlu0 %6919
    %6921 = vset.pattern.permute.xlu0 0
    %6922 = vperm.xlu0 %6921, %v6187
    %v6923 = vpop.permute.xlu0 %6922
    %6924 = vset.pattern.permute.xlu0 0
    %6925 = vperm.xlu0 %6924, %v6188
    %v6926 = vpop.permute.xlu0 %6925
    %6927 = vset.pattern.permute.xlu0 0
    %6928 = vperm.xlu0 %6927, %v6189
    %v6929 = vpop.permute.xlu0 %6928
    %6930 = vset.pattern.permute.xlu0 0
    %6931 = vperm.xlu0 %6930, %v6190
    %v6932 = vpop.permute.xlu0 %6931
    %6933 = vset.pattern.permute.xlu0 0
    %6934 = vperm.xlu0 %6933, %v6191
    %v6935 = vpop.permute.xlu0 %6934
    %6936 = vset.pattern.permute.xlu0 0
    %6937 = vperm.xlu0 %6936, %v6192
    %v6938 = vpop.permute.xlu0 %6937
    %6939 = vset.pattern.permute.xlu0 0
    %6940 = vperm.xlu0 %6939, %v6193
    %v6941 = vpop.permute.xlu0 %6940
    %6942 = vset.pattern.permute.xlu0 0
    %6943 = vperm.xlu0 %6942, %v6194
    %v6944 = vpop.permute.xlu0 %6943
    %6945 = vset.pattern.permute.xlu0 0
    %6946 = vperm.xlu0 %6945, %v6195
    %v6947 = vpop.permute.xlu0 %6946
    %6948 = vset.pattern.permute.xlu0 0
    %6949 = vperm.xlu0 %6948, %v6196
    %v6950 = vpop.permute.xlu0 %6949
    %6951 = vset.pattern.permute.xlu0 0
    %6952 = vperm.xlu0 %6951, %v6197
    %v6953 = vpop.permute.xlu0 %6952
    %6954 = vset.pattern.permute.xlu0 0
    %6955 = vperm.xlu0 %6954, %v6198
    %v6956 = vpop.permute.xlu0 %6955
    %6957 = vset.pattern.permute.xlu0 0
    %6958 = vperm.xlu0 %6957, %v6199
    %v6959 = vpop.permute.xlu0 %6958
    %6960 = vset.pattern.permute.xlu0 0
    %6961 = vperm.xlu0 %6960, %v6200
    %v6962 = vpop.permute.xlu0 %6961
    %6963 = vset.pattern.permute.xlu0 0
    %6964 = vperm.xlu0 %6963, %v6201
    %v6965 = vpop.permute.xlu0 %6964
    %6966 = vset.pattern.permute.xlu0 0
    %6967 = vperm.xlu0 %6966, %v6202
    %v6968 = vpop.permute.xlu0 %6967
    %6969 = vset.pattern.permute.xlu0 0
    %6970 = vperm.xlu0 %6969, %v6203
    %v6971 = vpop.permute.xlu0 %6970
    %6972 = vset.pattern.permute.xlu0 0
    %6973 = vperm.xlu0 %6972, %v6204
    %v6974 = vpop.permute.xlu0 %6973
    %6975 = vset.pattern.permute.xlu0 0
    %6976 = vperm.xlu0 %6975, %v6205
    %v6977 = vpop.permute.xlu0 %6976
    %6978 = vset.pattern.permute.xlu0 0
    %6979 = vperm.xlu0 %6978, %v6206
    %v6980 = vpop.permute.xlu0 %6979
    %6981 = vset.pattern.permute.xlu0 0
    %6982 = vperm.xlu0 %6981, %v6207
    %v6983 = vpop.permute.xlu0 %6982
    %6984 = vset.pattern.permute.xlu0 0
    %6985 = vperm.xlu0 %6984, %v6208
    %v6986 = vpop.permute.xlu0 %6985
    %6987 = vset.pattern.permute.xlu0 0
    %6988 = vperm.xlu0 %6987, %v6209
    %v6989 = vpop.permute.xlu0 %6988
    %6990 = vset.pattern.permute.xlu0 0
    %6991 = vperm.xlu0 %6990, %v6210
    %v6992 = vpop.permute.xlu0 %6991
    %6993 = vset.pattern.permute.xlu0 0
    %6994 = vperm.xlu0 %6993, %v6211
    %v6995 = vpop.permute.xlu0 %6994
    %6996 = vset.pattern.permute.xlu0 0
    %6997 = vperm.xlu0 %6996, %v6212
    %v6998 = vpop.permute.xlu0 %6997
    %6999 = vset.pattern.permute.xlu0 0
    %7000 = vperm.xlu0 %6999, %v6213
    %v7001 = vpop.permute.xlu0 %7000
    %7002 = vset.pattern.permute.xlu0 0
    %7003 = vperm.xlu0 %7002, %v6214
    %v7004 = vpop.permute.xlu0 %7003
    %7005 = vset.pattern.permute.xlu0 0
    %7006 = vperm.xlu0 %7005, %v6215
    %v7007 = vpop.permute.xlu0 %7006
    %7008 = vset.pattern.permute.xlu0 0
    %7009 = vperm.xlu0 %7008, %v6216
    %v7010 = vpop.permute.xlu0 %7009
    %7011 = vset.pattern.permute.xlu0 0
    %7012 = vperm.xlu0 %7011, %v6217
    %v7013 = vpop.permute.xlu0 %7012
    %7014 = vset.pattern.permute.xlu0 0
    %7015 = vperm.xlu0 %7014, %v6218
    %v7016 = vpop.permute.xlu0 %7015
    %7017 = vset.pattern.permute.xlu0 0
    %7018 = vperm.xlu0 %7017, %v6219
    %v7019 = vpop.permute.xlu0 %7018
    %7020 = vset.pattern.permute.xlu0 0
    %7021 = vperm.xlu0 %7020, %v6220
    %v7022 = vpop.permute.xlu0 %7021
    %7023 = vset.pattern.permute.xlu0 0
    %7024 = vperm.xlu0 %7023, %v6221
    %v7025 = vpop.permute.xlu0 %7024
    %7026 = vset.pattern.permute.xlu0 0
    %7027 = vperm.xlu0 %7026, %v6222
    %v7028 = vpop.permute.xlu0 %7027
    %7029 = vset.pattern.permute.xlu0 0
    %7030 = vperm.xlu0 %7029, %v6223
    %v7031 = vpop.permute.xlu0 %7030
    %7032 = vset.pattern.permute.xlu0 0
    %7033 = vperm.xlu0 %7032, %v6224
    %v7034 = vpop.permute.xlu0 %7033
    %7035 = vset.pattern.permute.xlu0 0
    %7036 = vperm.xlu0 %7035, %v6225
    %v7037 = vpop.permute.xlu0 %7036
    %7038 = vset.pattern.permute.xlu0 0
    %7039 = vperm.xlu0 %7038, %v6226
    %v7040 = vpop.permute.xlu0 %7039
    %7041 = vset.pattern.permute.xlu0 0
    %7042 = vperm.xlu0 %7041, %v6227
    %v7043 = vpop.permute.xlu0 %7042
    %7044 = vset.pattern.permute.xlu0 0
    %7045 = vperm.xlu0 %7044, %v6228
    %v7046 = vpop.permute.xlu0 %7045
    %7047 = vset.pattern.permute.xlu0 0
    %7048 = vperm.xlu0 %7047, %v6229
    %v7049 = vpop.permute.xlu0 %7048
    %7050 = vset.pattern.permute.xlu0 0
    %7051 = vperm.xlu0 %7050, %v6230
    %v7052 = vpop.permute.xlu0 %7051
    %7053 = vset.pattern.permute.xlu0 0
    %7054 = vperm.xlu0 %7053, %v6231
    %v7055 = vpop.permute.xlu0 %7054
    %7056 = vset.pattern.permute.xlu0 0
    %7057 = vperm.xlu0 %7056, %v6232
    %v7058 = vpop.permute.xlu0 %7057
    %7059 = vset.pattern.permute.xlu0 0
    %7060 = vperm.xlu0 %7059, %v6233
    %v7061 = vpop.permute.xlu0 %7060
    %7062 = vset.pattern.permute.xlu0 0
    %7063 = vperm.xlu0 %7062, %v6234
    %v7064 = vpop.permute.xlu0 %7063
    %7065 = vset.pattern.permute.xlu0 0
    %7066 = vperm.xlu0 %7065, %v6235
    %v7067 = vpop.permute.xlu0 %7066
    %7068 = vset.pattern.permute.xlu0 0
    %7069 = vperm.xlu0 %7068, %v6236
    %v7070 = vpop.permute.xlu0 %7069
    %7071 = vset.pattern.permute.xlu0 0
    %7072 = vperm.xlu0 %7071, %v6237
    %v7073 = vpop.permute.xlu0 %7072
    %7074 = vset.pattern.permute.xlu0 0
    %7075 = vperm.xlu0 %7074, %v6238
    %v7076 = vpop.permute.xlu0 %7075
    %7077 = vset.pattern.permute.xlu0 0
    %7078 = vperm.xlu0 %7077, %v6239
    %v7079 = vpop.permute.xlu0 %7078
    %7080 = vset.pattern.permute.xlu0 0
    %7081 = vperm.xlu0 %7080, %v6240
    %v7082 = vpop.permute.xlu0 %7081
    %7083 = vset.pattern.permute.xlu0 0
    %7084 = vperm.xlu0 %7083, %v6241
    %v7085 = vpop.permute.xlu0 %7084
    %7086 = vset.pattern.permute.xlu0 0
    %7087 = vperm.xlu0 %7086, %v6242
    %v7088 = vpop.permute.xlu0 %7087
    %7089 = vset.pattern.permute.xlu0 0
    %7090 = vperm.xlu0 %7089, %v6243
    %v7091 = vpop.permute.xlu0 %7090
    %7092 = vset.pattern.permute.xlu0 0
    %7093 = vperm.xlu0 %7092, %v6244
    %v7094 = vpop.permute.xlu0 %7093
    %7095 = vset.pattern.permute.xlu0 0
    %7096 = vperm.xlu0 %7095, %v6245
    %v7097 = vpop.permute.xlu0 %7096
    %7098 = vset.pattern.permute.xlu0 0
    %7099 = vperm.xlu0 %7098, %v6246
    %v7100 = vpop.permute.xlu0 %7099
    %7101 = vset.pattern.permute.xlu0 0
    %7102 = vperm.xlu0 %7101, %v6247
    %v7103 = vpop.permute.xlu0 %7102
    %7104 = vset.pattern.permute.xlu0 0
    %7105 = vperm.xlu0 %7104, %v6248
    %v7106 = vpop.permute.xlu0 %7105
    %7107 = vset.pattern.permute.xlu0 0
    %7108 = vperm.xlu0 %7107, %v6249
    %v7109 = vpop.permute.xlu0 %7108
    %7110 = vset.pattern.permute.xlu0 0
    %7111 = vperm.xlu0 %7110, %v6250
    %v7112 = vpop.permute.xlu0 %7111
    %7113 = vset.pattern.permute.xlu0 0
    %7114 = vperm.xlu0 %7113, %v6251
    %v7115 = vpop.permute.xlu0 %7114
    %7116 = vset.pattern.permute.xlu0 0
    %7117 = vperm.xlu0 %7116, %v6252
    %v7118 = vpop.permute.xlu0 %7117
    %7119 = vset.pattern.permute.xlu0 0
    %7120 = vperm.xlu0 %7119, %v6253
    %v7121 = vpop.permute.xlu0 %7120
    %7122 = vset.pattern.permute.xlu0 0
    %7123 = vperm.xlu0 %7122, %v6254
    %v7124 = vpop.permute.xlu0 %7123
    %7125 = vset.pattern.permute.xlu0 0
    %7126 = vperm.xlu0 %7125, %v6255
    %v7127 = vpop.permute.xlu0 %7126
    %7128 = vset.pattern.permute.xlu0 0
    %7129 = vperm.xlu0 %7128, %v6256
    %v7130 = vpop.permute.xlu0 %7129
    %7131 = vset.pattern.permute.xlu0 0
    %7132 = vperm.xlu0 %7131, %v6257
    %v7133 = vpop.permute.xlu0 %7132
    %7134 = vset.pattern.permute.xlu0 0
    %7135 = vperm.xlu0 %7134, %v6258
    %v7136 = vpop.permute.xlu0 %7135
    %7137 = vset.pattern.permute.xlu0 0
    %7138 = vperm.xlu0 %7137, %v6259
    %v7139 = vpop.permute.xlu0 %7138
    %7140 = vset.pattern.permute.xlu0 0
    %7141 = vperm.xlu0 %7140, %v6260
    %v7142 = vpop.permute.xlu0 %7141
    %7143 = vset.pattern.permute.xlu0 0
    %7144 = vperm.xlu0 %7143, %v6261
    %v7145 = vpop.permute.xlu0 %7144
    %7146 = vset.pattern.permute.xlu0 0
    %7147 = vperm.xlu0 %7146, %v6262
    %v7148 = vpop.permute.xlu0 %7147
    %7149 = vset.pattern.permute.xlu0 0
    %7150 = vperm.xlu0 %7149, %v6263
    %v7151 = vpop.permute.xlu0 %7150
    %7152 = vset.pattern.permute.xlu0 0
    %7153 = vperm.xlu0 %7152, %v6264
    %v7154 = vpop.permute.xlu0 %7153
    %7155 = vset.pattern.permute.xlu0 0
    %7156 = vperm.xlu0 %7155, %v6265
    %v7157 = vpop.permute.xlu0 %7156
    %7158 = vset.pattern.permute.xlu0 0
    %7159 = vperm.xlu0 %7158, %v6266
    %v7160 = vpop.permute.xlu0 %7159
    %7161 = vset.pattern.permute.xlu0 0
    %7162 = vperm.xlu0 %7161, %v6267
    %v7163 = vpop.permute.xlu0 %7162
    %7164 = vset.pattern.permute.xlu0 0
    %7165 = vperm.xlu0 %7164, %v6268
    %v7166 = vpop.permute.xlu0 %7165
    %7167 = vset.pattern.permute.xlu0 0
    %7168 = vperm.xlu0 %7167, %v6269
    %v7169 = vpop.permute.xlu0 %7168
    %7170 = vset.pattern.permute.xlu0 0
    %7171 = vperm.xlu0 %7170, %v6270
    %v7172 = vpop.permute.xlu0 %7171
    %7173 = vset.pattern.permute.xlu0 0
    %7174 = vperm.xlu0 %7173, %v6271
    %v7175 = vpop.permute.xlu0 %7174
    %7176 = vset.pattern.permute.xlu0 0
    %7177 = vperm.xlu0 %7176, %v6272
    %v7178 = vpop.permute.xlu0 %7177
    %7179 = vset.pattern.permute.xlu0 0
    %7180 = vperm.xlu0 %7179, %v6273
    %v7181 = vpop.permute.xlu0 %7180
    %7182 = vset.pattern.permute.xlu0 0
    %7183 = vperm.xlu0 %7182, %v6274
    %v7184 = vpop.permute.xlu0 %7183
    %7185 = vset.pattern.permute.xlu0 0
    %7186 = vperm.xlu0 %7185, %v6275
    %v7187 = vpop.permute.xlu0 %7186
    %7188 = vset.pattern.permute.xlu0 0
    %7189 = vperm.xlu0 %7188, %v6276
    %v7190 = vpop.permute.xlu0 %7189
    %7191 = vset.pattern.permute.xlu0 0
    %7192 = vperm.xlu0 %7191, %v6277
    %v7193 = vpop.permute.xlu0 %7192
    %7194 = vset.pattern.permute.xlu0 0
    %7195 = vperm.xlu0 %7194, %v6278
    %v7196 = vpop.permute.xlu0 %7195
    %7197 = vset.pattern.permute.xlu0 0
    %7198 = vperm.xlu0 %7197, %v6279
    %v7199 = vpop.permute.xlu0 %7198
    %7200 = vset.pattern.permute.xlu0 0
    %7201 = vperm.xlu0 %7200, %v6280
    %v7202 = vpop.permute.xlu0 %7201
    %7203 = vset.pattern.permute.xlu0 0
    %7204 = vperm.xlu0 %7203, %v6281
    %v7205 = vpop.permute.xlu0 %7204
    %7206 = vset.pattern.permute.xlu0 0
    %7207 = vperm.xlu0 %7206, %v6282
    %v7208 = vpop.permute.xlu0 %7207
    %7209 = vset.pattern.permute.xlu0 0
    %7210 = vperm.xlu0 %7209, %v6283
    %v7211 = vpop.permute.xlu0 %7210
    %7212 = vset.pattern.permute.xlu0 0
    %7213 = vperm.xlu0 %7212, %v6284
    %v7214 = vpop.permute.xlu0 %7213
    %7215 = vset.pattern.permute.xlu0 0
    %7216 = vperm.xlu0 %7215, %v6285
    %v7217 = vpop.permute.xlu0 %7216
    %7218 = vset.pattern.permute.xlu0 0
    %7219 = vperm.xlu0 %7218, %v6286
    %v7220 = vpop.permute.xlu0 %7219
    %7221 = vset.pattern.permute.xlu0 0
    %7222 = vperm.xlu0 %7221, %v6287
    %v7223 = vpop.permute.xlu0 %7222
    %7224 = vset.pattern.permute.xlu0 0
    %7225 = vperm.xlu0 %7224, %v6288
    %v7226 = vpop.permute.xlu0 %7225
    %7227 = vset.pattern.permute.xlu0 0
    %7228 = vperm.xlu0 %7227, %v6289
    %v7229 = vpop.permute.xlu0 %7228
    %7230 = vset.pattern.permute.xlu0 0
    %7231 = vperm.xlu0 %7230, %v6290
    %v7232 = vpop.permute.xlu0 %7231
    %7233 = vset.pattern.permute.xlu0 0
    %7234 = vperm.xlu0 %7233, %v6291
    %v7235 = vpop.permute.xlu0 %7234
    %7236 = vset.pattern.permute.xlu0 0
    %7237 = vperm.xlu0 %7236, %v6292
    %v7238 = vpop.permute.xlu0 %7237
    %7239 = vset.pattern.permute.xlu0 0
    %7240 = vperm.xlu0 %7239, %v6293
    %v7241 = vpop.permute.xlu0 %7240
    %7242 = vset.pattern.permute.xlu0 0
    %7243 = vperm.xlu0 %7242, %v6294
    %v7244 = vpop.permute.xlu0 %7243
    %7245 = vset.pattern.permute.xlu0 0
    %7246 = vperm.xlu0 %7245, %v6295
    %v7247 = vpop.permute.xlu0 %7246
    %7248 = vset.pattern.permute.xlu0 0
    %7249 = vperm.xlu0 %7248, %v6296
    %v7250 = vpop.permute.xlu0 %7249
    %7251 = vset.pattern.permute.xlu0 0
    %7252 = vperm.xlu0 %7251, %v6297
    %v7253 = vpop.permute.xlu0 %7252
    %7254 = vset.pattern.permute.xlu0 0
    %7255 = vperm.xlu0 %7254, %v6298
    %v7256 = vpop.permute.xlu0 %7255
    %7257 = vset.pattern.permute.xlu0 0
    %7258 = vperm.xlu0 %7257, %v6299
    %v7259 = vpop.permute.xlu0 %7258
    %7260 = vset.pattern.permute.xlu0 0
    %7261 = vperm.xlu0 %7260, %v6300
    %v7262 = vpop.permute.xlu0 %7261
    %7263 = vset.pattern.permute.xlu0 0
    %7264 = vperm.xlu0 %7263, %v6301
    %v7265 = vpop.permute.xlu0 %7264
    %7266 = vset.pattern.permute.xlu0 0
    %7267 = vperm.xlu0 %7266, %v6302
    %v7268 = vpop.permute.xlu0 %7267
    %7269 = vset.pattern.permute.xlu0 0
    %7270 = vperm.xlu0 %7269, %v6303
    %v7271 = vpop.permute.xlu0 %7270
    %7272 = vset.pattern.permute.xlu0 0
    %7273 = vperm.xlu0 %7272, %v6304
    %v7274 = vpop.permute.xlu0 %7273
    %7275 = vset.pattern.permute.xlu0 0
    %7276 = vperm.xlu0 %7275, %v6305
    %v7277 = vpop.permute.xlu0 %7276
    %7278 = vset.pattern.permute.xlu0 0
    %7279 = vperm.xlu0 %7278, %v6306
    %v7280 = vpop.permute.xlu0 %7279
    %7281 = vset.pattern.permute.xlu0 0
    %7282 = vperm.xlu0 %7281, %v6307
    %v7283 = vpop.permute.xlu0 %7282
    %7284 = vset.pattern.permute.xlu0 0
    %7285 = vperm.xlu0 %7284, %v6308
    %v7286 = vpop.permute.xlu0 %7285
    %7287 = vset.pattern.permute.xlu0 0
    %7288 = vperm.xlu0 %7287, %v6309
    %v7289 = vpop.permute.xlu0 %7288
    %7290 = vset.pattern.permute.xlu0 0
    %7291 = vperm.xlu0 %7290, %v6310
    %v7292 = vpop.permute.xlu0 %7291
    %7293 = vset.pattern.permute.xlu0 0
    %7294 = vperm.xlu0 %7293, %v6311
    %v7295 = vpop.permute.xlu0 %7294
    %7296 = vset.pattern.permute.xlu0 0
    %7297 = vperm.xlu0 %7296, %v6312
    %v7298 = vpop.permute.xlu0 %7297
    %7299 = vset.pattern.permute.xlu0 0
    %7300 = vperm.xlu0 %7299, %v6313
    %v7301 = vpop.permute.xlu0 %7300
    %7302 = vset.pattern.permute.xlu0 0
    %7303 = vperm.xlu0 %7302, %v6314
    %v7304 = vpop.permute.xlu0 %7303
    %7305 = vset.pattern.permute.xlu0 0
    %7306 = vperm.xlu0 %7305, %v6315
    %v7307 = vpop.permute.xlu0 %7306
    %7308 = vset.pattern.permute.xlu0 0
    %7309 = vperm.xlu0 %7308, %v6316
    %v7310 = vpop.permute.xlu0 %7309
    %7311 = vset.pattern.permute.xlu0 0
    %7312 = vperm.xlu0 %7311, %v6317
    %v7313 = vpop.permute.xlu0 %7312
    %7314 = vset.pattern.permute.xlu0 0
    %7315 = vperm.xlu0 %7314, %v6318
    %v7316 = vpop.permute.xlu0 %7315
    %7317 = vset.pattern.permute.xlu0 0
    %7318 = vperm.xlu0 %7317, %v6319
    %v7319 = vpop.permute.xlu0 %7318
    %7320 = vset.pattern.permute.xlu0 0
    %7321 = vperm.xlu0 %7320, %v6320
    %v7322 = vpop.permute.xlu0 %7321
    %7323 = vset.pattern.permute.xlu0 0
    %7324 = vperm.xlu0 %7323, %v6321
    %v7325 = vpop.permute.xlu0 %7324
    %7326 = vset.pattern.permute.xlu0 0
    %7327 = vperm.xlu0 %7326, %v6322
    %v7328 = vpop.permute.xlu0 %7327
    %7329 = vset.pattern.permute.xlu0 0
    %7330 = vperm.xlu0 %7329, %v6323
    %v7331 = vpop.permute.xlu0 %7330
    %7332 = vset.pattern.permute.xlu0 0
    %7333 = vperm.xlu0 %7332, %v6324
    %v7334 = vpop.permute.xlu0 %7333
    %7335 = vset.pattern.permute.xlu0 0
    %7336 = vperm.xlu0 %7335, %v6325
    %v7337 = vpop.permute.xlu0 %7336
    %7338 = vset.pattern.permute.xlu0 0
    %7339 = vperm.xlu0 %7338, %v6326
    %v7340 = vpop.permute.xlu0 %7339
    %7341 = vset.pattern.permute.xlu0 0
    %7342 = vperm.xlu0 %7341, %v6327
    %v7343 = vpop.permute.xlu0 %7342
    %7344 = vset.pattern.permute.xlu0 0
    %7345 = vperm.xlu0 %7344, %v6328
    %v7346 = vpop.permute.xlu0 %7345
    %7347 = vset.pattern.permute.xlu0 0
    %7348 = vperm.xlu0 %7347, %v6329
    %v7349 = vpop.permute.xlu0 %7348
    %7350 = vset.pattern.permute.xlu0 0
    %7351 = vperm.xlu0 %7350, %v6330
    %v7352 = vpop.permute.xlu0 %7351
    %7353 = vset.pattern.permute.xlu0 0
    %7354 = vperm.xlu0 %7353, %v6331
    %v7355 = vpop.permute.xlu0 %7354
    %v7356 = vlaneseq
    %v7357 = vshrl.u32 %v7356, 7
    %v7358 = vsub.s32 %v1123, %v7357
    %v7359 = vrot.slane %v6590, %v7358
    %v7360 = vlaneseq
    %v7361 = vshrl.u32 %v7360, 7
    %v7362 = vsub.s32 %v1123, %v7361
    %v7363 = vrot.slane %v6593, %v7362
    %v7364 = vlaneseq
    %v7365 = vshrl.u32 %v7364, 7
    %v7366 = vsub.s32 %v1123, %v7365
    %v7367 = vrot.slane %v6596, %v7366
    %v7368 = vlaneseq
    %v7369 = vshrl.u32 %v7368, 7
    %v7370 = vsub.s32 %v1123, %v7369
    %v7371 = vrot.slane %v6599, %v7370
    %v7372 = vlaneseq
    %v7373 = vshrl.u32 %v7372, 7
    %v7374 = vsub.s32 %v1123, %v7373
    %v7375 = vrot.slane %v6602, %v7374
    %v7376 = vlaneseq
    %v7377 = vshrl.u32 %v7376, 7
    %v7378 = vsub.s32 %v1123, %v7377
    %v7379 = vrot.slane %v6605, %v7378
    %v7380 = vlaneseq
    %v7381 = vshrl.u32 %v7380, 7
    %v7382 = vsub.s32 %v1123, %v7381
    %v7383 = vrot.slane %v6608, %v7382
    %v7384 = vlaneseq
    %v7385 = vshrl.u32 %v7384, 7
    %v7386 = vsub.s32 %v1123, %v7385
    %v7387 = vrot.slane %v6611, %v7386
    %v7388 = vlaneseq
    %v7389 = vshrl.u32 %v7388, 7
    %v7390 = vsub.s32 %v1123, %v7389
    %v7391 = vrot.slane %v6614, %v7390
    %v7392 = vlaneseq
    %v7393 = vshrl.u32 %v7392, 7
    %v7394 = vsub.s32 %v1123, %v7393
    %v7395 = vrot.slane %v6617, %v7394
    %v7396 = vlaneseq
    %v7397 = vshrl.u32 %v7396, 7
    %v7398 = vsub.s32 %v1123, %v7397
    %v7399 = vrot.slane %v6620, %v7398
    %v7400 = vlaneseq
    %v7401 = vshrl.u32 %v7400, 7
    %v7402 = vsub.s32 %v1123, %v7401
    %v7403 = vrot.slane %v6623, %v7402
    %v7404 = vlaneseq
    %v7405 = vshrl.u32 %v7404, 7
    %v7406 = vsub.s32 %v1123, %v7405
    %v7407 = vrot.slane %v6626, %v7406
    %v7408 = vlaneseq
    %v7409 = vshrl.u32 %v7408, 7
    %v7410 = vsub.s32 %v1123, %v7409
    %v7411 = vrot.slane %v6629, %v7410
    %v7412 = vlaneseq
    %v7413 = vshrl.u32 %v7412, 7
    %v7414 = vsub.s32 %v1123, %v7413
    %v7415 = vrot.slane %v6632, %v7414
    %v7416 = vlaneseq
    %v7417 = vshrl.u32 %v7416, 7
    %v7418 = vsub.s32 %v1123, %v7417
    %v7419 = vrot.slane %v6635, %v7418
    %v7420 = vlaneseq
    %v7421 = vshrl.u32 %v7420, 7
    %v7422 = vsub.s32 %v1123, %v7421
    %v7423 = vrot.slane %v6638, %v7422
    %v7424 = vlaneseq
    %v7425 = vshrl.u32 %v7424, 7
    %v7426 = vsub.s32 %v1123, %v7425
    %v7427 = vrot.slane %v6641, %v7426
    %v7428 = vlaneseq
    %v7429 = vshrl.u32 %v7428, 7
    %v7430 = vsub.s32 %v1123, %v7429
    %v7431 = vrot.slane %v6644, %v7430
    %v7432 = vlaneseq
    %v7433 = vshrl.u32 %v7432, 7
    %v7434 = vsub.s32 %v1123, %v7433
    %v7435 = vrot.slane %v6647, %v7434
    %v7436 = vlaneseq
    %v7437 = vshrl.u32 %v7436, 7
    %v7438 = vsub.s32 %v1123, %v7437
    %v7439 = vrot.slane %v6650, %v7438
    %v7440 = vlaneseq
    %v7441 = vshrl.u32 %v7440, 7
    %v7442 = vsub.s32 %v1123, %v7441
    %v7443 = vrot.slane %v6653, %v7442
    %v7444 = vlaneseq
    %v7445 = vshrl.u32 %v7444, 7
    %v7446 = vsub.s32 %v1123, %v7445
    %v7447 = vrot.slane %v6656, %v7446
    %v7448 = vlaneseq
    %v7449 = vshrl.u32 %v7448, 7
    %v7450 = vsub.s32 %v1123, %v7449
    %v7451 = vrot.slane %v6659, %v7450
    %v7452 = vlaneseq
    %v7453 = vshrl.u32 %v7452, 7
    %v7454 = vsub.s32 %v1123, %v7453
    %v7455 = vrot.slane %v6662, %v7454
    %v7456 = vlaneseq
    %v7457 = vshrl.u32 %v7456, 7
    %v7458 = vsub.s32 %v1123, %v7457
    %v7459 = vrot.slane %v6665, %v7458
    %v7460 = vlaneseq
    %v7461 = vshrl.u32 %v7460, 7
    %v7462 = vsub.s32 %v1123, %v7461
    %v7463 = vrot.slane %v6668, %v7462
    %v7464 = vlaneseq
    %v7465 = vshrl.u32 %v7464, 7
    %v7466 = vsub.s32 %v1123, %v7465
    %v7467 = vrot.slane %v6671, %v7466
    %v7468 = vlaneseq
    %v7469 = vshrl.u32 %v7468, 7
    %v7470 = vsub.s32 %v1123, %v7469
    %v7471 = vrot.slane %v6674, %v7470
    %v7472 = vlaneseq
    %v7473 = vshrl.u32 %v7472, 7
    %v7474 = vsub.s32 %v1123, %v7473
    %v7475 = vrot.slane %v6677, %v7474
    %v7476 = vlaneseq
    %v7477 = vshrl.u32 %v7476, 7
    %v7478 = vsub.s32 %v1123, %v7477
    %v7479 = vrot.slane %v6680, %v7478
    %v7480 = vlaneseq
    %v7481 = vshrl.u32 %v7480, 7
    %v7482 = vsub.s32 %v1123, %v7481
    %v7483 = vrot.slane %v6683, %v7482
    %v7484 = vlaneseq
    %v7485 = vshrl.u32 %v7484, 7
    %v7486 = vsub.s32 %v1123, %v7485
    %v7487 = vrot.slane %v6686, %v7486
    %v7488 = vlaneseq
    %v7489 = vshrl.u32 %v7488, 7
    %v7490 = vsub.s32 %v1123, %v7489
    %v7491 = vrot.slane %v6689, %v7490
    %v7492 = vlaneseq
    %v7493 = vshrl.u32 %v7492, 7
    %v7494 = vsub.s32 %v1123, %v7493
    %v7495 = vrot.slane %v6692, %v7494
    %v7496 = vlaneseq
    %v7497 = vshrl.u32 %v7496, 7
    %v7498 = vsub.s32 %v1123, %v7497
    %v7499 = vrot.slane %v6695, %v7498
    %v7500 = vlaneseq
    %v7501 = vshrl.u32 %v7500, 7
    %v7502 = vsub.s32 %v1123, %v7501
    %v7503 = vrot.slane %v6698, %v7502
    %v7504 = vlaneseq
    %v7505 = vshrl.u32 %v7504, 7
    %v7506 = vsub.s32 %v1123, %v7505
    %v7507 = vrot.slane %v6701, %v7506
    %v7508 = vlaneseq
    %v7509 = vshrl.u32 %v7508, 7
    %v7510 = vsub.s32 %v1123, %v7509
    %v7511 = vrot.slane %v6704, %v7510
    %v7512 = vlaneseq
    %v7513 = vshrl.u32 %v7512, 7
    %v7514 = vsub.s32 %v1123, %v7513
    %v7515 = vrot.slane %v6707, %v7514
    %v7516 = vlaneseq
    %v7517 = vshrl.u32 %v7516, 7
    %v7518 = vsub.s32 %v1123, %v7517
    %v7519 = vrot.slane %v6710, %v7518
    %v7520 = vlaneseq
    %v7521 = vshrl.u32 %v7520, 7
    %v7522 = vsub.s32 %v1123, %v7521
    %v7523 = vrot.slane %v6713, %v7522
    %v7524 = vlaneseq
    %v7525 = vshrl.u32 %v7524, 7
    %v7526 = vsub.s32 %v1123, %v7525
    %v7527 = vrot.slane %v6716, %v7526
    %v7528 = vlaneseq
    %v7529 = vshrl.u32 %v7528, 7
    %v7530 = vsub.s32 %v1123, %v7529
    %v7531 = vrot.slane %v6719, %v7530
    %v7532 = vlaneseq
    %v7533 = vshrl.u32 %v7532, 7
    %v7534 = vsub.s32 %v1123, %v7533
    %v7535 = vrot.slane %v6722, %v7534
    %v7536 = vlaneseq
    %v7537 = vshrl.u32 %v7536, 7
    %v7538 = vsub.s32 %v1123, %v7537
    %v7539 = vrot.slane %v6725, %v7538
    %v7540 = vlaneseq
    %v7541 = vshrl.u32 %v7540, 7
    %v7542 = vsub.s32 %v1123, %v7541
    %v7543 = vrot.slane %v6728, %v7542
    %v7544 = vlaneseq
    %v7545 = vshrl.u32 %v7544, 7
    %v7546 = vsub.s32 %v1123, %v7545
    %v7547 = vrot.slane %v6731, %v7546
    %v7548 = vlaneseq
    %v7549 = vshrl.u32 %v7548, 7
    %v7550 = vsub.s32 %v1123, %v7549
    %v7551 = vrot.slane %v6734, %v7550
    %v7552 = vlaneseq
    %v7553 = vshrl.u32 %v7552, 7
    %v7554 = vsub.s32 %v1123, %v7553
    %v7555 = vrot.slane %v6737, %v7554
    %v7556 = vlaneseq
    %v7557 = vshrl.u32 %v7556, 7
    %v7558 = vsub.s32 %v1123, %v7557
    %v7559 = vrot.slane %v6740, %v7558
    %v7560 = vlaneseq
    %v7561 = vshrl.u32 %v7560, 7
    %v7562 = vsub.s32 %v1123, %v7561
    %v7563 = vrot.slane %v6743, %v7562
    %v7564 = vlaneseq
    %v7565 = vshrl.u32 %v7564, 7
    %v7566 = vsub.s32 %v1123, %v7565
    %v7567 = vrot.slane %v6746, %v7566
    %v7568 = vlaneseq
    %v7569 = vshrl.u32 %v7568, 7
    %v7570 = vsub.s32 %v1123, %v7569
    %v7571 = vrot.slane %v6749, %v7570
    %v7572 = vlaneseq
    %v7573 = vshrl.u32 %v7572, 7
    %v7574 = vsub.s32 %v1123, %v7573
    %v7575 = vrot.slane %v6752, %v7574
    %v7576 = vlaneseq
    %v7577 = vshrl.u32 %v7576, 7
    %v7578 = vsub.s32 %v1123, %v7577
    %v7579 = vrot.slane %v6755, %v7578
    %v7580 = vlaneseq
    %v7581 = vshrl.u32 %v7580, 7
    %v7582 = vsub.s32 %v1123, %v7581
    %v7583 = vrot.slane %v6758, %v7582
    %v7584 = vlaneseq
    %v7585 = vshrl.u32 %v7584, 7
    %v7586 = vsub.s32 %v1123, %v7585
    %v7587 = vrot.slane %v6761, %v7586
    %v7588 = vlaneseq
    %v7589 = vshrl.u32 %v7588, 7
    %v7590 = vsub.s32 %v1123, %v7589
    %v7591 = vrot.slane %v6764, %v7590
    %v7592 = vlaneseq
    %v7593 = vshrl.u32 %v7592, 7
    %v7594 = vsub.s32 %v1123, %v7593
    %v7595 = vrot.slane %v6767, %v7594
    %v7596 = vlaneseq
    %v7597 = vshrl.u32 %v7596, 7
    %v7598 = vsub.s32 %v1123, %v7597
    %v7599 = vrot.slane %v6770, %v7598
    %v7600 = vlaneseq
    %v7601 = vshrl.u32 %v7600, 7
    %v7602 = vsub.s32 %v1123, %v7601
    %v7603 = vrot.slane %v6773, %v7602
    %v7604 = vlaneseq
    %v7605 = vshrl.u32 %v7604, 7
    %v7606 = vsub.s32 %v1123, %v7605
    %v7607 = vrot.slane %v6776, %v7606
    %v7608 = vlaneseq
    %v7609 = vshrl.u32 %v7608, 7
    %v7610 = vsub.s32 %v1123, %v7609
    %v7611 = vrot.slane %v6779, %v7610
    %v7612 = vlaneseq
    %v7613 = vshrl.u32 %v7612, 7
    %v7614 = vsub.s32 %v1123, %v7613
    %v7615 = vrot.slane %v6782, %v7614
    %v7616 = vlaneseq
    %v7617 = vshrl.u32 %v7616, 7
    %v7618 = vsub.s32 %v1123, %v7617
    %v7619 = vrot.slane %v6785, %v7618
    %v7620 = vlaneseq
    %v7621 = vshrl.u32 %v7620, 7
    %v7622 = vsub.s32 %v1123, %v7621
    %v7623 = vrot.slane %v6788, %v7622
    %v7624 = vlaneseq
    %v7625 = vshrl.u32 %v7624, 7
    %v7626 = vsub.s32 %v1123, %v7625
    %v7627 = vrot.slane %v6791, %v7626
    %v7628 = vlaneseq
    %v7629 = vshrl.u32 %v7628, 7
    %v7630 = vsub.s32 %v1123, %v7629
    %v7631 = vrot.slane %v6794, %v7630
    %v7632 = vlaneseq
    %v7633 = vshrl.u32 %v7632, 7
    %v7634 = vsub.s32 %v1123, %v7633
    %v7635 = vrot.slane %v6797, %v7634
    %v7636 = vlaneseq
    %v7637 = vshrl.u32 %v7636, 7
    %v7638 = vsub.s32 %v1123, %v7637
    %v7639 = vrot.slane %v6800, %v7638
    %v7640 = vlaneseq
    %v7641 = vshrl.u32 %v7640, 7
    %v7642 = vsub.s32 %v1123, %v7641
    %v7643 = vrot.slane %v6803, %v7642
    %v7644 = vlaneseq
    %v7645 = vshrl.u32 %v7644, 7
    %v7646 = vsub.s32 %v1123, %v7645
    %v7647 = vrot.slane %v6806, %v7646
    %v7648 = vlaneseq
    %v7649 = vshrl.u32 %v7648, 7
    %v7650 = vsub.s32 %v1123, %v7649
    %v7651 = vrot.slane %v6809, %v7650
    %v7652 = vlaneseq
    %v7653 = vshrl.u32 %v7652, 7
    %v7654 = vsub.s32 %v1123, %v7653
    %v7655 = vrot.slane %v6812, %v7654
    %v7656 = vlaneseq
    %v7657 = vshrl.u32 %v7656, 7
    %v7658 = vsub.s32 %v1123, %v7657
    %v7659 = vrot.slane %v6815, %v7658
    %v7660 = vlaneseq
    %v7661 = vshrl.u32 %v7660, 7
    %v7662 = vsub.s32 %v1123, %v7661
    %v7663 = vrot.slane %v6818, %v7662
    %v7664 = vlaneseq
    %v7665 = vshrl.u32 %v7664, 7
    %v7666 = vsub.s32 %v1123, %v7665
    %v7667 = vrot.slane %v6821, %v7666
    %v7668 = vlaneseq
    %v7669 = vshrl.u32 %v7668, 7
    %v7670 = vsub.s32 %v1123, %v7669
    %v7671 = vrot.slane %v6824, %v7670
    %v7672 = vlaneseq
    %v7673 = vshrl.u32 %v7672, 7
    %v7674 = vsub.s32 %v1123, %v7673
    %v7675 = vrot.slane %v6827, %v7674
    %v7676 = vlaneseq
    %v7677 = vshrl.u32 %v7676, 7
    %v7678 = vsub.s32 %v1123, %v7677
    %v7679 = vrot.slane %v6830, %v7678
    %v7680 = vlaneseq
    %v7681 = vshrl.u32 %v7680, 7
    %v7682 = vsub.s32 %v1123, %v7681
    %v7683 = vrot.slane %v6833, %v7682
    %v7684 = vlaneseq
    %v7685 = vshrl.u32 %v7684, 7
    %v7686 = vsub.s32 %v1123, %v7685
    %v7687 = vrot.slane %v6836, %v7686
    %v7688 = vlaneseq
    %v7689 = vshrl.u32 %v7688, 7
    %v7690 = vsub.s32 %v1123, %v7689
    %v7691 = vrot.slane %v6839, %v7690
    %v7692 = vlaneseq
    %v7693 = vshrl.u32 %v7692, 7
    %v7694 = vsub.s32 %v1123, %v7693
    %v7695 = vrot.slane %v6842, %v7694
    %v7696 = vlaneseq
    %v7697 = vshrl.u32 %v7696, 7
    %v7698 = vsub.s32 %v1123, %v7697
    %v7699 = vrot.slane %v6845, %v7698
    %v7700 = vlaneseq
    %v7701 = vshrl.u32 %v7700, 7
    %v7702 = vsub.s32 %v1123, %v7701
    %v7703 = vrot.slane %v6848, %v7702
    %v7704 = vlaneseq
    %v7705 = vshrl.u32 %v7704, 7
    %v7706 = vsub.s32 %v1123, %v7705
    %v7707 = vrot.slane %v6851, %v7706
    %v7708 = vlaneseq
    %v7709 = vshrl.u32 %v7708, 7
    %v7710 = vsub.s32 %v1123, %v7709
    %v7711 = vrot.slane %v6854, %v7710
    %v7712 = vlaneseq
    %v7713 = vshrl.u32 %v7712, 7
    %v7714 = vsub.s32 %v1123, %v7713
    %v7715 = vrot.slane %v6857, %v7714
    %v7716 = vlaneseq
    %v7717 = vshrl.u32 %v7716, 7
    %v7718 = vsub.s32 %v1123, %v7717
    %v7719 = vrot.slane %v6860, %v7718
    %v7720 = vlaneseq
    %v7721 = vshrl.u32 %v7720, 7
    %v7722 = vsub.s32 %v1123, %v7721
    %v7723 = vrot.slane %v6863, %v7722
    %v7724 = vlaneseq
    %v7725 = vshrl.u32 %v7724, 7
    %v7726 = vsub.s32 %v1123, %v7725
    %v7727 = vrot.slane %v6866, %v7726
    %v7728 = vlaneseq
    %v7729 = vshrl.u32 %v7728, 7
    %v7730 = vsub.s32 %v1123, %v7729
    %v7731 = vrot.slane %v6869, %v7730
    %v7732 = vlaneseq
    %v7733 = vshrl.u32 %v7732, 7
    %v7734 = vsub.s32 %v1123, %v7733
    %v7735 = vrot.slane %v6872, %v7734
    %v7736 = vlaneseq
    %v7737 = vshrl.u32 %v7736, 7
    %v7738 = vsub.s32 %v1123, %v7737
    %v7739 = vrot.slane %v6875, %v7738
    %v7740 = vlaneseq
    %v7741 = vshrl.u32 %v7740, 7
    %v7742 = vsub.s32 %v1123, %v7741
    %v7743 = vrot.slane %v6878, %v7742
    %v7744 = vlaneseq
    %v7745 = vshrl.u32 %v7744, 7
    %v7746 = vsub.s32 %v1123, %v7745
    %v7747 = vrot.slane %v6881, %v7746
    %v7748 = vlaneseq
    %v7749 = vshrl.u32 %v7748, 7
    %v7750 = vsub.s32 %v1123, %v7749
    %v7751 = vrot.slane %v6884, %v7750
    %v7752 = vlaneseq
    %v7753 = vshrl.u32 %v7752, 7
    %v7754 = vsub.s32 %v1123, %v7753
    %v7755 = vrot.slane %v6887, %v7754
    %v7756 = vlaneseq
    %v7757 = vshrl.u32 %v7756, 7
    %v7758 = vsub.s32 %v1123, %v7757
    %v7759 = vrot.slane %v6890, %v7758
    %v7760 = vlaneseq
    %v7761 = vshrl.u32 %v7760, 7
    %v7762 = vsub.s32 %v1123, %v7761
    %v7763 = vrot.slane %v6893, %v7762
    %v7764 = vlaneseq
    %v7765 = vshrl.u32 %v7764, 7
    %v7766 = vsub.s32 %v1123, %v7765
    %v7767 = vrot.slane %v6896, %v7766
    %v7768 = vlaneseq
    %v7769 = vshrl.u32 %v7768, 7
    %v7770 = vsub.s32 %v1123, %v7769
    %v7771 = vrot.slane %v6899, %v7770
    %v7772 = vlaneseq
    %v7773 = vshrl.u32 %v7772, 7
    %v7774 = vsub.s32 %v1123, %v7773
    %v7775 = vrot.slane %v6902, %v7774
    %v7776 = vlaneseq
    %v7777 = vshrl.u32 %v7776, 7
    %v7778 = vsub.s32 %v1123, %v7777
    %v7779 = vrot.slane %v6905, %v7778
    %v7780 = vlaneseq
    %v7781 = vshrl.u32 %v7780, 7
    %v7782 = vsub.s32 %v1123, %v7781
    %v7783 = vrot.slane %v6908, %v7782
    %v7784 = vlaneseq
    %v7785 = vshrl.u32 %v7784, 7
    %v7786 = vsub.s32 %v1123, %v7785
    %v7787 = vrot.slane %v6911, %v7786
    %v7788 = vlaneseq
    %v7789 = vshrl.u32 %v7788, 7
    %v7790 = vsub.s32 %v1123, %v7789
    %v7791 = vrot.slane %v6914, %v7790
    %v7792 = vlaneseq
    %v7793 = vshrl.u32 %v7792, 7
    %v7794 = vsub.s32 %v1123, %v7793
    %v7795 = vrot.slane %v6917, %v7794
    %v7796 = vlaneseq
    %v7797 = vshrl.u32 %v7796, 7
    %v7798 = vsub.s32 %v1123, %v7797
    %v7799 = vrot.slane %v6920, %v7798
    %v7800 = vlaneseq
    %v7801 = vshrl.u32 %v7800, 7
    %v7802 = vsub.s32 %v1123, %v7801
    %v7803 = vrot.slane %v6923, %v7802
    %v7804 = vlaneseq
    %v7805 = vshrl.u32 %v7804, 7
    %v7806 = vsub.s32 %v1123, %v7805
    %v7807 = vrot.slane %v6926, %v7806
    %v7808 = vlaneseq
    %v7809 = vshrl.u32 %v7808, 7
    %v7810 = vsub.s32 %v1123, %v7809
    %v7811 = vrot.slane %v6929, %v7810
    %v7812 = vlaneseq
    %v7813 = vshrl.u32 %v7812, 7
    %v7814 = vsub.s32 %v1123, %v7813
    %v7815 = vrot.slane %v6932, %v7814
    %v7816 = vlaneseq
    %v7817 = vshrl.u32 %v7816, 7
    %v7818 = vsub.s32 %v1123, %v7817
    %v7819 = vrot.slane %v6935, %v7818
    %v7820 = vlaneseq
    %v7821 = vshrl.u32 %v7820, 7
    %v7822 = vsub.s32 %v1123, %v7821
    %v7823 = vrot.slane %v6938, %v7822
    %v7824 = vlaneseq
    %v7825 = vshrl.u32 %v7824, 7
    %v7826 = vsub.s32 %v1123, %v7825
    %v7827 = vrot.slane %v6941, %v7826
    %v7828 = vlaneseq
    %v7829 = vshrl.u32 %v7828, 7
    %v7830 = vsub.s32 %v1123, %v7829
    %v7831 = vrot.slane %v6944, %v7830
    %v7832 = vlaneseq
    %v7833 = vshrl.u32 %v7832, 7
    %v7834 = vsub.s32 %v1123, %v7833
    %v7835 = vrot.slane %v6947, %v7834
    %v7836 = vlaneseq
    %v7837 = vshrl.u32 %v7836, 7
    %v7838 = vsub.s32 %v1123, %v7837
    %v7839 = vrot.slane %v6950, %v7838
    %v7840 = vlaneseq
    %v7841 = vshrl.u32 %v7840, 7
    %v7842 = vsub.s32 %v1123, %v7841
    %v7843 = vrot.slane %v6953, %v7842
    %v7844 = vlaneseq
    %v7845 = vshrl.u32 %v7844, 7
    %v7846 = vsub.s32 %v1123, %v7845
    %v7847 = vrot.slane %v6956, %v7846
    %v7848 = vlaneseq
    %v7849 = vshrl.u32 %v7848, 7
    %v7850 = vsub.s32 %v1123, %v7849
    %v7851 = vrot.slane %v6959, %v7850
    %v7852 = vlaneseq
    %v7853 = vshrl.u32 %v7852, 7
    %v7854 = vsub.s32 %v1123, %v7853
    %v7855 = vrot.slane %v6962, %v7854
    %v7856 = vlaneseq
    %v7857 = vshrl.u32 %v7856, 7
    %v7858 = vsub.s32 %v1123, %v7857
    %v7859 = vrot.slane %v6965, %v7858
    %v7860 = vlaneseq
    %v7861 = vshrl.u32 %v7860, 7
    %v7862 = vsub.s32 %v1123, %v7861
    %v7863 = vrot.slane %v6968, %v7862
    %v7864 = vlaneseq
    %v7865 = vshrl.u32 %v7864, 7
    %v7866 = vsub.s32 %v1123, %v7865
    %v7867 = vrot.slane %v6971, %v7866
    %v7868 = vlaneseq
    %v7869 = vshrl.u32 %v7868, 7
    %v7870 = vsub.s32 %v1123, %v7869
    %v7871 = vrot.slane %v6974, %v7870
    %v7872 = vlaneseq
    %v7873 = vshrl.u32 %v7872, 7
    %v7874 = vsub.s32 %v1123, %v7873
    %v7875 = vrot.slane %v6977, %v7874
    %v7876 = vlaneseq
    %v7877 = vshrl.u32 %v7876, 7
    %v7878 = vsub.s32 %v1123, %v7877
    %v7879 = vrot.slane %v6980, %v7878
    %v7880 = vlaneseq
    %v7881 = vshrl.u32 %v7880, 7
    %v7882 = vsub.s32 %v1123, %v7881
    %v7883 = vrot.slane %v6983, %v7882
    %v7884 = vlaneseq
    %v7885 = vshrl.u32 %v7884, 7
    %v7886 = vsub.s32 %v1123, %v7885
    %v7887 = vrot.slane %v6986, %v7886
    %v7888 = vlaneseq
    %v7889 = vshrl.u32 %v7888, 7
    %v7890 = vsub.s32 %v1123, %v7889
    %v7891 = vrot.slane %v6989, %v7890
    %v7892 = vlaneseq
    %v7893 = vshrl.u32 %v7892, 7
    %v7894 = vsub.s32 %v1123, %v7893
    %v7895 = vrot.slane %v6992, %v7894
    %v7896 = vlaneseq
    %v7897 = vshrl.u32 %v7896, 7
    %v7898 = vsub.s32 %v1123, %v7897
    %v7899 = vrot.slane %v6995, %v7898
    %v7900 = vlaneseq
    %v7901 = vshrl.u32 %v7900, 7
    %v7902 = vsub.s32 %v1123, %v7901
    %v7903 = vrot.slane %v6998, %v7902
    %v7904 = vlaneseq
    %v7905 = vshrl.u32 %v7904, 7
    %v7906 = vsub.s32 %v1123, %v7905
    %v7907 = vrot.slane %v7001, %v7906
    %v7908 = vlaneseq
    %v7909 = vshrl.u32 %v7908, 7
    %v7910 = vsub.s32 %v1123, %v7909
    %v7911 = vrot.slane %v7004, %v7910
    %v7912 = vlaneseq
    %v7913 = vshrl.u32 %v7912, 7
    %v7914 = vsub.s32 %v1123, %v7913
    %v7915 = vrot.slane %v7007, %v7914
    %v7916 = vlaneseq
    %v7917 = vshrl.u32 %v7916, 7
    %v7918 = vsub.s32 %v1123, %v7917
    %v7919 = vrot.slane %v7010, %v7918
    %v7920 = vlaneseq
    %v7921 = vshrl.u32 %v7920, 7
    %v7922 = vsub.s32 %v1123, %v7921
    %v7923 = vrot.slane %v7013, %v7922
    %v7924 = vlaneseq
    %v7925 = vshrl.u32 %v7924, 7
    %v7926 = vsub.s32 %v1123, %v7925
    %v7927 = vrot.slane %v7016, %v7926
    %v7928 = vlaneseq
    %v7929 = vshrl.u32 %v7928, 7
    %v7930 = vsub.s32 %v1123, %v7929
    %v7931 = vrot.slane %v7019, %v7930
    %v7932 = vlaneseq
    %v7933 = vshrl.u32 %v7932, 7
    %v7934 = vsub.s32 %v1123, %v7933
    %v7935 = vrot.slane %v7022, %v7934
    %v7936 = vlaneseq
    %v7937 = vshrl.u32 %v7936, 7
    %v7938 = vsub.s32 %v1123, %v7937
    %v7939 = vrot.slane %v7025, %v7938
    %v7940 = vlaneseq
    %v7941 = vshrl.u32 %v7940, 7
    %v7942 = vsub.s32 %v1123, %v7941
    %v7943 = vrot.slane %v7028, %v7942
    %v7944 = vlaneseq
    %v7945 = vshrl.u32 %v7944, 7
    %v7946 = vsub.s32 %v1123, %v7945
    %v7947 = vrot.slane %v7031, %v7946
    %v7948 = vlaneseq
    %v7949 = vshrl.u32 %v7948, 7
    %v7950 = vsub.s32 %v1123, %v7949
    %v7951 = vrot.slane %v7034, %v7950
    %v7952 = vlaneseq
    %v7953 = vshrl.u32 %v7952, 7
    %v7954 = vsub.s32 %v1123, %v7953
    %v7955 = vrot.slane %v7037, %v7954
    %v7956 = vlaneseq
    %v7957 = vshrl.u32 %v7956, 7
    %v7958 = vsub.s32 %v1123, %v7957
    %v7959 = vrot.slane %v7040, %v7958
    %v7960 = vlaneseq
    %v7961 = vshrl.u32 %v7960, 7
    %v7962 = vsub.s32 %v1123, %v7961
    %v7963 = vrot.slane %v7043, %v7962
    %v7964 = vlaneseq
    %v7965 = vshrl.u32 %v7964, 7
    %v7966 = vsub.s32 %v1123, %v7965
    %v7967 = vrot.slane %v7046, %v7966
    %v7968 = vlaneseq
    %v7969 = vshrl.u32 %v7968, 7
    %v7970 = vsub.s32 %v1123, %v7969
    %v7971 = vrot.slane %v7049, %v7970
    %v7972 = vlaneseq
    %v7973 = vshrl.u32 %v7972, 7
    %v7974 = vsub.s32 %v1123, %v7973
    %v7975 = vrot.slane %v7052, %v7974
    %v7976 = vlaneseq
    %v7977 = vshrl.u32 %v7976, 7
    %v7978 = vsub.s32 %v1123, %v7977
    %v7979 = vrot.slane %v7055, %v7978
    %v7980 = vlaneseq
    %v7981 = vshrl.u32 %v7980, 7
    %v7982 = vsub.s32 %v1123, %v7981
    %v7983 = vrot.slane %v7058, %v7982
    %v7984 = vlaneseq
    %v7985 = vshrl.u32 %v7984, 7
    %v7986 = vsub.s32 %v1123, %v7985
    %v7987 = vrot.slane %v7061, %v7986
    %v7988 = vlaneseq
    %v7989 = vshrl.u32 %v7988, 7
    %v7990 = vsub.s32 %v1123, %v7989
    %v7991 = vrot.slane %v7064, %v7990
    %v7992 = vlaneseq
    %v7993 = vshrl.u32 %v7992, 7
    %v7994 = vsub.s32 %v1123, %v7993
    %v7995 = vrot.slane %v7067, %v7994
    %v7996 = vlaneseq
    %v7997 = vshrl.u32 %v7996, 7
    %v7998 = vsub.s32 %v1123, %v7997
    %v7999 = vrot.slane %v7070, %v7998
    %v8000 = vlaneseq
    %v8001 = vshrl.u32 %v8000, 7
    %v8002 = vsub.s32 %v1123, %v8001
    %v8003 = vrot.slane %v7073, %v8002
    %v8004 = vlaneseq
    %v8005 = vshrl.u32 %v8004, 7
    %v8006 = vsub.s32 %v1123, %v8005
    %v8007 = vrot.slane %v7076, %v8006
    %v8008 = vlaneseq
    %v8009 = vshrl.u32 %v8008, 7
    %v8010 = vsub.s32 %v1123, %v8009
    %v8011 = vrot.slane %v7079, %v8010
    %v8012 = vlaneseq
    %v8013 = vshrl.u32 %v8012, 7
    %v8014 = vsub.s32 %v1123, %v8013
    %v8015 = vrot.slane %v7082, %v8014
    %v8016 = vlaneseq
    %v8017 = vshrl.u32 %v8016, 7
    %v8018 = vsub.s32 %v1123, %v8017
    %v8019 = vrot.slane %v7085, %v8018
    %v8020 = vlaneseq
    %v8021 = vshrl.u32 %v8020, 7
    %v8022 = vsub.s32 %v1123, %v8021
    %v8023 = vrot.slane %v7088, %v8022
    %v8024 = vlaneseq
    %v8025 = vshrl.u32 %v8024, 7
    %v8026 = vsub.s32 %v1123, %v8025
    %v8027 = vrot.slane %v7091, %v8026
    %v8028 = vlaneseq
    %v8029 = vshrl.u32 %v8028, 7
    %v8030 = vsub.s32 %v1123, %v8029
    %v8031 = vrot.slane %v7094, %v8030
    %v8032 = vlaneseq
    %v8033 = vshrl.u32 %v8032, 7
    %v8034 = vsub.s32 %v1123, %v8033
    %v8035 = vrot.slane %v7097, %v8034
    %v8036 = vlaneseq
    %v8037 = vshrl.u32 %v8036, 7
    %v8038 = vsub.s32 %v1123, %v8037
    %v8039 = vrot.slane %v7100, %v8038
    %v8040 = vlaneseq
    %v8041 = vshrl.u32 %v8040, 7
    %v8042 = vsub.s32 %v1123, %v8041
    %v8043 = vrot.slane %v7103, %v8042
    %v8044 = vlaneseq
    %v8045 = vshrl.u32 %v8044, 7
    %v8046 = vsub.s32 %v1123, %v8045
    %v8047 = vrot.slane %v7106, %v8046
    %v8048 = vlaneseq
    %v8049 = vshrl.u32 %v8048, 7
    %v8050 = vsub.s32 %v1123, %v8049
    %v8051 = vrot.slane %v7109, %v8050
    %v8052 = vlaneseq
    %v8053 = vshrl.u32 %v8052, 7
    %v8054 = vsub.s32 %v1123, %v8053
    %v8055 = vrot.slane %v7112, %v8054
    %v8056 = vlaneseq
    %v8057 = vshrl.u32 %v8056, 7
    %v8058 = vsub.s32 %v1123, %v8057
    %v8059 = vrot.slane %v7115, %v8058
    %v8060 = vlaneseq
    %v8061 = vshrl.u32 %v8060, 7
    %v8062 = vsub.s32 %v1123, %v8061
    %v8063 = vrot.slane %v7118, %v8062
    %v8064 = vlaneseq
    %v8065 = vshrl.u32 %v8064, 7
    %v8066 = vsub.s32 %v1123, %v8065
    %v8067 = vrot.slane %v7121, %v8066
    %v8068 = vlaneseq
    %v8069 = vshrl.u32 %v8068, 7
    %v8070 = vsub.s32 %v1123, %v8069
    %v8071 = vrot.slane %v7124, %v8070
    %v8072 = vlaneseq
    %v8073 = vshrl.u32 %v8072, 7
    %v8074 = vsub.s32 %v1123, %v8073
    %v8075 = vrot.slane %v7127, %v8074
    %v8076 = vlaneseq
    %v8077 = vshrl.u32 %v8076, 7
    %v8078 = vsub.s32 %v1123, %v8077
    %v8079 = vrot.slane %v7130, %v8078
    %v8080 = vlaneseq
    %v8081 = vshrl.u32 %v8080, 7
    %v8082 = vsub.s32 %v1123, %v8081
    %v8083 = vrot.slane %v7133, %v8082
    %v8084 = vlaneseq
    %v8085 = vshrl.u32 %v8084, 7
    %v8086 = vsub.s32 %v1123, %v8085
    %v8087 = vrot.slane %v7136, %v8086
    %v8088 = vlaneseq
    %v8089 = vshrl.u32 %v8088, 7
    %v8090 = vsub.s32 %v1123, %v8089
    %v8091 = vrot.slane %v7139, %v8090
    %v8092 = vlaneseq
    %v8093 = vshrl.u32 %v8092, 7
    %v8094 = vsub.s32 %v1123, %v8093
    %v8095 = vrot.slane %v7142, %v8094
    %v8096 = vlaneseq
    %v8097 = vshrl.u32 %v8096, 7
    %v8098 = vsub.s32 %v1123, %v8097
    %v8099 = vrot.slane %v7145, %v8098
    %v8100 = vlaneseq
    %v8101 = vshrl.u32 %v8100, 7
    %v8102 = vsub.s32 %v1123, %v8101
    %v8103 = vrot.slane %v7148, %v8102
    %v8104 = vlaneseq
    %v8105 = vshrl.u32 %v8104, 7
    %v8106 = vsub.s32 %v1123, %v8105
    %v8107 = vrot.slane %v7151, %v8106
    %v8108 = vlaneseq
    %v8109 = vshrl.u32 %v8108, 7
    %v8110 = vsub.s32 %v1123, %v8109
    %v8111 = vrot.slane %v7154, %v8110
    %v8112 = vlaneseq
    %v8113 = vshrl.u32 %v8112, 7
    %v8114 = vsub.s32 %v1123, %v8113
    %v8115 = vrot.slane %v7157, %v8114
    %v8116 = vlaneseq
    %v8117 = vshrl.u32 %v8116, 7
    %v8118 = vsub.s32 %v1123, %v8117
    %v8119 = vrot.slane %v7160, %v8118
    %v8120 = vlaneseq
    %v8121 = vshrl.u32 %v8120, 7
    %v8122 = vsub.s32 %v1123, %v8121
    %v8123 = vrot.slane %v7163, %v8122
    %v8124 = vlaneseq
    %v8125 = vshrl.u32 %v8124, 7
    %v8126 = vsub.s32 %v1123, %v8125
    %v8127 = vrot.slane %v7166, %v8126
    %v8128 = vlaneseq
    %v8129 = vshrl.u32 %v8128, 7
    %v8130 = vsub.s32 %v1123, %v8129
    %v8131 = vrot.slane %v7169, %v8130
    %v8132 = vlaneseq
    %v8133 = vshrl.u32 %v8132, 7
    %v8134 = vsub.s32 %v1123, %v8133
    %v8135 = vrot.slane %v7172, %v8134
    %v8136 = vlaneseq
    %v8137 = vshrl.u32 %v8136, 7
    %v8138 = vsub.s32 %v1123, %v8137
    %v8139 = vrot.slane %v7175, %v8138
    %v8140 = vlaneseq
    %v8141 = vshrl.u32 %v8140, 7
    %v8142 = vsub.s32 %v1123, %v8141
    %v8143 = vrot.slane %v7178, %v8142
    %v8144 = vlaneseq
    %v8145 = vshrl.u32 %v8144, 7
    %v8146 = vsub.s32 %v1123, %v8145
    %v8147 = vrot.slane %v7181, %v8146
    %v8148 = vlaneseq
    %v8149 = vshrl.u32 %v8148, 7
    %v8150 = vsub.s32 %v1123, %v8149
    %v8151 = vrot.slane %v7184, %v8150
    %v8152 = vlaneseq
    %v8153 = vshrl.u32 %v8152, 7
    %v8154 = vsub.s32 %v1123, %v8153
    %v8155 = vrot.slane %v7187, %v8154
    %v8156 = vlaneseq
    %v8157 = vshrl.u32 %v8156, 7
    %v8158 = vsub.s32 %v1123, %v8157
    %v8159 = vrot.slane %v7190, %v8158
    %v8160 = vlaneseq
    %v8161 = vshrl.u32 %v8160, 7
    %v8162 = vsub.s32 %v1123, %v8161
    %v8163 = vrot.slane %v7193, %v8162
    %v8164 = vlaneseq
    %v8165 = vshrl.u32 %v8164, 7
    %v8166 = vsub.s32 %v1123, %v8165
    %v8167 = vrot.slane %v7196, %v8166
    %v8168 = vlaneseq
    %v8169 = vshrl.u32 %v8168, 7
    %v8170 = vsub.s32 %v1123, %v8169
    %v8171 = vrot.slane %v7199, %v8170
    %v8172 = vlaneseq
    %v8173 = vshrl.u32 %v8172, 7
    %v8174 = vsub.s32 %v1123, %v8173
    %v8175 = vrot.slane %v7202, %v8174
    %v8176 = vlaneseq
    %v8177 = vshrl.u32 %v8176, 7
    %v8178 = vsub.s32 %v1123, %v8177
    %v8179 = vrot.slane %v7205, %v8178
    %v8180 = vlaneseq
    %v8181 = vshrl.u32 %v8180, 7
    %v8182 = vsub.s32 %v1123, %v8181
    %v8183 = vrot.slane %v7208, %v8182
    %v8184 = vlaneseq
    %v8185 = vshrl.u32 %v8184, 7
    %v8186 = vsub.s32 %v1123, %v8185
    %v8187 = vrot.slane %v7211, %v8186
    %v8188 = vlaneseq
    %v8189 = vshrl.u32 %v8188, 7
    %v8190 = vsub.s32 %v1123, %v8189
    %v8191 = vrot.slane %v7214, %v8190
    %v8192 = vlaneseq
    %v8193 = vshrl.u32 %v8192, 7
    %v8194 = vsub.s32 %v1123, %v8193
    %v8195 = vrot.slane %v7217, %v8194
    %v8196 = vlaneseq
    %v8197 = vshrl.u32 %v8196, 7
    %v8198 = vsub.s32 %v1123, %v8197
    %v8199 = vrot.slane %v7220, %v8198
    %v8200 = vlaneseq
    %v8201 = vshrl.u32 %v8200, 7
    %v8202 = vsub.s32 %v1123, %v8201
    %v8203 = vrot.slane %v7223, %v8202
    %v8204 = vlaneseq
    %v8205 = vshrl.u32 %v8204, 7
    %v8206 = vsub.s32 %v1123, %v8205
    %v8207 = vrot.slane %v7226, %v8206
    %v8208 = vlaneseq
    %v8209 = vshrl.u32 %v8208, 7
    %v8210 = vsub.s32 %v1123, %v8209
    %v8211 = vrot.slane %v7229, %v8210
    %v8212 = vlaneseq
    %v8213 = vshrl.u32 %v8212, 7
    %v8214 = vsub.s32 %v1123, %v8213
    %v8215 = vrot.slane %v7232, %v8214
    %v8216 = vlaneseq
    %v8217 = vshrl.u32 %v8216, 7
    %v8218 = vsub.s32 %v1123, %v8217
    %v8219 = vrot.slane %v7235, %v8218
    %v8220 = vlaneseq
    %v8221 = vshrl.u32 %v8220, 7
    %v8222 = vsub.s32 %v1123, %v8221
    %v8223 = vrot.slane %v7238, %v8222
    %v8224 = vlaneseq
    %v8225 = vshrl.u32 %v8224, 7
    %v8226 = vsub.s32 %v1123, %v8225
    %v8227 = vrot.slane %v7241, %v8226
    %v8228 = vlaneseq
    %v8229 = vshrl.u32 %v8228, 7
    %v8230 = vsub.s32 %v1123, %v8229
    %v8231 = vrot.slane %v7244, %v8230
    %v8232 = vlaneseq
    %v8233 = vshrl.u32 %v8232, 7
    %v8234 = vsub.s32 %v1123, %v8233
    %v8235 = vrot.slane %v7247, %v8234
    %v8236 = vlaneseq
    %v8237 = vshrl.u32 %v8236, 7
    %v8238 = vsub.s32 %v1123, %v8237
    %v8239 = vrot.slane %v7250, %v8238
    %v8240 = vlaneseq
    %v8241 = vshrl.u32 %v8240, 7
    %v8242 = vsub.s32 %v1123, %v8241
    %v8243 = vrot.slane %v7253, %v8242
    %v8244 = vlaneseq
    %v8245 = vshrl.u32 %v8244, 7
    %v8246 = vsub.s32 %v1123, %v8245
    %v8247 = vrot.slane %v7256, %v8246
    %v8248 = vlaneseq
    %v8249 = vshrl.u32 %v8248, 7
    %v8250 = vsub.s32 %v1123, %v8249
    %v8251 = vrot.slane %v7259, %v8250
    %v8252 = vlaneseq
    %v8253 = vshrl.u32 %v8252, 7
    %v8254 = vsub.s32 %v1123, %v8253
    %v8255 = vrot.slane %v7262, %v8254
    %v8256 = vlaneseq
    %v8257 = vshrl.u32 %v8256, 7
    %v8258 = vsub.s32 %v1123, %v8257
    %v8259 = vrot.slane %v7265, %v8258
    %v8260 = vlaneseq
    %v8261 = vshrl.u32 %v8260, 7
    %v8262 = vsub.s32 %v1123, %v8261
    %v8263 = vrot.slane %v7268, %v8262
    %v8264 = vlaneseq
    %v8265 = vshrl.u32 %v8264, 7
    %v8266 = vsub.s32 %v1123, %v8265
    %v8267 = vrot.slane %v7271, %v8266
    %v8268 = vlaneseq
    %v8269 = vshrl.u32 %v8268, 7
    %v8270 = vsub.s32 %v1123, %v8269
    %v8271 = vrot.slane %v7274, %v8270
    %v8272 = vlaneseq
    %v8273 = vshrl.u32 %v8272, 7
    %v8274 = vsub.s32 %v1123, %v8273
    %v8275 = vrot.slane %v7277, %v8274
    %v8276 = vlaneseq
    %v8277 = vshrl.u32 %v8276, 7
    %v8278 = vsub.s32 %v1123, %v8277
    %v8279 = vrot.slane %v7280, %v8278
    %v8280 = vlaneseq
    %v8281 = vshrl.u32 %v8280, 7
    %v8282 = vsub.s32 %v1123, %v8281
    %v8283 = vrot.slane %v7283, %v8282
    %v8284 = vlaneseq
    %v8285 = vshrl.u32 %v8284, 7
    %v8286 = vsub.s32 %v1123, %v8285
    %v8287 = vrot.slane %v7286, %v8286
    %v8288 = vlaneseq
    %v8289 = vshrl.u32 %v8288, 7
    %v8290 = vsub.s32 %v1123, %v8289
    %v8291 = vrot.slane %v7289, %v8290
    %v8292 = vlaneseq
    %v8293 = vshrl.u32 %v8292, 7
    %v8294 = vsub.s32 %v1123, %v8293
    %v8295 = vrot.slane %v7292, %v8294
    %v8296 = vlaneseq
    %v8297 = vshrl.u32 %v8296, 7
    %v8298 = vsub.s32 %v1123, %v8297
    %v8299 = vrot.slane %v7295, %v8298
    %v8300 = vlaneseq
    %v8301 = vshrl.u32 %v8300, 7
    %v8302 = vsub.s32 %v1123, %v8301
    %v8303 = vrot.slane %v7298, %v8302
    %v8304 = vlaneseq
    %v8305 = vshrl.u32 %v8304, 7
    %v8306 = vsub.s32 %v1123, %v8305
    %v8307 = vrot.slane %v7301, %v8306
    %v8308 = vlaneseq
    %v8309 = vshrl.u32 %v8308, 7
    %v8310 = vsub.s32 %v1123, %v8309
    %v8311 = vrot.slane %v7304, %v8310
    %v8312 = vlaneseq
    %v8313 = vshrl.u32 %v8312, 7
    %v8314 = vsub.s32 %v1123, %v8313
    %v8315 = vrot.slane %v7307, %v8314
    %v8316 = vlaneseq
    %v8317 = vshrl.u32 %v8316, 7
    %v8318 = vsub.s32 %v1123, %v8317
    %v8319 = vrot.slane %v7310, %v8318
    %v8320 = vlaneseq
    %v8321 = vshrl.u32 %v8320, 7
    %v8322 = vsub.s32 %v1123, %v8321
    %v8323 = vrot.slane %v7313, %v8322
    %v8324 = vlaneseq
    %v8325 = vshrl.u32 %v8324, 7
    %v8326 = vsub.s32 %v1123, %v8325
    %v8327 = vrot.slane %v7316, %v8326
    %v8328 = vlaneseq
    %v8329 = vshrl.u32 %v8328, 7
    %v8330 = vsub.s32 %v1123, %v8329
    %v8331 = vrot.slane %v7319, %v8330
    %v8332 = vlaneseq
    %v8333 = vshrl.u32 %v8332, 7
    %v8334 = vsub.s32 %v1123, %v8333
    %v8335 = vrot.slane %v7322, %v8334
    %v8336 = vlaneseq
    %v8337 = vshrl.u32 %v8336, 7
    %v8338 = vsub.s32 %v1123, %v8337
    %v8339 = vrot.slane %v7325, %v8338
    %v8340 = vlaneseq
    %v8341 = vshrl.u32 %v8340, 7
    %v8342 = vsub.s32 %v1123, %v8341
    %v8343 = vrot.slane %v7328, %v8342
    %v8344 = vlaneseq
    %v8345 = vshrl.u32 %v8344, 7
    %v8346 = vsub.s32 %v1123, %v8345
    %v8347 = vrot.slane %v7331, %v8346
    %v8348 = vlaneseq
    %v8349 = vshrl.u32 %v8348, 7
    %v8350 = vsub.s32 %v1123, %v8349
    %v8351 = vrot.slane %v7334, %v8350
    %v8352 = vlaneseq
    %v8353 = vshrl.u32 %v8352, 7
    %v8354 = vsub.s32 %v1123, %v8353
    %v8355 = vrot.slane %v7337, %v8354
    %v8356 = vlaneseq
    %v8357 = vshrl.u32 %v8356, 7
    %v8358 = vsub.s32 %v1123, %v8357
    %v8359 = vrot.slane %v7340, %v8358
    %v8360 = vlaneseq
    %v8361 = vshrl.u32 %v8360, 7
    %v8362 = vsub.s32 %v1123, %v8361
    %v8363 = vrot.slane %v7343, %v8362
    %v8364 = vlaneseq
    %v8365 = vshrl.u32 %v8364, 7
    %v8366 = vsub.s32 %v1123, %v8365
    %v8367 = vrot.slane %v7346, %v8366
    %v8368 = vlaneseq
    %v8369 = vshrl.u32 %v8368, 7
    %v8370 = vsub.s32 %v1123, %v8369
    %v8371 = vrot.slane %v7349, %v8370
    %v8372 = vlaneseq
    %v8373 = vshrl.u32 %v8372, 7
    %v8374 = vsub.s32 %v1123, %v8373
    %v8375 = vrot.slane %v7352, %v8374
    %v8376 = vlaneseq
    %v8377 = vshrl.u32 %v8376, 7
    %v8378 = vsub.s32 %v1123, %v8377
    %v8379 = vrot.slane %v7355, %v8378
    %v8380 = vsel %vm1252, %v7363, %v7359
    %v8381 = vsel %vm1254, %v7367, %v8380
    %v8382 = vsel %vm1256, %v7371, %v8381
    %v8383 = vsel %vm1258, %v7375, %v8382
    %v8384 = vsel %vm1260, %v7379, %v8383
    %v8385 = vsel %vm1262, %v7383, %v8384
    %v8386 = vsel %vm1264, %v7387, %v8385
    %v8387 = vsel %vm1252, %v7395, %v7391
    %v8388 = vsel %vm1254, %v7399, %v8387
    %v8389 = vsel %vm1256, %v7403, %v8388
    %v8390 = vsel %vm1258, %v7407, %v8389
    %v8391 = vsel %vm1260, %v7411, %v8390
    %v8392 = vsel %vm1262, %v7415, %v8391
    %v8393 = vsel %vm1264, %v7419, %v8392
    %v8394 = vsel %vm1252, %v7427, %v7423
    %v8395 = vsel %vm1254, %v7431, %v8394
    %v8396 = vsel %vm1256, %v7435, %v8395
    %v8397 = vsel %vm1258, %v7439, %v8396
    %v8398 = vsel %vm1260, %v7443, %v8397
    %v8399 = vsel %vm1262, %v7447, %v8398
    %v8400 = vsel %vm1264, %v7451, %v8399
    %v8401 = vsel %vm1252, %v7459, %v7455
    %v8402 = vsel %vm1254, %v7463, %v8401
    %v8403 = vsel %vm1256, %v7467, %v8402
    %v8404 = vsel %vm1258, %v7471, %v8403
    %v8405 = vsel %vm1260, %v7475, %v8404
    %v8406 = vsel %vm1262, %v7479, %v8405
    %v8407 = vsel %vm1264, %v7483, %v8406
    %v8408 = vsel %vm1252, %v7491, %v7487
    %v8409 = vsel %vm1254, %v7495, %v8408
    %v8410 = vsel %vm1256, %v7499, %v8409
    %v8411 = vsel %vm1258, %v7503, %v8410
    %v8412 = vsel %vm1260, %v7507, %v8411
    %v8413 = vsel %vm1262, %v7511, %v8412
    %v8414 = vsel %vm1264, %v7515, %v8413
    %v8415 = vsel %vm1252, %v7523, %v7519
    %v8416 = vsel %vm1254, %v7527, %v8415
    %v8417 = vsel %vm1256, %v7531, %v8416
    %v8418 = vsel %vm1258, %v7535, %v8417
    %v8419 = vsel %vm1260, %v7539, %v8418
    %v8420 = vsel %vm1262, %v7543, %v8419
    %v8421 = vsel %vm1264, %v7547, %v8420
    %v8422 = vsel %vm1252, %v7555, %v7551
    %v8423 = vsel %vm1254, %v7559, %v8422
    %v8424 = vsel %vm1256, %v7563, %v8423
    %v8425 = vsel %vm1258, %v7567, %v8424
    %v8426 = vsel %vm1260, %v7571, %v8425
    %v8427 = vsel %vm1262, %v7575, %v8426
    %v8428 = vsel %vm1264, %v7579, %v8427
    %v8429 = vsel %vm1252, %v7587, %v7583
    %v8430 = vsel %vm1254, %v7591, %v8429
    %v8431 = vsel %vm1256, %v7595, %v8430
    %v8432 = vsel %vm1258, %v7599, %v8431
    %v8433 = vsel %vm1260, %v7603, %v8432
    %v8434 = vsel %vm1262, %v7607, %v8433
    %v8435 = vsel %vm1264, %v7611, %v8434
    %v8436 = vsel %vm1252, %v7619, %v7615
    %v8437 = vsel %vm1254, %v7623, %v8436
    %v8438 = vsel %vm1256, %v7627, %v8437
    %v8439 = vsel %vm1258, %v7631, %v8438
    %v8440 = vsel %vm1260, %v7635, %v8439
    %v8441 = vsel %vm1262, %v7639, %v8440
    %v8442 = vsel %vm1264, %v7643, %v8441
    %v8443 = vsel %vm1252, %v7651, %v7647
    %v8444 = vsel %vm1254, %v7655, %v8443
    %v8445 = vsel %vm1256, %v7659, %v8444
    %v8446 = vsel %vm1258, %v7663, %v8445
    %v8447 = vsel %vm1260, %v7667, %v8446
    %v8448 = vsel %vm1262, %v7671, %v8447
    %v8449 = vsel %vm1264, %v7675, %v8448
    %v8450 = vsel %vm1252, %v7683, %v7679
    %v8451 = vsel %vm1254, %v7687, %v8450
    %v8452 = vsel %vm1256, %v7691, %v8451
    %v8453 = vsel %vm1258, %v7695, %v8452
    %v8454 = vsel %vm1260, %v7699, %v8453
    %v8455 = vsel %vm1262, %v7703, %v8454
    %v8456 = vsel %vm1264, %v7707, %v8455
    %v8457 = vsel %vm1252, %v7715, %v7711
    %v8458 = vsel %vm1254, %v7719, %v8457
    %v8459 = vsel %vm1256, %v7723, %v8458
    %v8460 = vsel %vm1258, %v7727, %v8459
    %v8461 = vsel %vm1260, %v7731, %v8460
    %v8462 = vsel %vm1262, %v7735, %v8461
    %v8463 = vsel %vm1264, %v7739, %v8462
    %v8464 = vsel %vm1252, %v7747, %v7743
    %v8465 = vsel %vm1254, %v7751, %v8464
    %v8466 = vsel %vm1256, %v7755, %v8465
    %v8467 = vsel %vm1258, %v7759, %v8466
    %v8468 = vsel %vm1260, %v7763, %v8467
    %v8469 = vsel %vm1262, %v7767, %v8468
    %v8470 = vsel %vm1264, %v7771, %v8469
    %v8471 = vsel %vm1252, %v7779, %v7775
    %v8472 = vsel %vm1254, %v7783, %v8471
    %v8473 = vsel %vm1256, %v7787, %v8472
    %v8474 = vsel %vm1258, %v7791, %v8473
    %v8475 = vsel %vm1260, %v7795, %v8474
    %v8476 = vsel %vm1262, %v7799, %v8475
    %v8477 = vsel %vm1264, %v7803, %v8476
    %v8478 = vsel %vm1252, %v7811, %v7807
    %v8479 = vsel %vm1254, %v7815, %v8478
    %v8480 = vsel %vm1256, %v7819, %v8479
    %v8481 = vsel %vm1258, %v7823, %v8480
    %v8482 = vsel %vm1260, %v7827, %v8481
    %v8483 = vsel %vm1262, %v7831, %v8482
    %v8484 = vsel %vm1264, %v7835, %v8483
    %v8485 = vsel %vm1252, %v7843, %v7839
    %v8486 = vsel %vm1254, %v7847, %v8485
    %v8487 = vsel %vm1256, %v7851, %v8486
    %v8488 = vsel %vm1258, %v7855, %v8487
    %v8489 = vsel %vm1260, %v7859, %v8488
    %v8490 = vsel %vm1262, %v7863, %v8489
    %v8491 = vsel %vm1264, %v7867, %v8490
    %v8492 = vsel %vm1252, %v7875, %v7871
    %v8493 = vsel %vm1254, %v7879, %v8492
    %v8494 = vsel %vm1256, %v7883, %v8493
    %v8495 = vsel %vm1258, %v7887, %v8494
    %v8496 = vsel %vm1260, %v7891, %v8495
    %v8497 = vsel %vm1262, %v7895, %v8496
    %v8498 = vsel %vm1264, %v7899, %v8497
    %v8499 = vsel %vm1252, %v7907, %v7903
    %v8500 = vsel %vm1254, %v7911, %v8499
    %v8501 = vsel %vm1256, %v7915, %v8500
    %v8502 = vsel %vm1258, %v7919, %v8501
    %v8503 = vsel %vm1260, %v7923, %v8502
    %v8504 = vsel %vm1262, %v7927, %v8503
    %v8505 = vsel %vm1264, %v7931, %v8504
    %v8506 = vsel %vm1252, %v7939, %v7935
    %v8507 = vsel %vm1254, %v7943, %v8506
    %v8508 = vsel %vm1256, %v7947, %v8507
    %v8509 = vsel %vm1258, %v7951, %v8508
    %v8510 = vsel %vm1260, %v7955, %v8509
    %v8511 = vsel %vm1262, %v7959, %v8510
    %v8512 = vsel %vm1264, %v7963, %v8511
    %v8513 = vsel %vm1252, %v7971, %v7967
    %v8514 = vsel %vm1254, %v7975, %v8513
    %v8515 = vsel %vm1256, %v7979, %v8514
    %v8516 = vsel %vm1258, %v7983, %v8515
    %v8517 = vsel %vm1260, %v7987, %v8516
    %v8518 = vsel %vm1262, %v7991, %v8517
    %v8519 = vsel %vm1264, %v7995, %v8518
    %v8520 = vsel %vm1252, %v8003, %v7999
    %v8521 = vsel %vm1254, %v8007, %v8520
    %v8522 = vsel %vm1256, %v8011, %v8521
    %v8523 = vsel %vm1258, %v8015, %v8522
    %v8524 = vsel %vm1260, %v8019, %v8523
    %v8525 = vsel %vm1262, %v8023, %v8524
    %v8526 = vsel %vm1264, %v8027, %v8525
    %v8527 = vsel %vm1252, %v8035, %v8031
    %v8528 = vsel %vm1254, %v8039, %v8527
    %v8529 = vsel %vm1256, %v8043, %v8528
    %v8530 = vsel %vm1258, %v8047, %v8529
    %v8531 = vsel %vm1260, %v8051, %v8530
    %v8532 = vsel %vm1262, %v8055, %v8531
    %v8533 = vsel %vm1264, %v8059, %v8532
    %v8534 = vsel %vm1252, %v8067, %v8063
    %v8535 = vsel %vm1254, %v8071, %v8534
    %v8536 = vsel %vm1256, %v8075, %v8535
    %v8537 = vsel %vm1258, %v8079, %v8536
    %v8538 = vsel %vm1260, %v8083, %v8537
    %v8539 = vsel %vm1262, %v8087, %v8538
    %v8540 = vsel %vm1264, %v8091, %v8539
    %v8541 = vsel %vm1252, %v8099, %v8095
    %v8542 = vsel %vm1254, %v8103, %v8541
    %v8543 = vsel %vm1256, %v8107, %v8542
    %v8544 = vsel %vm1258, %v8111, %v8543
    %v8545 = vsel %vm1260, %v8115, %v8544
    %v8546 = vsel %vm1262, %v8119, %v8545
    %v8547 = vsel %vm1264, %v8123, %v8546
    %v8548 = vsel %vm1252, %v8131, %v8127
    %v8549 = vsel %vm1254, %v8135, %v8548
    %v8550 = vsel %vm1256, %v8139, %v8549
    %v8551 = vsel %vm1258, %v8143, %v8550
    %v8552 = vsel %vm1260, %v8147, %v8551
    %v8553 = vsel %vm1262, %v8151, %v8552
    %v8554 = vsel %vm1264, %v8155, %v8553
    %v8555 = vsel %vm1252, %v8163, %v8159
    %v8556 = vsel %vm1254, %v8167, %v8555
    %v8557 = vsel %vm1256, %v8171, %v8556
    %v8558 = vsel %vm1258, %v8175, %v8557
    %v8559 = vsel %vm1260, %v8179, %v8558
    %v8560 = vsel %vm1262, %v8183, %v8559
    %v8561 = vsel %vm1264, %v8187, %v8560
    %v8562 = vsel %vm1252, %v8195, %v8191
    %v8563 = vsel %vm1254, %v8199, %v8562
    %v8564 = vsel %vm1256, %v8203, %v8563
    %v8565 = vsel %vm1258, %v8207, %v8564
    %v8566 = vsel %vm1260, %v8211, %v8565
    %v8567 = vsel %vm1262, %v8215, %v8566
    %v8568 = vsel %vm1264, %v8219, %v8567
    %v8569 = vsel %vm1252, %v8227, %v8223
    %v8570 = vsel %vm1254, %v8231, %v8569
    %v8571 = vsel %vm1256, %v8235, %v8570
    %v8572 = vsel %vm1258, %v8239, %v8571
    %v8573 = vsel %vm1260, %v8243, %v8572
    %v8574 = vsel %vm1262, %v8247, %v8573
    %v8575 = vsel %vm1264, %v8251, %v8574
    %v8576 = vsel %vm1252, %v8259, %v8255
    %v8577 = vsel %vm1254, %v8263, %v8576
    %v8578 = vsel %vm1256, %v8267, %v8577
    %v8579 = vsel %vm1258, %v8271, %v8578
    %v8580 = vsel %vm1260, %v8275, %v8579
    %v8581 = vsel %vm1262, %v8279, %v8580
    %v8582 = vsel %vm1264, %v8283, %v8581
    %v8583 = vsel %vm1252, %v8291, %v8287
    %v8584 = vsel %vm1254, %v8295, %v8583
    %v8585 = vsel %vm1256, %v8299, %v8584
    %v8586 = vsel %vm1258, %v8303, %v8585
    %v8587 = vsel %vm1260, %v8307, %v8586
    %v8588 = vsel %vm1262, %v8311, %v8587
    %v8589 = vsel %vm1264, %v8315, %v8588
    %v8590 = vsel %vm1252, %v8323, %v8319
    %v8591 = vsel %vm1254, %v8327, %v8590
    %v8592 = vsel %vm1256, %v8331, %v8591
    %v8593 = vsel %vm1258, %v8335, %v8592
    %v8594 = vsel %vm1260, %v8339, %v8593
    %v8595 = vsel %vm1262, %v8343, %v8594
    %v8596 = vsel %vm1264, %v8347, %v8595
    %v8597 = vsel %vm1252, %v8355, %v8351
    %v8598 = vsel %vm1254, %v8359, %v8597
    %v8599 = vsel %vm1256, %v8363, %v8598
    %v8600 = vsel %vm1258, %v8367, %v8599
    %v8601 = vsel %vm1260, %v8371, %v8600
    %v8602 = vsel %vm1262, %v8375, %v8601
    %v8603 = vsel %vm1264, %v8379, %v8602
    %v8636 = vsel %vm1291, %v8386, 0.0
    %8637 = vadd.xlane.f32.xlu0 %v8636
    %v8638 = vpop.xlane.xlu0 %8637
    %v8639 = vsel %vm1291, %v8393, 0.0
    %8640 = vadd.xlane.f32.xlu0 %v8639
    %v8641 = vpop.xlane.xlu0 %8640
    %v8642 = vsel %vm1291, %v8400, 0.0
    %8643 = vadd.xlane.f32.xlu0 %v8642
    %v8644 = vpop.xlane.xlu0 %8643
    %v8645 = vsel %vm1291, %v8407, 0.0
    %8646 = vadd.xlane.f32.xlu0 %v8645
    %v8647 = vpop.xlane.xlu0 %8646
    %v8648 = vsel %vm1291, %v8414, 0.0
    %8649 = vadd.xlane.f32.xlu0 %v8648
    %v8650 = vpop.xlane.xlu0 %8649
    %v8651 = vsel %vm1291, %v8421, 0.0
    %8652 = vadd.xlane.f32.xlu0 %v8651
    %v8653 = vpop.xlane.xlu0 %8652
    %v8654 = vsel %vm1291, %v8428, 0.0
    %8655 = vadd.xlane.f32.xlu0 %v8654
    %v8656 = vpop.xlane.xlu0 %8655
    %v8657 = vsel %vm1291, %v8435, 0.0
    %8658 = vadd.xlane.f32.xlu0 %v8657
    %v8659 = vpop.xlane.xlu0 %8658
    %v8660 = vsel %vm1291, %v8442, 0.0
    %8661 = vadd.xlane.f32.xlu0 %v8660
    %v8662 = vpop.xlane.xlu0 %8661
    %v8663 = vsel %vm1291, %v8449, 0.0
    %8664 = vadd.xlane.f32.xlu0 %v8663
    %v8665 = vpop.xlane.xlu0 %8664
    %v8666 = vsel %vm1291, %v8456, 0.0
    %8667 = vadd.xlane.f32.xlu0 %v8666
    %v8668 = vpop.xlane.xlu0 %8667
    %v8669 = vsel %vm1291, %v8463, 0.0
    %8670 = vadd.xlane.f32.xlu0 %v8669
    %v8671 = vpop.xlane.xlu0 %8670
    %v8672 = vsel %vm1291, %v8470, 0.0
    %8673 = vadd.xlane.f32.xlu0 %v8672
    %v8674 = vpop.xlane.xlu0 %8673
    %v8675 = vsel %vm1291, %v8477, 0.0
    %8676 = vadd.xlane.f32.xlu0 %v8675
    %v8677 = vpop.xlane.xlu0 %8676
    %v8678 = vsel %vm1291, %v8484, 0.0
    %8679 = vadd.xlane.f32.xlu0 %v8678
    %v8680 = vpop.xlane.xlu0 %8679
    %v8681 = vsel %vm1291, %v8491, 0.0
    %8682 = vadd.xlane.f32.xlu0 %v8681
    %v8683 = vpop.xlane.xlu0 %8682
    %v8684 = vsel %vm1291, %v8498, 0.0
    %8685 = vadd.xlane.f32.xlu0 %v8684
    %v8686 = vpop.xlane.xlu0 %8685
    %v8687 = vsel %vm1291, %v8505, 0.0
    %8688 = vadd.xlane.f32.xlu0 %v8687
    %v8689 = vpop.xlane.xlu0 %8688
    %v8690 = vsel %vm1291, %v8512, 0.0
    %8691 = vadd.xlane.f32.xlu0 %v8690
    %v8692 = vpop.xlane.xlu0 %8691
    %v8693 = vsel %vm1291, %v8519, 0.0
    %8694 = vadd.xlane.f32.xlu0 %v8693
    %v8695 = vpop.xlane.xlu0 %8694
    %v8696 = vsel %vm1291, %v8526, 0.0
    %8697 = vadd.xlane.f32.xlu0 %v8696
    %v8698 = vpop.xlane.xlu0 %8697
    %v8699 = vsel %vm1291, %v8533, 0.0
    %8700 = vadd.xlane.f32.xlu0 %v8699
    %v8701 = vpop.xlane.xlu0 %8700
    %v8702 = vsel %vm1291, %v8540, 0.0
    %8703 = vadd.xlane.f32.xlu0 %v8702
    %v8704 = vpop.xlane.xlu0 %8703
    %v8705 = vsel %vm1291, %v8547, 0.0
    %8706 = vadd.xlane.f32.xlu0 %v8705
    %v8707 = vpop.xlane.xlu0 %8706
    %v8708 = vsel %vm1291, %v8554, 0.0
    %8709 = vadd.xlane.f32.xlu0 %v8708
    %v8710 = vpop.xlane.xlu0 %8709
    %v8711 = vsel %vm1291, %v8561, 0.0
    %8712 = vadd.xlane.f32.xlu0 %v8711
    %v8713 = vpop.xlane.xlu0 %8712
    %v8714 = vsel %vm1291, %v8568, 0.0
    %8715 = vadd.xlane.f32.xlu0 %v8714
    %v8716 = vpop.xlane.xlu0 %8715
    %v8717 = vsel %vm1291, %v8575, 0.0
    %8718 = vadd.xlane.f32.xlu0 %v8717
    %v8719 = vpop.xlane.xlu0 %8718
    %v8720 = vsel %vm1291, %v8582, 0.0
    %8721 = vadd.xlane.f32.xlu0 %v8720
    %v8722 = vpop.xlane.xlu0 %8721
    %v8723 = vsel %vm1291, %v8589, 0.0
    %8724 = vadd.xlane.f32.xlu0 %v8723
    %v8725 = vpop.xlane.xlu0 %8724
    %v8726 = vsel %vm1291, %v8596, 0.0
    %8727 = vadd.xlane.f32.xlu0 %v8726
    %v8728 = vpop.xlane.xlu0 %8727
    %v8729 = vsel %vm1291, %v8603, 0.0
    %8730 = vadd.xlane.f32.xlu0 %v8729
    %v8731 = vpop.xlane.xlu0 %8730
    %v8732 = vmul.f32 %v5982, %v1468
    %v8733 = vmul.f32 %v5985, %v1469
    %v8734 = vmul.f32 %v5988, %v1470
    %v8735 = vmul.f32 %v5991, %v1471
    %v8736 = vmul.f32 %v5994, %v1472
    %v8737 = vmul.f32 %v5997, %v1473
    %v8738 = vmul.f32 %v6000, %v1474
    %v8739 = vmul.f32 %v6003, %v1475
    %v8740 = vmul.f32 %v6006, %v1476
    %v8741 = vmul.f32 %v6009, %v1477
    %v8742 = vmul.f32 %v6012, %v1478
    %v8743 = vmul.f32 %v6015, %v1479
    %v8744 = vmul.f32 %v6018, %v1480
    %v8745 = vmul.f32 %v6021, %v1481
    %v8746 = vmul.f32 %v6024, %v1482
    %v8747 = vmul.f32 %v6027, %v1483
    %v8748 = vmul.f32 %v6030, %v1484
    %v8749 = vmul.f32 %v6033, %v1485
    %v8750 = vmul.f32 %v6036, %v1486
    %v8751 = vmul.f32 %v6039, %v1487
    %v8752 = vmul.f32 %v6042, %v1488
    %v8753 = vmul.f32 %v6045, %v1489
    %v8754 = vmul.f32 %v6048, %v1490
    %v8755 = vmul.f32 %v6051, %v1491
    %v8756 = vmul.f32 %v6054, %v1492
    %v8757 = vmul.f32 %v6057, %v1493
    %v8758 = vmul.f32 %v6060, %v1494
    %v8759 = vmul.f32 %v6063, %v1495
    %v8760 = vmul.f32 %v6066, %v1496
    %v8761 = vmul.f32 %v6069, %v1497
    %v8762 = vmul.f32 %v6072, %v1498
    %v8763 = vmul.f32 %v6075, %v1499
    %v8764 = vadd.f32 %v8732, 1.0
    %v8765 = vadd.f32 %v8733, 1.0
    %v8766 = vadd.f32 %v8734, 1.0
    %v8767 = vadd.f32 %v8735, 1.0
    %v8768 = vadd.f32 %v8736, 1.0
    %v8769 = vadd.f32 %v8737, 1.0
    %v8770 = vadd.f32 %v8738, 1.0
    %v8771 = vadd.f32 %v8739, 1.0
    %v8772 = vadd.f32 %v8740, 1.0
    %v8773 = vadd.f32 %v8741, 1.0
    %v8774 = vadd.f32 %v8742, 1.0
    %v8775 = vadd.f32 %v8743, 1.0
    %v8776 = vadd.f32 %v8744, 1.0
    %v8777 = vadd.f32 %v8745, 1.0
    %v8778 = vadd.f32 %v8746, 1.0
    %v8779 = vadd.f32 %v8747, 1.0
    %v8780 = vadd.f32 %v8748, 1.0
    %v8781 = vadd.f32 %v8749, 1.0
    %v8782 = vadd.f32 %v8750, 1.0
    %v8783 = vadd.f32 %v8751, 1.0
    %v8784 = vadd.f32 %v8752, 1.0
    %v8785 = vadd.f32 %v8753, 1.0
    %v8786 = vadd.f32 %v8754, 1.0
    %v8787 = vadd.f32 %v8755, 1.0
    %v8788 = vadd.f32 %v8756, 1.0
    %v8789 = vadd.f32 %v8757, 1.0
    %v8790 = vadd.f32 %v8758, 1.0
    %v8791 = vadd.f32 %v8759, 1.0
    %v8792 = vadd.f32 %v8760, 1.0
    %v8793 = vadd.f32 %v8761, 1.0
    %v8794 = vadd.f32 %v8762, 1.0
    %v8795 = vadd.f32 %v8763, 1.0
    %vm8796 = vcmp.gt.f32.partialorder %v8764, %v8638
    %vm8797 = vcmp.gt.f32.partialorder %v8765, %v8641
    %vm8798 = vcmp.gt.f32.partialorder %v8766, %v8644
    %vm8799 = vcmp.gt.f32.partialorder %v8767, %v8647
    %vm8800 = vcmp.gt.f32.partialorder %v8768, %v8650
    %vm8801 = vcmp.gt.f32.partialorder %v8769, %v8653
    %vm8802 = vcmp.gt.f32.partialorder %v8770, %v8656
    %vm8803 = vcmp.gt.f32.partialorder %v8771, %v8659
    %vm8804 = vcmp.gt.f32.partialorder %v8772, %v8662
    %vm8805 = vcmp.gt.f32.partialorder %v8773, %v8665
    %vm8806 = vcmp.gt.f32.partialorder %v8774, %v8668
    %vm8807 = vcmp.gt.f32.partialorder %v8775, %v8671
    %vm8808 = vcmp.gt.f32.partialorder %v8776, %v8674
    %vm8809 = vcmp.gt.f32.partialorder %v8777, %v8677
    %vm8810 = vcmp.gt.f32.partialorder %v8778, %v8680
    %vm8811 = vcmp.gt.f32.partialorder %v8779, %v8683
    %vm8812 = vcmp.gt.f32.partialorder %v8780, %v8686
    %vm8813 = vcmp.gt.f32.partialorder %v8781, %v8689
    %vm8814 = vcmp.gt.f32.partialorder %v8782, %v8692
    %vm8815 = vcmp.gt.f32.partialorder %v8783, %v8695
    %vm8816 = vcmp.gt.f32.partialorder %v8784, %v8698
    %vm8817 = vcmp.gt.f32.partialorder %v8785, %v8701
    %vm8818 = vcmp.gt.f32.partialorder %v8786, %v8704
    %vm8819 = vcmp.gt.f32.partialorder %v8787, %v8707
    %vm8820 = vcmp.gt.f32.partialorder %v8788, %v8710
    %vm8821 = vcmp.gt.f32.partialorder %v8789, %v8713
    %vm8822 = vcmp.gt.f32.partialorder %v8790, %v8716
    %vm8823 = vcmp.gt.f32.partialorder %v8791, %v8719
    %vm8824 = vcmp.gt.f32.partialorder %v8792, %v8722
    %vm8825 = vcmp.gt.f32.partialorder %v8793, %v8725
    %vm8826 = vcmp.gt.f32.partialorder %v8794, %v8728
    %vm8827 = vcmp.gt.f32.partialorder %v8795, %v8731
    %v8828 = vsel %vm8796, 1, 0
    %v8829 = vsel %vm8797, 1, 0
    %v8830 = vsel %vm8798, 1, 0
    %v8831 = vsel %vm8799, 1, 0
    %v8832 = vsel %vm8800, 1, 0
    %v8833 = vsel %vm8801, 1, 0
    %v8834 = vsel %vm8802, 1, 0
    %v8835 = vsel %vm8803, 1, 0
    %v8836 = vsel %vm8804, 1, 0
    %v8837 = vsel %vm8805, 1, 0
    %v8838 = vsel %vm8806, 1, 0
    %v8839 = vsel %vm8807, 1, 0
    %v8840 = vsel %vm8808, 1, 0
    %v8841 = vsel %vm8809, 1, 0
    %v8842 = vsel %vm8810, 1, 0
    %v8843 = vsel %vm8811, 1, 0
    %v8844 = vsel %vm8812, 1, 0
    %v8845 = vsel %vm8813, 1, 0
    %v8846 = vsel %vm8814, 1, 0
    %v8847 = vsel %vm8815, 1, 0
    %v8848 = vsel %vm8816, 1, 0
    %v8849 = vsel %vm8817, 1, 0
    %v8850 = vsel %vm8818, 1, 0
    %v8851 = vsel %vm8819, 1, 0
    %v8852 = vsel %vm8820, 1, 0
    %v8853 = vsel %vm8821, 1, 0
    %v8854 = vsel %vm8822, 1, 0
    %v8855 = vsel %vm8823, 1, 0
    %v8856 = vsel %vm8824, 1, 0
    %v8857 = vsel %vm8825, 1, 0
    %v8858 = vsel %vm8826, 1, 0
    %v8859 = vsel %vm8827, 1, 0
    %v8860 = vcvt.s32.f32 %v8828
    %v8861 = vcvt.s32.f32 %v8829
    %v8862 = vcvt.s32.f32 %v8830
    %v8863 = vcvt.s32.f32 %v8831
    %v8864 = vcvt.s32.f32 %v8832
    %v8865 = vcvt.s32.f32 %v8833
    %v8866 = vcvt.s32.f32 %v8834
    %v8867 = vcvt.s32.f32 %v8835
    %v8868 = vcvt.s32.f32 %v8836
    %v8869 = vcvt.s32.f32 %v8837
    %v8870 = vcvt.s32.f32 %v8838
    %v8871 = vcvt.s32.f32 %v8839
    %v8872 = vcvt.s32.f32 %v8840
    %v8873 = vcvt.s32.f32 %v8841
    %v8874 = vcvt.s32.f32 %v8842
    %v8875 = vcvt.s32.f32 %v8843
    %v8876 = vcvt.s32.f32 %v8844
    %v8877 = vcvt.s32.f32 %v8845
    %v8878 = vcvt.s32.f32 %v8846
    %v8879 = vcvt.s32.f32 %v8847
    %v8880 = vcvt.s32.f32 %v8848
    %v8881 = vcvt.s32.f32 %v8849
    %v8882 = vcvt.s32.f32 %v8850
    %v8883 = vcvt.s32.f32 %v8851
    %v8884 = vcvt.s32.f32 %v8852
    %v8885 = vcvt.s32.f32 %v8853
    %v8886 = vcvt.s32.f32 %v8854
    %v8887 = vcvt.s32.f32 %v8855
    %v8888 = vcvt.s32.f32 %v8856
    %v8889 = vcvt.s32.f32 %v8857
    %v8890 = vcvt.s32.f32 %v8858
    %v8891 = vcvt.s32.f32 %v8859
    %8924 = vset.pattern.permute.xlu0 0
    %8925 = vperm.xlu0 %8924, %v8860
    %v8926 = vpop.permute.xlu0 %8925
    %8927 = vset.pattern.permute.xlu0 0
    %8928 = vperm.xlu0 %8927, %v8861
    %v8929 = vpop.permute.xlu0 %8928
    %8930 = vset.pattern.permute.xlu0 0
    %8931 = vperm.xlu0 %8930, %v8862
    %v8932 = vpop.permute.xlu0 %8931
    %8933 = vset.pattern.permute.xlu0 0
    %8934 = vperm.xlu0 %8933, %v8863
    %v8935 = vpop.permute.xlu0 %8934
    %8936 = vset.pattern.permute.xlu0 0
    %8937 = vperm.xlu0 %8936, %v8864
    %v8938 = vpop.permute.xlu0 %8937
    %8939 = vset.pattern.permute.xlu0 0
    %8940 = vperm.xlu0 %8939, %v8865
    %v8941 = vpop.permute.xlu0 %8940
    %8942 = vset.pattern.permute.xlu0 0
    %8943 = vperm.xlu0 %8942, %v8866
    %v8944 = vpop.permute.xlu0 %8943
    %8945 = vset.pattern.permute.xlu0 0
    %8946 = vperm.xlu0 %8945, %v8867
    %v8947 = vpop.permute.xlu0 %8946
    %8948 = vset.pattern.permute.xlu0 0
    %8949 = vperm.xlu0 %8948, %v8868
    %v8950 = vpop.permute.xlu0 %8949
    %8951 = vset.pattern.permute.xlu0 0
    %8952 = vperm.xlu0 %8951, %v8869
    %v8953 = vpop.permute.xlu0 %8952
    %8954 = vset.pattern.permute.xlu0 0
    %8955 = vperm.xlu0 %8954, %v8870
    %v8956 = vpop.permute.xlu0 %8955
    %8957 = vset.pattern.permute.xlu0 0
    %8958 = vperm.xlu0 %8957, %v8871
    %v8959 = vpop.permute.xlu0 %8958
    %8960 = vset.pattern.permute.xlu0 0
    %8961 = vperm.xlu0 %8960, %v8872
    %v8962 = vpop.permute.xlu0 %8961
    %8963 = vset.pattern.permute.xlu0 0
    %8964 = vperm.xlu0 %8963, %v8873
    %v8965 = vpop.permute.xlu0 %8964
    %8966 = vset.pattern.permute.xlu0 0
    %8967 = vperm.xlu0 %8966, %v8874
    %v8968 = vpop.permute.xlu0 %8967
    %8969 = vset.pattern.permute.xlu0 0
    %8970 = vperm.xlu0 %8969, %v8875
    %v8971 = vpop.permute.xlu0 %8970
    %8972 = vset.pattern.permute.xlu0 0
    %8973 = vperm.xlu0 %8972, %v8876
    %v8974 = vpop.permute.xlu0 %8973
    %8975 = vset.pattern.permute.xlu0 0
    %8976 = vperm.xlu0 %8975, %v8877
    %v8977 = vpop.permute.xlu0 %8976
    %8978 = vset.pattern.permute.xlu0 0
    %8979 = vperm.xlu0 %8978, %v8878
    %v8980 = vpop.permute.xlu0 %8979
    %8981 = vset.pattern.permute.xlu0 0
    %8982 = vperm.xlu0 %8981, %v8879
    %v8983 = vpop.permute.xlu0 %8982
    %8984 = vset.pattern.permute.xlu0 0
    %8985 = vperm.xlu0 %8984, %v8880
    %v8986 = vpop.permute.xlu0 %8985
    %8987 = vset.pattern.permute.xlu0 0
    %8988 = vperm.xlu0 %8987, %v8881
    %v8989 = vpop.permute.xlu0 %8988
    %8990 = vset.pattern.permute.xlu0 0
    %8991 = vperm.xlu0 %8990, %v8882
    %v8992 = vpop.permute.xlu0 %8991
    %8993 = vset.pattern.permute.xlu0 0
    %8994 = vperm.xlu0 %8993, %v8883
    %v8995 = vpop.permute.xlu0 %8994
    %8996 = vset.pattern.permute.xlu0 0
    %8997 = vperm.xlu0 %8996, %v8884
    %v8998 = vpop.permute.xlu0 %8997
    %8999 = vset.pattern.permute.xlu0 0
    %9000 = vperm.xlu0 %8999, %v8885
    %v9001 = vpop.permute.xlu0 %9000
    %9002 = vset.pattern.permute.xlu0 0
    %9003 = vperm.xlu0 %9002, %v8886
    %v9004 = vpop.permute.xlu0 %9003
    %9005 = vset.pattern.permute.xlu0 0
    %9006 = vperm.xlu0 %9005, %v8887
    %v9007 = vpop.permute.xlu0 %9006
    %9008 = vset.pattern.permute.xlu0 0
    %9009 = vperm.xlu0 %9008, %v8888
    %v9010 = vpop.permute.xlu0 %9009
    %9011 = vset.pattern.permute.xlu0 0
    %9012 = vperm.xlu0 %9011, %v8889
    %v9013 = vpop.permute.xlu0 %9012
    %9014 = vset.pattern.permute.xlu0 0
    %9015 = vperm.xlu0 %9014, %v8890
    %v9016 = vpop.permute.xlu0 %9015
    %9017 = vset.pattern.permute.xlu0 0
    %9018 = vperm.xlu0 %9017, %v8891
    %v9019 = vpop.permute.xlu0 %9018
    %v9020 = vlaneseq
    %v9021 = vshrl.u32 %v9020, 7
    %v9022 = vsub.s32 %v1123, %v9021
    %v9023 = vrot.slane %v8926, %v9022
    %v9024 = vlaneseq
    %v9025 = vshrl.u32 %v9024, 7
    %v9026 = vsub.s32 %v1123, %v9025
    %v9027 = vrot.slane %v8929, %v9026
    %v9028 = vlaneseq
    %v9029 = vshrl.u32 %v9028, 7
    %v9030 = vsub.s32 %v1123, %v9029
    %v9031 = vrot.slane %v8932, %v9030
    %v9032 = vlaneseq
    %v9033 = vshrl.u32 %v9032, 7
    %v9034 = vsub.s32 %v1123, %v9033
    %v9035 = vrot.slane %v8935, %v9034
    %v9036 = vlaneseq
    %v9037 = vshrl.u32 %v9036, 7
    %v9038 = vsub.s32 %v1123, %v9037
    %v9039 = vrot.slane %v8938, %v9038
    %v9040 = vlaneseq
    %v9041 = vshrl.u32 %v9040, 7
    %v9042 = vsub.s32 %v1123, %v9041
    %v9043 = vrot.slane %v8941, %v9042
    %v9044 = vlaneseq
    %v9045 = vshrl.u32 %v9044, 7
    %v9046 = vsub.s32 %v1123, %v9045
    %v9047 = vrot.slane %v8944, %v9046
    %v9048 = vlaneseq
    %v9049 = vshrl.u32 %v9048, 7
    %v9050 = vsub.s32 %v1123, %v9049
    %v9051 = vrot.slane %v8947, %v9050
    %v9052 = vlaneseq
    %v9053 = vshrl.u32 %v9052, 7
    %v9054 = vsub.s32 %v1123, %v9053
    %v9055 = vrot.slane %v8950, %v9054
    %v9056 = vlaneseq
    %v9057 = vshrl.u32 %v9056, 7
    %v9058 = vsub.s32 %v1123, %v9057
    %v9059 = vrot.slane %v8953, %v9058
    %v9060 = vlaneseq
    %v9061 = vshrl.u32 %v9060, 7
    %v9062 = vsub.s32 %v1123, %v9061
    %v9063 = vrot.slane %v8956, %v9062
    %v9064 = vlaneseq
    %v9065 = vshrl.u32 %v9064, 7
    %v9066 = vsub.s32 %v1123, %v9065
    %v9067 = vrot.slane %v8959, %v9066
    %v9068 = vlaneseq
    %v9069 = vshrl.u32 %v9068, 7
    %v9070 = vsub.s32 %v1123, %v9069
    %v9071 = vrot.slane %v8962, %v9070
    %v9072 = vlaneseq
    %v9073 = vshrl.u32 %v9072, 7
    %v9074 = vsub.s32 %v1123, %v9073
    %v9075 = vrot.slane %v8965, %v9074
    %v9076 = vlaneseq
    %v9077 = vshrl.u32 %v9076, 7
    %v9078 = vsub.s32 %v1123, %v9077
    %v9079 = vrot.slane %v8968, %v9078
    %v9080 = vlaneseq
    %v9081 = vshrl.u32 %v9080, 7
    %v9082 = vsub.s32 %v1123, %v9081
    %v9083 = vrot.slane %v8971, %v9082
    %v9084 = vlaneseq
    %v9085 = vshrl.u32 %v9084, 7
    %v9086 = vsub.s32 %v1123, %v9085
    %v9087 = vrot.slane %v8974, %v9086
    %v9088 = vlaneseq
    %v9089 = vshrl.u32 %v9088, 7
    %v9090 = vsub.s32 %v1123, %v9089
    %v9091 = vrot.slane %v8977, %v9090
    %v9092 = vlaneseq
    %v9093 = vshrl.u32 %v9092, 7
    %v9094 = vsub.s32 %v1123, %v9093
    %v9095 = vrot.slane %v8980, %v9094
    %v9096 = vlaneseq
    %v9097 = vshrl.u32 %v9096, 7
    %v9098 = vsub.s32 %v1123, %v9097
    %v9099 = vrot.slane %v8983, %v9098
    %v9100 = vlaneseq
    %v9101 = vshrl.u32 %v9100, 7
    %v9102 = vsub.s32 %v1123, %v9101
    %v9103 = vrot.slane %v8986, %v9102
    %v9104 = vlaneseq
    %v9105 = vshrl.u32 %v9104, 7
    %v9106 = vsub.s32 %v1123, %v9105
    %v9107 = vrot.slane %v8989, %v9106
    %v9108 = vlaneseq
    %v9109 = vshrl.u32 %v9108, 7
    %v9110 = vsub.s32 %v1123, %v9109
    %v9111 = vrot.slane %v8992, %v9110
    %v9112 = vlaneseq
    %v9113 = vshrl.u32 %v9112, 7
    %v9114 = vsub.s32 %v1123, %v9113
    %v9115 = vrot.slane %v8995, %v9114
    %v9116 = vlaneseq
    %v9117 = vshrl.u32 %v9116, 7
    %v9118 = vsub.s32 %v1123, %v9117
    %v9119 = vrot.slane %v8998, %v9118
    %v9120 = vlaneseq
    %v9121 = vshrl.u32 %v9120, 7
    %v9122 = vsub.s32 %v1123, %v9121
    %v9123 = vrot.slane %v9001, %v9122
    %v9124 = vlaneseq
    %v9125 = vshrl.u32 %v9124, 7
    %v9126 = vsub.s32 %v1123, %v9125
    %v9127 = vrot.slane %v9004, %v9126
    %v9128 = vlaneseq
    %v9129 = vshrl.u32 %v9128, 7
    %v9130 = vsub.s32 %v1123, %v9129
    %v9131 = vrot.slane %v9007, %v9130
    %v9132 = vlaneseq
    %v9133 = vshrl.u32 %v9132, 7
    %v9134 = vsub.s32 %v1123, %v9133
    %v9135 = vrot.slane %v9010, %v9134
    %v9136 = vlaneseq
    %v9137 = vshrl.u32 %v9136, 7
    %v9138 = vsub.s32 %v1123, %v9137
    %v9139 = vrot.slane %v9013, %v9138
    %v9140 = vlaneseq
    %v9141 = vshrl.u32 %v9140, 7
    %v9142 = vsub.s32 %v1123, %v9141
    %v9143 = vrot.slane %v9016, %v9142
    %v9144 = vlaneseq
    %v9145 = vshrl.u32 %v9144, 7
    %v9146 = vsub.s32 %v1123, %v9145
    %v9147 = vrot.slane %v9019, %v9146
    %v9148 = vsel %vm1252, %v9027, %v9023
    %v9149 = vsel %vm1254, %v9031, %v9148
    %v9150 = vsel %vm1256, %v9035, %v9149
    %v9151 = vsel %vm1258, %v9039, %v9150
    %v9152 = vsel %vm1260, %v9043, %v9151
    %v9153 = vsel %vm1262, %v9047, %v9152
    %v9154 = vsel %vm1264, %v9051, %v9153
    %v9155 = vsel %vm1252, %v9059, %v9055
    %v9156 = vsel %vm1254, %v9063, %v9155
    %v9157 = vsel %vm1256, %v9067, %v9156
    %v9158 = vsel %vm1258, %v9071, %v9157
    %v9159 = vsel %vm1260, %v9075, %v9158
    %v9160 = vsel %vm1262, %v9079, %v9159
    %v9161 = vsel %vm1264, %v9083, %v9160
    %v9162 = vsel %vm1252, %v9091, %v9087
    %v9163 = vsel %vm1254, %v9095, %v9162
    %v9164 = vsel %vm1256, %v9099, %v9163
    %v9165 = vsel %vm1258, %v9103, %v9164
    %v9166 = vsel %vm1260, %v9107, %v9165
    %v9167 = vsel %vm1262, %v9111, %v9166
    %v9168 = vsel %vm1264, %v9115, %v9167
    %v9169 = vsel %vm1252, %v9123, %v9119
    %v9170 = vsel %vm1254, %v9127, %v9169
    %v9171 = vsel %vm1256, %v9131, %v9170
    %v9172 = vsel %vm1258, %v9135, %v9171
    %v9173 = vsel %vm1260, %v9139, %v9172
    %v9174 = vsel %vm1262, %v9143, %v9173
    %v9175 = vsel %vm1264, %v9147, %v9174
    %v9180 = vsel %vm1291, %v9154, 0.0
    %9181 = vadd.xlane.f32.xlu0 %v9180
    %v9182 = vpop.xlane.xlu0 %9181
    %v9183 = vsel %vm1291, %v9161, 0.0
    %9184 = vadd.xlane.f32.xlu0 %v9183
    %v9185 = vpop.xlane.xlu0 %9184
    %v9186 = vsel %vm1291, %v9168, 0.0
    %9187 = vadd.xlane.f32.xlu0 %v9186
    %v9188 = vpop.xlane.xlu0 %9187
    %v9189 = vsel %vm1291, %v9175, 0.0
    %9190 = vadd.xlane.f32.xlu0 %v9189
    %v9191 = vpop.xlane.xlu0 %9190
    %v9192 = vmul.f32 %v8860, %v1468
    %v9193 = vmul.f32 %v8861, %v1469
    %v9194 = vmul.f32 %v8862, %v1470
    %v9195 = vmul.f32 %v8863, %v1471
    %v9196 = vmul.f32 %v8864, %v1472
    %v9197 = vmul.f32 %v8865, %v1473
    %v9198 = vmul.f32 %v8866, %v1474
    %v9199 = vmul.f32 %v8867, %v1475
    %v9200 = vmul.f32 %v8868, %v1476
    %v9201 = vmul.f32 %v8869, %v1477
    %v9202 = vmul.f32 %v8870, %v1478
    %v9203 = vmul.f32 %v8871, %v1479
    %v9204 = vmul.f32 %v8872, %v1480
    %v9205 = vmul.f32 %v8873, %v1481
    %v9206 = vmul.f32 %v8874, %v1482
    %v9207 = vmul.f32 %v8875, %v1483
    %v9208 = vmul.f32 %v8876, %v1484
    %v9209 = vmul.f32 %v8877, %v1485
    %v9210 = vmul.f32 %v8878, %v1486
    %v9211 = vmul.f32 %v8879, %v1487
    %v9212 = vmul.f32 %v8880, %v1488
    %v9213 = vmul.f32 %v8881, %v1489
    %v9214 = vmul.f32 %v8882, %v1490
    %v9215 = vmul.f32 %v8883, %v1491
    %v9216 = vmul.f32 %v8884, %v1492
    %v9217 = vmul.f32 %v8885, %v1493
    %v9218 = vmul.f32 %v8886, %v1494
    %v9219 = vmul.f32 %v8887, %v1495
    %v9220 = vmul.f32 %v8888, %v1496
    %v9221 = vmul.f32 %v8889, %v1497
    %v9222 = vmul.f32 %v8890, %v1498
    %v9223 = vmul.f32 %v8891, %v1499
    %9256 = vset.pattern.permute.xlu0 0
    %9257 = vperm.xlu0 %9256, %v9192
    %v9258 = vpop.permute.xlu0 %9257
    %9259 = vset.pattern.permute.xlu0 0
    %9260 = vperm.xlu0 %9259, %v9193
    %v9261 = vpop.permute.xlu0 %9260
    %9262 = vset.pattern.permute.xlu0 0
    %9263 = vperm.xlu0 %9262, %v9194
    %v9264 = vpop.permute.xlu0 %9263
    %9265 = vset.pattern.permute.xlu0 0
    %9266 = vperm.xlu0 %9265, %v9195
    %v9267 = vpop.permute.xlu0 %9266
    %9268 = vset.pattern.permute.xlu0 0
    %9269 = vperm.xlu0 %9268, %v9196
    %v9270 = vpop.permute.xlu0 %9269
    %9271 = vset.pattern.permute.xlu0 0
    %9272 = vperm.xlu0 %9271, %v9197
    %v9273 = vpop.permute.xlu0 %9272
    %9274 = vset.pattern.permute.xlu0 0
    %9275 = vperm.xlu0 %9274, %v9198
    %v9276 = vpop.permute.xlu0 %9275
    %9277 = vset.pattern.permute.xlu0 0
    %9278 = vperm.xlu0 %9277, %v9199
    %v9279 = vpop.permute.xlu0 %9278
    %9280 = vset.pattern.permute.xlu0 0
    %9281 = vperm.xlu0 %9280, %v9200
    %v9282 = vpop.permute.xlu0 %9281
    %9283 = vset.pattern.permute.xlu0 0
    %9284 = vperm.xlu0 %9283, %v9201
    %v9285 = vpop.permute.xlu0 %9284
    %9286 = vset.pattern.permute.xlu0 0
    %9287 = vperm.xlu0 %9286, %v9202
    %v9288 = vpop.permute.xlu0 %9287
    %9289 = vset.pattern.permute.xlu0 0
    %9290 = vperm.xlu0 %9289, %v9203
    %v9291 = vpop.permute.xlu0 %9290
    %9292 = vset.pattern.permute.xlu0 0
    %9293 = vperm.xlu0 %9292, %v9204
    %v9294 = vpop.permute.xlu0 %9293
    %9295 = vset.pattern.permute.xlu0 0
    %9296 = vperm.xlu0 %9295, %v9205
    %v9297 = vpop.permute.xlu0 %9296
    %9298 = vset.pattern.permute.xlu0 0
    %9299 = vperm.xlu0 %9298, %v9206
    %v9300 = vpop.permute.xlu0 %9299
    %9301 = vset.pattern.permute.xlu0 0
    %9302 = vperm.xlu0 %9301, %v9207
    %v9303 = vpop.permute.xlu0 %9302
    %9304 = vset.pattern.permute.xlu0 0
    %9305 = vperm.xlu0 %9304, %v9208
    %v9306 = vpop.permute.xlu0 %9305
    %9307 = vset.pattern.permute.xlu0 0
    %9308 = vperm.xlu0 %9307, %v9209
    %v9309 = vpop.permute.xlu0 %9308
    %9310 = vset.pattern.permute.xlu0 0
    %9311 = vperm.xlu0 %9310, %v9210
    %v9312 = vpop.permute.xlu0 %9311
    %9313 = vset.pattern.permute.xlu0 0
    %9314 = vperm.xlu0 %9313, %v9211
    %v9315 = vpop.permute.xlu0 %9314
    %9316 = vset.pattern.permute.xlu0 0
    %9317 = vperm.xlu0 %9316, %v9212
    %v9318 = vpop.permute.xlu0 %9317
    %9319 = vset.pattern.permute.xlu0 0
    %9320 = vperm.xlu0 %9319, %v9213
    %v9321 = vpop.permute.xlu0 %9320
    %9322 = vset.pattern.permute.xlu0 0
    %9323 = vperm.xlu0 %9322, %v9214
    %v9324 = vpop.permute.xlu0 %9323
    %9325 = vset.pattern.permute.xlu0 0
    %9326 = vperm.xlu0 %9325, %v9215
    %v9327 = vpop.permute.xlu0 %9326
    %9328 = vset.pattern.permute.xlu0 0
    %9329 = vperm.xlu0 %9328, %v9216
    %v9330 = vpop.permute.xlu0 %9329
    %9331 = vset.pattern.permute.xlu0 0
    %9332 = vperm.xlu0 %9331, %v9217
    %v9333 = vpop.permute.xlu0 %9332
    %9334 = vset.pattern.permute.xlu0 0
    %9335 = vperm.xlu0 %9334, %v9218
    %v9336 = vpop.permute.xlu0 %9335
    %9337 = vset.pattern.permute.xlu0 0
    %9338 = vperm.xlu0 %9337, %v9219
    %v9339 = vpop.permute.xlu0 %9338
    %9340 = vset.pattern.permute.xlu0 0
    %9341 = vperm.xlu0 %9340, %v9220
    %v9342 = vpop.permute.xlu0 %9341
    %9343 = vset.pattern.permute.xlu0 0
    %9344 = vperm.xlu0 %9343, %v9221
    %v9345 = vpop.permute.xlu0 %9344
    %9346 = vset.pattern.permute.xlu0 0
    %9347 = vperm.xlu0 %9346, %v9222
    %v9348 = vpop.permute.xlu0 %9347
    %9349 = vset.pattern.permute.xlu0 0
    %9350 = vperm.xlu0 %9349, %v9223
    %v9351 = vpop.permute.xlu0 %9350
    %v9352 = vlaneseq
    %v9353 = vshrl.u32 %v9352, 7
    %v9354 = vsub.s32 %v1123, %v9353
    %v9355 = vrot.slane %v9258, %v9354
    %v9356 = vlaneseq
    %v9357 = vshrl.u32 %v9356, 7
    %v9358 = vsub.s32 %v1123, %v9357
    %v9359 = vrot.slane %v9261, %v9358
    %v9360 = vlaneseq
    %v9361 = vshrl.u32 %v9360, 7
    %v9362 = vsub.s32 %v1123, %v9361
    %v9363 = vrot.slane %v9264, %v9362
    %v9364 = vlaneseq
    %v9365 = vshrl.u32 %v9364, 7
    %v9366 = vsub.s32 %v1123, %v9365
    %v9367 = vrot.slane %v9267, %v9366
    %v9368 = vlaneseq
    %v9369 = vshrl.u32 %v9368, 7
    %v9370 = vsub.s32 %v1123, %v9369
    %v9371 = vrot.slane %v9270, %v9370
    %v9372 = vlaneseq
    %v9373 = vshrl.u32 %v9372, 7
    %v9374 = vsub.s32 %v1123, %v9373
    %v9375 = vrot.slane %v9273, %v9374
    %v9376 = vlaneseq
    %v9377 = vshrl.u32 %v9376, 7
    %v9378 = vsub.s32 %v1123, %v9377
    %v9379 = vrot.slane %v9276, %v9378
    %v9380 = vlaneseq
    %v9381 = vshrl.u32 %v9380, 7
    %v9382 = vsub.s32 %v1123, %v9381
    %v9383 = vrot.slane %v9279, %v9382
    %v9384 = vlaneseq
    %v9385 = vshrl.u32 %v9384, 7
    %v9386 = vsub.s32 %v1123, %v9385
    %v9387 = vrot.slane %v9282, %v9386
    %v9388 = vlaneseq
    %v9389 = vshrl.u32 %v9388, 7
    %v9390 = vsub.s32 %v1123, %v9389
    %v9391 = vrot.slane %v9285, %v9390
    %v9392 = vlaneseq
    %v9393 = vshrl.u32 %v9392, 7
    %v9394 = vsub.s32 %v1123, %v9393
    %v9395 = vrot.slane %v9288, %v9394
    %v9396 = vlaneseq
    %v9397 = vshrl.u32 %v9396, 7
    %v9398 = vsub.s32 %v1123, %v9397
    %v9399 = vrot.slane %v9291, %v9398
    %v9400 = vlaneseq
    %v9401 = vshrl.u32 %v9400, 7
    %v9402 = vsub.s32 %v1123, %v9401
    %v9403 = vrot.slane %v9294, %v9402
    %v9404 = vlaneseq
    %v9405 = vshrl.u32 %v9404, 7
    %v9406 = vsub.s32 %v1123, %v9405
    %v9407 = vrot.slane %v9297, %v9406
    %v9408 = vlaneseq
    %v9409 = vshrl.u32 %v9408, 7
    %v9410 = vsub.s32 %v1123, %v9409
    %v9411 = vrot.slane %v9300, %v9410
    %v9412 = vlaneseq
    %v9413 = vshrl.u32 %v9412, 7
    %v9414 = vsub.s32 %v1123, %v9413
    %v9415 = vrot.slane %v9303, %v9414
    %v9416 = vlaneseq
    %v9417 = vshrl.u32 %v9416, 7
    %v9418 = vsub.s32 %v1123, %v9417
    %v9419 = vrot.slane %v9306, %v9418
    %v9420 = vlaneseq
    %v9421 = vshrl.u32 %v9420, 7
    %v9422 = vsub.s32 %v1123, %v9421
    %v9423 = vrot.slane %v9309, %v9422
    %v9424 = vlaneseq
    %v9425 = vshrl.u32 %v9424, 7
    %v9426 = vsub.s32 %v1123, %v9425
    %v9427 = vrot.slane %v9312, %v9426
    %v9428 = vlaneseq
    %v9429 = vshrl.u32 %v9428, 7
    %v9430 = vsub.s32 %v1123, %v9429
    %v9431 = vrot.slane %v9315, %v9430
    %v9432 = vlaneseq
    %v9433 = vshrl.u32 %v9432, 7
    %v9434 = vsub.s32 %v1123, %v9433
    %v9435 = vrot.slane %v9318, %v9434
    %v9436 = vlaneseq
    %v9437 = vshrl.u32 %v9436, 7
    %v9438 = vsub.s32 %v1123, %v9437
    %v9439 = vrot.slane %v9321, %v9438
    %v9440 = vlaneseq
    %v9441 = vshrl.u32 %v9440, 7
    %v9442 = vsub.s32 %v1123, %v9441
    %v9443 = vrot.slane %v9324, %v9442
    %v9444 = vlaneseq
    %v9445 = vshrl.u32 %v9444, 7
    %v9446 = vsub.s32 %v1123, %v9445
    %v9447 = vrot.slane %v9327, %v9446
    %v9448 = vlaneseq
    %v9449 = vshrl.u32 %v9448, 7
    %v9450 = vsub.s32 %v1123, %v9449
    %v9451 = vrot.slane %v9330, %v9450
    %v9452 = vlaneseq
    %v9453 = vshrl.u32 %v9452, 7
    %v9454 = vsub.s32 %v1123, %v9453
    %v9455 = vrot.slane %v9333, %v9454
    %v9456 = vlaneseq
    %v9457 = vshrl.u32 %v9456, 7
    %v9458 = vsub.s32 %v1123, %v9457
    %v9459 = vrot.slane %v9336, %v9458
    %v9460 = vlaneseq
    %v9461 = vshrl.u32 %v9460, 7
    %v9462 = vsub.s32 %v1123, %v9461
    %v9463 = vrot.slane %v9339, %v9462
    %v9464 = vlaneseq
    %v9465 = vshrl.u32 %v9464, 7
    %v9466 = vsub.s32 %v1123, %v9465
    %v9467 = vrot.slane %v9342, %v9466
    %v9468 = vlaneseq
    %v9469 = vshrl.u32 %v9468, 7
    %v9470 = vsub.s32 %v1123, %v9469
    %v9471 = vrot.slane %v9345, %v9470
    %v9472 = vlaneseq
    %v9473 = vshrl.u32 %v9472, 7
    %v9474 = vsub.s32 %v1123, %v9473
    %v9475 = vrot.slane %v9348, %v9474
    %v9476 = vlaneseq
    %v9477 = vshrl.u32 %v9476, 7
    %v9478 = vsub.s32 %v1123, %v9477
    %v9479 = vrot.slane %v9351, %v9478
    %v9480 = vsel %vm1252, %v9359, %v9355
    %v9481 = vsel %vm1254, %v9363, %v9480
    %v9482 = vsel %vm1256, %v9367, %v9481
    %v9483 = vsel %vm1258, %v9371, %v9482
    %v9484 = vsel %vm1260, %v9375, %v9483
    %v9485 = vsel %vm1262, %v9379, %v9484
    %v9486 = vsel %vm1264, %v9383, %v9485
    %v9487 = vsel %vm1252, %v9391, %v9387
    %v9488 = vsel %vm1254, %v9395, %v9487
    %v9489 = vsel %vm1256, %v9399, %v9488
    %v9490 = vsel %vm1258, %v9403, %v9489
    %v9491 = vsel %vm1260, %v9407, %v9490
    %v9492 = vsel %vm1262, %v9411, %v9491
    %v9493 = vsel %vm1264, %v9415, %v9492
    %v9494 = vsel %vm1252, %v9423, %v9419
    %v9495 = vsel %vm1254, %v9427, %v9494
    %v9496 = vsel %vm1256, %v9431, %v9495
    %v9497 = vsel %vm1258, %v9435, %v9496
    %v9498 = vsel %vm1260, %v9439, %v9497
    %v9499 = vsel %vm1262, %v9443, %v9498
    %v9500 = vsel %vm1264, %v9447, %v9499
    %v9501 = vsel %vm1252, %v9455, %v9451
    %v9502 = vsel %vm1254, %v9459, %v9501
    %v9503 = vsel %vm1256, %v9463, %v9502
    %v9504 = vsel %vm1258, %v9467, %v9503
    %v9505 = vsel %vm1260, %v9471, %v9504
    %v9506 = vsel %vm1262, %v9475, %v9505
    %v9507 = vsel %vm1264, %v9479, %v9506
    %v9512 = vsel %vm1291, %v9486, 0.0
    %9513 = vadd.xlane.f32.xlu0 %v9512
    %v9514 = vpop.xlane.xlu0 %9513
    %v9515 = vsel %vm1291, %v9493, 0.0
    %9516 = vadd.xlane.f32.xlu0 %v9515
    %v9517 = vpop.xlane.xlu0 %9516
    %v9518 = vsel %vm1291, %v9500, 0.0
    %9519 = vadd.xlane.f32.xlu0 %v9518
    %v9520 = vpop.xlane.xlu0 %9519
    %v9521 = vsel %vm1291, %v9507, 0.0
    %9522 = vadd.xlane.f32.xlu0 %v9521
    %v9523 = vpop.xlane.xlu0 %9522
    %v9524 = vsub.f32 %v9514, 1.0
    %v9525 = vsub.f32 %v9517, 1.0
    %v9526 = vsub.f32 %v9520, 1.0
    %v9527 = vsub.f32 %v9523, 1.0
    %v9528 = vrcp.pop %v9182
    %v9529 = vmul.f32 %v9524, %v9528
    %v9530 = vrcp.pop %v9185
    %v9531 = vmul.f32 %v9525, %v9530
    %v9532 = vrcp.pop %v9188
    %v9533 = vmul.f32 %v9526, %v9532
    %v9534 = vrcp.pop %v9191
    %v9535 = vmul.f32 %v9527, %v9534
    %v9540 = vlaneseq
    %v9541 = vshrl.u32 %v9540, 7
    %v9542 = vsub.s32 0, %v9541
    %v9543 = vrot.slane %v9529, %v9542
    %v9544 = vlaneseq
    %v9545 = vshrl.u32 %v9544, 7
    %v9546 = vsub.s32 1, %v9545
    %v9547 = vrot.slane %v9529, %v9546
    %v9548 = vlaneseq
    %v9549 = vshrl.u32 %v9548, 7
    %v9550 = vsub.s32 2, %v9549
    %v9551 = vrot.slane %v9529, %v9550
    %v9552 = vlaneseq
    %v9553 = vshrl.u32 %v9552, 7
    %v9554 = vsub.s32 3, %v9553
    %v9555 = vrot.slane %v9529, %v9554
    %v9556 = vlaneseq
    %v9557 = vshrl.u32 %v9556, 7
    %v9558 = vsub.s32 4, %v9557
    %v9559 = vrot.slane %v9529, %v9558
    %v9560 = vlaneseq
    %v9561 = vshrl.u32 %v9560, 7
    %v9562 = vsub.s32 5, %v9561
    %v9563 = vrot.slane %v9529, %v9562
    %v9564 = vlaneseq
    %v9565 = vshrl.u32 %v9564, 7
    %v9566 = vsub.s32 6, %v9565
    %v9567 = vrot.slane %v9529, %v9566
    %v9568 = vlaneseq
    %v9569 = vshrl.u32 %v9568, 7
    %v9570 = vsub.s32 7, %v9569
    %v9571 = vrot.slane %v9529, %v9570
    %v9572 = vlaneseq
    %v9573 = vshrl.u32 %v9572, 7
    %v9574 = vsub.s32 0, %v9573
    %v9575 = vrot.slane %v9531, %v9574
    %v9576 = vlaneseq
    %v9577 = vshrl.u32 %v9576, 7
    %v9578 = vsub.s32 1, %v9577
    %v9579 = vrot.slane %v9531, %v9578
    %v9580 = vlaneseq
    %v9581 = vshrl.u32 %v9580, 7
    %v9582 = vsub.s32 2, %v9581
    %v9583 = vrot.slane %v9531, %v9582
    %v9584 = vlaneseq
    %v9585 = vshrl.u32 %v9584, 7
    %v9586 = vsub.s32 3, %v9585
    %v9587 = vrot.slane %v9531, %v9586
    %v9588 = vlaneseq
    %v9589 = vshrl.u32 %v9588, 7
    %v9590 = vsub.s32 4, %v9589
    %v9591 = vrot.slane %v9531, %v9590
    %v9592 = vlaneseq
    %v9593 = vshrl.u32 %v9592, 7
    %v9594 = vsub.s32 5, %v9593
    %v9595 = vrot.slane %v9531, %v9594
    %v9596 = vlaneseq
    %v9597 = vshrl.u32 %v9596, 7
    %v9598 = vsub.s32 6, %v9597
    %v9599 = vrot.slane %v9531, %v9598
    %v9600 = vlaneseq
    %v9601 = vshrl.u32 %v9600, 7
    %v9602 = vsub.s32 7, %v9601
    %v9603 = vrot.slane %v9531, %v9602
    %v9604 = vlaneseq
    %v9605 = vshrl.u32 %v9604, 7
    %v9606 = vsub.s32 0, %v9605
    %v9607 = vrot.slane %v9533, %v9606
    %v9608 = vlaneseq
    %v9609 = vshrl.u32 %v9608, 7
    %v9610 = vsub.s32 1, %v9609
    %v9611 = vrot.slane %v9533, %v9610
    %v9612 = vlaneseq
    %v9613 = vshrl.u32 %v9612, 7
    %v9614 = vsub.s32 2, %v9613
    %v9615 = vrot.slane %v9533, %v9614
    %v9616 = vlaneseq
    %v9617 = vshrl.u32 %v9616, 7
    %v9618 = vsub.s32 3, %v9617
    %v9619 = vrot.slane %v9533, %v9618
    %v9620 = vlaneseq
    %v9621 = vshrl.u32 %v9620, 7
    %v9622 = vsub.s32 4, %v9621
    %v9623 = vrot.slane %v9533, %v9622
    %v9624 = vlaneseq
    %v9625 = vshrl.u32 %v9624, 7
    %v9626 = vsub.s32 5, %v9625
    %v9627 = vrot.slane %v9533, %v9626
    %v9628 = vlaneseq
    %v9629 = vshrl.u32 %v9628, 7
    %v9630 = vsub.s32 6, %v9629
    %v9631 = vrot.slane %v9533, %v9630
    %v9632 = vlaneseq
    %v9633 = vshrl.u32 %v9632, 7
    %v9634 = vsub.s32 7, %v9633
    %v9635 = vrot.slane %v9533, %v9634
    %v9636 = vlaneseq
    %v9637 = vshrl.u32 %v9636, 7
    %v9638 = vsub.s32 0, %v9637
    %v9639 = vrot.slane %v9535, %v9638
    %v9640 = vlaneseq
    %v9641 = vshrl.u32 %v9640, 7
    %v9642 = vsub.s32 1, %v9641
    %v9643 = vrot.slane %v9535, %v9642
    %v9644 = vlaneseq
    %v9645 = vshrl.u32 %v9644, 7
    %v9646 = vsub.s32 2, %v9645
    %v9647 = vrot.slane %v9535, %v9646
    %v9648 = vlaneseq
    %v9649 = vshrl.u32 %v9648, 7
    %v9650 = vsub.s32 3, %v9649
    %v9651 = vrot.slane %v9535, %v9650
    %v9652 = vlaneseq
    %v9653 = vshrl.u32 %v9652, 7
    %v9654 = vsub.s32 4, %v9653
    %v9655 = vrot.slane %v9535, %v9654
    %v9656 = vlaneseq
    %v9657 = vshrl.u32 %v9656, 7
    %v9658 = vsub.s32 5, %v9657
    %v9659 = vrot.slane %v9535, %v9658
    %v9660 = vlaneseq
    %v9661 = vshrl.u32 %v9660, 7
    %v9662 = vsub.s32 6, %v9661
    %v9663 = vrot.slane %v9535, %v9662
    %v9664 = vlaneseq
    %v9665 = vshrl.u32 %v9664, 7
    %v9666 = vsub.s32 7, %v9665
    %v9667 = vrot.slane %v9535, %v9666
    %v9700 = vsub.f32 %v1468, %v9543
    %v9701 = vsub.f32 %v1469, %v9547
    %v9702 = vsub.f32 %v1470, %v9551
    %v9703 = vsub.f32 %v1471, %v9555
    %v9704 = vsub.f32 %v1472, %v9559
    %v9705 = vsub.f32 %v1473, %v9563
    %v9706 = vsub.f32 %v1474, %v9567
    %v9707 = vsub.f32 %v1475, %v9571
    %v9708 = vsub.f32 %v1476, %v9575
    %v9709 = vsub.f32 %v1477, %v9579
    %v9710 = vsub.f32 %v1478, %v9583
    %v9711 = vsub.f32 %v1479, %v9587
    %v9712 = vsub.f32 %v1480, %v9591
    %v9713 = vsub.f32 %v1481, %v9595
    %v9714 = vsub.f32 %v1482, %v9599
    %v9715 = vsub.f32 %v1483, %v9603
    %v9716 = vsub.f32 %v1484, %v9607
    %v9717 = vsub.f32 %v1485, %v9611
    %v9718 = vsub.f32 %v1486, %v9615
    %v9719 = vsub.f32 %v1487, %v9619
    %v9720 = vsub.f32 %v1488, %v9623
    %v9721 = vsub.f32 %v1489, %v9627
    %v9722 = vsub.f32 %v1490, %v9631
    %v9723 = vsub.f32 %v1491, %v9635
    %v9724 = vsub.f32 %v1492, %v9639
    %v9725 = vsub.f32 %v1493, %v9643
    %v9726 = vsub.f32 %v1494, %v9647
    %v9727 = vsub.f32 %v1495, %v9651
    %v9728 = vsub.f32 %v1496, %v9655
    %v9729 = vsub.f32 %v1497, %v9659
    %v9730 = vsub.f32 %v1498, %v9663
    %v9731 = vsub.f32 %v1499, %v9667
    %v9732 = vmax.f32 %v9700, 0.0
    %v9733 = vmax.f32 %v9701, 0.0
    %v9734 = vmax.f32 %v9702, 0.0
    %v9735 = vmax.f32 %v9703, 0.0
    %v9736 = vmax.f32 %v9704, 0.0
    %v9737 = vmax.f32 %v9705, 0.0
    %v9738 = vmax.f32 %v9706, 0.0
    %v9739 = vmax.f32 %v9707, 0.0
    %v9740 = vmax.f32 %v9708, 0.0
    %v9741 = vmax.f32 %v9709, 0.0
    %v9742 = vmax.f32 %v9710, 0.0
    %v9743 = vmax.f32 %v9711, 0.0
    %v9744 = vmax.f32 %v9712, 0.0
    %v9745 = vmax.f32 %v9713, 0.0
    %v9746 = vmax.f32 %v9714, 0.0
    %v9747 = vmax.f32 %v9715, 0.0
    %v9748 = vmax.f32 %v9716, 0.0
    %v9749 = vmax.f32 %v9717, 0.0
    %v9750 = vmax.f32 %v9718, 0.0
    %v9751 = vmax.f32 %v9719, 0.0
    %v9752 = vmax.f32 %v9720, 0.0
    %v9753 = vmax.f32 %v9721, 0.0
    %v9754 = vmax.f32 %v9722, 0.0
    %v9755 = vmax.f32 %v9723, 0.0
    %v9756 = vmax.f32 %v9724, 0.0
    %v9757 = vmax.f32 %v9725, 0.0
    %v9758 = vmax.f32 %v9726, 0.0
    %v9759 = vmax.f32 %v9727, 0.0
    %v9760 = vmax.f32 %v9728, 0.0
    %v9761 = vmax.f32 %v9729, 0.0
    %v9762 = vmax.f32 %v9730, 0.0
    %v9763 = vmax.f32 %v9731, 0.0
    %9765 = vset.pattern.permute.xlu0 0
    %9766 = vperm.xlu0 %9765, %v9732
    %v9767 = vpop.permute.xlu0 %9766
    %9770 = vset.pattern.permute.xlu0 0
    %9771 = vperm.xlu0 %9770, %v9733
    %v9772 = vpop.permute.xlu0 %9771
    %9775 = vset.pattern.permute.xlu0 0
    %9776 = vperm.xlu0 %9775, %v9734
    %v9777 = vpop.permute.xlu0 %9776
    %9780 = vset.pattern.permute.xlu0 0
    %9781 = vperm.xlu0 %9780, %v9735
    %v9782 = vpop.permute.xlu0 %9781
    %9785 = vset.pattern.permute.xlu0 0
    %9786 = vperm.xlu0 %9785, %v9736
    %v9787 = vpop.permute.xlu0 %9786
    %9790 = vset.pattern.permute.xlu0 0
    %9791 = vperm.xlu0 %9790, %v9737
    %v9792 = vpop.permute.xlu0 %9791
    %9795 = vset.pattern.permute.xlu0 0
    %9796 = vperm.xlu0 %9795, %v9738
    %v9797 = vpop.permute.xlu0 %9796
    %9800 = vset.pattern.permute.xlu0 0
    %9801 = vperm.xlu0 %9800, %v9739
    %v9802 = vpop.permute.xlu0 %9801
    %9805 = vset.pattern.permute.xlu0 0
    %9806 = vperm.xlu0 %9805, %v9740
    %v9807 = vpop.permute.xlu0 %9806
    %9810 = vset.pattern.permute.xlu0 0
    %9811 = vperm.xlu0 %9810, %v9741
    %v9812 = vpop.permute.xlu0 %9811
    %9815 = vset.pattern.permute.xlu0 0
    %9816 = vperm.xlu0 %9815, %v9742
    %v9817 = vpop.permute.xlu0 %9816
    %9820 = vset.pattern.permute.xlu0 0
    %9821 = vperm.xlu0 %9820, %v9743
    %v9822 = vpop.permute.xlu0 %9821
    %9825 = vset.pattern.permute.xlu0 0
    %9826 = vperm.xlu0 %9825, %v9744
    %v9827 = vpop.permute.xlu0 %9826
    %9830 = vset.pattern.permute.xlu0 0
    %9831 = vperm.xlu0 %9830, %v9745
    %v9832 = vpop.permute.xlu0 %9831
    %9835 = vset.pattern.permute.xlu0 0
    %9836 = vperm.xlu0 %9835, %v9746
    %v9837 = vpop.permute.xlu0 %9836
    %9840 = vset.pattern.permute.xlu0 0
    %9841 = vperm.xlu0 %9840, %v9747
    %v9842 = vpop.permute.xlu0 %9841
    %9845 = vset.pattern.permute.xlu0 0
    %9846 = vperm.xlu0 %9845, %v9748
    %v9847 = vpop.permute.xlu0 %9846
    %9850 = vset.pattern.permute.xlu0 0
    %9851 = vperm.xlu0 %9850, %v9749
    %v9852 = vpop.permute.xlu0 %9851
    %9855 = vset.pattern.permute.xlu0 0
    %9856 = vperm.xlu0 %9855, %v9750
    %v9857 = vpop.permute.xlu0 %9856
    %9860 = vset.pattern.permute.xlu0 0
    %9861 = vperm.xlu0 %9860, %v9751
    %v9862 = vpop.permute.xlu0 %9861
    %9865 = vset.pattern.permute.xlu0 0
    %9866 = vperm.xlu0 %9865, %v9752
    %v9867 = vpop.permute.xlu0 %9866
    %9870 = vset.pattern.permute.xlu0 0
    %9871 = vperm.xlu0 %9870, %v9753
    %v9872 = vpop.permute.xlu0 %9871
    %9875 = vset.pattern.permute.xlu0 0
    %9876 = vperm.xlu0 %9875, %v9754
    %v9877 = vpop.permute.xlu0 %9876
    %9880 = vset.pattern.permute.xlu0 0
    %9881 = vperm.xlu0 %9880, %v9755
    %v9882 = vpop.permute.xlu0 %9881
    %9885 = vset.pattern.permute.xlu0 0
    %9886 = vperm.xlu0 %9885, %v9756
    %v9887 = vpop.permute.xlu0 %9886
    %9890 = vset.pattern.permute.xlu0 0
    %9891 = vperm.xlu0 %9890, %v9757
    %v9892 = vpop.permute.xlu0 %9891
    %9895 = vset.pattern.permute.xlu0 0
    %9896 = vperm.xlu0 %9895, %v9758
    %v9897 = vpop.permute.xlu0 %9896
    %9900 = vset.pattern.permute.xlu0 0
    %9901 = vperm.xlu0 %9900, %v9759
    %v9902 = vpop.permute.xlu0 %9901
    %9905 = vset.pattern.permute.xlu0 0
    %9906 = vperm.xlu0 %9905, %v9760
    %v9907 = vpop.permute.xlu0 %9906
    %9910 = vset.pattern.permute.xlu0 0
    %9911 = vperm.xlu0 %9910, %v9761
    %v9912 = vpop.permute.xlu0 %9911
    %9915 = vset.pattern.permute.xlu0 0
    %9916 = vperm.xlu0 %9915, %v9762
    %v9917 = vpop.permute.xlu0 %9916
    %9920 = vset.pattern.permute.xlu0 0
    %9921 = vperm.xlu0 %9920, %v9763
    %v9922 = vpop.permute.xlu0 %9921
    %v9924 = vmul.f32 %v9767, %v506
    %v9925 = vmul.f32 %v9772, %v511
    %v9926 = vmul.f32 %v9777, %v516
    %v9927 = vmul.f32 %v9782, %v521
    %v9928 = vmul.f32 %v9787, %v526
    %v9929 = vmul.f32 %v9792, %v531
    %v9930 = vmul.f32 %v9797, %v536
    %v9931 = vmul.f32 %v9802, %v541
    %v9932 = vmul.f32 %v9807, %v546
    %v9933 = vmul.f32 %v9812, %v551
    %v9934 = vmul.f32 %v9817, %v556
    %v9935 = vmul.f32 %v9822, %v561
    %v9936 = vmul.f32 %v9827, %v566
    %v9937 = vmul.f32 %v9832, %v571
    %v9938 = vmul.f32 %v9837, %v576
    %v9939 = vmul.f32 %v9842, %v581
    %v9940 = vmul.f32 %v9847, %v586
    %v9941 = vmul.f32 %v9852, %v591
    %v9942 = vmul.f32 %v9857, %v596
    %v9943 = vmul.f32 %v9862, %v601
    %v9944 = vmul.f32 %v9867, %v606
    %v9945 = vmul.f32 %v9872, %v611
    %v9946 = vmul.f32 %v9877, %v616
    %v9947 = vmul.f32 %v9882, %v621
    %v9948 = vmul.f32 %v9887, %v626
    %v9949 = vmul.f32 %v9892, %v631
    %v9950 = vmul.f32 %v9897, %v636
    %v9951 = vmul.f32 %v9902, %v641
    %v9952 = vmul.f32 %v9907, %v646
    %v9953 = vmul.f32 %v9912, %v651
    %v9954 = vmul.f32 %v9917, %v656
    %v9955 = vmul.f32 %v9922, %v661
    %v9956 = vrot.slane %v9924, 4
    %v9957 = vadd.f32 %v9924, %v9956
    %v9958 = vrot.slane %v9957, 2
    %v9959 = vadd.f32 %v9957, %v9958
    %v9960 = vrot.slane %v9959, 1
    %v9961 = vadd.f32 %v9959, %v9960
    %v9962 = vrot.slane %v9925, 4
    %v9963 = vadd.f32 %v9925, %v9962
    %v9964 = vrot.slane %v9963, 2
    %v9965 = vadd.f32 %v9963, %v9964
    %v9966 = vrot.slane %v9965, 1
    %v9967 = vadd.f32 %v9965, %v9966
    %v9968 = vrot.slane %v9926, 4
    %v9969 = vadd.f32 %v9926, %v9968
    %v9970 = vrot.slane %v9969, 2
    %v9971 = vadd.f32 %v9969, %v9970
    %v9972 = vrot.slane %v9971, 1
    %v9973 = vadd.f32 %v9971, %v9972
    %v9974 = vrot.slane %v9927, 4
    %v9975 = vadd.f32 %v9927, %v9974
    %v9976 = vrot.slane %v9975, 2
    %v9977 = vadd.f32 %v9975, %v9976
    %v9978 = vrot.slane %v9977, 1
    %v9979 = vadd.f32 %v9977, %v9978
    %v9980 = vrot.slane %v9928, 4
    %v9981 = vadd.f32 %v9928, %v9980
    %v9982 = vrot.slane %v9981, 2
    %v9983 = vadd.f32 %v9981, %v9982
    %v9984 = vrot.slane %v9983, 1
    %v9985 = vadd.f32 %v9983, %v9984
    %v9986 = vrot.slane %v9929, 4
    %v9987 = vadd.f32 %v9929, %v9986
    %v9988 = vrot.slane %v9987, 2
    %v9989 = vadd.f32 %v9987, %v9988
    %v9990 = vrot.slane %v9989, 1
    %v9991 = vadd.f32 %v9989, %v9990
    %v9992 = vrot.slane %v9930, 4
    %v9993 = vadd.f32 %v9930, %v9992
    %v9994 = vrot.slane %v9993, 2
    %v9995 = vadd.f32 %v9993, %v9994
    %v9996 = vrot.slane %v9995, 1
    %v9997 = vadd.f32 %v9995, %v9996
    %v9998 = vrot.slane %v9931, 4
    %v9999 = vadd.f32 %v9931, %v9998
    %v10000 = vrot.slane %v9999, 2
    %v10001 = vadd.f32 %v9999, %v10000
    %v10002 = vrot.slane %v10001, 1
    %v10003 = vadd.f32 %v10001, %v10002
    %v10004 = vrot.slane %v9932, 4
    %v10005 = vadd.f32 %v9932, %v10004
    %v10006 = vrot.slane %v10005, 2
    %v10007 = vadd.f32 %v10005, %v10006
    %v10008 = vrot.slane %v10007, 1
    %v10009 = vadd.f32 %v10007, %v10008
    %v10010 = vrot.slane %v9933, 4
    %v10011 = vadd.f32 %v9933, %v10010
    %v10012 = vrot.slane %v10011, 2
    %v10013 = vadd.f32 %v10011, %v10012
    %v10014 = vrot.slane %v10013, 1
    %v10015 = vadd.f32 %v10013, %v10014
    %v10016 = vrot.slane %v9934, 4
    %v10017 = vadd.f32 %v9934, %v10016
    %v10018 = vrot.slane %v10017, 2
    %v10019 = vadd.f32 %v10017, %v10018
    %v10020 = vrot.slane %v10019, 1
    %v10021 = vadd.f32 %v10019, %v10020
    %v10022 = vrot.slane %v9935, 4
    %v10023 = vadd.f32 %v9935, %v10022
    %v10024 = vrot.slane %v10023, 2
    %v10025 = vadd.f32 %v10023, %v10024
    %v10026 = vrot.slane %v10025, 1
    %v10027 = vadd.f32 %v10025, %v10026
    %v10028 = vrot.slane %v9936, 4
    %v10029 = vadd.f32 %v9936, %v10028
    %v10030 = vrot.slane %v10029, 2
    %v10031 = vadd.f32 %v10029, %v10030
    %v10032 = vrot.slane %v10031, 1
    %v10033 = vadd.f32 %v10031, %v10032
    %v10034 = vrot.slane %v9937, 4
    %v10035 = vadd.f32 %v9937, %v10034
    %v10036 = vrot.slane %v10035, 2
    %v10037 = vadd.f32 %v10035, %v10036
    %v10038 = vrot.slane %v10037, 1
    %v10039 = vadd.f32 %v10037, %v10038
    %v10040 = vrot.slane %v9938, 4
    %v10041 = vadd.f32 %v9938, %v10040
    %v10042 = vrot.slane %v10041, 2
    %v10043 = vadd.f32 %v10041, %v10042
    %v10044 = vrot.slane %v10043, 1
    %v10045 = vadd.f32 %v10043, %v10044
    %v10046 = vrot.slane %v9939, 4
    %v10047 = vadd.f32 %v9939, %v10046
    %v10048 = vrot.slane %v10047, 2
    %v10049 = vadd.f32 %v10047, %v10048
    %v10050 = vrot.slane %v10049, 1
    %v10051 = vadd.f32 %v10049, %v10050
    %v10052 = vrot.slane %v9940, 4
    %v10053 = vadd.f32 %v9940, %v10052
    %v10054 = vrot.slane %v10053, 2
    %v10055 = vadd.f32 %v10053, %v10054
    %v10056 = vrot.slane %v10055, 1
    %v10057 = vadd.f32 %v10055, %v10056
    %v10058 = vrot.slane %v9941, 4
    %v10059 = vadd.f32 %v9941, %v10058
    %v10060 = vrot.slane %v10059, 2
    %v10061 = vadd.f32 %v10059, %v10060
    %v10062 = vrot.slane %v10061, 1
    %v10063 = vadd.f32 %v10061, %v10062
    %v10064 = vrot.slane %v9942, 4
    %v10065 = vadd.f32 %v9942, %v10064
    %v10066 = vrot.slane %v10065, 2
    %v10067 = vadd.f32 %v10065, %v10066
    %v10068 = vrot.slane %v10067, 1
    %v10069 = vadd.f32 %v10067, %v10068
    %v10070 = vrot.slane %v9943, 4
    %v10071 = vadd.f32 %v9943, %v10070
    %v10072 = vrot.slane %v10071, 2
    %v10073 = vadd.f32 %v10071, %v10072
    %v10074 = vrot.slane %v10073, 1
    %v10075 = vadd.f32 %v10073, %v10074
    %v10076 = vrot.slane %v9944, 4
    %v10077 = vadd.f32 %v9944, %v10076
    %v10078 = vrot.slane %v10077, 2
    %v10079 = vadd.f32 %v10077, %v10078
    %v10080 = vrot.slane %v10079, 1
    %v10081 = vadd.f32 %v10079, %v10080
    %v10082 = vrot.slane %v9945, 4
    %v10083 = vadd.f32 %v9945, %v10082
    %v10084 = vrot.slane %v10083, 2
    %v10085 = vadd.f32 %v10083, %v10084
    %v10086 = vrot.slane %v10085, 1
    %v10087 = vadd.f32 %v10085, %v10086
    %v10088 = vrot.slane %v9946, 4
    %v10089 = vadd.f32 %v9946, %v10088
    %v10090 = vrot.slane %v10089, 2
    %v10091 = vadd.f32 %v10089, %v10090
    %v10092 = vrot.slane %v10091, 1
    %v10093 = vadd.f32 %v10091, %v10092
    %v10094 = vrot.slane %v9947, 4
    %v10095 = vadd.f32 %v9947, %v10094
    %v10096 = vrot.slane %v10095, 2
    %v10097 = vadd.f32 %v10095, %v10096
    %v10098 = vrot.slane %v10097, 1
    %v10099 = vadd.f32 %v10097, %v10098
    %v10100 = vrot.slane %v9948, 4
    %v10101 = vadd.f32 %v9948, %v10100
    %v10102 = vrot.slane %v10101, 2
    %v10103 = vadd.f32 %v10101, %v10102
    %v10104 = vrot.slane %v10103, 1
    %v10105 = vadd.f32 %v10103, %v10104
    %v10106 = vrot.slane %v9949, 4
    %v10107 = vadd.f32 %v9949, %v10106
    %v10108 = vrot.slane %v10107, 2
    %v10109 = vadd.f32 %v10107, %v10108
    %v10110 = vrot.slane %v10109, 1
    %v10111 = vadd.f32 %v10109, %v10110
    %v10112 = vrot.slane %v9950, 4
    %v10113 = vadd.f32 %v9950, %v10112
    %v10114 = vrot.slane %v10113, 2
    %v10115 = vadd.f32 %v10113, %v10114
    %v10116 = vrot.slane %v10115, 1
    %v10117 = vadd.f32 %v10115, %v10116
    %v10118 = vrot.slane %v9951, 4
    %v10119 = vadd.f32 %v9951, %v10118
    %v10120 = vrot.slane %v10119, 2
    %v10121 = vadd.f32 %v10119, %v10120
    %v10122 = vrot.slane %v10121, 1
    %v10123 = vadd.f32 %v10121, %v10122
    %v10124 = vrot.slane %v9952, 4
    %v10125 = vadd.f32 %v9952, %v10124
    %v10126 = vrot.slane %v10125, 2
    %v10127 = vadd.f32 %v10125, %v10126
    %v10128 = vrot.slane %v10127, 1
    %v10129 = vadd.f32 %v10127, %v10128
    %v10130 = vrot.slane %v9953, 4
    %v10131 = vadd.f32 %v9953, %v10130
    %v10132 = vrot.slane %v10131, 2
    %v10133 = vadd.f32 %v10131, %v10132
    %v10134 = vrot.slane %v10133, 1
    %v10135 = vadd.f32 %v10133, %v10134
    %v10136 = vrot.slane %v9954, 4
    %v10137 = vadd.f32 %v9954, %v10136
    %v10138 = vrot.slane %v10137, 2
    %v10139 = vadd.f32 %v10137, %v10138
    %v10140 = vrot.slane %v10139, 1
    %v10141 = vadd.f32 %v10139, %v10140
    %v10142 = vrot.slane %v9955, 4
    %v10143 = vadd.f32 %v9955, %v10142
    %v10144 = vrot.slane %v10143, 2
    %v10145 = vadd.f32 %v10143, %v10144
    %v10146 = vrot.slane %v10145, 1
    %v10147 = vadd.f32 %v10145, %v10146
    %v10180 = vsel %vm1252, %v9967, %v9961
    %v10181 = vsel %vm1254, %v9973, %v10180
    %v10182 = vsel %vm1256, %v9979, %v10181
    %v10183 = vsel %vm1258, %v9985, %v10182
    %v10184 = vsel %vm1260, %v9991, %v10183
    %v10185 = vsel %vm1262, %v9997, %v10184
    %v10186 = vsel %vm1264, %v10003, %v10185
    %v10187 = vsel %vm1252, %v10015, %v10009
    %v10188 = vsel %vm1254, %v10021, %v10187
    %v10189 = vsel %vm1256, %v10027, %v10188
    %v10190 = vsel %vm1258, %v10033, %v10189
    %v10191 = vsel %vm1260, %v10039, %v10190
    %v10192 = vsel %vm1262, %v10045, %v10191
    %v10193 = vsel %vm1264, %v10051, %v10192
    %v10194 = vsel %vm1252, %v10063, %v10057
    %v10195 = vsel %vm1254, %v10069, %v10194
    %v10196 = vsel %vm1256, %v10075, %v10195
    %v10197 = vsel %vm1258, %v10081, %v10196
    %v10198 = vsel %vm1260, %v10087, %v10197
    %v10199 = vsel %vm1262, %v10093, %v10198
    %v10200 = vsel %vm1264, %v10099, %v10199
    %v10201 = vsel %vm1252, %v10111, %v10105
    %v10202 = vsel %vm1254, %v10117, %v10201
    %v10203 = vsel %vm1256, %v10123, %v10202
    %v10204 = vsel %vm1258, %v10129, %v10203
    %v10205 = vsel %vm1260, %v10135, %v10204
    %v10206 = vsel %vm1262, %v10141, %v10205
    %v10207 = vsel %vm1264, %v10147, %v10206
    %10212 = vst [vmem:[#allocation3] sm:$0xff] %v10186
    %10213 = vst [vmem:[#allocation3 + $0x8] sm:$0xff] %v10193
    %10214 = vst [vmem:[#allocation3 + $0x10] sm:$0xff] %v10200
    %10215 = vst [vmem:[#allocation3 + $0x18] sm:$0xff] %v10207
    %v10216 = vlaneseq
    %v10217 = vshrl.u32 %v10216, 7
    %v10218 = vsub.s32 %v1123, %v10217
    %v10219 = vrot.slane %v9767, %v10218
    %v10220 = vlaneseq
    %v10221 = vshrl.u32 %v10220, 7
    %v10222 = vsub.s32 %v1123, %v10221
    %v10223 = vrot.slane %v9772, %v10222
    %v10224 = vlaneseq
    %v10225 = vshrl.u32 %v10224, 7
    %v10226 = vsub.s32 %v1123, %v10225
    %v10227 = vrot.slane %v9777, %v10226
    %v10228 = vlaneseq
    %v10229 = vshrl.u32 %v10228, 7
    %v10230 = vsub.s32 %v1123, %v10229
    %v10231 = vrot.slane %v9782, %v10230
    %v10232 = vlaneseq
    %v10233 = vshrl.u32 %v10232, 7
    %v10234 = vsub.s32 %v1123, %v10233
    %v10235 = vrot.slane %v9787, %v10234
    %v10236 = vlaneseq
    %v10237 = vshrl.u32 %v10236, 7
    %v10238 = vsub.s32 %v1123, %v10237
    %v10239 = vrot.slane %v9792, %v10238
    %v10240 = vlaneseq
    %v10241 = vshrl.u32 %v10240, 7
    %v10242 = vsub.s32 %v1123, %v10241
    %v10243 = vrot.slane %v9797, %v10242
    %v10244 = vlaneseq
    %v10245 = vshrl.u32 %v10244, 7
    %v10246 = vsub.s32 %v1123, %v10245
    %v10247 = vrot.slane %v9802, %v10246
    %v10248 = vlaneseq
    %v10249 = vshrl.u32 %v10248, 7
    %v10250 = vsub.s32 %v1123, %v10249
    %v10251 = vrot.slane %v9807, %v10250
    %v10252 = vlaneseq
    %v10253 = vshrl.u32 %v10252, 7
    %v10254 = vsub.s32 %v1123, %v10253
    %v10255 = vrot.slane %v9812, %v10254
    %v10256 = vlaneseq
    %v10257 = vshrl.u32 %v10256, 7
    %v10258 = vsub.s32 %v1123, %v10257
    %v10259 = vrot.slane %v9817, %v10258
    %v10260 = vlaneseq
    %v10261 = vshrl.u32 %v10260, 7
    %v10262 = vsub.s32 %v1123, %v10261
    %v10263 = vrot.slane %v9822, %v10262
    %v10264 = vlaneseq
    %v10265 = vshrl.u32 %v10264, 7
    %v10266 = vsub.s32 %v1123, %v10265
    %v10267 = vrot.slane %v9827, %v10266
    %v10268 = vlaneseq
    %v10269 = vshrl.u32 %v10268, 7
    %v10270 = vsub.s32 %v1123, %v10269
    %v10271 = vrot.slane %v9832, %v10270
    %v10272 = vlaneseq
    %v10273 = vshrl.u32 %v10272, 7
    %v10274 = vsub.s32 %v1123, %v10273
    %v10275 = vrot.slane %v9837, %v10274
    %v10276 = vlaneseq
    %v10277 = vshrl.u32 %v10276, 7
    %v10278 = vsub.s32 %v1123, %v10277
    %v10279 = vrot.slane %v9842, %v10278
    %v10280 = vlaneseq
    %v10281 = vshrl.u32 %v10280, 7
    %v10282 = vsub.s32 %v1123, %v10281
    %v10283 = vrot.slane %v9847, %v10282
    %v10284 = vlaneseq
    %v10285 = vshrl.u32 %v10284, 7
    %v10286 = vsub.s32 %v1123, %v10285
    %v10287 = vrot.slane %v9852, %v10286
    %v10288 = vlaneseq
    %v10289 = vshrl.u32 %v10288, 7
    %v10290 = vsub.s32 %v1123, %v10289
    %v10291 = vrot.slane %v9857, %v10290
    %v10292 = vlaneseq
    %v10293 = vshrl.u32 %v10292, 7
    %v10294 = vsub.s32 %v1123, %v10293
    %v10295 = vrot.slane %v9862, %v10294
    %v10296 = vlaneseq
    %v10297 = vshrl.u32 %v10296, 7
    %v10298 = vsub.s32 %v1123, %v10297
    %v10299 = vrot.slane %v9867, %v10298
    %v10300 = vlaneseq
    %v10301 = vshrl.u32 %v10300, 7
    %v10302 = vsub.s32 %v1123, %v10301
    %v10303 = vrot.slane %v9872, %v10302
    %v10304 = vlaneseq
    %v10305 = vshrl.u32 %v10304, 7
    %v10306 = vsub.s32 %v1123, %v10305
    %v10307 = vrot.slane %v9877, %v10306
    %v10308 = vlaneseq
    %v10309 = vshrl.u32 %v10308, 7
    %v10310 = vsub.s32 %v1123, %v10309
    %v10311 = vrot.slane %v9882, %v10310
    %v10312 = vlaneseq
    %v10313 = vshrl.u32 %v10312, 7
    %v10314 = vsub.s32 %v1123, %v10313
    %v10315 = vrot.slane %v9887, %v10314
    %v10316 = vlaneseq
    %v10317 = vshrl.u32 %v10316, 7
    %v10318 = vsub.s32 %v1123, %v10317
    %v10319 = vrot.slane %v9892, %v10318
    %v10320 = vlaneseq
    %v10321 = vshrl.u32 %v10320, 7
    %v10322 = vsub.s32 %v1123, %v10321
    %v10323 = vrot.slane %v9897, %v10322
    %v10324 = vlaneseq
    %v10325 = vshrl.u32 %v10324, 7
    %v10326 = vsub.s32 %v1123, %v10325
    %v10327 = vrot.slane %v9902, %v10326
    %v10328 = vlaneseq
    %v10329 = vshrl.u32 %v10328, 7
    %v10330 = vsub.s32 %v1123, %v10329
    %v10331 = vrot.slane %v9907, %v10330
    %v10332 = vlaneseq
    %v10333 = vshrl.u32 %v10332, 7
    %v10334 = vsub.s32 %v1123, %v10333
    %v10335 = vrot.slane %v9912, %v10334
    %v10336 = vlaneseq
    %v10337 = vshrl.u32 %v10336, 7
    %v10338 = vsub.s32 %v1123, %v10337
    %v10339 = vrot.slane %v9917, %v10338
    %v10340 = vlaneseq
    %v10341 = vshrl.u32 %v10340, 7
    %v10342 = vsub.s32 %v1123, %v10341
    %v10343 = vrot.slane %v9922, %v10342
    %v10344 = vsel %vm1252, %v10223, %v10219
    %v10345 = vsel %vm1254, %v10227, %v10344
    %v10346 = vsel %vm1256, %v10231, %v10345
    %v10347 = vsel %vm1258, %v10235, %v10346
    %v10348 = vsel %vm1260, %v10239, %v10347
    %v10349 = vsel %vm1262, %v10243, %v10348
    %v10350 = vsel %vm1264, %v10247, %v10349
    %v10351 = vsel %vm1252, %v10255, %v10251
    %v10352 = vsel %vm1254, %v10259, %v10351
    %v10353 = vsel %vm1256, %v10263, %v10352
    %v10354 = vsel %vm1258, %v10267, %v10353
    %v10355 = vsel %vm1260, %v10271, %v10354
    %v10356 = vsel %vm1262, %v10275, %v10355
    %v10357 = vsel %vm1264, %v10279, %v10356
    %v10358 = vsel %vm1252, %v10287, %v10283
    %v10359 = vsel %vm1254, %v10291, %v10358
    %v10360 = vsel %vm1256, %v10295, %v10359
    %v10361 = vsel %vm1258, %v10299, %v10360
    %v10362 = vsel %vm1260, %v10303, %v10361
    %v10363 = vsel %vm1262, %v10307, %v10362
    %v10364 = vsel %vm1264, %v10311, %v10363
    %v10365 = vsel %vm1252, %v10319, %v10315
    %v10366 = vsel %vm1254, %v10323, %v10365
    %v10367 = vsel %vm1256, %v10327, %v10366
    %v10368 = vsel %vm1258, %v10331, %v10367
    %v10369 = vsel %vm1260, %v10335, %v10368
    %v10370 = vsel %vm1262, %v10339, %v10369
    %v10371 = vsel %vm1264, %v10343, %v10370
    %10376 = vst.msk [vmem:[%s6] sm:$0xff] %vm1291, %v10350
    %10377 = vst.msk [vmem:[%s6 + $0x8] sm:$0xff] %vm1291, %v10357
    %10378 = vst.msk [vmem:[%s6 + $0x10] sm:$0xff] %vm1291, %v10364
    %10379 = vst.msk [vmem:[%s6 + $0x18] sm:$0xff] %vm1291, %v10371
    // Predicated region
    $region22: #{tpu_custom_call.1} parent=1 // pred_check
      _
    $region23: #{tpu_custom_call.1} parent=1 // pred_check_branch
      %10381 = sbr.rel (0) target = $region25
    $region24: #{tpu_custom_call.1} parent=1 // pred_region
      %s10383 = ssub.s32 512, 512
      %10384 = vsyncadd [#allocation4], %s10383
      %s10385 = sshll.u32 [#allocation3], 4
      %s10386 = int_to_ptr.vmem [resolvable:$true] %s10385
      %10391 = dma.vmem_to_hbm [thread:$0]  %s10386, 512, %s5, [#allocation4], 128, 128, 8
    $region25: #{tpu_custom_call.1} parent=1 // pred_fallthru
      _
    // Predicated region
    $region26: #{tpu_custom_call.1} parent=1 // pred_check
      _
    $region27: #{tpu_custom_call.1} parent=1 // pred_check_branch
      %10393 = sbr.rel (0) target = $region29
    $region28: #{tpu_custom_call.1} parent=1 // pred_region
      _
    $region29: #{tpu_custom_call.1} parent=1 // pred_fallthru
      _
    // Predicated region
    $region30: #{tpu_custom_call.1} parent=1 // pred_check
      _
    $region31: #{tpu_custom_call.1} parent=1 // pred_check_branch
      %10395 = sbr.rel (0) target = $region33
    $region32: #{tpu_custom_call.1} parent=1 // pred_region
      %10396 = dma.done [#allocation4], 512
    $region33: #{tpu_custom_call.1} parent=1 // pred_fallthru
      _
    // Predicated region
    $region34: #{tpu_custom_call.1} parent=1 // pred_check
      _
    $region35: #{tpu_custom_call.1} parent=1 // pred_check_branch
      %10398 = sbr.rel (0) target = $region37
    $region36: #{tpu_custom_call.1} parent=1 // pred_region
      _
    $region37: #{tpu_custom_call.1} parent=1 // pred_fallthru
      _
    %10399 = vsyncpa [#allocation4], 1

</llo_original>
